<compile_context>
chip_gen: v6e
topology: v6e:2x2x1
jax: 0.10.0
libtpu: 0.0.40
codegen_flags: <defaults>
</compile_context>

<pallas_src>
import jax
import jax.numpy as jnp
from jax.experimental import pallas as pl
from jax.experimental.pallas import tpu as pltpu


def _round_up(x, m):
    return (x + m - 1) // m * m


# ---------------------------------------------------------------------------
# Fused encoder kernel builder
# ---------------------------------------------------------------------------
def _make_encoder_kernel(H, W, C, N, n_conv, slope):
    Hp, Wp = H + 2, W + 2
    P = Hp * Wp                        # flattened padded plane (row-major)
    Pp = _round_up(P, 128)             # per-image lane extent (lane aligned)
    NP = N * Pp                        # batch folded onto the lane axis
    LS = _round_up(Wp + 1, 128)        # lane slack at both ends (>= max |tap|)
    L = LS + NP + LS                   # activation buffer lane extent
    K = 9 * C                          # im2col contraction size
    Kp = _round_up(K, 128)             # MXU-aligned contraction size
    n_res = (n_conv - 2) // 2

    def lrelu(a):
        return jnp.where(a > 0, a, slope * a)

    def kernel(x_ref, w_ref, b_ref, mask_ref, o_ref, act_a, act_b, col):
        mask = mask_ref[...]                               # (1, NP) lane-dense

        # One-off init: only the slack lanes of the activation buffers and the
        # K-padding rows of the im2col scratch.  Interior lanes are always
        # fully overwritten, so no full-buffer copies.
        zs = jnp.zeros((C, LS), jnp.float32)
        for buf in (act_a, act_b):
            buf[:, pl.ds(0, LS)] = zs
            buf[:, pl.ds(LS + NP, LS)] = zs
        if Kp > K:
            col[pl.ds(K, Kp - K), :] = jnp.zeros((Kp - K, NP), jnp.float32)

        def build_col(src):
            # Tap (kh, kw) == static lane shift d of the flattened padded
            # plane; stack the 9 shifted planes along the contraction axis.
            # Interior output columns only ever read lanes of their own image,
            # so the batch fold is safe (border/slack columns are masked).
            for k in range(9):
                kh, kw = divmod(k, 3)
                d = (kh - 1) * Wp + (kw - 1)
                col[pl.ds(k * C, C), :] = src[:, pl.ds(LS + d, NP)]

        def conv(src, layer, act, res=None):
            build_col(src)
            y = jnp.dot(w_ref[layer], col[...],            # (C,Kp)@(Kp,NP)
                        preferred_element_type=jnp.float32)
            y = y + b_ref[layer]                           # (C,1) lane bcast
            if act:
                y = lrelu(y)
            if res is not None:
                y = y + res
            return y * mask   # zero border/slack cols -> next conv's padding

        def emit(val, dst):
            dst[:, pl.ds(LS, NP)] = val

        # conv1 / conv2 (+ LeakyReLU); conv1 taps read x_ref directly.
        h = conv(x_ref, 0, True)
        emit(h, act_a)
        h = conv(act_a, 1, True)
        if n_res == 0:
            o_ref[...] = h
            return
        emit(h, act_b)

        # Residual blocks: out = conv_b(lrelu(conv_a(h))) + h
        cur, other = act_b, act_a
        for i in range(n_res):
            la, lb = 2 + 2 * i, 3 + 2 * i
            t = conv(cur, la, True)
            emit(t, other)
            hh = conv(other, lb, False, res=cur[:, pl.ds(LS, NP)])
            if i == n_res - 1:
                o_ref[...] = hh                            # lane-dense store
            else:
                emit(hh, cur)

    return kernel, P, Pp, NP, LS, L, Kp


# ---------------------------------------------------------------------------
# Wrapper: layout prep + single pallas_call
# ---------------------------------------------------------------------------
def encoder_forward_pallas(params, x_nchw, *, slope=0.2):
    N, Cin, H, W = x_nchw.shape
    C = params["conv1"]["w"].shape[-1]          # hidden channels
    assert Cin <= C, "conv1 input channels are zero-padded up to hidden size"
    n_res = len(params["resblocks"])
    n_conv = 2 + 2 * n_res
    Hp, Wp = H + 2, W + 2

    kernel, P, Pp, NP, LS, L, Kp = _make_encoder_kernel(
        H, W, C, N, n_conv, slope)

    # --- weights -> GEMM-ready (n_conv, C_out, Kp); biases -> (n_conv, C, 1)
    def to_gemm(w_hwio):
        ci = w_hwio.shape[2]
        w = jnp.pad(w_hwio, ((0, 0), (0, 0), (0, C - ci), (0, 0)))
        w = jnp.transpose(w, (3, 0, 1, 2)).reshape(C, 9 * C)  # (Cout, 9*Cin)
        return jnp.pad(w, ((0, 0), (0, Kp - 9 * C)))

    ws = [to_gemm(params["conv1"]["w"]), to_gemm(params["conv2"]["w"])]
    bs = [params["conv1"]["b"], params["conv2"]["b"]]
    for rb in params["resblocks"]:
        ws += [to_gemm(rb["conv_a"]["w"]), to_gemm(rb["conv_b"]["w"])]
        bs += [rb["conv_a"]["b"], rb["conv_b"]["b"]]
    w_all = jnp.stack(ws)                                  # (n_conv, C, Kp)
    b_all = jnp.stack(bs).reshape(n_conv, C, 1)

    # --- input: NCHW -> (C, LS + N*Pp + LS), channels on sublanes ----------
    x = jnp.pad(x_nchw, ((0, 0), (0, C - Cin), (0, 0), (0, 0)))
    x = jnp.pad(x, ((0, 0), (0, 0), (1, 1), (1, 1)))       # spatial zero pad
    x = jnp.transpose(x, (1, 0, 2, 3)).reshape(C, N, P)
    x = jnp.pad(x, ((0, 0), (0, 0), (0, Pp - P))).reshape(C, NP)
    x_buf = jnp.pad(x, ((0, 0), (LS, LS)))                 # lane slack

    # --- interior-pixel mask, lane-dense (1, NP) ----------------------------
    pidx = jnp.arange(P)
    r, c = pidx // Wp, pidx % Wp
    m = ((r >= 1) & (r <= H) & (c >= 1) & (c <= W)).astype(jnp.float32)
    mask = jnp.tile(jnp.pad(m, (0, Pp - P)), (N,)).reshape(1, NP)

    out = pl.pallas_call(
        kernel,
        out_shape=jax.ShapeDtypeStruct((C, NP), jnp.float32),
        grid=(1,),
        in_specs=[
            pl.BlockSpec((C, L), lambda i: (0, 0)),
            pl.BlockSpec((n_conv, C, Kp), lambda i: (0, 0, 0)),
            pl.BlockSpec((n_conv, C, 1), lambda i: (0, 0, 0)),
            pl.BlockSpec((1, NP), lambda i: (0, 0)),
        ],
        out_specs=pl.BlockSpec((C, NP), lambda i: (0, 0)),
        scratch_shapes=[pltpu.VMEM((C, L), jnp.float32),     # activation A
                        pltpu.VMEM((C, L), jnp.float32),     # activation B
                        pltpu.VMEM((Kp, NP), jnp.float32)],  # im2col
        compiler_params=pltpu.CompilerParams(
            dimension_semantics=("arbitrary",)),
    )(x_buf, w_all, b_all, mask)

    # (C, N*Pp) -> interior pixels -> NCHW like the PyTorch module.
    out = out.reshape(C, N, Pp)[:, :, :P]
    out = out.reshape(C, N, Hp, Wp)[:, :, 1:-1, 1:-1]
    return jnp.transpose(out, (1, 0, 2, 3))


# ---------------------------------------------------------------------------
# Parameter init (matches PyTorch Conv2d default init style)
# ---------------------------------------------------------------------------
def init_encoder_params(key, in_channels=3, hidden_channels=16, n_layers=2):
    def conv_init(k, cin, cout):
        kw_, kb_ = jax.random.split(k)
        bound = 1.0 / jnp.sqrt(cin * 9)
        w = jax.random.uniform(kw_, (3, 3, cin, cout), jnp.float32,
                               -bound, bound)
        b = jax.random.uniform(kb_, (cout,), jnp.float32, -bound, bound)
        return {"w": w, "b": b}

    keys = jax.random.split(key, 2 + 2 * n_layers)
    params = {
        "conv1": conv_init(keys[0], in_channels, hidden_channels),
        "conv2": conv_init(keys[1], hidden_channels, hidden_channels),
        "resblocks": [],
    }
    for i in range(n_layers):
        params["resblocks"].append({
            "conv_a": conv_init(keys[2 + 2 * i], hidden_channels,
                                hidden_channels),
            "conv_b": conv_init(keys[3 + 2 * i], hidden_channels,
                                hidden_channels),
        })
    return params


# ---------------------------------------------------------------------------
# Pure-JAX reference (lax.conv, HIGHEST precision) for validation
# ---------------------------------------------------------------------------
def _conv_ref(x_nhwc, w_hwio, b, act, slope=0.2, residual=None):
    y = jax.lax.conv_general_dilated(
        x_nhwc, w_hwio, window_strides=(1, 1), padding="SAME",
        dimension_numbers=("NHWC", "HWIO", "NHWC"),
        precision=jax.lax.Precision.HIGHEST)
    y = y + b
    if act:
        y = jnp.where(y > 0, y, slope * y)
    if residual is not None:
        y = y + residual
    return y


def encoder_forward_ref(params, x_nchw):
    x = jnp.transpose(x_nchw, (0, 2, 3, 1))
    h = _conv_ref(x, params["conv1"]["w"], params["conv1"]["b"], True)
    h = _conv_ref(h, params["conv2"]["w"], params["conv2"]["b"], True)
    for rb in params["resblocks"]:
        t = _conv_ref(h, rb["conv_a"]["w"], rb["conv_a"]["b"], True)
        h = _conv_ref(t, rb["conv_b"]["w"], rb["conv_b"]["b"], False,
                      residual=h)
    return jnp.transpose(h, (0, 3, 1, 2))


if __name__ == "__main__":
    key = jax.random.PRNGKey(0)
    k_params, k_x = jax.random.split(key)

    in_channels, hidden_channels, n_layers = 3, 16, 2
    params = init_encoder_params(k_params, in_channels, hidden_channels,
                                 n_layers)

    # PyTorch conv input convention is NCHW.
    x = jax.random.normal(k_x, (2, in_channels, 16, 16), dtype=jnp.float32)

    fwd = jax.jit(encoder_forward_pallas)
    out = jax.block_until_ready(fwd(params, x))

    ref = jax.block_until_ready(encoder_forward_ref(params, x))
    assert out.shape == (2, hidden_channels, 16, 16), out.shape
    max_err = float(jnp.max(jnp.abs(out - ref)))
    # f32 MXU-pass differences vs XLA's conv path can reach ~1e-3 across the
    # 6 fused layers; any structural bug would be >= 1e-1, so this is still a
    # meaningful check.
    assert max_err < 5e-3, f"max abs error vs reference: {max_err}"

    print("KERNEL_OK")
</pallas_src>

<mosaic_0001>
module attributes {stable_mosaic.version = 11 : i64} {
  func.func @kernel(%arg0: i32, %arg1: memref<16x1024xf32, #tpu.memory_space<vmem>>, %arg2: memref<6x16x256xf32, #tpu.memory_space<vmem>>, %arg3: memref<6x16x1xf32, #tpu.memory_space<vmem>>, %arg4: memref<1x768xf32, #tpu.memory_space<vmem>>, %arg5: memref<16x768xf32, #tpu.memory_space<vmem>>, %arg6: memref<16x1024xf32, #tpu.memory_space<vmem>>, %arg7: memref<16x1024xf32, #tpu.memory_space<vmem>>, %arg8: memref<256x768xf32, #tpu.memory_space<vmem>>) attributes {dimension_semantics = [#tpu.dimension_semantics<arbitrary>], iteration_bounds = array<i64: 1>, scalar_prefetch = 0 : i64, scratch_operands = 3 : i64, tpu.core_type = #tpu.core_type<tc>, window_params = [{pipeline_mode = #tpu.pipeline_mode<synchronous>, transform_indices = @transform_0, window_bounds = array<i64: 16, 1024>}, {pipeline_mode = #tpu.pipeline_mode<synchronous>, transform_indices = @transform_1, window_bounds = array<i64: 6, 16, 256>}, {pipeline_mode = #tpu.pipeline_mode<synchronous>, transform_indices = @transform_2, window_bounds = array<i64: 6, 16, 1>}, {pipeline_mode = #tpu.pipeline_mode<synchronous>, transform_indices = @transform_3, window_bounds = array<i64: 1, 768>}, {pipeline_mode = #tpu.pipeline_mode<synchronous>, transform_indices = @transform_4, window_bounds = array<i64: 16, 768>}]} {
    %c0 = arith.constant 0 : index
    %c0_0 = arith.constant 0 : index
    %0 = vector.load %arg4[%c0, %c0_0] : memref<1x768xf32, #tpu.memory_space<vmem>>, vector<1x768xf32>
    %cst = arith.constant 0.000000e+00 : f32
    %1 = vector.broadcast %cst : f32 to vector<16x128xf32>
    %c0_1 = arith.constant 0 : index
    %c0_2 = arith.constant 0 : index
    %2 = vector.load %arg6[%c0_1, %c0_2] : memref<16x1024xf32, #tpu.memory_space<vmem>>, vector<16x128xf32>
    tpu.vector_store %arg6[%c0_1, %c0_2], %1 {strides = array<i32>} : memref<16x1024xf32, #tpu.memory_space<vmem>>, vector<16x128xf32>,
    %c0_3 = arith.constant 0 : index
    %c896 = arith.constant 896 : index
    %3 = vector.load %arg6[%c0_3, %c896] : memref<16x1024xf32, #tpu.memory_space<vmem>>, vector<16x128xf32>
    tpu.vector_store %arg6[%c0_3, %c896], %1 {strides = array<i32>} : memref<16x1024xf32, #tpu.memory_space<vmem>>, vector<16x128xf32>,
    %c0_4 = arith.constant 0 : index
    %c0_5 = arith.constant 0 : index
    %4 = vector.load %arg7[%c0_4, %c0_5] : memref<16x1024xf32, #tpu.memory_space<vmem>>, vector<16x128xf32>
    tpu.vector_store %arg7[%c0_4, %c0_5], %1 {strides = array<i32>} : memref<16x1024xf32, #tpu.memory_space<vmem>>, vector<16x128xf32>,
    %c0_6 = arith.constant 0 : index
    %c896_7 = arith.constant 896 : index
    %5 = vector.load %arg7[%c0_6, %c896_7] : memref<16x1024xf32, #tpu.memory_space<vmem>>, vector<16x128xf32>
    tpu.vector_store %arg7[%c0_6, %c896_7], %1 {strides = array<i32>} : memref<16x1024xf32, #tpu.memory_space<vmem>>, vector<16x128xf32>,
    %cst_8 = arith.constant 0.000000e+00 : f32
    %6 = vector.broadcast %cst_8 : f32 to vector<112x768xf32>
    %c144 = arith.constant 144 : index
    %c0_9 = arith.constant 0 : index
    %7 = vector.load %arg8[%c144, %c0_9] : memref<256x768xf32, #tpu.memory_space<vmem>>, vector<112x768xf32>
    tpu.vector_store %arg8[%c144, %c0_9], %6 {strides = array<i32>} : memref<256x768xf32, #tpu.memory_space<vmem>>, vector<112x768xf32>,
    %c0_10 = arith.constant 0 : index
    %c109 = arith.constant 109 : index
    %8 = vector.load %arg1[%c0_10, %c109] : memref<16x1024xf32, #tpu.memory_space<vmem>>, vector<16x768xf32>
    %c0_11 = arith.constant 0 : index
    %c0_12 = arith.constant 0 : index
    %9 = vector.load %arg8[%c0_11, %c0_12] : memref<256x768xf32, #tpu.memory_space<vmem>>, vector<16x768xf32>
    tpu.vector_store %arg8[%c0_11, %c0_12], %8 {strides = array<i32>} : memref<256x768xf32, #tpu.memory_space<vmem>>, vector<16x768xf32>,
    %c0_13 = arith.constant 0 : index
    %c110 = arith.constant 110 : index
    %10 = vector.load %arg1[%c0_13, %c110] : memref<16x1024xf32, #tpu.memory_space<vmem>>, vector<16x768xf32>
    %c16 = arith.constant 16 : index
    %c0_14 = arith.constant 0 : index
    %11 = vector.load %arg8[%c16, %c0_14] : memref<256x768xf32, #tpu.memory_space<vmem>>, vector<16x768xf32>
    tpu.vector_store %arg8[%c16, %c0_14], %10 {strides = array<i32>} : memref<256x768xf32, #tpu.memory_space<vmem>>, vector<16x768xf32>,
    %c0_15 = arith.constant 0 : index
    %c111 = arith.constant 111 : index
    %12 = vector.load %arg1[%c0_15, %c111] : memref<16x1024xf32, #tpu.memory_space<vmem>>, vector<16x768xf32>
    %c32 = arith.constant 32 : index
    %c0_16 = arith.constant 0 : index
    %13 = vector.load %arg8[%c32, %c0_16] : memref<256x768xf32, #tpu.memory_space<vmem>>, vector<16x768xf32>
    tpu.vector_store %arg8[%c32, %c0_16], %12 {strides = array<i32>} : memref<256x768xf32, #tpu.memory_space<vmem>>, vector<16x768xf32>,
    %c0_17 = arith.constant 0 : index
    %c127 = arith.constant 127 : index
    %14 = vector.load %arg1[%c0_17, %c127] : memref<16x1024xf32, #tpu.memory_space<vmem>>, vector<16x768xf32>
    %c48 = arith.constant 48 : index
    %c0_18 = arith.constant 0 : index
    %15 = vector.load %arg8[%c48, %c0_18] : memref<256x768xf32, #tpu.memory_space<vmem>>, vector<16x768xf32>
    tpu.vector_store %arg8[%c48, %c0_18], %14 {strides = array<i32>} : memref<256x768xf32, #tpu.memory_space<vmem>>, vector<16x768xf32>,
    %c0_19 = arith.constant 0 : index
    %c128 = arith.constant 128 : index
    %16 = vector.load %arg1[%c0_19, %c128] : memref<16x1024xf32, #tpu.memory_space<vmem>>, vector<16x768xf32>
    %c64 = arith.constant 64 : index
    %c0_20 = arith.constant 0 : index
    %17 = vector.load %arg8[%c64, %c0_20] : memref<256x768xf32, #tpu.memory_space<vmem>>, vector<16x768xf32>
    tpu.vector_store %arg8[%c64, %c0_20], %16 {strides = array<i32>} : memref<256x768xf32, #tpu.memory_space<vmem>>, vector<16x768xf32>,
    %c0_21 = arith.constant 0 : index
    %c129 = arith.constant 129 : index
    %18 = vector.load %arg1[%c0_21, %c129] : memref<16x1024xf32, #tpu.memory_space<vmem>>, vector<16x768xf32>
    %c80 = arith.constant 80 : index
    %c0_22 = arith.constant 0 : index
    %19 = vector.load %arg8[%c80, %c0_22] : memref<256x768xf32, #tpu.memory_space<vmem>>, vector<16x768xf32>
    tpu.vector_store %arg8[%c80, %c0_22], %18 {strides = array<i32>} : memref<256x768xf32, #tpu.memory_space<vmem>>, vector<16x768xf32>,
    %c0_23 = arith.constant 0 : index
    %c145 = arith.constant 145 : index
    %20 = vector.load %arg1[%c0_23, %c145] : memref<16x1024xf32, #tpu.memory_space<vmem>>, vector<16x768xf32>
    %c96 = arith.constant 96 : index
    %c0_24 = arith.constant 0 : index
    %21 = vector.load %arg8[%c96, %c0_24] : memref<256x768xf32, #tpu.memory_space<vmem>>, vector<16x768xf32>
    tpu.vector_store %arg8[%c96, %c0_24], %20 {strides = array<i32>} : memref<256x768xf32, #tpu.memory_space<vmem>>, vector<16x768xf32>,
    %c0_25 = arith.constant 0 : index
    %c146 = arith.constant 146 : index
    %22 = vector.load %arg1[%c0_25, %c146] : memref<16x1024xf32, #tpu.memory_space<vmem>>, vector<16x768xf32>
    %c112 = arith.constant 112 : index
    %c0_26 = arith.constant 0 : index
    %23 = vector.load %arg8[%c112, %c0_26] : memref<256x768xf32, #tpu.memory_space<vmem>>, vector<16x768xf32>
    tpu.vector_store %arg8[%c112, %c0_26], %22 {strides = array<i32>} : memref<256x768xf32, #tpu.memory_space<vmem>>, vector<16x768xf32>,
    %c0_27 = arith.constant 0 : index
    %c147 = arith.constant 147 : index
    %24 = vector.load %arg1[%c0_27, %c147] : memref<16x1024xf32, #tpu.memory_space<vmem>>, vector<16x768xf32>
    %c128_28 = arith.constant 128 : index
    %c0_29 = arith.constant 0 : index
    %25 = vector.load %arg8[%c128_28, %c0_29] : memref<256x768xf32, #tpu.memory_space<vmem>>, vector<16x768xf32>
    tpu.vector_store %arg8[%c128_28, %c0_29], %24 {strides = array<i32>} : memref<256x768xf32, #tpu.memory_space<vmem>>, vector<16x768xf32>,
    %c0_30 = arith.constant 0 : index
    %c0_31 = arith.constant 0 : index
    %c0_32 = arith.constant 0 : index
    %26 = vector.load %arg2[%c0_30, %c0_31, %c0_32] : memref<6x16x256xf32, #tpu.memory_space<vmem>>, vector<1x16x256xf32>
    %27 = vector.shape_cast %26 : vector<1x16x256xf32> to vector<16x256xf32>
    %c0_33 = arith.constant 0 : index
    %c0_34 = arith.constant 0 : index
    %28 = vector.load %arg8[%c0_33, %c0_34] : memref<256x768xf32, #tpu.memory_space<vmem>>, vector<256x768xf32>
    %cst_35 = arith.constant dense<0.000000e+00> : vector<16x768xf32>
    %29 = tpu.matmul %27, %28, %cst_35 {dimension_numbers = #tpu.dot_dimension_numbers<[1], [0], [0], [1], [0, 0, 1, 1], [], []>} : vector<16x256xf32>, vector<256x768xf32>, vector<16x768xf32> -> vector<16x768xf32>
    %c0_36 = arith.constant 0 : index
    %c0_37 = arith.constant 0 : index
    %c0_38 = arith.constant 0 : index
    %30 = vector.load %arg3[%c0_36, %c0_37, %c0_38] : memref<6x16x1xf32, #tpu.memory_space<vmem>>, vector<1x16x1xf32>
    %31 = vector.shape_cast %30 : vector<1x16x1xf32> to vector<16x1xf32>
    %32 = vector.broadcast %31 : vector<16x1xf32> to vector<16x768xf32>
    %33 = arith.addf %29, %32 : vector<16x768xf32>
    %cst_39 = arith.constant 0.000000e+00 : f32
    %34 = vector.broadcast %cst_39 : f32 to vector<16x768xf32>
    %35 = arith.cmpf ogt, %33, %34 : vector<16x768xf32>
    %cst_40 = arith.constant 2.000000e-01 : f32
    %36 = vector.broadcast %cst_40 : f32 to vector<16x768xf32>
    %37 = arith.mulf %36, %33 : vector<16x768xf32>
    %38 = arith.select %35, %33, %37 : vector<16x768xi1>, vector<16x768xf32>
    %39 = vector.broadcast %0 : vector<1x768xf32> to vector<16x768xf32>
    %40 = arith.mulf %38, %39 : vector<16x768xf32>
    %c0_41 = arith.constant 0 : index
    %c128_42 = arith.constant 128 : index
    %41 = vector.load %arg6[%c0_41, %c128_42] : memref<16x1024xf32, #tpu.memory_space<vmem>>, vector<16x768xf32>
    tpu.vector_store %arg6[%c0_41, %c128_42], %40 {strides = array<i32>} : memref<16x1024xf32, #tpu.memory_space<vmem>>, vector<16x768xf32>,
    %c0_43 = arith.constant 0 : index
    %c109_44 = arith.constant 109 : index
    %42 = vector.load %arg6[%c0_43, %c109_44] : memref<16x1024xf32, #tpu.memory_space<vmem>>, vector<16x768xf32>
    %c0_45 = arith.constant 0 : index
    %c0_46 = arith.constant 0 : index
    %43 = vector.load %arg8[%c0_45, %c0_46] : memref<256x768xf32, #tpu.memory_space<vmem>>, vector<16x768xf32>
    tpu.vector_store %arg8[%c0_45, %c0_46], %42 {strides = array<i32>} : memref<256x768xf32, #tpu.memory_space<vmem>>, vector<16x768xf32>,
    %c0_47 = arith.constant 0 : index
    %c110_48 = arith.constant 110 : index
    %44 = vector.load %arg6[%c0_47, %c110_48] : memref<16x1024xf32, #tpu.memory_space<vmem>>, vector<16x768xf32>
    %c16_49 = arith.constant 16 : index
    %c0_50 = arith.constant 0 : index
    %45 = vector.load %arg8[%c16_49, %c0_50] : memref<256x768xf32, #tpu.memory_space<vmem>>, vector<16x768xf32>
    tpu.vector_store %arg8[%c16_49, %c0_50], %44 {strides = array<i32>} : memref<256x768xf32, #tpu.memory_space<vmem>>, vector<16x768xf32>,
    %c0_51 = arith.constant 0 : index
    %c111_52 = arith.constant 111 : index
    %46 = vector.load %arg6[%c0_51, %c111_52] : memref<16x1024xf32, #tpu.memory_space<vmem>>, vector<16x768xf32>
    %c32_53 = arith.constant 32 : index
    %c0_54 = arith.constant 0 : index
    %47 = vector.load %arg8[%c32_53, %c0_54] : memref<256x768xf32, #tpu.memory_space<vmem>>, vector<16x768xf32>
    tpu.vector_store %arg8[%c32_53, %c0_54], %46 {strides = array<i32>} : memref<256x768xf32, #tpu.memory_space<vmem>>, vector<16x768xf32>,
    %c0_55 = arith.constant 0 : index
    %c127_56 = arith.constant 127 : index
    %48 = vector.load %arg6[%c0_55, %c127_56] : memref<16x1024xf32, #tpu.memory_space<vmem>>, vector<16x768xf32>
    %c48_57 = arith.constant 48 : index
    %c0_58 = arith.constant 0 : index
    %49 = vector.load %arg8[%c48_57, %c0_58] : memref<256x768xf32, #tpu.memory_space<vmem>>, vector<16x768xf32>
    tpu.vector_store %arg8[%c48_57, %c0_58], %48 {strides = array<i32>} : memref<256x768xf32, #tpu.memory_space<vmem>>, vector<16x768xf32>,
    %c0_59 = arith.constant 0 : index
    %c128_60 = arith.constant 128 : index
    %50 = vector.load %arg6[%c0_59, %c128_60] : memref<16x1024xf32, #tpu.memory_space<vmem>>, vector<16x768xf32>
    %c64_61 = arith.constant 64 : index
    %c0_62 = arith.constant 0 : index
    %51 = vector.load %arg8[%c64_61, %c0_62] : memref<256x768xf32, #tpu.memory_space<vmem>>, vector<16x768xf32>
    tpu.vector_store %arg8[%c64_61, %c0_62], %50 {strides = array<i32>} : memref<256x768xf32, #tpu.memory_space<vmem>>, vector<16x768xf32>,
    %c0_63 = arith.constant 0 : index
    %c129_64 = arith.constant 129 : index
    %52 = vector.load %arg6[%c0_63, %c129_64] : memref<16x1024xf32, #tpu.memory_space<vmem>>, vector<16x768xf32>
    %c80_65 = arith.constant 80 : index
    %c0_66 = arith.constant 0 : index
    %53 = vector.load %arg8[%c80_65, %c0_66] : memref<256x768xf32, #tpu.memory_space<vmem>>, vector<16x768xf32>
    tpu.vector_store %arg8[%c80_65, %c0_66], %52 {strides = array<i32>} : memref<256x768xf32, #tpu.memory_space<vmem>>, vector<16x768xf32>,
    %c0_67 = arith.constant 0 : index
    %c145_68 = arith.constant 145 : index
    %54 = vector.load %arg6[%c0_67, %c145_68] : memref<16x1024xf32, #tpu.memory_space<vmem>>, vector<16x768xf32>
    %c96_69 = arith.constant 96 : index
    %c0_70 = arith.constant 0 : index
    %55 = vector.load %arg8[%c96_69, %c0_70] : memref<256x768xf32, #tpu.memory_space<vmem>>, vector<16x768xf32>
    tpu.vector_store %arg8[%c96_69, %c0_70], %54 {strides = array<i32>} : memref<256x768xf32, #tpu.memory_space<vmem>>, vector<16x768xf32>,
    %c0_71 = arith.constant 0 : index
    %c146_72 = arith.constant 146 : index
    %56 = vector.load %arg6[%c0_71, %c146_72] : memref<16x1024xf32, #tpu.memory_space<vmem>>, vector<16x768xf32>
    %c112_73 = arith.constant 112 : index
    %c0_74 = arith.constant 0 : index
    %57 = vector.load %arg8[%c112_73, %c0_74] : memref<256x768xf32, #tpu.memory_space<vmem>>, vector<16x768xf32>
    tpu.vector_store %arg8[%c112_73, %c0_74], %56 {strides = array<i32>} : memref<256x768xf32, #tpu.memory_space<vmem>>, vector<16x768xf32>,
    %c0_75 = arith.constant 0 : index
    %c147_76 = arith.constant 147 : index
    %58 = vector.load %arg6[%c0_75, %c147_76] : memref<16x1024xf32, #tpu.memory_space<vmem>>, vector<16x768xf32>
    %c128_77 = arith.constant 128 : index
    %c0_78 = arith.constant 0 : index
    %59 = vector.load %arg8[%c128_77, %c0_78] : memref<256x768xf32, #tpu.memory_space<vmem>>, vector<16x768xf32>
    tpu.vector_store %arg8[%c128_77, %c0_78], %58 {strides = array<i32>} : memref<256x768xf32, #tpu.memory_space<vmem>>, vector<16x768xf32>,
    %c1 = arith.constant 1 : index
    %c0_79 = arith.constant 0 : index
    %c0_80 = arith.constant 0 : index
    %60 = vector.load %arg2[%c1, %c0_79, %c0_80] : memref<6x16x256xf32, #tpu.memory_space<vmem>>, vector<1x16x256xf32>
    %61 = vector.shape_cast %60 : vector<1x16x256xf32> to vector<16x256xf32>
    %c0_81 = arith.constant 0 : index
    %c0_82 = arith.constant 0 : index
    %62 = vector.load %arg8[%c0_81, %c0_82] : memref<256x768xf32, #tpu.memory_space<vmem>>, vector<256x768xf32>
    %cst_83 = arith.constant dense<0.000000e+00> : vector<16x768xf32>
    %63 = tpu.matmul %61, %62, %cst_83 {dimension_numbers = #tpu.dot_dimension_numbers<[1], [0], [0], [1], [0, 0, 1, 1], [], []>} : vector<16x256xf32>, vector<256x768xf32>, vector<16x768xf32> -> vector<16x768xf32>
    %c1_84 = arith.constant 1 : index
    %c0_85 = arith.constant 0 : index
    %c0_86 = arith.constant 0 : index
    %64 = vector.load %arg3[%c1_84, %c0_85, %c0_86] : memref<6x16x1xf32, #tpu.memory_space<vmem>>, vector<1x16x1xf32>
    %65 = vector.shape_cast %64 : vector<1x16x1xf32> to vector<16x1xf32>
    %66 = vector.broadcast %65 : vector<16x1xf32> to vector<16x768xf32>
    %67 = arith.addf %63, %66 : vector<16x768xf32>
    %cst_87 = arith.constant 0.000000e+00 : f32
    %68 = vector.broadcast %cst_87 : f32 to vector<16x768xf32>
    %69 = arith.cmpf ogt, %67, %68 : vector<16x768xf32>
    %cst_88 = arith.constant 2.000000e-01 : f32
    %70 = vector.broadcast %cst_88 : f32 to vector<16x768xf32>
    %71 = arith.mulf %70, %67 : vector<16x768xf32>
    %72 = arith.select %69, %67, %71 : vector<16x768xi1>, vector<16x768xf32>
    %73 = vector.broadcast %0 : vector<1x768xf32> to vector<16x768xf32>
    %74 = arith.mulf %72, %73 : vector<16x768xf32>
    %c0_89 = arith.constant 0 : index
    %c128_90 = arith.constant 128 : index
    %75 = vector.load %arg7[%c0_89, %c128_90] : memref<16x1024xf32, #tpu.memory_space<vmem>>, vector<16x768xf32>
    tpu.vector_store %arg7[%c0_89, %c128_90], %74 {strides = array<i32>} : memref<16x1024xf32, #tpu.memory_space<vmem>>, vector<16x768xf32>,
    %c0_91 = arith.constant 0 : index
    %c109_92 = arith.constant 109 : index
    %76 = vector.load %arg7[%c0_91, %c109_92] : memref<16x1024xf32, #tpu.memory_space<vmem>>, vector<16x768xf32>
    %c0_93 = arith.constant 0 : index
    %c0_94 = arith.constant 0 : index
    %77 = vector.load %arg8[%c0_93, %c0_94] : memref<256x768xf32, #tpu.memory_space<vmem>>, vector<16x768xf32>
    tpu.vector_store %arg8[%c0_93, %c0_94], %76 {strides = array<i32>} : memref<256x768xf32, #tpu.memory_space<vmem>>, vector<16x768xf32>,
    %c0_95 = arith.constant 0 : index
    %c110_96 = arith.constant 110 : index
    %78 = vector.load %arg7[%c0_95, %c110_96] : memref<16x1024xf32, #tpu.memory_space<vmem>>, vector<16x768xf32>
    %c16_97 = arith.constant 16 : index
    %c0_98 = arith.constant 0 : index
    %79 = vector.load %arg8[%c16_97, %c0_98] : memref<256x768xf32, #tpu.memory_space<vmem>>, vector<16x768xf32>
    tpu.vector_store %arg8[%c16_97, %c0_98], %78 {strides = array<i32>} : memref<256x768xf32, #tpu.memory_space<vmem>>, vector<16x768xf32>,
    %c0_99 = arith.constant 0 : index
    %c111_100 = arith.constant 111 : index
    %80 = vector.load %arg7[%c0_99, %c111_100] : memref<16x1024xf32, #tpu.memory_space<vmem>>, vector<16x768xf32>
    %c32_101 = arith.constant 32 : index
    %c0_102 = arith.constant 0 : index
    %81 = vector.load %arg8[%c32_101, %c0_102] : memref<256x768xf32, #tpu.memory_space<vmem>>, vector<16x768xf32>
    tpu.vector_store %arg8[%c32_101, %c0_102], %80 {strides = array<i32>} : memref<256x768xf32, #tpu.memory_space<vmem>>, vector<16x768xf32>,
    %c0_103 = arith.constant 0 : index
    %c127_104 = arith.constant 127 : index
    %82 = vector.load %arg7[%c0_103, %c127_104] : memref<16x1024xf32, #tpu.memory_space<vmem>>, vector<16x768xf32>
    %c48_105 = arith.constant 48 : index
    %c0_106 = arith.constant 0 : index
    %83 = vector.load %arg8[%c48_105, %c0_106] : memref<256x768xf32, #tpu.memory_space<vmem>>, vector<16x768xf32>
    tpu.vector_store %arg8[%c48_105, %c0_106], %82 {strides = array<i32>} : memref<256x768xf32, #tpu.memory_space<vmem>>, vector<16x768xf32>,
    %c0_107 = arith.constant 0 : index
    %c128_108 = arith.constant 128 : index
    %84 = vector.load %arg7[%c0_107, %c128_108] : memref<16x1024xf32, #tpu.memory_space<vmem>>, vector<16x768xf32>
    %c64_109 = arith.constant 64 : index
    %c0_110 = arith.constant 0 : index
    %85 = vector.load %arg8[%c64_109, %c0_110] : memref<256x768xf32, #tpu.memory_space<vmem>>, vector<16x768xf32>
    tpu.vector_store %arg8[%c64_109, %c0_110], %84 {strides = array<i32>} : memref<256x768xf32, #tpu.memory_space<vmem>>, vector<16x768xf32>,
    %c0_111 = arith.constant 0 : index
    %c129_112 = arith.constant 129 : index
    %86 = vector.load %arg7[%c0_111, %c129_112] : memref<16x1024xf32, #tpu.memory_space<vmem>>, vector<16x768xf32>
    %c80_113 = arith.constant 80 : index
    %c0_114 = arith.constant 0 : index
    %87 = vector.load %arg8[%c80_113, %c0_114] : memref<256x768xf32, #tpu.memory_space<vmem>>, vector<16x768xf32>
    tpu.vector_store %arg8[%c80_113, %c0_114], %86 {strides = array<i32>} : memref<256x768xf32, #tpu.memory_space<vmem>>, vector<16x768xf32>,
    %c0_115 = arith.constant 0 : index
    %c145_116 = arith.constant 145 : index
    %88 = vector.load %arg7[%c0_115, %c145_116] : memref<16x1024xf32, #tpu.memory_space<vmem>>, vector<16x768xf32>
    %c96_117 = arith.constant 96 : index
    %c0_118 = arith.constant 0 : index
    %89 = vector.load %arg8[%c96_117, %c0_118] : memref<256x768xf32, #tpu.memory_space<vmem>>, vector<16x768xf32>
    tpu.vector_store %arg8[%c96_117, %c0_118], %88 {strides = array<i32>} : memref<256x768xf32, #tpu.memory_space<vmem>>, vector<16x768xf32>,
    %c0_119 = arith.constant 0 : index
    %c146_120 = arith.constant 146 : index
    %90 = vector.load %arg7[%c0_119, %c146_120] : memref<16x1024xf32, #tpu.memory_space<vmem>>, vector<16x768xf32>
    %c112_121 = arith.constant 112 : index
    %c0_122 = arith.constant 0 : index
    %91 = vector.load %arg8[%c112_121, %c0_122] : memref<256x768xf32, #tpu.memory_space<vmem>>, vector<16x768xf32>
    tpu.vector_store %arg8[%c112_121, %c0_122], %90 {strides = array<i32>} : memref<256x768xf32, #tpu.memory_space<vmem>>, vector<16x768xf32>,
    %c0_123 = arith.constant 0 : index
    %c147_124 = arith.constant 147 : index
    %92 = vector.load %arg7[%c0_123, %c147_124] : memref<16x1024xf32, #tpu.memory_space<vmem>>, vector<16x768xf32>
    %c128_125 = arith.constant 128 : index
    %c0_126 = arith.constant 0 : index
    %93 = vector.load %arg8[%c128_125, %c0_126] : memref<256x768xf32, #tpu.memory_space<vmem>>, vector<16x768xf32>
    tpu.vector_store %arg8[%c128_125, %c0_126], %92 {strides = array<i32>} : memref<256x768xf32, #tpu.memory_space<vmem>>, vector<16x768xf32>,
    %c2 = arith.constant 2 : index
    %c0_127 = arith.constant 0 : index
    %c0_128 = arith.constant 0 : index
    %94 = vector.load %arg2[%c2, %c0_127, %c0_128] : memref<6x16x256xf32, #tpu.memory_space<vmem>>, vector<1x16x256xf32>
    %95 = vector.shape_cast %94 : vector<1x16x256xf32> to vector<16x256xf32>
    %c0_129 = arith.constant 0 : index
    %c0_130 = arith.constant 0 : index
    %96 = vector.load %arg8[%c0_129, %c0_130] : memref<256x768xf32, #tpu.memory_space<vmem>>, vector<256x768xf32>
    %cst_131 = arith.constant dense<0.000000e+00> : vector<16x768xf32>
    %97 = tpu.matmul %95, %96, %cst_131 {dimension_numbers = #tpu.dot_dimension_numbers<[1], [0], [0], [1], [0, 0, 1, 1], [], []>} : vector<16x256xf32>, vector<256x768xf32>, vector<16x768xf32> -> vector<16x768xf32>
    %c2_132 = arith.constant 2 : index
    %c0_133 = arith.constant 0 : index
    %c0_134 = arith.constant 0 : index
    %98 = vector.load %arg3[%c2_132, %c0_133, %c0_134] : memref<6x16x1xf32, #tpu.memory_space<vmem>>, vector<1x16x1xf32>
    %99 = vector.shape_cast %98 : vector<1x16x1xf32> to vector<16x1xf32>
    %100 = vector.broadcast %99 : vector<16x1xf32> to vector<16x768xf32>
    %101 = arith.addf %97, %100 : vector<16x768xf32>
    %cst_135 = arith.constant 0.000000e+00 : f32
    %102 = vector.broadcast %cst_135 : f32 to vector<16x768xf32>
    %103 = arith.cmpf ogt, %101, %102 : vector<16x768xf32>
    %cst_136 = arith.constant 2.000000e-01 : f32
    %104 = vector.broadcast %cst_136 : f32 to vector<16x768xf32>
    %105 = arith.mulf %104, %101 : vector<16x768xf32>
    %106 = arith.select %103, %101, %105 : vector<16x768xi1>, vector<16x768xf32>
    %107 = vector.broadcast %0 : vector<1x768xf32> to vector<16x768xf32>
    %108 = arith.mulf %106, %107 : vector<16x768xf32>
    %c0_137 = arith.constant 0 : index
    %c128_138 = arith.constant 128 : index
    %109 = vector.load %arg6[%c0_137, %c128_138] : memref<16x1024xf32, #tpu.memory_space<vmem>>, vector<16x768xf32>
    tpu.vector_store %arg6[%c0_137, %c128_138], %108 {strides = array<i32>} : memref<16x1024xf32, #tpu.memory_space<vmem>>, vector<16x768xf32>,
    %c0_139 = arith.constant 0 : index
    %c128_140 = arith.constant 128 : index
    %110 = vector.load %arg7[%c0_139, %c128_140] : memref<16x1024xf32, #tpu.memory_space<vmem>>, vector<16x768xf32>
    %c0_141 = arith.constant 0 : index
    %c109_142 = arith.constant 109 : index
    %111 = vector.load %arg6[%c0_141, %c109_142] : memref<16x1024xf32, #tpu.memory_space<vmem>>, vector<16x768xf32>
    %c0_143 = arith.constant 0 : index
    %c0_144 = arith.constant 0 : index
    %112 = vector.load %arg8[%c0_143, %c0_144] : memref<256x768xf32, #tpu.memory_space<vmem>>, vector<16x768xf32>
    tpu.vector_store %arg8[%c0_143, %c0_144], %111 {strides = array<i32>} : memref<256x768xf32, #tpu.memory_space<vmem>>, vector<16x768xf32>,
    %c0_145 = arith.constant 0 : index
    %c110_146 = arith.constant 110 : index
    %113 = vector.load %arg6[%c0_145, %c110_146] : memref<16x1024xf32, #tpu.memory_space<vmem>>, vector<16x768xf32>
    %c16_147 = arith.constant 16 : index
    %c0_148 = arith.constant 0 : index
    %114 = vector.load %arg8[%c16_147, %c0_148] : memref<256x768xf32, #tpu.memory_space<vmem>>, vector<16x768xf32>
    tpu.vector_store %arg8[%c16_147, %c0_148], %113 {strides = array<i32>} : memref<256x768xf32, #tpu.memory_space<vmem>>, vector<16x768xf32>,
    %c0_149 = arith.constant 0 : index
    %c111_150 = arith.constant 111 : index
    %115 = vector.load %arg6[%c0_149, %c111_150] : memref<16x1024xf32, #tpu.memory_space<vmem>>, vector<16x768xf32>
    %c32_151 = arith.constant 32 : index
    %c0_152 = arith.constant 0 : index
    %116 = vector.load %arg8[%c32_151, %c0_152] : memref<256x768xf32, #tpu.memory_space<vmem>>, vector<16x768xf32>
    tpu.vector_store %arg8[%c32_151, %c0_152], %115 {strides = array<i32>} : memref<256x768xf32, #tpu.memory_space<vmem>>, vector<16x768xf32>,
    %c0_153 = arith.constant 0 : index
    %c127_154 = arith.constant 127 : index
    %117 = vector.load %arg6[%c0_153, %c127_154] : memref<16x1024xf32, #tpu.memory_space<vmem>>, vector<16x768xf32>
    %c48_155 = arith.constant 48 : index
    %c0_156 = arith.constant 0 : index
    %118 = vector.load %arg8[%c48_155, %c0_156] : memref<256x768xf32, #tpu.memory_space<vmem>>, vector<16x768xf32>
    tpu.vector_store %arg8[%c48_155, %c0_156], %117 {strides = array<i32>} : memref<256x768xf32, #tpu.memory_space<vmem>>, vector<16x768xf32>,
    %c0_157 = arith.constant 0 : index
    %c128_158 = arith.constant 128 : index
    %119 = vector.load %arg6[%c0_157, %c128_158] : memref<16x1024xf32, #tpu.memory_space<vmem>>, vector<16x768xf32>
    %c64_159 = arith.constant 64 : index
    %c0_160 = arith.constant 0 : index
    %120 = vector.load %arg8[%c64_159, %c0_160] : memref<256x768xf32, #tpu.memory_space<vmem>>, vector<16x768xf32>
    tpu.vector_store %arg8[%c64_159, %c0_160], %119 {strides = array<i32>} : memref<256x768xf32, #tpu.memory_space<vmem>>, vector<16x768xf32>,
    %c0_161 = arith.constant 0 : index
    %c129_162 = arith.constant 129 : index
    %121 = vector.load %arg6[%c0_161, %c129_162] : memref<16x1024xf32, #tpu.memory_space<vmem>>, vector<16x768xf32>
    %c80_163 = arith.constant 80 : index
    %c0_164 = arith.constant 0 : index
    %122 = vector.load %arg8[%c80_163, %c0_164] : memref<256x768xf32, #tpu.memory_space<vmem>>, vector<16x768xf32>
    tpu.vector_store %arg8[%c80_163, %c0_164], %121 {strides = array<i32>} : memref<256x768xf32, #tpu.memory_space<vmem>>, vector<16x768xf32>,
    %c0_165 = arith.constant 0 : index
    %c145_166 = arith.constant 145 : index
    %123 = vector.load %arg6[%c0_165, %c145_166] : memref<16x1024xf32, #tpu.memory_space<vmem>>, vector<16x768xf32>
    %c96_167 = arith.constant 96 : index
    %c0_168 = arith.constant 0 : index
    %124 = vector.load %arg8[%c96_167, %c0_168] : memref<256x768xf32, #tpu.memory_space<vmem>>, vector<16x768xf32>
    tpu.vector_store %arg8[%c96_167, %c0_168], %123 {strides = array<i32>} : memref<256x768xf32, #tpu.memory_space<vmem>>, vector<16x768xf32>,
    %c0_169 = arith.constant 0 : index
    %c146_170 = arith.constant 146 : index
    %125 = vector.load %arg6[%c0_169, %c146_170] : memref<16x1024xf32, #tpu.memory_space<vmem>>, vector<16x768xf32>
    %c112_171 = arith.constant 112 : index
    %c0_172 = arith.constant 0 : index
    %126 = vector.load %arg8[%c112_171, %c0_172] : memref<256x768xf32, #tpu.memory_space<vmem>>, vector<16x768xf32>
    tpu.vector_store %arg8[%c112_171, %c0_172], %125 {strides = array<i32>} : memref<256x768xf32, #tpu.memory_space<vmem>>, vector<16x768xf32>,
    %c0_173 = arith.constant 0 : index
    %c147_174 = arith.constant 147 : index
    %127 = vector.load %arg6[%c0_173, %c147_174] : memref<16x1024xf32, #tpu.memory_space<vmem>>, vector<16x768xf32>
    %c128_175 = arith.constant 128 : index
    %c0_176 = arith.constant 0 : index
    %128 = vector.load %arg8[%c128_175, %c0_176] : memref<256x768xf32, #tpu.memory_space<vmem>>, vector<16x768xf32>
    tpu.vector_store %arg8[%c128_175, %c0_176], %127 {strides = array<i32>} : memref<256x768xf32, #tpu.memory_space<vmem>>, vector<16x768xf32>,
    %c3 = arith.constant 3 : index
    %c0_177 = arith.constant 0 : index
    %c0_178 = arith.constant 0 : index
    %129 = vector.load %arg2[%c3, %c0_177, %c0_178] : memref<6x16x256xf32, #tpu.memory_space<vmem>>, vector<1x16x256xf32>
    %130 = vector.shape_cast %129 : vector<1x16x256xf32> to vector<16x256xf32>
    %c0_179 = arith.constant 0 : index
    %c0_180 = arith.constant 0 : index
    %131 = vector.load %arg8[%c0_179, %c0_180] : memref<256x768xf32, #tpu.memory_space<vmem>>, vector<256x768xf32>
    %cst_181 = arith.constant dense<0.000000e+00> : vector<16x768xf32>
    %132 = tpu.matmul %130, %131, %cst_181 {dimension_numbers = #tpu.dot_dimension_numbers<[1], [0], [0], [1], [0, 0, 1, 1], [], []>} : vector<16x256xf32>, vector<256x768xf32>, vector<16x768xf32> -> vector<16x768xf32>
    %c3_182 = arith.constant 3 : index
    %c0_183 = arith.constant 0 : index
    %c0_184 = arith.constant 0 : index
    %133 = vector.load %arg3[%c3_182, %c0_183, %c0_184] : memref<6x16x1xf32, #tpu.memory_space<vmem>>, vector<1x16x1xf32>
    %134 = vector.shape_cast %133 : vector<1x16x1xf32> to vector<16x1xf32>
    %135 = vector.broadcast %134 : vector<16x1xf32> to vector<16x768xf32>
    %136 = arith.addf %132, %135 : vector<16x768xf32>
    %137 = arith.addf %136, %110 : vector<16x768xf32>
    %138 = vector.broadcast %0 : vector<1x768xf32> to vector<16x768xf32>
    %139 = arith.mulf %137, %138 : vector<16x768xf32>
    %c0_185 = arith.constant 0 : index
    %c128_186 = arith.constant 128 : index
    %140 = vector.load %arg7[%c0_185, %c128_186] : memref<16x1024xf32, #tpu.memory_space<vmem>>, vector<16x768xf32>
    tpu.vector_store %arg7[%c0_185, %c128_186], %139 {strides = array<i32>} : memref<16x1024xf32, #tpu.memory_space<vmem>>, vector<16x768xf32>,
    %c0_187 = arith.constant 0 : index
    %c109_188 = arith.constant 109 : index
    %141 = vector.load %arg7[%c0_187, %c109_188] : memref<16x1024xf32, #tpu.memory_space<vmem>>, vector<16x768xf32>
    %c0_189 = arith.constant 0 : index
    %c0_190 = arith.constant 0 : index
    %142 = vector.load %arg8[%c0_189, %c0_190] : memref<256x768xf32, #tpu.memory_space<vmem>>, vector<16x768xf32>
    tpu.vector_store %arg8[%c0_189, %c0_190], %141 {strides = array<i32>} : memref<256x768xf32, #tpu.memory_space<vmem>>, vector<16x768xf32>,
    %c0_191 = arith.constant 0 : index
    %c110_192 = arith.constant 110 : index
    %143 = vector.load %arg7[%c0_191, %c110_192] : memref<16x1024xf32, #tpu.memory_space<vmem>>, vector<16x768xf32>
    %c16_193 = arith.constant 16 : index
    %c0_194 = arith.constant 0 : index
    %144 = vector.load %arg8[%c16_193, %c0_194] : memref<256x768xf32, #tpu.memory_space<vmem>>, vector<16x768xf32>
    tpu.vector_store %arg8[%c16_193, %c0_194], %143 {strides = array<i32>} : memref<256x768xf32, #tpu.memory_space<vmem>>, vector<16x768xf32>,
    %c0_195 = arith.constant 0 : index
    %c111_196 = arith.constant 111 : index
    %145 = vector.load %arg7[%c0_195, %c111_196] : memref<16x1024xf32, #tpu.memory_space<vmem>>, vector<16x768xf32>
    %c32_197 = arith.constant 32 : index
    %c0_198 = arith.constant 0 : index
    %146 = vector.load %arg8[%c32_197, %c0_198] : memref<256x768xf32, #tpu.memory_space<vmem>>, vector<16x768xf32>
    tpu.vector_store %arg8[%c32_197, %c0_198], %145 {strides = array<i32>} : memref<256x768xf32, #tpu.memory_space<vmem>>, vector<16x768xf32>,
    %c0_199 = arith.constant 0 : index
    %c127_200 = arith.constant 127 : index
    %147 = vector.load %arg7[%c0_199, %c127_200] : memref<16x1024xf32, #tpu.memory_space<vmem>>, vector<16x768xf32>
    %c48_201 = arith.constant 48 : index
    %c0_202 = arith.constant 0 : index
    %148 = vector.load %arg8[%c48_201, %c0_202] : memref<256x768xf32, #tpu.memory_space<vmem>>, vector<16x768xf32>
    tpu.vector_store %arg8[%c48_201, %c0_202], %147 {strides = array<i32>} : memref<256x768xf32, #tpu.memory_space<vmem>>, vector<16x768xf32>,
    %c0_203 = arith.constant 0 : index
    %c128_204 = arith.constant 128 : index
    %149 = vector.load %arg7[%c0_203, %c128_204] : memref<16x1024xf32, #tpu.memory_space<vmem>>, vector<16x768xf32>
    %c64_205 = arith.constant 64 : index
    %c0_206 = arith.constant 0 : index
    %150 = vector.load %arg8[%c64_205, %c0_206] : memref<256x768xf32, #tpu.memory_space<vmem>>, vector<16x768xf32>
    tpu.vector_store %arg8[%c64_205, %c0_206], %149 {strides = array<i32>} : memref<256x768xf32, #tpu.memory_space<vmem>>, vector<16x768xf32>,
    %c0_207 = arith.constant 0 : index
    %c129_208 = arith.constant 129 : index
    %151 = vector.load %arg7[%c0_207, %c129_208] : memref<16x1024xf32, #tpu.memory_space<vmem>>, vector<16x768xf32>
    %c80_209 = arith.constant 80 : index
    %c0_210 = arith.constant 0 : index
    %152 = vector.load %arg8[%c80_209, %c0_210] : memref<256x768xf32, #tpu.memory_space<vmem>>, vector<16x768xf32>
    tpu.vector_store %arg8[%c80_209, %c0_210], %151 {strides = array<i32>} : memref<256x768xf32, #tpu.memory_space<vmem>>, vector<16x768xf32>,
    %c0_211 = arith.constant 0 : index
    %c145_212 = arith.constant 145 : index
    %153 = vector.load %arg7[%c0_211, %c145_212] : memref<16x1024xf32, #tpu.memory_space<vmem>>, vector<16x768xf32>
    %c96_213 = arith.constant 96 : index
    %c0_214 = arith.constant 0 : index
    %154 = vector.load %arg8[%c96_213, %c0_214] : memref<256x768xf32, #tpu.memory_space<vmem>>, vector<16x768xf32>
    tpu.vector_store %arg8[%c96_213, %c0_214], %153 {strides = array<i32>} : memref<256x768xf32, #tpu.memory_space<vmem>>, vector<16x768xf32>,
    %c0_215 = arith.constant 0 : index
    %c146_216 = arith.constant 146 : index
    %155 = vector.load %arg7[%c0_215, %c146_216] : memref<16x1024xf32, #tpu.memory_space<vmem>>, vector<16x768xf32>
    %c112_217 = arith.constant 112 : index
    %c0_218 = arith.constant 0 : index
    %156 = vector.load %arg8[%c112_217, %c0_218] : memref<256x768xf32, #tpu.memory_space<vmem>>, vector<16x768xf32>
    tpu.vector_store %arg8[%c112_217, %c0_218], %155 {strides = array<i32>} : memref<256x768xf32, #tpu.memory_space<vmem>>, vector<16x768xf32>,
    %c0_219 = arith.constant 0 : index
    %c147_220 = arith.constant 147 : index
    %157 = vector.load %arg7[%c0_219, %c147_220] : memref<16x1024xf32, #tpu.memory_space<vmem>>, vector<16x768xf32>
    %c128_221 = arith.constant 128 : index
    %c0_222 = arith.constant 0 : index
    %158 = vector.load %arg8[%c128_221, %c0_222] : memref<256x768xf32, #tpu.memory_space<vmem>>, vector<16x768xf32>
    tpu.vector_store %arg8[%c128_221, %c0_222], %157 {strides = array<i32>} : memref<256x768xf32, #tpu.memory_space<vmem>>, vector<16x768xf32>,
    %c4 = arith.constant 4 : index
    %c0_223 = arith.constant 0 : index
    %c0_224 = arith.constant 0 : index
    %159 = vector.load %arg2[%c4, %c0_223, %c0_224] : memref<6x16x256xf32, #tpu.memory_space<vmem>>, vector<1x16x256xf32>
    %160 = vector.shape_cast %159 : vector<1x16x256xf32> to vector<16x256xf32>
    %c0_225 = arith.constant 0 : index
    %c0_226 = arith.constant 0 : index
    %161 = vector.load %arg8[%c0_225, %c0_226] : memref<256x768xf32, #tpu.memory_space<vmem>>, vector<256x768xf32>
    %cst_227 = arith.constant dense<0.000000e+00> : vector<16x768xf32>
    %162 = tpu.matmul %160, %161, %cst_227 {dimension_numbers = #tpu.dot_dimension_numbers<[1], [0], [0], [1], [0, 0, 1, 1], [], []>} : vector<16x256xf32>, vector<256x768xf32>, vector<16x768xf32> -> vector<16x768xf32>
    %c4_228 = arith.constant 4 : index
    %c0_229 = arith.constant 0 : index
    %c0_230 = arith.constant 0 : index
    %163 = vector.load %arg3[%c4_228, %c0_229, %c0_230] : memref<6x16x1xf32, #tpu.memory_space<vmem>>, vector<1x16x1xf32>
    %164 = vector.shape_cast %163 : vector<1x16x1xf32> to vector<16x1xf32>
    %165 = vector.broadcast %164 : vector<16x1xf32> to vector<16x768xf32>
    %166 = arith.addf %162, %165 : vector<16x768xf32>
    %cst_231 = arith.constant 0.000000e+00 : f32
    %167 = vector.broadcast %cst_231 : f32 to vector<16x768xf32>
    %168 = arith.cmpf ogt, %166, %167 : vector<16x768xf32>
    %cst_232 = arith.constant 2.000000e-01 : f32
    %169 = vector.broadcast %cst_232 : f32 to vector<16x768xf32>
    %170 = arith.mulf %169, %166 : vector<16x768xf32>
    %171 = arith.select %168, %166, %170 : vector<16x768xi1>, vector<16x768xf32>
    %172 = vector.broadcast %0 : vector<1x768xf32> to vector<16x768xf32>
    %173 = arith.mulf %171, %172 : vector<16x768xf32>
    %c0_233 = arith.constant 0 : index
    %c128_234 = arith.constant 128 : index
    %174 = vector.load %arg6[%c0_233, %c128_234] : memref<16x1024xf32, #tpu.memory_space<vmem>>, vector<16x768xf32>
    tpu.vector_store %arg6[%c0_233, %c128_234], %173 {strides = array<i32>} : memref<16x1024xf32, #tpu.memory_space<vmem>>, vector<16x768xf32>,
    %c0_235 = arith.constant 0 : index
    %c128_236 = arith.constant 128 : index
    %175 = vector.load %arg7[%c0_235, %c128_236] : memref<16x1024xf32, #tpu.memory_space<vmem>>, vector<16x768xf32>
    %c0_237 = arith.constant 0 : index
    %c109_238 = arith.constant 109 : index
    %176 = vector.load %arg6[%c0_237, %c109_238] : memref<16x1024xf32, #tpu.memory_space<vmem>>, vector<16x768xf32>
    %c0_239 = arith.constant 0 : index
    %c0_240 = arith.constant 0 : index
    %177 = vector.load %arg8[%c0_239, %c0_240] : memref<256x768xf32, #tpu.memory_space<vmem>>, vector<16x768xf32>
    tpu.vector_store %arg8[%c0_239, %c0_240], %176 {strides = array<i32>} : memref<256x768xf32, #tpu.memory_space<vmem>>, vector<16x768xf32>,
    %c0_241 = arith.constant 0 : index
    %c110_242 = arith.constant 110 : index
    %178 = vector.load %arg6[%c0_241, %c110_242] : memref<16x1024xf32, #tpu.memory_space<vmem>>, vector<16x768xf32>
    %c16_243 = arith.constant 16 : index
    %c0_244 = arith.constant 0 : index
    %179 = vector.load %arg8[%c16_243, %c0_244] : memref<256x768xf32, #tpu.memory_space<vmem>>, vector<16x768xf32>
    tpu.vector_store %arg8[%c16_243, %c0_244], %178 {strides = array<i32>} : memref<256x768xf32, #tpu.memory_space<vmem>>, vector<16x768xf32>,
    %c0_245 = arith.constant 0 : index
    %c111_246 = arith.constant 111 : index
    %180 = vector.load %arg6[%c0_245, %c111_246] : memref<16x1024xf32, #tpu.memory_space<vmem>>, vector<16x768xf32>
    %c32_247 = arith.constant 32 : index
    %c0_248 = arith.constant 0 : index
    %181 = vector.load %arg8[%c32_247, %c0_248] : memref<256x768xf32, #tpu.memory_space<vmem>>, vector<16x768xf32>
    tpu.vector_store %arg8[%c32_247, %c0_248], %180 {strides = array<i32>} : memref<256x768xf32, #tpu.memory_space<vmem>>, vector<16x768xf32>,
    %c0_249 = arith.constant 0 : index
    %c127_250 = arith.constant 127 : index
    %182 = vector.load %arg6[%c0_249, %c127_250] : memref<16x1024xf32, #tpu.memory_space<vmem>>, vector<16x768xf32>
    %c48_251 = arith.constant 48 : index
    %c0_252 = arith.constant 0 : index
    %183 = vector.load %arg8[%c48_251, %c0_252] : memref<256x768xf32, #tpu.memory_space<vmem>>, vector<16x768xf32>
    tpu.vector_store %arg8[%c48_251, %c0_252], %182 {strides = array<i32>} : memref<256x768xf32, #tpu.memory_space<vmem>>, vector<16x768xf32>,
    %c0_253 = arith.constant 0 : index
    %c128_254 = arith.constant 128 : index
    %184 = vector.load %arg6[%c0_253, %c128_254] : memref<16x1024xf32, #tpu.memory_space<vmem>>, vector<16x768xf32>
    %c64_255 = arith.constant 64 : index
    %c0_256 = arith.constant 0 : index
    %185 = vector.load %arg8[%c64_255, %c0_256] : memref<256x768xf32, #tpu.memory_space<vmem>>, vector<16x768xf32>
    tpu.vector_store %arg8[%c64_255, %c0_256], %184 {strides = array<i32>} : memref<256x768xf32, #tpu.memory_space<vmem>>, vector<16x768xf32>,
    %c0_257 = arith.constant 0 : index
    %c129_258 = arith.constant 129 : index
    %186 = vector.load %arg6[%c0_257, %c129_258] : memref<16x1024xf32, #tpu.memory_space<vmem>>, vector<16x768xf32>
    %c80_259 = arith.constant 80 : index
    %c0_260 = arith.constant 0 : index
    %187 = vector.load %arg8[%c80_259, %c0_260] : memref<256x768xf32, #tpu.memory_space<vmem>>, vector<16x768xf32>
    tpu.vector_store %arg8[%c80_259, %c0_260], %186 {strides = array<i32>} : memref<256x768xf32, #tpu.memory_space<vmem>>, vector<16x768xf32>,
    %c0_261 = arith.constant 0 : index
    %c145_262 = arith.constant 145 : index
    %188 = vector.load %arg6[%c0_261, %c145_262] : memref<16x1024xf32, #tpu.memory_space<vmem>>, vector<16x768xf32>
    %c96_263 = arith.constant 96 : index
    %c0_264 = arith.constant 0 : index
    %189 = vector.load %arg8[%c96_263, %c0_264] : memref<256x768xf32, #tpu.memory_space<vmem>>, vector<16x768xf32>
    tpu.vector_store %arg8[%c96_263, %c0_264], %188 {strides = array<i32>} : memref<256x768xf32, #tpu.memory_space<vmem>>, vector<16x768xf32>,
    %c0_265 = arith.constant 0 : index
    %c146_266 = arith.constant 146 : index
    %190 = vector.load %arg6[%c0_265, %c146_266] : memref<16x1024xf32, #tpu.memory_space<vmem>>, vector<16x768xf32>
    %c112_267 = arith.constant 112 : index
    %c0_268 = arith.constant 0 : index
    %191 = vector.load %arg8[%c112_267, %c0_268] : memref<256x768xf32, #tpu.memory_space<vmem>>, vector<16x768xf32>
    tpu.vector_store %arg8[%c112_267, %c0_268], %190 {strides = array<i32>} : memref<256x768xf32, #tpu.memory_space<vmem>>, vector<16x768xf32>,
    %c0_269 = arith.constant 0 : index
    %c147_270 = arith.constant 147 : index
    %192 = vector.load %arg6[%c0_269, %c147_270] : memref<16x1024xf32, #tpu.memory_space<vmem>>, vector<16x768xf32>
    %c128_271 = arith.constant 128 : index
    %c0_272 = arith.constant 0 : index
    %193 = vector.load %arg8[%c128_271, %c0_272] : memref<256x768xf32, #tpu.memory_space<vmem>>, vector<16x768xf32>
    tpu.vector_store %arg8[%c128_271, %c0_272], %192 {strides = array<i32>} : memref<256x768xf32, #tpu.memory_space<vmem>>, vector<16x768xf32>,
    %c5 = arith.constant 5 : index
    %c0_273 = arith.constant 0 : index
    %c0_274 = arith.constant 0 : index
    %194 = vector.load %arg2[%c5, %c0_273, %c0_274] : memref<6x16x256xf32, #tpu.memory_space<vmem>>, vector<1x16x256xf32>
    %195 = vector.shape_cast %194 : vector<1x16x256xf32> to vector<16x256xf32>
    %c0_275 = arith.constant 0 : index
    %c0_276 = arith.constant 0 : index
    %196 = vector.load %arg8[%c0_275, %c0_276] : memref<256x768xf32, #tpu.memory_space<vmem>>, vector<256x768xf32>
    %cst_277 = arith.constant dense<0.000000e+00> : vector<16x768xf32>
    %197 = tpu.matmul %195, %196, %cst_277 {dimension_numbers = #tpu.dot_dimension_numbers<[1], [0], [0], [1], [0, 0, 1, 1], [], []>} : vector<16x256xf32>, vector<256x768xf32>, vector<16x768xf32> -> vector<16x768xf32>
    %c5_278 = arith.constant 5 : index
    %c0_279 = arith.constant 0 : index
    %c0_280 = arith.constant 0 : index
    %198 = vector.load %arg3[%c5_278, %c0_279, %c0_280] : memref<6x16x1xf32, #tpu.memory_space<vmem>>, vector<1x16x1xf32>
    %199 = vector.shape_cast %198 : vector<1x16x1xf32> to vector<16x1xf32>
    %200 = vector.broadcast %199 : vector<16x1xf32> to vector<16x768xf32>
    %201 = arith.addf %197, %200 : vector<16x768xf32>
    %202 = arith.addf %201, %175 : vector<16x768xf32>
    %203 = vector.broadcast %0 : vector<1x768xf32> to vector<16x768xf32>
    %204 = arith.mulf %202, %203 : vector<16x768xf32>
    %c0_281 = arith.constant 0 : index
    %c0_282 = arith.constant 0 : index
    %205 = vector.load %arg5[%c0_281, %c0_282] : memref<16x768xf32, #tpu.memory_space<vmem>>, vector<16x768xf32>
    tpu.vector_store %arg5[%c0_281, %c0_282], %204 {strides = array<i32>} : memref<16x768xf32, #tpu.memory_space<vmem>>, vector<16x768xf32>,
    return
  }
  func.func @transform_0(%arg0: i32) -> (i32, i32) {
    %c0_i32 = arith.constant 0 : i32
    %c0_i32_0 = arith.constant 0 : i32
    %c0_i32_1 = arith.constant 0 : i32
    return %c0_i32, %c0_i32_0 : i32, i32
  }
  func.func @transform_1(%arg0: i32) -> (i32, i32, i32) {
    %c0_i32 = arith.constant 0 : i32
    %c0_i32_0 = arith.constant 0 : i32
    %c0_i32_1 = arith.constant 0 : i32
    %c0_i32_2 = arith.constant 0 : i32
    return %c0_i32, %c0_i32_0, %c0_i32_1 : i32, i32, i32
  }
  func.func @transform_2(%arg0: i32) -> (i32, i32, i32) {
    %c0_i32 = arith.constant 0 : i32
    %c0_i32_0 = arith.constant 0 : i32
    %c0_i32_1 = arith.constant 0 : i32
    %c0_i32_2 = arith.constant 0 : i32
    return %c0_i32, %c0_i32_0, %c0_i32_1 : i32, i32, i32
  }
  func.func @transform_3(%arg0: i32) -> (i32, i32) {
    %c0_i32 = arith.constant 0 : i32
    %c0_i32_0 = arith.constant 0 : i32
    %c0_i32_1 = arith.constant 0 : i32
    return %c0_i32, %c0_i32_0 : i32, i32
  }
  func.func @transform_4(%arg0: i32) -> (i32, i32) {
    %c0_i32 = arith.constant 0 : i32
    %c0_i32_0 = arith.constant 0 : i32
    %c0_i32_1 = arith.constant 0 : i32
    return %c0_i32, %c0_i32_0 : i32, i32
  }
}

</mosaic_0001>

<llo_original>
// kernel: encoder_forward_pallas.1
$region0: #{encoder_forward_pallas.1}
  #allocation0 [shape = 'u32[]', space=smem, size = 0x4, offset = 0x4, fixed_abs, tag = 'smem constant byte address 0x4 - core index']
  #allocation1 [shape = 'u32[144,128]{1,0:T(1,128)}', space=vmem, size = 0x12000, scoped, tag = 'internal scratch']
  #allocation2 [shape = 'f32[16,1024]{1,0:T(8,128)}', space=vmem, size = 0x10000, scoped, tag = 'scratch operand']
  #allocation3 [shape = 'f32[16,1024]{1,0:T(8,128)}', space=vmem, size = 0x10000, scoped, tag = 'scratch operand']
  #allocation4 [shape = 'f32[256,768]{1,0:T(8,128)}', space=vmem, size = 0xc0000, scoped, tag = 'scratch operand']
  %s0 = inlined_call_operand.vmem [shape: f32[16,1024], index: 0, kind: input, shape index: {}]
  %s1 = inlined_call_operand.vmem [shape: f32[6,16,256], index: 1, kind: input, shape index: {}]
  %s2 = inlined_call_operand.vmem [shape: f32[6,16,1], index: 2, kind: input, shape index: {}]
  %s3 = inlined_call_operand.vmem [shape: f32[1,768], index: 3, kind: input, shape index: {}]
  %s4 = inlined_call_operand.vmem [shape: f32[16,768], index: 4, kind: output, shape index: {}]
  %s5 = sld [smem:[#allocation0]]
  $region26: #{encoder_forward_pallas.1} parent=0
    _
  %s7 = ssub.s32 1, %s5
  %s8 = scalar_select 0, %s7, %s5
  // Predicated region
  $region2: #{encoder_forward_pallas.1} parent=0 // pred_check
    _
  $region3: #{encoder_forward_pallas.1} parent=0 // pred_check_branch
    %10 = sbr.rel (0) target = $region5
  $region4: #{encoder_forward_pallas.1} parent=0 // pred_region
    _
  $region5: #{encoder_forward_pallas.1} parent=0 // pred_fallthru
    _
  // Predicated region
  $region6: #{encoder_forward_pallas.1} parent=0 // pred_check
    _
  $region7: #{encoder_forward_pallas.1} parent=0 // pred_check_branch
    %12 = sbr.rel (0) target = $region9
  $region8: #{encoder_forward_pallas.1} parent=0 // pred_region
    _
  $region9: #{encoder_forward_pallas.1} parent=0 // pred_fallthru
    _
  // Predicated region
  $region10: #{encoder_forward_pallas.1} parent=0 // pred_check
    _
  $region11: #{encoder_forward_pallas.1} parent=0 // pred_check_branch
    %14 = sbr.rel (0) target = $region13
  $region12: #{encoder_forward_pallas.1} parent=0 // pred_region
    _
  $region13: #{encoder_forward_pallas.1} parent=0 // pred_fallthru
    _
  // Predicated region
  $region14: #{encoder_forward_pallas.1} parent=0 // pred_check
    _
  $region15: #{encoder_forward_pallas.1} parent=0 // pred_check_branch
    %16 = sbr.rel (0) target = $region17
  $region16: #{encoder_forward_pallas.1} parent=0 // pred_region
    _
  $region17: #{encoder_forward_pallas.1} parent=0 // pred_fallthru
    _
  %v17 = vld [vmem:[%s3] sm:$0x3f]
  %18 = vst [vmem:[#allocation2] sm:$0xff] 0.0
  %19 = vst [vmem:[#allocation2 + $0x40] sm:$0xff] 0.0
  %20 = vst [vmem:[#allocation2 + $0x38] sm:$0xff] 0.0
  %21 = vst [vmem:[#allocation2 + $0x78] sm:$0xff] 0.0
  %22 = vst [vmem:[#allocation3] sm:$0xff] 0.0
  %23 = vst [vmem:[#allocation3 + $0x40] sm:$0xff] 0.0
  %24 = vst [vmem:[#allocation3 + $0x38] sm:$0xff] 0.0
  %25 = vst [vmem:[#allocation3 + $0x78] sm:$0xff] 0.0
  %26 = vst [vmem:[#allocation4 + $0x360] sm:$0xff] 0.0
  %27 = vst [vmem:[#allocation4 + $0x368] sm:$0xff] 0.0
  %28 = vst [vmem:[#allocation4 + $0x370] sm:$0xff] 0.0
  %29 = vst [vmem:[#allocation4 + $0x378] sm:$0xff] 0.0
  %30 = vst [vmem:[#allocation4 + $0x380] sm:$0xff] 0.0
  %31 = vst [vmem:[#allocation4 + $0x388] sm:$0xff] 0.0
  %32 = vst [vmem:[#allocation4 + $0x390] sm:$0xff] 0.0
  %33 = vst [vmem:[#allocation4 + $0x398] sm:$0xff] 0.0
  %34 = vst [vmem:[#allocation4 + $0x3a0] sm:$0xff] 0.0
  %35 = vst [vmem:[#allocation4 + $0x3a8] sm:$0xff] 0.0
  %36 = vst [vmem:[#allocation4 + $0x3b0] sm:$0xff] 0.0
  %37 = vst [vmem:[#allocation4 + $0x3b8] sm:$0xff] 0.0
  %38 = vst [vmem:[#allocation4 + $0x3c0] sm:$0xff] 0.0
  %39 = vst [vmem:[#allocation4 + $0x3c8] sm:$0xff] 0.0
  %40 = vst [vmem:[#allocation4 + $0x3d0] sm:$0xff] 0.0
  %41 = vst [vmem:[#allocation4 + $0x3d8] sm:$0xff] 0.0
  %42 = vst [vmem:[#allocation4 + $0x3e0] sm:$0xff] 0.0
  %43 = vst [vmem:[#allocation4 + $0x3e8] sm:$0xff] 0.0
  %44 = vst [vmem:[#allocation4 + $0x3f0] sm:$0xff] 0.0
  %45 = vst [vmem:[#allocation4 + $0x3f8] sm:$0xff] 0.0
  %46 = vst [vmem:[#allocation4 + $0x400] sm:$0xff] 0.0
  %47 = vst [vmem:[#allocation4 + $0x408] sm:$0xff] 0.0
  %48 = vst [vmem:[#allocation4 + $0x410] sm:$0xff] 0.0
  %49 = vst [vmem:[#allocation4 + $0x418] sm:$0xff] 0.0
  %50 = vst [vmem:[#allocation4 + $0x420] sm:$0xff] 0.0
  %51 = vst [vmem:[#allocation4 + $0x428] sm:$0xff] 0.0
  %52 = vst [vmem:[#allocation4 + $0x430] sm:$0xff] 0.0
  %53 = vst [vmem:[#allocation4 + $0x438] sm:$0xff] 0.0
  %54 = vst [vmem:[#allocation4 + $0x440] sm:$0xff] 0.0
  %55 = vst [vmem:[#allocation4 + $0x448] sm:$0xff] 0.0
  %56 = vst [vmem:[#allocation4 + $0x450] sm:$0xff] 0.0
  %57 = vst [vmem:[#allocation4 + $0x458] sm:$0xff] 0.0
  %58 = vst [vmem:[#allocation4 + $0x460] sm:$0xff] 0.0
  %59 = vst [vmem:[#allocation4 + $0x468] sm:$0xff] 0.0
  %60 = vst [vmem:[#allocation4 + $0x470] sm:$0xff] 0.0
  %61 = vst [vmem:[#allocation4 + $0x478] sm:$0xff] 0.0
  %62 = vst [vmem:[#allocation4 + $0x480] sm:$0xff] 0.0
  %63 = vst [vmem:[#allocation4 + $0x488] sm:$0xff] 0.0
  %64 = vst [vmem:[#allocation4 + $0x490] sm:$0xff] 0.0
  %65 = vst [vmem:[#allocation4 + $0x498] sm:$0xff] 0.0
  %66 = vst [vmem:[#allocation4 + $0x4a0] sm:$0xff] 0.0
  %67 = vst [vmem:[#allocation4 + $0x4a8] sm:$0xff] 0.0
  %68 = vst [vmem:[#allocation4 + $0x4b0] sm:$0xff] 0.0
  %69 = vst [vmem:[#allocation4 + $0x4b8] sm:$0xff] 0.0
  %70 = vst [vmem:[#allocation4 + $0x4c0] sm:$0xff] 0.0
  %71 = vst [vmem:[#allocation4 + $0x4c8] sm:$0xff] 0.0
  %72 = vst [vmem:[#allocation4 + $0x4d0] sm:$0xff] 0.0
  %73 = vst [vmem:[#allocation4 + $0x4d8] sm:$0xff] 0.0
  %74 = vst [vmem:[#allocation4 + $0x4e0] sm:$0xff] 0.0
  %75 = vst [vmem:[#allocation4 + $0x4e8] sm:$0xff] 0.0
  %76 = vst [vmem:[#allocation4 + $0x4f0] sm:$0xff] 0.0
  %77 = vst [vmem:[#allocation4 + $0x4f8] sm:$0xff] 0.0
  %78 = vst [vmem:[#allocation4 + $0x500] sm:$0xff] 0.0
  %79 = vst [vmem:[#allocation4 + $0x508] sm:$0xff] 0.0
  %80 = vst [vmem:[#allocation4 + $0x510] sm:$0xff] 0.0
  %81 = vst [vmem:[#allocation4 + $0x518] sm:$0xff] 0.0
  %82 = vst [vmem:[#allocation4 + $0x520] sm:$0xff] 0.0
  %83 = vst [vmem:[#allocation4 + $0x528] sm:$0xff] 0.0
  %84 = vst [vmem:[#allocation4 + $0x530] sm:$0xff] 0.0
  %85 = vst [vmem:[#allocation4 + $0x538] sm:$0xff] 0.0
  %86 = vst [vmem:[#allocation4 + $0x540] sm:$0xff] 0.0
  %87 = vst [vmem:[#allocation4 + $0x548] sm:$0xff] 0.0
  %88 = vst [vmem:[#allocation4 + $0x550] sm:$0xff] 0.0
  %89 = vst [vmem:[#allocation4 + $0x558] sm:$0xff] 0.0
  %90 = vst [vmem:[#allocation4 + $0x560] sm:$0xff] 0.0
  %91 = vst [vmem:[#allocation4 + $0x568] sm:$0xff] 0.0
  %92 = vst [vmem:[#allocation4 + $0x570] sm:$0xff] 0.0
  %93 = vst [vmem:[#allocation4 + $0x578] sm:$0xff] 0.0
  %94 = vst [vmem:[#allocation4 + $0x580] sm:$0xff] 0.0
  %95 = vst [vmem:[#allocation4 + $0x588] sm:$0xff] 0.0
  %96 = vst [vmem:[#allocation4 + $0x590] sm:$0xff] 0.0
  %97 = vst [vmem:[#allocation4 + $0x598] sm:$0xff] 0.0
  %98 = vst [vmem:[#allocation4 + $0x5a0] sm:$0xff] 0.0
  %99 = vst [vmem:[#allocation4 + $0x5a8] sm:$0xff] 0.0
  %100 = vst [vmem:[#allocation4 + $0x5b0] sm:$0xff] 0.0
  %101 = vst [vmem:[#allocation4 + $0x5b8] sm:$0xff] 0.0
  %102 = vst [vmem:[#allocation4 + $0x5c0] sm:$0xff] 0.0
  %103 = vst [vmem:[#allocation4 + $0x5c8] sm:$0xff] 0.0
  %104 = vst [vmem:[#allocation4 + $0x5d0] sm:$0xff] 0.0
  %105 = vst [vmem:[#allocation4 + $0x5d8] sm:$0xff] 0.0
  %106 = vst [vmem:[#allocation4 + $0x5e0] sm:$0xff] 0.0
  %107 = vst [vmem:[#allocation4 + $0x5e8] sm:$0xff] 0.0
  %108 = vst [vmem:[#allocation4 + $0x5f0] sm:$0xff] 0.0
  %109 = vst [vmem:[#allocation4 + $0x5f8] sm:$0xff] 0.0
  %v110 = vld [vmem:[%s0] sm:$0xff]
  %v111 = vld [vmem:[%s0 + $0x8] sm:$0xff]
  %v112 = vld [vmem:[%s0 + $0x10] sm:$0xff]
  %v113 = vld [vmem:[%s0 + $0x18] sm:$0xff]
  %v114 = vld [vmem:[%s0 + $0x20] sm:$0xff]
  %v115 = vld [vmem:[%s0 + $0x28] sm:$0xff]
  %v116 = vld [vmem:[%s0 + $0x30] sm:$0xff]
  %v117 = vld [vmem:[%s0 + $0x40] sm:$0xff]
  %v118 = vld [vmem:[%s0 + $0x48] sm:$0xff]
  %v119 = vld [vmem:[%s0 + $0x50] sm:$0xff]
  %v120 = vld [vmem:[%s0 + $0x58] sm:$0xff]
  %v121 = vld [vmem:[%s0 + $0x60] sm:$0xff]
  %v122 = vld [vmem:[%s0 + $0x68] sm:$0xff]
  %v123 = vld [vmem:[%s0 + $0x70] sm:$0xff]
  %138 = vrot.lane.b32.xlu0 %v110, 19
  %v139 = vpop.permute.xlu0 %138
  %140 = vrot.lane.b32.xlu0 %v111, 19
  %v141 = vpop.permute.xlu0 %140
  %142 = vrot.lane.b32.xlu0 %v112, 19
  %v143 = vpop.permute.xlu0 %142
  %144 = vrot.lane.b32.xlu0 %v113, 19
  %v145 = vpop.permute.xlu0 %144
  %146 = vrot.lane.b32.xlu0 %v114, 19
  %v147 = vpop.permute.xlu0 %146
  %148 = vrot.lane.b32.xlu0 %v115, 19
  %v149 = vpop.permute.xlu0 %148
  %150 = vrot.lane.b32.xlu0 %v116, 19
  %v151 = vpop.permute.xlu0 %150
  %152 = vrot.lane.b32.xlu0 %v117, 19
  %v153 = vpop.permute.xlu0 %152
  %154 = vrot.lane.b32.xlu0 %v118, 19
  %v155 = vpop.permute.xlu0 %154
  %156 = vrot.lane.b32.xlu0 %v119, 19
  %v157 = vpop.permute.xlu0 %156
  %158 = vrot.lane.b32.xlu0 %v120, 19
  %v159 = vpop.permute.xlu0 %158
  %160 = vrot.lane.b32.xlu0 %v121, 19
  %v161 = vpop.permute.xlu0 %160
  %162 = vrot.lane.b32.xlu0 %v122, 19
  %v163 = vpop.permute.xlu0 %162
  %164 = vrot.lane.b32.xlu0 %v123, 19
  %v165 = vpop.permute.xlu0 %164
  %vm166 = vcmask 154624
  %v167 = vsel %vm166, %v139, %v141
  %v168 = vsel %vm166, %v141, %v143
  %v169 = vsel %vm166, %v143, %v145
  %v170 = vsel %vm166, %v145, %v147
  %v171 = vsel %vm166, %v147, %v149
  %v172 = vsel %vm166, %v149, %v151
  %v173 = vsel %vm166, %v153, %v155
  %v174 = vsel %vm166, %v155, %v157
  %v175 = vsel %vm166, %v157, %v159
  %v176 = vsel %vm166, %v159, %v161
  %v177 = vsel %vm166, %v161, %v163
  %v178 = vsel %vm166, %v163, %v165
  %191 = vst [vmem:[#allocation4] sm:$0xff] %v167
  %192 = vst [vmem:[#allocation4 + $0x8] sm:$0xff] %v168
  %193 = vst [vmem:[#allocation4 + $0x10] sm:$0xff] %v169
  %194 = vst [vmem:[#allocation4 + $0x18] sm:$0xff] %v170
  %195 = vst [vmem:[#allocation4 + $0x20] sm:$0xff] %v171
  %196 = vst [vmem:[#allocation4 + $0x28] sm:$0xff] %v172
  %197 = vst [vmem:[#allocation4 + $0x30] sm:$0xff] %v173
  %198 = vst [vmem:[#allocation4 + $0x38] sm:$0xff] %v174
  %199 = vst [vmem:[#allocation4 + $0x40] sm:$0xff] %v175
  %200 = vst [vmem:[#allocation4 + $0x48] sm:$0xff] %v176
  %201 = vst [vmem:[#allocation4 + $0x50] sm:$0xff] %v177
  %202 = vst [vmem:[#allocation4 + $0x58] sm:$0xff] %v178
  %v203 = vld [vmem:[%s0] sm:$0xff]
  %v204 = vld [vmem:[%s0 + $0x8] sm:$0xff]
  %v205 = vld [vmem:[%s0 + $0x10] sm:$0xff]
  %v206 = vld [vmem:[%s0 + $0x18] sm:$0xff]
  %v207 = vld [vmem:[%s0 + $0x20] sm:$0xff]
  %v208 = vld [vmem:[%s0 + $0x28] sm:$0xff]
  %v209 = vld [vmem:[%s0 + $0x30] sm:$0xff]
  %v210 = vld [vmem:[%s0 + $0x40] sm:$0xff]
  %v211 = vld [vmem:[%s0 + $0x48] sm:$0xff]
  %v212 = vld [vmem:[%s0 + $0x50] sm:$0xff]
  %v213 = vld [vmem:[%s0 + $0x58] sm:$0xff]
  %v214 = vld [vmem:[%s0 + $0x60] sm:$0xff]
  %v215 = vld [vmem:[%s0 + $0x68] sm:$0xff]
  %v216 = vld [vmem:[%s0 + $0x70] sm:$0xff]
  %231 = vrot.lane.b32.xlu0 %v203, 18
  %v232 = vpop.permute.xlu0 %231
  %233 = vrot.lane.b32.xlu0 %v204, 18
  %v234 = vpop.permute.xlu0 %233
  %235 = vrot.lane.b32.xlu0 %v205, 18
  %v236 = vpop.permute.xlu0 %235
  %237 = vrot.lane.b32.xlu0 %v206, 18
  %v238 = vpop.permute.xlu0 %237
  %239 = vrot.lane.b32.xlu0 %v207, 18
  %v240 = vpop.permute.xlu0 %239
  %241 = vrot.lane.b32.xlu0 %v208, 18
  %v242 = vpop.permute.xlu0 %241
  %243 = vrot.lane.b32.xlu0 %v209, 18
  %v244 = vpop.permute.xlu0 %243
  %245 = vrot.lane.b32.xlu0 %v210, 18
  %v246 = vpop.permute.xlu0 %245
  %247 = vrot.lane.b32.xlu0 %v211, 18
  %v248 = vpop.permute.xlu0 %247
  %249 = vrot.lane.b32.xlu0 %v212, 18
  %v250 = vpop.permute.xlu0 %249
  %251 = vrot.lane.b32.xlu0 %v213, 18
  %v252 = vpop.permute.xlu0 %251
  %253 = vrot.lane.b32.xlu0 %v214, 18
  %v254 = vpop.permute.xlu0 %253
  %255 = vrot.lane.b32.xlu0 %v215, 18
  %v256 = vpop.permute.xlu0 %255
  %257 = vrot.lane.b32.xlu0 %v216, 18
  %v258 = vpop.permute.xlu0 %257
  %vm259 = vcmask 146432
  %v260 = vsel %vm259, %v232, %v234
  %v261 = vsel %vm259, %v234, %v236
  %v262 = vsel %vm259, %v236, %v238
  %v263 = vsel %vm259, %v238, %v240
  %v264 = vsel %vm259, %v240, %v242
  %v265 = vsel %vm259, %v242, %v244
  %v266 = vsel %vm259, %v246, %v248
  %v267 = vsel %vm259, %v248, %v250
  %v268 = vsel %vm259, %v250, %v252
  %v269 = vsel %vm259, %v252, %v254
  %v270 = vsel %vm259, %v254, %v256
  %v271 = vsel %vm259, %v256, %v258
  %284 = vst [vmem:[#allocation4 + $0x60] sm:$0xff] %v260
  %285 = vst [vmem:[#allocation4 + $0x68] sm:$0xff] %v261
  %286 = vst [vmem:[#allocation4 + $0x70] sm:$0xff] %v262
  %287 = vst [vmem:[#allocation4 + $0x78] sm:$0xff] %v263
  %288 = vst [vmem:[#allocation4 + $0x80] sm:$0xff] %v264
  %289 = vst [vmem:[#allocation4 + $0x88] sm:$0xff] %v265
  %290 = vst [vmem:[#allocation4 + $0x90] sm:$0xff] %v266
  %291 = vst [vmem:[#allocation4 + $0x98] sm:$0xff] %v267
  %292 = vst [vmem:[#allocation4 + $0xa0] sm:$0xff] %v268
  %293 = vst [vmem:[#allocation4 + $0xa8] sm:$0xff] %v269
  %294 = vst [vmem:[#allocation4 + $0xb0] sm:$0xff] %v270
  %295 = vst [vmem:[#allocation4 + $0xb8] sm:$0xff] %v271
  %v296 = vld [vmem:[%s0] sm:$0xff]
  %v297 = vld [vmem:[%s0 + $0x8] sm:$0xff]
  %v298 = vld [vmem:[%s0 + $0x10] sm:$0xff]
  %v299 = vld [vmem:[%s0 + $0x18] sm:$0xff]
  %v300 = vld [vmem:[%s0 + $0x20] sm:$0xff]
  %v301 = vld [vmem:[%s0 + $0x28] sm:$0xff]
  %v302 = vld [vmem:[%s0 + $0x30] sm:$0xff]
  %v303 = vld [vmem:[%s0 + $0x40] sm:$0xff]
  %v304 = vld [vmem:[%s0 + $0x48] sm:$0xff]
  %v305 = vld [vmem:[%s0 + $0x50] sm:$0xff]
  %v306 = vld [vmem:[%s0 + $0x58] sm:$0xff]
  %v307 = vld [vmem:[%s0 + $0x60] sm:$0xff]
  %v308 = vld [vmem:[%s0 + $0x68] sm:$0xff]
  %v309 = vld [vmem:[%s0 + $0x70] sm:$0xff]
  %324 = vrot.lane.b32.xlu0 %v296, 17
  %v325 = vpop.permute.xlu0 %324
  %326 = vrot.lane.b32.xlu0 %v297, 17
  %v327 = vpop.permute.xlu0 %326
  %328 = vrot.lane.b32.xlu0 %v298, 17
  %v329 = vpop.permute.xlu0 %328
  %330 = vrot.lane.b32.xlu0 %v299, 17
  %v331 = vpop.permute.xlu0 %330
  %332 = vrot.lane.b32.xlu0 %v300, 17
  %v333 = vpop.permute.xlu0 %332
  %334 = vrot.lane.b32.xlu0 %v301, 17
  %v335 = vpop.permute.xlu0 %334
  %336 = vrot.lane.b32.xlu0 %v302, 17
  %v337 = vpop.permute.xlu0 %336
  %338 = vrot.lane.b32.xlu0 %v303, 17
  %v339 = vpop.permute.xlu0 %338
  %340 = vrot.lane.b32.xlu0 %v304, 17
  %v341 = vpop.permute.xlu0 %340
  %342 = vrot.lane.b32.xlu0 %v305, 17
  %v343 = vpop.permute.xlu0 %342
  %344 = vrot.lane.b32.xlu0 %v306, 17
  %v345 = vpop.permute.xlu0 %344
  %346 = vrot.lane.b32.xlu0 %v307, 17
  %v347 = vpop.permute.xlu0 %346
  %348 = vrot.lane.b32.xlu0 %v308, 17
  %v349 = vpop.permute.xlu0 %348
  %350 = vrot.lane.b32.xlu0 %v309, 17
  %v351 = vpop.permute.xlu0 %350
  %vm352 = vcmask 138240
  %v353 = vsel %vm352, %v325, %v327
  %v354 = vsel %vm352, %v327, %v329
  %v355 = vsel %vm352, %v329, %v331
  %v356 = vsel %vm352, %v331, %v333
  %v357 = vsel %vm352, %v333, %v335
  %v358 = vsel %vm352, %v335, %v337
  %v359 = vsel %vm352, %v339, %v341
  %v360 = vsel %vm352, %v341, %v343
  %v361 = vsel %vm352, %v343, %v345
  %v362 = vsel %vm352, %v345, %v347
  %v363 = vsel %vm352, %v347, %v349
  %v364 = vsel %vm352, %v349, %v351
  %377 = vst [vmem:[#allocation4 + $0xc0] sm:$0xff] %v353
  %378 = vst [vmem:[#allocation4 + $0xc8] sm:$0xff] %v354
  %379 = vst [vmem:[#allocation4 + $0xd0] sm:$0xff] %v355
  %380 = vst [vmem:[#allocation4 + $0xd8] sm:$0xff] %v356
  %381 = vst [vmem:[#allocation4 + $0xe0] sm:$0xff] %v357
  %382 = vst [vmem:[#allocation4 + $0xe8] sm:$0xff] %v358
  %383 = vst [vmem:[#allocation4 + $0xf0] sm:$0xff] %v359
  %384 = vst [vmem:[#allocation4 + $0xf8] sm:$0xff] %v360
  %385 = vst [vmem:[#allocation4 + $0x100] sm:$0xff] %v361
  %386 = vst [vmem:[#allocation4 + $0x108] sm:$0xff] %v362
  %387 = vst [vmem:[#allocation4 + $0x110] sm:$0xff] %v363
  %388 = vst [vmem:[#allocation4 + $0x118] sm:$0xff] %v364
  %v389 = vld [vmem:[%s0] sm:$0xff]
  %v390 = vld [vmem:[%s0 + $0x8] sm:$0xff]
  %v391 = vld [vmem:[%s0 + $0x10] sm:$0xff]
  %v392 = vld [vmem:[%s0 + $0x18] sm:$0xff]
  %v393 = vld [vmem:[%s0 + $0x20] sm:$0xff]
  %v394 = vld [vmem:[%s0 + $0x28] sm:$0xff]
  %v395 = vld [vmem:[%s0 + $0x30] sm:$0xff]
  %v396 = vld [vmem:[%s0 + $0x40] sm:$0xff]
  %v397 = vld [vmem:[%s0 + $0x48] sm:$0xff]
  %v398 = vld [vmem:[%s0 + $0x50] sm:$0xff]
  %v399 = vld [vmem:[%s0 + $0x58] sm:$0xff]
  %v400 = vld [vmem:[%s0 + $0x60] sm:$0xff]
  %v401 = vld [vmem:[%s0 + $0x68] sm:$0xff]
  %v402 = vld [vmem:[%s0 + $0x70] sm:$0xff]
  %417 = vrot.lane.b32.xlu0 %v389, 1
  %v418 = vpop.permute.xlu0 %417
  %419 = vrot.lane.b32.xlu0 %v390, 1
  %v420 = vpop.permute.xlu0 %419
  %421 = vrot.lane.b32.xlu0 %v391, 1
  %v422 = vpop.permute.xlu0 %421
  %423 = vrot.lane.b32.xlu0 %v392, 1
  %v424 = vpop.permute.xlu0 %423
  %425 = vrot.lane.b32.xlu0 %v393, 1
  %v426 = vpop.permute.xlu0 %425
  %427 = vrot.lane.b32.xlu0 %v394, 1
  %v428 = vpop.permute.xlu0 %427
  %429 = vrot.lane.b32.xlu0 %v395, 1
  %v430 = vpop.permute.xlu0 %429
  %431 = vrot.lane.b32.xlu0 %v396, 1
  %v432 = vpop.permute.xlu0 %431
  %433 = vrot.lane.b32.xlu0 %v397, 1
  %v434 = vpop.permute.xlu0 %433
  %435 = vrot.lane.b32.xlu0 %v398, 1
  %v436 = vpop.permute.xlu0 %435
  %437 = vrot.lane.b32.xlu0 %v399, 1
  %v438 = vpop.permute.xlu0 %437
  %439 = vrot.lane.b32.xlu0 %v400, 1
  %v440 = vpop.permute.xlu0 %439
  %441 = vrot.lane.b32.xlu0 %v401, 1
  %v442 = vpop.permute.xlu0 %441
  %443 = vrot.lane.b32.xlu0 %v402, 1
  %v444 = vpop.permute.xlu0 %443
  %vm445 = vcmask 7168
  %v446 = vsel %vm445, %v418, %v420
  %v447 = vsel %vm445, %v420, %v422
  %v448 = vsel %vm445, %v422, %v424
  %v449 = vsel %vm445, %v424, %v426
  %v450 = vsel %vm445, %v426, %v428
  %v451 = vsel %vm445, %v428, %v430
  %v452 = vsel %vm445, %v432, %v434
  %v453 = vsel %vm445, %v434, %v436
  %v454 = vsel %vm445, %v436, %v438
  %v455 = vsel %vm445, %v438, %v440
  %v456 = vsel %vm445, %v440, %v442
  %v457 = vsel %vm445, %v442, %v444
  %470 = vst [vmem:[#allocation4 + $0x120] sm:$0xff] %v446
  %471 = vst [vmem:[#allocation4 + $0x128] sm:$0xff] %v447
  %472 = vst [vmem:[#allocation4 + $0x130] sm:$0xff] %v448
  %473 = vst [vmem:[#allocation4 + $0x138] sm:$0xff] %v449
  %474 = vst [vmem:[#allocation4 + $0x140] sm:$0xff] %v450
  %475 = vst [vmem:[#allocation4 + $0x148] sm:$0xff] %v451
  %476 = vst [vmem:[#allocation4 + $0x150] sm:$0xff] %v452
  %477 = vst [vmem:[#allocation4 + $0x158] sm:$0xff] %v453
  %478 = vst [vmem:[#allocation4 + $0x160] sm:$0xff] %v454
  %479 = vst [vmem:[#allocation4 + $0x168] sm:$0xff] %v455
  %480 = vst [vmem:[#allocation4 + $0x170] sm:$0xff] %v456
  %481 = vst [vmem:[#allocation4 + $0x178] sm:$0xff] %v457
  %v482 = vld [vmem:[%s0 + $0x8] sm:$0xff]
  %v483 = vld [vmem:[%s0 + $0x10] sm:$0xff]
  %v484 = vld [vmem:[%s0 + $0x18] sm:$0xff]
  %v485 = vld [vmem:[%s0 + $0x20] sm:$0xff]
  %v486 = vld [vmem:[%s0 + $0x28] sm:$0xff]
  %v487 = vld [vmem:[%s0 + $0x30] sm:$0xff]
  %v488 = vld [vmem:[%s0 + $0x48] sm:$0xff]
  %v489 = vld [vmem:[%s0 + $0x50] sm:$0xff]
  %v490 = vld [vmem:[%s0 + $0x58] sm:$0xff]
  %v491 = vld [vmem:[%s0 + $0x60] sm:$0xff]
  %v492 = vld [vmem:[%s0 + $0x68] sm:$0xff]
  %v493 = vld [vmem:[%s0 + $0x70] sm:$0xff]
  %494 = vst [vmem:[#allocation4 + $0x180] sm:$0xff] %v482
  %495 = vst [vmem:[#allocation4 + $0x188] sm:$0xff] %v483
  %496 = vst [vmem:[#allocation4 + $0x190] sm:$0xff] %v484
  %497 = vst [vmem:[#allocation4 + $0x198] sm:$0xff] %v485
  %498 = vst [vmem:[#allocation4 + $0x1a0] sm:$0xff] %v486
  %499 = vst [vmem:[#allocation4 + $0x1a8] sm:$0xff] %v487
  %500 = vst [vmem:[#allocation4 + $0x1b0] sm:$0xff] %v488
  %501 = vst [vmem:[#allocation4 + $0x1b8] sm:$0xff] %v489
  %502 = vst [vmem:[#allocation4 + $0x1c0] sm:$0xff] %v490
  %503 = vst [vmem:[#allocation4 + $0x1c8] sm:$0xff] %v491
  %504 = vst [vmem:[#allocation4 + $0x1d0] sm:$0xff] %v492
  %505 = vst [vmem:[#allocation4 + $0x1d8] sm:$0xff] %v493
  %v506 = vld [vmem:[%s0 + $0x8] sm:$0xff]
  %v507 = vld [vmem:[%s0 + $0x10] sm:$0xff]
  %v508 = vld [vmem:[%s0 + $0x18] sm:$0xff]
  %v509 = vld [vmem:[%s0 + $0x20] sm:$0xff]
  %v510 = vld [vmem:[%s0 + $0x28] sm:$0xff]
  %v511 = vld [vmem:[%s0 + $0x30] sm:$0xff]
  %v512 = vld [vmem:[%s0 + $0x38] sm:$0xff]
  %v513 = vld [vmem:[%s0 + $0x48] sm:$0xff]
  %v514 = vld [vmem:[%s0 + $0x50] sm:$0xff]
  %v515 = vld [vmem:[%s0 + $0x58] sm:$0xff]
  %v516 = vld [vmem:[%s0 + $0x60] sm:$0xff]
  %v517 = vld [vmem:[%s0 + $0x68] sm:$0xff]
  %v518 = vld [vmem:[%s0 + $0x70] sm:$0xff]
  %v519 = vld [vmem:[%s0 + $0x78] sm:$0xff]
  %534 = vrot.lane.b32.xlu0 %v506, 127
  %v535 = vpop.permute.xlu0 %534
  %536 = vrot.lane.b32.xlu0 %v507, 127
  %v537 = vpop.permute.xlu0 %536
  %538 = vrot.lane.b32.xlu0 %v508, 127
  %v539 = vpop.permute.xlu0 %538
  %540 = vrot.lane.b32.xlu0 %v509, 127
  %v541 = vpop.permute.xlu0 %540
  %542 = vrot.lane.b32.xlu0 %v510, 127
  %v543 = vpop.permute.xlu0 %542
  %544 = vrot.lane.b32.xlu0 %v511, 127
  %v545 = vpop.permute.xlu0 %544
  %546 = vrot.lane.b32.xlu0 %v512, 127
  %v547 = vpop.permute.xlu0 %546
  %548 = vrot.lane.b32.xlu0 %v513, 127
  %v549 = vpop.permute.xlu0 %548
  %550 = vrot.lane.b32.xlu0 %v514, 127
  %v551 = vpop.permute.xlu0 %550
  %552 = vrot.lane.b32.xlu0 %v515, 127
  %v553 = vpop.permute.xlu0 %552
  %554 = vrot.lane.b32.xlu0 %v516, 127
  %v555 = vpop.permute.xlu0 %554
  %556 = vrot.lane.b32.xlu0 %v517, 127
  %v557 = vpop.permute.xlu0 %556
  %558 = vrot.lane.b32.xlu0 %v518, 127
  %v559 = vpop.permute.xlu0 %558
  %560 = vrot.lane.b32.xlu0 %v519, 127
  %v561 = vpop.permute.xlu0 %560
  %vm562 = vcmask 1039360
  %v563 = vsel %vm562, %v535, %v537
  %v564 = vsel %vm562, %v537, %v539
  %v565 = vsel %vm562, %v539, %v541
  %v566 = vsel %vm562, %v541, %v543
  %v567 = vsel %vm562, %v543, %v545
  %v568 = vsel %vm562, %v545, %v547
  %v569 = vsel %vm562, %v549, %v551
  %v570 = vsel %vm562, %v551, %v553
  %v571 = vsel %vm562, %v553, %v555
  %v572 = vsel %vm562, %v555, %v557
  %v573 = vsel %vm562, %v557, %v559
  %v574 = vsel %vm562, %v559, %v561
  %587 = vst [vmem:[#allocation4 + $0x1e0] sm:$0xff] %v563
  %588 = vst [vmem:[#allocation4 + $0x1e8] sm:$0xff] %v564
  %589 = vst [vmem:[#allocation4 + $0x1f0] sm:$0xff] %v565
  %590 = vst [vmem:[#allocation4 + $0x1f8] sm:$0xff] %v566
  %591 = vst [vmem:[#allocation4 + $0x200] sm:$0xff] %v567
  %592 = vst [vmem:[#allocation4 + $0x208] sm:$0xff] %v568
  %593 = vst [vmem:[#allocation4 + $0x210] sm:$0xff] %v569
  %594 = vst [vmem:[#allocation4 + $0x218] sm:$0xff] %v570
  %595 = vst [vmem:[#allocation4 + $0x220] sm:$0xff] %v571
  %596 = vst [vmem:[#allocation4 + $0x228] sm:$0xff] %v572
  %597 = vst [vmem:[#allocation4 + $0x230] sm:$0xff] %v573
  %598 = vst [vmem:[#allocation4 + $0x238] sm:$0xff] %v574
  %v599 = vld [vmem:[%s0 + $0x8] sm:$0xff]
  %v600 = vld [vmem:[%s0 + $0x10] sm:$0xff]
  %v601 = vld [vmem:[%s0 + $0x18] sm:$0xff]
  %v602 = vld [vmem:[%s0 + $0x20] sm:$0xff]
  %v603 = vld [vmem:[%s0 + $0x28] sm:$0xff]
  %v604 = vld [vmem:[%s0 + $0x30] sm:$0xff]
  %v605 = vld [vmem:[%s0 + $0x38] sm:$0xff]
  %v606 = vld [vmem:[%s0 + $0x48] sm:$0xff]
  %v607 = vld [vmem:[%s0 + $0x50] sm:$0xff]
  %v608 = vld [vmem:[%s0 + $0x58] sm:$0xff]
  %v609 = vld [vmem:[%s0 + $0x60] sm:$0xff]
  %v610 = vld [vmem:[%s0 + $0x68] sm:$0xff]
  %v611 = vld [vmem:[%s0 + $0x70] sm:$0xff]
  %v612 = vld [vmem:[%s0 + $0x78] sm:$0xff]
  %627 = vrot.lane.b32.xlu0 %v599, 111
  %v628 = vpop.permute.xlu0 %627
  %629 = vrot.lane.b32.xlu0 %v600, 111
  %v630 = vpop.permute.xlu0 %629
  %631 = vrot.lane.b32.xlu0 %v601, 111
  %v632 = vpop.permute.xlu0 %631
  %633 = vrot.lane.b32.xlu0 %v602, 111
  %v634 = vpop.permute.xlu0 %633
  %635 = vrot.lane.b32.xlu0 %v603, 111
  %v636 = vpop.permute.xlu0 %635
  %637 = vrot.lane.b32.xlu0 %v604, 111
  %v638 = vpop.permute.xlu0 %637
  %639 = vrot.lane.b32.xlu0 %v605, 111
  %v640 = vpop.permute.xlu0 %639
  %641 = vrot.lane.b32.xlu0 %v606, 111
  %v642 = vpop.permute.xlu0 %641
  %643 = vrot.lane.b32.xlu0 %v607, 111
  %v644 = vpop.permute.xlu0 %643
  %645 = vrot.lane.b32.xlu0 %v608, 111
  %v646 = vpop.permute.xlu0 %645
  %647 = vrot.lane.b32.xlu0 %v609, 111
  %v648 = vpop.permute.xlu0 %647
  %649 = vrot.lane.b32.xlu0 %v610, 111
  %v650 = vpop.permute.xlu0 %649
  %651 = vrot.lane.b32.xlu0 %v611, 111
  %v652 = vpop.permute.xlu0 %651
  %653 = vrot.lane.b32.xlu0 %v612, 111
  %v654 = vpop.permute.xlu0 %653
  %vm655 = vcmask 908288
  %v656 = vsel %vm655, %v628, %v630
  %v657 = vsel %vm655, %v630, %v632
  %v658 = vsel %vm655, %v632, %v634
  %v659 = vsel %vm655, %v634, %v636
  %v660 = vsel %vm655, %v636, %v638
  %v661 = vsel %vm655, %v638, %v640
  %v662 = vsel %vm655, %v642, %v644
  %v663 = vsel %vm655, %v644, %v646
  %v664 = vsel %vm655, %v646, %v648
  %v665 = vsel %vm655, %v648, %v650
  %v666 = vsel %vm655, %v650, %v652
  %v667 = vsel %vm655, %v652, %v654
  %680 = vst [vmem:[#allocation4 + $0x240] sm:$0xff] %v656
  %681 = vst [vmem:[#allocation4 + $0x248] sm:$0xff] %v657
  %682 = vst [vmem:[#allocation4 + $0x250] sm:$0xff] %v658
  %683 = vst [vmem:[#allocation4 + $0x258] sm:$0xff] %v659
  %684 = vst [vmem:[#allocation4 + $0x260] sm:$0xff] %v660
  %685 = vst [vmem:[#allocation4 + $0x268] sm:$0xff] %v661
  %686 = vst [vmem:[#allocation4 + $0x270] sm:$0xff] %v662
  %687 = vst [vmem:[#allocation4 + $0x278] sm:$0xff] %v663
  %688 = vst [vmem:[#allocation4 + $0x280] sm:$0xff] %v664
  %689 = vst [vmem:[#allocation4 + $0x288] sm:$0xff] %v665
  %690 = vst [vmem:[#allocation4 + $0x290] sm:$0xff] %v666
  %691 = vst [vmem:[#allocation4 + $0x298] sm:$0xff] %v667
  %v692 = vld [vmem:[%s0 + $0x8] sm:$0xff]
  %v693 = vld [vmem:[%s0 + $0x10] sm:$0xff]
  %v694 = vld [vmem:[%s0 + $0x18] sm:$0xff]
  %v695 = vld [vmem:[%s0 + $0x20] sm:$0xff]
  %v696 = vld [vmem:[%s0 + $0x28] sm:$0xff]
  %v697 = vld [vmem:[%s0 + $0x30] sm:$0xff]
  %v698 = vld [vmem:[%s0 + $0x38] sm:$0xff]
  %v699 = vld [vmem:[%s0 + $0x48] sm:$0xff]
  %v700 = vld [vmem:[%s0 + $0x50] sm:$0xff]
  %v701 = vld [vmem:[%s0 + $0x58] sm:$0xff]
  %v702 = vld [vmem:[%s0 + $0x60] sm:$0xff]
  %v703 = vld [vmem:[%s0 + $0x68] sm:$0xff]
  %v704 = vld [vmem:[%s0 + $0x70] sm:$0xff]
  %v705 = vld [vmem:[%s0 + $0x78] sm:$0xff]
  %720 = vrot.lane.b32.xlu0 %v692, 110
  %v721 = vpop.permute.xlu0 %720
  %722 = vrot.lane.b32.xlu0 %v693, 110
  %v723 = vpop.permute.xlu0 %722
  %724 = vrot.lane.b32.xlu0 %v694, 110
  %v725 = vpop.permute.xlu0 %724
  %726 = vrot.lane.b32.xlu0 %v695, 110
  %v727 = vpop.permute.xlu0 %726
  %728 = vrot.lane.b32.xlu0 %v696, 110
  %v729 = vpop.permute.xlu0 %728
  %730 = vrot.lane.b32.xlu0 %v697, 110
  %v731 = vpop.permute.xlu0 %730
  %732 = vrot.lane.b32.xlu0 %v698, 110
  %v733 = vpop.permute.xlu0 %732
  %734 = vrot.lane.b32.xlu0 %v699, 110
  %v735 = vpop.permute.xlu0 %734
  %736 = vrot.lane.b32.xlu0 %v700, 110
  %v737 = vpop.permute.xlu0 %736
  %738 = vrot.lane.b32.xlu0 %v701, 110
  %v739 = vpop.permute.xlu0 %738
  %740 = vrot.lane.b32.xlu0 %v702, 110
  %v741 = vpop.permute.xlu0 %740
  %742 = vrot.lane.b32.xlu0 %v703, 110
  %v743 = vpop.permute.xlu0 %742
  %744 = vrot.lane.b32.xlu0 %v704, 110
  %v745 = vpop.permute.xlu0 %744
  %746 = vrot.lane.b32.xlu0 %v705, 110
  %v747 = vpop.permute.xlu0 %746
  %vm748 = vcmask 900096
  %v749 = vsel %vm748, %v721, %v723
  %v750 = vsel %vm748, %v723, %v725
  %v751 = vsel %vm748, %v725, %v727
  %v752 = vsel %vm748, %v727, %v729
  %v753 = vsel %vm748, %v729, %v731
  %v754 = vsel %vm748, %v731, %v733
  %v755 = vsel %vm748, %v735, %v737
  %v756 = vsel %vm748, %v737, %v739
  %v757 = vsel %vm748, %v739, %v741
  %v758 = vsel %vm748, %v741, %v743
  %v759 = vsel %vm748, %v743, %v745
  %v760 = vsel %vm748, %v745, %v747
  %773 = vst [vmem:[#allocation4 + $0x2a0] sm:$0xff] %v749
  %774 = vst [vmem:[#allocation4 + $0x2a8] sm:$0xff] %v750
  %775 = vst [vmem:[#allocation4 + $0x2b0] sm:$0xff] %v751
  %776 = vst [vmem:[#allocation4 + $0x2b8] sm:$0xff] %v752
  %777 = vst [vmem:[#allocation4 + $0x2c0] sm:$0xff] %v753
  %778 = vst [vmem:[#allocation4 + $0x2c8] sm:$0xff] %v754
  %779 = vst [vmem:[#allocation4 + $0x2d0] sm:$0xff] %v755
  %780 = vst [vmem:[#allocation4 + $0x2d8] sm:$0xff] %v756
  %781 = vst [vmem:[#allocation4 + $0x2e0] sm:$0xff] %v757
  %782 = vst [vmem:[#allocation4 + $0x2e8] sm:$0xff] %v758
  %783 = vst [vmem:[#allocation4 + $0x2f0] sm:$0xff] %v759
  %784 = vst [vmem:[#allocation4 + $0x2f8] sm:$0xff] %v760
  %v785 = vld [vmem:[%s0 + $0x8] sm:$0xff]
  %v786 = vld [vmem:[%s0 + $0x10] sm:$0xff]
  %v787 = vld [vmem:[%s0 + $0x18] sm:$0xff]
  %v788 = vld [vmem:[%s0 + $0x20] sm:$0xff]
  %v789 = vld [vmem:[%s0 + $0x28] sm:$0xff]
  %v790 = vld [vmem:[%s0 + $0x30] sm:$0xff]
  %v791 = vld [vmem:[%s0 + $0x38] sm:$0xff]
  %v792 = vld [vmem:[%s0 + $0x48] sm:$0xff]
  %v793 = vld [vmem:[%s0 + $0x50] sm:$0xff]
  %v794 = vld [vmem:[%s0 + $0x58] sm:$0xff]
  %v795 = vld [vmem:[%s0 + $0x60] sm:$0xff]
  %v796 = vld [vmem:[%s0 + $0x68] sm:$0xff]
  %v797 = vld [vmem:[%s0 + $0x70] sm:$0xff]
  %v798 = vld [vmem:[%s0 + $0x78] sm:$0xff]
  %813 = vrot.lane.b32.xlu0 %v785, 109
  %v814 = vpop.permute.xlu0 %813
  %815 = vrot.lane.b32.xlu0 %v786, 109
  %v816 = vpop.permute.xlu0 %815
  %817 = vrot.lane.b32.xlu0 %v787, 109
  %v818 = vpop.permute.xlu0 %817
  %819 = vrot.lane.b32.xlu0 %v788, 109
  %v820 = vpop.permute.xlu0 %819
  %821 = vrot.lane.b32.xlu0 %v789, 109
  %v822 = vpop.permute.xlu0 %821
  %823 = vrot.lane.b32.xlu0 %v790, 109
  %v824 = vpop.permute.xlu0 %823
  %825 = vrot.lane.b32.xlu0 %v791, 109
  %v826 = vpop.permute.xlu0 %825
  %827 = vrot.lane.b32.xlu0 %v792, 109
  %v828 = vpop.permute.xlu0 %827
  %829 = vrot.lane.b32.xlu0 %v793, 109
  %v830 = vpop.permute.xlu0 %829
  %831 = vrot.lane.b32.xlu0 %v794, 109
  %v832 = vpop.permute.xlu0 %831
  %833 = vrot.lane.b32.xlu0 %v795, 109
  %v834 = vpop.permute.xlu0 %833
  %835 = vrot.lane.b32.xlu0 %v796, 109
  %v836 = vpop.permute.xlu0 %835
  %837 = vrot.lane.b32.xlu0 %v797, 109
  %v838 = vpop.permute.xlu0 %837
  %839 = vrot.lane.b32.xlu0 %v798, 109
  %v840 = vpop.permute.xlu0 %839
  %vm841 = vcmask 891904
  %v842 = vsel %vm841, %v814, %v816
  %v843 = vsel %vm841, %v816, %v818
  %v844 = vsel %vm841, %v818, %v820
  %v845 = vsel %vm841, %v820, %v822
  %v846 = vsel %vm841, %v822, %v824
  %v847 = vsel %vm841, %v824, %v826
  %v848 = vsel %vm841, %v828, %v830
  %v849 = vsel %vm841, %v830, %v832
  %v850 = vsel %vm841, %v832, %v834
  %v851 = vsel %vm841, %v834, %v836
  %v852 = vsel %vm841, %v836, %v838
  %v853 = vsel %vm841, %v838, %v840
  %866 = vst [vmem:[#allocation4 + $0x300] sm:$0xff] %v842
  %867 = vst [vmem:[#allocation4 + $0x308] sm:$0xff] %v843
  %868 = vst [vmem:[#allocation4 + $0x310] sm:$0xff] %v844
  %869 = vst [vmem:[#allocation4 + $0x318] sm:$0xff] %v845
  %870 = vst [vmem:[#allocation4 + $0x320] sm:$0xff] %v846
  %871 = vst [vmem:[#allocation4 + $0x328] sm:$0xff] %v847
  %872 = vst [vmem:[#allocation4 + $0x330] sm:$0xff] %v848
  %873 = vst [vmem:[#allocation4 + $0x338] sm:$0xff] %v849
  %874 = vst [vmem:[#allocation4 + $0x340] sm:$0xff] %v850
  %875 = vst [vmem:[#allocation4 + $0x348] sm:$0xff] %v851
  %876 = vst [vmem:[#allocation4 + $0x350] sm:$0xff] %v852
  %877 = vst [vmem:[#allocation4 + $0x358] sm:$0xff] %v853
  %v878 = vld [vmem:[%s1] sm:$0xff]
  %v879 = vld [vmem:[%s1 + $0x8] sm:$0xff]
  %v880 = vld [vmem:[%s1 + $0x10] sm:$0xff]
  %v881 = vld [vmem:[%s1 + $0x18] sm:$0xff]
  %v882 = vld [vmem:[#allocation4] sm:$0xff]
  %v883 = vld [vmem:[#allocation4 + $0x8] sm:$0xff]
  %v884 = vld [vmem:[#allocation4 + $0x10] sm:$0xff]
  %v885 = vld [vmem:[#allocation4 + $0x18] sm:$0xff]
  %v886 = vld [vmem:[#allocation4 + $0x20] sm:$0xff]
  %v887 = vld [vmem:[#allocation4 + $0x28] sm:$0xff]
  %v888 = vld [vmem:[#allocation4 + $0x30] sm:$0xff]
  %v889 = vld [vmem:[#allocation4 + $0x38] sm:$0xff]
  %v890 = vld [vmem:[#allocation4 + $0x40] sm:$0xff]
  %v891 = vld [vmem:[#allocation4 + $0x48] sm:$0xff]
  %v892 = vld [vmem:[#allocation4 + $0x50] sm:$0xff]
  %v893 = vld [vmem:[#allocation4 + $0x58] sm:$0xff]
  %v894 = vld [vmem:[#allocation4 + $0x60] sm:$0xff]
  %v895 = vld [vmem:[#allocation4 + $0x68] sm:$0xff]
  %v896 = vld [vmem:[#allocation4 + $0x70] sm:$0xff]
  %v897 = vld [vmem:[#allocation4 + $0x78] sm:$0xff]
  %v898 = vld [vmem:[#allocation4 + $0x80] sm:$0xff]
  %v899 = vld [vmem:[#allocation4 + $0x88] sm:$0xff]
  %v900 = vld [vmem:[#allocation4 + $0x90] sm:$0xff]
  %v901 = vld [vmem:[#allocation4 + $0x98] sm:$0xff]
  %v902 = vld [vmem:[#allocation4 + $0xa0] sm:$0xff]
  %v903 = vld [vmem:[#allocation4 + $0xa8] sm:$0xff]
  %v904 = vld [vmem:[#allocation4 + $0xb0] sm:$0xff]
  %v905 = vld [vmem:[#allocation4 + $0xb8] sm:$0xff]
  %v906 = vld [vmem:[#allocation4 + $0xc0] sm:$0xff]
  %v907 = vld [vmem:[#allocation4 + $0xc8] sm:$0xff]
  %v908 = vld [vmem:[#allocation4 + $0xd0] sm:$0xff]
  %v909 = vld [vmem:[#allocation4 + $0xd8] sm:$0xff]
  %v910 = vld [vmem:[#allocation4 + $0xe0] sm:$0xff]
  %v911 = vld [vmem:[#allocation4 + $0xe8] sm:$0xff]
  %v912 = vld [vmem:[#allocation4 + $0xf0] sm:$0xff]
  %v913 = vld [vmem:[#allocation4 + $0xf8] sm:$0xff]
  %v914 = vld [vmem:[#allocation4 + $0x100] sm:$0xff]
  %v915 = vld [vmem:[#allocation4 + $0x108] sm:$0xff]
  %v916 = vld [vmem:[#allocation4 + $0x110] sm:$0xff]
  %v917 = vld [vmem:[#allocation4 + $0x118] sm:$0xff]
  %v918 = vld [vmem:[#allocation4 + $0x120] sm:$0xff]
  %v919 = vld [vmem:[#allocation4 + $0x128] sm:$0xff]
  %v920 = vld [vmem:[#allocation4 + $0x130] sm:$0xff]
  %v921 = vld [vmem:[#allocation4 + $0x138] sm:$0xff]
  %v922 = vld [vmem:[#allocation4 + $0x140] sm:$0xff]
  %v923 = vld [vmem:[#allocation4 + $0x148] sm:$0xff]
  %v924 = vld [vmem:[#allocation4 + $0x150] sm:$0xff]
  %v925 = vld [vmem:[#allocation4 + $0x158] sm:$0xff]
  %v926 = vld [vmem:[#allocation4 + $0x160] sm:$0xff]
  %v927 = vld [vmem:[#allocation4 + $0x168] sm:$0xff]
  %v928 = vld [vmem:[#allocation4 + $0x170] sm:$0xff]
  %v929 = vld [vmem:[#allocation4 + $0x178] sm:$0xff]
  %v930 = vld [vmem:[#allocation4 + $0x180] sm:$0xff]
  %v931 = vld [vmem:[#allocation4 + $0x188] sm:$0xff]
  %v932 = vld [vmem:[#allocation4 + $0x190] sm:$0xff]
  %v933 = vld [vmem:[#allocation4 + $0x198] sm:$0xff]
  %v934 = vld [vmem:[#allocation4 + $0x1a0] sm:$0xff]
  %v935 = vld [vmem:[#allocation4 + $0x1a8] sm:$0xff]
  %v936 = vld [vmem:[#allocation4 + $0x1b0] sm:$0xff]
  %v937 = vld [vmem:[#allocation4 + $0x1b8] sm:$0xff]
  %v938 = vld [vmem:[#allocation4 + $0x1c0] sm:$0xff]
  %v939 = vld [vmem:[#allocation4 + $0x1c8] sm:$0xff]
  %v940 = vld [vmem:[#allocation4 + $0x1d0] sm:$0xff]
  %v941 = vld [vmem:[#allocation4 + $0x1d8] sm:$0xff]
  %v942 = vld [vmem:[#allocation4 + $0x1e0] sm:$0xff]
  %v943 = vld [vmem:[#allocation4 + $0x1e8] sm:$0xff]
  %v944 = vld [vmem:[#allocation4 + $0x1f0] sm:$0xff]
  %v945 = vld [vmem:[#allocation4 + $0x1f8] sm:$0xff]
  %v946 = vld [vmem:[#allocation4 + $0x200] sm:$0xff]
  %v947 = vld [vmem:[#allocation4 + $0x208] sm:$0xff]
  %v948 = vld [vmem:[#allocation4 + $0x210] sm:$0xff]
  %v949 = vld [vmem:[#allocation4 + $0x218] sm:$0xff]
  %v950 = vld [vmem:[#allocation4 + $0x220] sm:$0xff]
  %v951 = vld [vmem:[#allocation4 + $0x228] sm:$0xff]
  %v952 = vld [vmem:[#allocation4 + $0x230] sm:$0xff]
  %v953 = vld [vmem:[#allocation4 + $0x238] sm:$0xff]
  %v954 = vld [vmem:[#allocation4 + $0x240] sm:$0xff]
  %v955 = vld [vmem:[#allocation4 + $0x248] sm:$0xff]
  %v956 = vld [vmem:[#allocation4 + $0x250] sm:$0xff]
  %v957 = vld [vmem:[#allocation4 + $0x258] sm:$0xff]
  %v958 = vld [vmem:[#allocation4 + $0x260] sm:$0xff]
  %v959 = vld [vmem:[#allocation4 + $0x268] sm:$0xff]
  %v960 = vld [vmem:[#allocation4 + $0x270] sm:$0xff]
  %v961 = vld [vmem:[#allocation4 + $0x278] sm:$0xff]
  %v962 = vld [vmem:[#allocation4 + $0x280] sm:$0xff]
  %v963 = vld [vmem:[#allocation4 + $0x288] sm:$0xff]
  %v964 = vld [vmem:[#allocation4 + $0x290] sm:$0xff]
  %v965 = vld [vmem:[#allocation4 + $0x298] sm:$0xff]
  %v966 = vld [vmem:[#allocation4 + $0x2a0] sm:$0xff]
  %v967 = vld [vmem:[#allocation4 + $0x2a8] sm:$0xff]
  %v968 = vld [vmem:[#allocation4 + $0x2b0] sm:$0xff]
  %v969 = vld [vmem:[#allocation4 + $0x2b8] sm:$0xff]
  %v970 = vld [vmem:[#allocation4 + $0x2c0] sm:$0xff]
  %v971 = vld [vmem:[#allocation4 + $0x2c8] sm:$0xff]
  %v972 = vld [vmem:[#allocation4 + $0x2d0] sm:$0xff]
  %v973 = vld [vmem:[#allocation4 + $0x2d8] sm:$0xff]
  %v974 = vld [vmem:[#allocation4 + $0x2e0] sm:$0xff]
  %v975 = vld [vmem:[#allocation4 + $0x2e8] sm:$0xff]
  %v976 = vld [vmem:[#allocation4 + $0x2f0] sm:$0xff]
  %v977 = vld [vmem:[#allocation4 + $0x2f8] sm:$0xff]
  %v978 = vld [vmem:[#allocation4 + $0x300] sm:$0xff]
  %v979 = vld [vmem:[#allocation4 + $0x308] sm:$0xff]
  %v980 = vld [vmem:[#allocation4 + $0x310] sm:$0xff]
  %v981 = vld [vmem:[#allocation4 + $0x318] sm:$0xff]
  %v982 = vld [vmem:[#allocation4 + $0x320] sm:$0xff]
  %v983 = vld [vmem:[#allocation4 + $0x328] sm:$0xff]
  %v984 = vld [vmem:[#allocation4 + $0x330] sm:$0xff]
  %v985 = vld [vmem:[#allocation4 + $0x338] sm:$0xff]
  %v986 = vld [vmem:[#allocation4 + $0x340] sm:$0xff]
  %v987 = vld [vmem:[#allocation4 + $0x348] sm:$0xff]
  %v988 = vld [vmem:[#allocation4 + $0x350] sm:$0xff]
  %v989 = vld [vmem:[#allocation4 + $0x358] sm:$0xff]
  %v990 = vld [vmem:[#allocation4 + $0x360] sm:$0xff]
  %v991 = vld [vmem:[#allocation4 + $0x368] sm:$0xff]
  %v992 = vld [vmem:[#allocation4 + $0x370] sm:$0xff]
  %v993 = vld [vmem:[#allocation4 + $0x378] sm:$0xff]
  %v994 = vld [vmem:[#allocation4 + $0x380] sm:$0xff]
  %v995 = vld [vmem:[#allocation4 + $0x388] sm:$0xff]
  %v996 = vld [vmem:[#allocation4 + $0x390] sm:$0xff]
  %v997 = vld [vmem:[#allocation4 + $0x398] sm:$0xff]
  %v998 = vld [vmem:[#allocation4 + $0x3a0] sm:$0xff]
  %v999 = vld [vmem:[#allocation4 + $0x3a8] sm:$0xff]
  %v1000 = vld [vmem:[#allocation4 + $0x3b0] sm:$0xff]
  %v1001 = vld [vmem:[#allocation4 + $0x3b8] sm:$0xff]
  %v1002 = vld [vmem:[#allocation4 + $0x3c0] sm:$0xff]
  %v1003 = vld [vmem:[#allocation4 + $0x3c8] sm:$0xff]
  %v1004 = vld [vmem:[#allocation4 + $0x3d0] sm:$0xff]
  %v1005 = vld [vmem:[#allocation4 + $0x3d8] sm:$0xff]
  %v1006 = vld [vmem:[#allocation4 + $0x3e0] sm:$0xff]
  %v1007 = vld [vmem:[#allocation4 + $0x3e8] sm:$0xff]
  %v1008 = vld [vmem:[#allocation4 + $0x3f0] sm:$0xff]
  %v1009 = vld [vmem:[#allocation4 + $0x3f8] sm:$0xff]
  %v1010 = vld [vmem:[#allocation4 + $0x400] sm:$0xff]
  %v1011 = vld [vmem:[#allocation4 + $0x408] sm:$0xff]
  %v1012 = vld [vmem:[#allocation4 + $0x410] sm:$0xff]
  %v1013 = vld [vmem:[#allocation4 + $0x418] sm:$0xff]
  %v1014 = vld [vmem:[#allocation4 + $0x420] sm:$0xff]
  %v1015 = vld [vmem:[#allocation4 + $0x428] sm:$0xff]
  %v1016 = vld [vmem:[#allocation4 + $0x430] sm:$0xff]
  %v1017 = vld [vmem:[#allocation4 + $0x438] sm:$0xff]
  %v1018 = vld [vmem:[#allocation4 + $0x440] sm:$0xff]
  %v1019 = vld [vmem:[#allocation4 + $0x448] sm:$0xff]
  %v1020 = vld [vmem:[#allocation4 + $0x450] sm:$0xff]
  %v1021 = vld [vmem:[#allocation4 + $0x458] sm:$0xff]
  %v1022 = vld [vmem:[#allocation4 + $0x460] sm:$0xff]
  %v1023 = vld [vmem:[#allocation4 + $0x468] sm:$0xff]
  %v1024 = vld [vmem:[#allocation4 + $0x470] sm:$0xff]
  %v1025 = vld [vmem:[#allocation4 + $0x478] sm:$0xff]
  %v1026 = vld [vmem:[#allocation4 + $0x480] sm:$0xff]
  %v1027 = vld [vmem:[#allocation4 + $0x488] sm:$0xff]
  %v1028 = vld [vmem:[#allocation4 + $0x490] sm:$0xff]
  %v1029 = vld [vmem:[#allocation4 + $0x498] sm:$0xff]
  %v1030 = vld [vmem:[#allocation4 + $0x4a0] sm:$0xff]
  %v1031 = vld [vmem:[#allocation4 + $0x4a8] sm:$0xff]
  %v1032 = vld [vmem:[#allocation4 + $0x4b0] sm:$0xff]
  %v1033 = vld [vmem:[#allocation4 + $0x4b8] sm:$0xff]
  %v1034 = vld [vmem:[#allocation4 + $0x4c0] sm:$0xff]
  %v1035 = vld [vmem:[#allocation4 + $0x4c8] sm:$0xff]
  %v1036 = vld [vmem:[#allocation4 + $0x4d0] sm:$0xff]
  %v1037 = vld [vmem:[#allocation4 + $0x4d8] sm:$0xff]
  %v1038 = vld [vmem:[#allocation4 + $0x4e0] sm:$0xff]
  %v1039 = vld [vmem:[#allocation4 + $0x4e8] sm:$0xff]
  %v1040 = vld [vmem:[#allocation4 + $0x4f0] sm:$0xff]
  %v1041 = vld [vmem:[#allocation4 + $0x4f8] sm:$0xff]
  %v1042 = vld [vmem:[#allocation4 + $0x500] sm:$0xff]
  %v1043 = vld [vmem:[#allocation4 + $0x508] sm:$0xff]
  %v1044 = vld [vmem:[#allocation4 + $0x510] sm:$0xff]
  %v1045 = vld [vmem:[#allocation4 + $0x518] sm:$0xff]
  %v1046 = vld [vmem:[#allocation4 + $0x520] sm:$0xff]
  %v1047 = vld [vmem:[#allocation4 + $0x528] sm:$0xff]
  %v1048 = vld [vmem:[#allocation4 + $0x530] sm:$0xff]
  %v1049 = vld [vmem:[#allocation4 + $0x538] sm:$0xff]
  %v1050 = vld [vmem:[#allocation4 + $0x540] sm:$0xff]
  %v1051 = vld [vmem:[#allocation4 + $0x548] sm:$0xff]
  %v1052 = vld [vmem:[#allocation4 + $0x550] sm:$0xff]
  %v1053 = vld [vmem:[#allocation4 + $0x558] sm:$0xff]
  %v1054 = vld [vmem:[#allocation4 + $0x560] sm:$0xff]
  %v1055 = vld [vmem:[#allocation4 + $0x568] sm:$0xff]
  %v1056 = vld [vmem:[#allocation4 + $0x570] sm:$0xff]
  %v1057 = vld [vmem:[#allocation4 + $0x578] sm:$0xff]
  %v1058 = vld [vmem:[#allocation4 + $0x580] sm:$0xff]
  %v1059 = vld [vmem:[#allocation4 + $0x588] sm:$0xff]
  %v1060 = vld [vmem:[#allocation4 + $0x590] sm:$0xff]
  %v1061 = vld [vmem:[#allocation4 + $0x598] sm:$0xff]
  %v1062 = vld [vmem:[#allocation4 + $0x5a0] sm:$0xff]
  %v1063 = vld [vmem:[#allocation4 + $0x5a8] sm:$0xff]
  %v1064 = vld [vmem:[#allocation4 + $0x5b0] sm:$0xff]
  %v1065 = vld [vmem:[#allocation4 + $0x5b8] sm:$0xff]
  %v1066 = vld [vmem:[#allocation4 + $0x5c0] sm:$0xff]
  %v1067 = vld [vmem:[#allocation4 + $0x5c8] sm:$0xff]
  %v1068 = vld [vmem:[#allocation4 + $0x5d0] sm:$0xff]
  %v1069 = vld [vmem:[#allocation4 + $0x5d8] sm:$0xff]
  %v1070 = vld [vmem:[#allocation4 + $0x5e0] sm:$0xff]
  %v1071 = vld [vmem:[#allocation4 + $0x5e8] sm:$0xff]
  %v1072 = vld [vmem:[#allocation4 + $0x5f0] sm:$0xff]
  %v1073 = vld [vmem:[#allocation4 + $0x5f8] sm:$0xff]
  %v1074 = vld [vmem:[%s2] sm:$0xff]
  %v1075 = vld [vmem:[%s2 + $0x8] sm:$0xff]
  %1077 = vset.pattern.permute.xlu0 0
  %1078 = vperm.xlu0 %1077, %v1074
  %v1079 = vpop.permute.xlu0 %1078
  %1082 = vset.pattern.permute.xlu0 0
  %1083 = vperm.xlu0 %1082, %v1075
  %v1084 = vpop.permute.xlu0 %1083
  %1086 = vmatprep.subr.mxu0 %v973
  %1087 = vmatpush1.msra.mxu0 %v972
  %1088 = vmatprep.subr.mxu0 %v967
  %1089 = vmatpush1.msra.mxu0 %v966
  %1090 = vmatprep.subr.mxu0 %v961
  %1091 = vmatpush1.msra.mxu0 %v960
  %1092 = vmatprep.subr.mxu0 %v955
  %1093 = vmatpush1.msra.mxu0 %v954
  %1094 = vmatprep.subr.mxu0 %v949
  %1095 = vmatpush1.msra.mxu0 %v948
  %1096 = vmatprep.subr.mxu0 %v943
  %1097 = vmatpush1.msra.mxu0 %v942
  %1098 = vmatprep.subr.mxu0 %v937
  %1099 = vmatpush1.msra.mxu0 %v936
  %1100 = vmatprep.subr.mxu0 %v931
  %1101 = vmatpush1.msra.mxu0 %v930
  %1102 = vmatprep.subr.mxu0 %v925
  %1103 = vmatpush1.msra.mxu0 %v924
  %1104 = vmatprep.subr.mxu0 %v919
  %1105 = vmatpush1.msra.mxu0 %v918
  %1106 = vmatprep.subr.mxu0 %v913
  %1107 = vmatpush1.msra.mxu0 %v912
  %1108 = vmatprep.subr.mxu0 %v907
  %1109 = vmatpush1.msra.mxu0 %v906
  %1110 = vmatprep.subr.mxu0 %v901
  %1111 = vmatpush1.msra.mxu0 %v900
  %1112 = vmatprep.subr.mxu0 %v895
  %1113 = vmatpush1.msra.mxu0 %v894
  %1114 = vmatprep.subr.mxu0 %v889
  %1115 = vmatpush1.msra.mxu0 %v888
  %1116 = vmatprep.subr.mxu0 %v883
  %1117 = vmatpush1.msra.mxu0 %v882
  %1118 = vmatprep.subr.mxu0 %v1069
  %1119 = vmatpush2.msra.mxu0 %v1068
  %1120 = vmatprep.subr.mxu0 %v1063
  %1121 = vmatpush2.msra.mxu0 %v1062
  %1122 = vmatprep.subr.mxu0 %v1057
  %1123 = vmatpush2.msra.mxu0 %v1056
  %1124 = vmatprep.subr.mxu0 %v1051
  %1125 = vmatpush2.msra.mxu0 %v1050
  %1126 = vmatprep.subr.mxu0 %v1045
  %1127 = vmatpush2.msra.mxu0 %v1044
  %1128 = vmatprep.subr.mxu0 %v1039
  %1129 = vmatpush2.msra.mxu0 %v1038
  %1130 = vmatprep.subr.mxu0 %v1033
  %1131 = vmatpush2.msra.mxu0 %v1032
  %1132 = vmatprep.subr.mxu0 %v1027
  %1133 = vmatpush2.msra.mxu0 %v1026
  %1134 = vmatprep.subr.mxu0 %v1021
  %1135 = vmatpush2.msra.mxu0 %v1020
  %1136 = vmatprep.subr.mxu0 %v1015
  %1137 = vmatpush2.msra.mxu0 %v1014
  %1138 = vmatprep.subr.mxu0 %v1009
  %1139 = vmatpush2.msra.mxu0 %v1008
  %1140 = vmatprep.subr.mxu0 %v1003
  %1141 = vmatpush2.msra.mxu0 %v1002
  %1142 = vmatprep.subr.mxu0 %v997
  %1143 = vmatpush2.msra.mxu0 %v996
  %1144 = vmatprep.subr.mxu0 %v991
  %1145 = vmatpush2.msra.mxu0 %v990
  %1146 = vmatprep.subr.mxu0 %v985
  %1147 = vmatpush2.msra.mxu0 %v984
  %1148 = vmatprep.subr.mxu0 %v979
  %1149 = vmatpush2.msra.mxu0 %v978
  %1150 = vmatprep.mubr.f32.mxu0 %v879
  %1151 = vmatmul.mubr.f32.gmra.mxu0 %v878
  %v1152 = vpop.f32.mrf.mxu0
  %v1153 = vadd.f32 %v1079, %v1152
  %v1154 = vpop.f32.mrf.mxu0
  %v1155 = vadd.f32 %v1079, %v1154
  %1156 = vmatprep.mubr.f32.mxu0 %v881
  %1157 = vmatmul.mubr.f32.gmra.mxu0 %v880
  %v1158 = vpop.f32.mrf.mxu0
  %v1159 = vadd.f32 %v1084, %v1158
  %v1160 = vpop.f32.mrf.mxu0
  %v1161 = vadd.f32 %v1084, %v1160
  %1162 = vdwg.mxu0
  %1163 = vmatprep.subr.mxu0 %v975
  %1164 = vmatpush1.msra.mxu0 %v974
  %1165 = vmatprep.subr.mxu0 %v969
  %1166 = vmatpush1.msra.mxu0 %v968
  %1167 = vmatprep.subr.mxu0 %v963
  %1168 = vmatpush1.msra.mxu0 %v962
  %1169 = vmatprep.subr.mxu0 %v957
  %1170 = vmatpush1.msra.mxu0 %v956
  %1171 = vmatprep.subr.mxu0 %v951
  %1172 = vmatpush1.msra.mxu0 %v950
  %1173 = vmatprep.subr.mxu0 %v945
  %1174 = vmatpush1.msra.mxu0 %v944
  %1175 = vmatprep.subr.mxu0 %v939
  %1176 = vmatpush1.msra.mxu0 %v938
  %1177 = vmatprep.subr.mxu0 %v933
  %1178 = vmatpush1.msra.mxu0 %v932
  %1179 = vmatprep.subr.mxu0 %v927
  %1180 = vmatpush1.msra.mxu0 %v926
  %1181 = vmatprep.subr.mxu0 %v921
  %1182 = vmatpush1.msra.mxu0 %v920
  %1183 = vmatprep.subr.mxu0 %v915
  %1184 = vmatpush1.msra.mxu0 %v914
  %1185 = vmatprep.subr.mxu0 %v909
  %1186 = vmatpush1.msra.mxu0 %v908
  %1187 = vmatprep.subr.mxu0 %v903
  %1188 = vmatpush1.msra.mxu0 %v902
  %1189 = vmatprep.subr.mxu0 %v897
  %1190 = vmatpush1.msra.mxu0 %v896
  %1191 = vmatprep.subr.mxu0 %v891
  %1192 = vmatpush1.msra.mxu0 %v890
  %1193 = vmatprep.subr.mxu0 %v885
  %1194 = vmatpush1.msra.mxu0 %v884
  %1195 = vmatprep.subr.mxu0 %v1071
  %1196 = vmatpush2.msra.mxu0 %v1070
  %1197 = vmatprep.subr.mxu0 %v1065
  %1198 = vmatpush2.msra.mxu0 %v1064
  %1199 = vmatprep.subr.mxu0 %v1059
  %1200 = vmatpush2.msra.mxu0 %v1058
  %1201 = vmatprep.subr.mxu0 %v1053
  %1202 = vmatpush2.msra.mxu0 %v1052
  %1203 = vmatprep.subr.mxu0 %v1047
  %1204 = vmatpush2.msra.mxu0 %v1046
  %1205 = vmatprep.subr.mxu0 %v1041
  %1206 = vmatpush2.msra.mxu0 %v1040
  %1207 = vmatprep.subr.mxu0 %v1035
  %1208 = vmatpush2.msra.mxu0 %v1034
  %1209 = vmatprep.subr.mxu0 %v1029
  %1210 = vmatpush2.msra.mxu0 %v1028
  %1211 = vmatprep.subr.mxu0 %v1023
  %1212 = vmatpush2.msra.mxu0 %v1022
  %1213 = vmatprep.subr.mxu0 %v1017
  %1214 = vmatpush2.msra.mxu0 %v1016
  %1215 = vmatprep.subr.mxu0 %v1011
  %1216 = vmatpush2.msra.mxu0 %v1010
  %1217 = vmatprep.subr.mxu0 %v1005
  %1218 = vmatpush2.msra.mxu0 %v1004
  %1219 = vmatprep.subr.mxu0 %v999
  %1220 = vmatpush2.msra.mxu0 %v998
  %1221 = vmatprep.subr.mxu0 %v993
  %1222 = vmatpush2.msra.mxu0 %v992
  %1223 = vmatprep.subr.mxu0 %v987
  %1224 = vmatpush2.msra.mxu0 %v986
  %1225 = vmatprep.subr.mxu0 %v981
  %1226 = vmatpush2.msra.mxu0 %v980
  %1227 = vmatprep.mubr.f32.mxu0 %v879
  %1228 = vmatmul.mubr.f32.gmra.mxu0 %v878
  %v1229 = vpop.f32.mrf.mxu0
  %v1230 = vadd.f32 %v1079, %v1229
  %v1231 = vpop.f32.mrf.mxu0
  %v1232 = vadd.f32 %v1079, %v1231
  %1233 = vmatprep.mubr.f32.mxu0 %v881
  %1234 = vmatmul.mubr.f32.gmra.mxu0 %v880
  %v1235 = vpop.f32.mrf.mxu0
  %v1236 = vadd.f32 %v1084, %v1235
  %v1237 = vpop.f32.mrf.mxu0
  %v1238 = vadd.f32 %v1084, %v1237
  %1239 = vdwg.mxu0
  %1240 = vmatprep.subr.mxu0 %v977
  %1241 = vmatpush1.msra.mxu0 %v976
  %1242 = vmatprep.subr.mxu0 %v971
  %1243 = vmatpush1.msra.mxu0 %v970
  %1244 = vmatprep.subr.mxu0 %v965
  %1245 = vmatpush1.msra.mxu0 %v964
  %1246 = vmatprep.subr.mxu0 %v959
  %1247 = vmatpush1.msra.mxu0 %v958
  %1248 = vmatprep.subr.mxu0 %v953
  %1249 = vmatpush1.msra.mxu0 %v952
  %1250 = vmatprep.subr.mxu0 %v947
  %1251 = vmatpush1.msra.mxu0 %v946
  %1252 = vmatprep.subr.mxu0 %v941
  %1253 = vmatpush1.msra.mxu0 %v940
  %1254 = vmatprep.subr.mxu0 %v935
  %1255 = vmatpush1.msra.mxu0 %v934
  %1256 = vmatprep.subr.mxu0 %v929
  %1257 = vmatpush1.msra.mxu0 %v928
  %1258 = vmatprep.subr.mxu0 %v923
  %1259 = vmatpush1.msra.mxu0 %v922
  %1260 = vmatprep.subr.mxu0 %v917
  %1261 = vmatpush1.msra.mxu0 %v916
  %1262 = vmatprep.subr.mxu0 %v911
  %1263 = vmatpush1.msra.mxu0 %v910
  %1264 = vmatprep.subr.mxu0 %v905
  %1265 = vmatpush1.msra.mxu0 %v904
  %1266 = vmatprep.subr.mxu0 %v899
  %1267 = vmatpush1.msra.mxu0 %v898
  %1268 = vmatprep.subr.mxu0 %v893
  %1269 = vmatpush1.msra.mxu0 %v892
  %1270 = vmatprep.subr.mxu0 %v887
  %1271 = vmatpush1.msra.mxu0 %v886
  %1272 = vmatprep.subr.mxu0 %v1073
  %1273 = vmatpush2.msra.mxu0 %v1072
  %1274 = vmatprep.subr.mxu0 %v1067
  %1275 = vmatpush2.msra.mxu0 %v1066
  %1276 = vmatprep.subr.mxu0 %v1061
  %1277 = vmatpush2.msra.mxu0 %v1060
  %1278 = vmatprep.subr.mxu0 %v1055
  %1279 = vmatpush2.msra.mxu0 %v1054
  %1280 = vmatprep.subr.mxu0 %v1049
  %1281 = vmatpush2.msra.mxu0 %v1048
  %1282 = vmatprep.subr.mxu0 %v1043
  %1283 = vmatpush2.msra.mxu0 %v1042
  %1284 = vmatprep.subr.mxu0 %v1037
  %1285 = vmatpush2.msra.mxu0 %v1036
  %1286 = vmatprep.subr.mxu0 %v1031
  %1287 = vmatpush2.msra.mxu0 %v1030
  %1288 = vmatprep.subr.mxu0 %v1025
  %1289 = vmatpush2.msra.mxu0 %v1024
  %1290 = vmatprep.subr.mxu0 %v1019
  %1291 = vmatpush2.msra.mxu0 %v1018
  %1292 = vmatprep.subr.mxu0 %v1013
  %1293 = vmatpush2.msra.mxu0 %v1012
  %1294 = vmatprep.subr.mxu0 %v1007
  %1295 = vmatpush2.msra.mxu0 %v1006
  %1296 = vmatprep.subr.mxu0 %v1001
  %1297 = vmatpush2.msra.mxu0 %v1000
  %1298 = vmatprep.subr.mxu0 %v995
  %1299 = vmatpush2.msra.mxu0 %v994
  %1300 = vmatprep.subr.mxu0 %v989
  %1301 = vmatpush2.msra.mxu0 %v988
  %1302 = vmatprep.subr.mxu0 %v983
  %1303 = vmatpush2.msra.mxu0 %v982
  %1304 = vmatprep.mubr.f32.mxu0 %v879
  %1305 = vmatmul.mubr.f32.gmra.mxu0 %v878
  %v1306 = vpop.f32.mrf.mxu0
  %v1307 = vadd.f32 %v1079, %v1306
  %v1308 = vpop.f32.mrf.mxu0
  %v1309 = vadd.f32 %v1079, %v1308
  %1310 = vmatprep.mubr.f32.mxu0 %v881
  %1311 = vmatmul.mubr.f32.gmra.mxu0 %v880
  %v1312 = vpop.f32.mrf.mxu0
  %v1313 = vadd.f32 %v1084, %v1312
  %v1314 = vpop.f32.mrf.mxu0
  %v1315 = vadd.f32 %v1084, %v1314
  %1316 = vdwg.mxu0
  %vm1317 = vcmp.gt.f32.partialorder %v1153, 0.0
  %vm1318 = vcmp.gt.f32.partialorder %v1155, 0.0
  %vm1319 = vcmp.gt.f32.partialorder %v1230, 0.0
  %vm1320 = vcmp.gt.f32.partialorder %v1232, 0.0
  %vm1321 = vcmp.gt.f32.partialorder %v1307, 0.0
  %vm1322 = vcmp.gt.f32.partialorder %v1309, 0.0
  %vm1323 = vcmp.gt.f32.partialorder %v1159, 0.0
  %vm1324 = vcmp.gt.f32.partialorder %v1161, 0.0
  %vm1325 = vcmp.gt.f32.partialorder %v1236, 0.0
  %vm1326 = vcmp.gt.f32.partialorder %v1238, 0.0
  %vm1327 = vcmp.gt.f32.partialorder %v1313, 0.0
  %vm1328 = vcmp.gt.f32.partialorder %v1315, 0.0
  %v1329 = vmul.f32 %v1153, 0.2
  %v1330 = vmul.f32 %v1155, 0.2
  %v1331 = vmul.f32 %v1230, 0.2
  %v1332 = vmul.f32 %v1232, 0.2
  %v1333 = vmul.f32 %v1307, 0.2
  %v1334 = vmul.f32 %v1309, 0.2
  %v1335 = vmul.f32 %v1159, 0.2
  %v1336 = vmul.f32 %v1161, 0.2
  %v1337 = vmul.f32 %v1236, 0.2
  %v1338 = vmul.f32 %v1238, 0.2
  %v1339 = vmul.f32 %v1313, 0.2
  %v1340 = vmul.f32 %v1315, 0.2
  %v1341 = vsel %vm1317, %v1153, %v1329
  %v1342 = vsel %vm1318, %v1155, %v1330
  %v1343 = vsel %vm1319, %v1230, %v1331
  %v1344 = vsel %vm1320, %v1232, %v1332
  %v1345 = vsel %vm1321, %v1307, %v1333
  %v1346 = vsel %vm1322, %v1309, %v1334
  %v1347 = vsel %vm1323, %v1159, %v1335
  %v1348 = vsel %vm1324, %v1161, %v1336
  %v1349 = vsel %vm1325, %v1236, %v1337
  %v1350 = vsel %vm1326, %v1238, %v1338
  %v1351 = vsel %vm1327, %v1313, %v1339
  %v1352 = vsel %vm1328, %v1315, %v1340
  %v1354 = vlaneseq
  %v1355 = vshrl.u32 %v1354, 7
  %v1356 = vsub.s32 0, %v1355
  %v1357 = vrot.slane %v17, %v1356
  %v1358 = vlaneseq
  %v1359 = vshrl.u32 %v1358, 7
  %v1360 = vsub.s32 1, %v1359
  %v1361 = vrot.slane %v17, %v1360
  %v1362 = vlaneseq
  %v1363 = vshrl.u32 %v1362, 7
  %v1364 = vsub.s32 2, %v1363
  %v1365 = vrot.slane %v17, %v1364
  %v1366 = vlaneseq
  %v1367 = vshrl.u32 %v1366, 7
  %v1368 = vsub.s32 3, %v1367
  %v1369 = vrot.slane %v17, %v1368
  %v1370 = vlaneseq
  %v1371 = vshrl.u32 %v1370, 7
  %v1372 = vsub.s32 4, %v1371
  %v1373 = vrot.slane %v17, %v1372
  %v1374 = vlaneseq
  %v1375 = vshrl.u32 %v1374, 7
  %v1376 = vsub.s32 5, %v1375
  %v1377 = vrot.slane %v17, %v1376
  %v1384 = vmul.f32 %v1341, %v1357
  %v1385 = vmul.f32 %v1342, %v1361
  %v1386 = vmul.f32 %v1343, %v1365
  %v1387 = vmul.f32 %v1344, %v1369
  %v1388 = vmul.f32 %v1345, %v1373
  %v1389 = vmul.f32 %v1346, %v1377
  %v1390 = vmul.f32 %v1347, %v1357
  %v1391 = vmul.f32 %v1348, %v1361
  %v1392 = vmul.f32 %v1349, %v1365
  %v1393 = vmul.f32 %v1350, %v1369
  %v1394 = vmul.f32 %v1351, %v1373
  %v1395 = vmul.f32 %v1352, %v1377
  %1396 = vst [vmem:[#allocation2 + $0x8] sm:$0xff] %v1384
  %1397 = vst [vmem:[#allocation2 + $0x10] sm:$0xff] %v1385
  %1398 = vst [vmem:[#allocation2 + $0x18] sm:$0xff] %v1386
  %1399 = vst [vmem:[#allocation2 + $0x20] sm:$0xff] %v1387
  %1400 = vst [vmem:[#allocation2 + $0x28] sm:$0xff] %v1388
  %1401 = vst [vmem:[#allocation2 + $0x30] sm:$0xff] %v1389
  %1402 = vst [vmem:[#allocation2 + $0x48] sm:$0xff] %v1390
  %1403 = vst [vmem:[#allocation2 + $0x50] sm:$0xff] %v1391
  %1404 = vst [vmem:[#allocation2 + $0x58] sm:$0xff] %v1392
  %1405 = vst [vmem:[#allocation2 + $0x60] sm:$0xff] %v1393
  %1406 = vst [vmem:[#allocation2 + $0x68] sm:$0xff] %v1394
  %1407 = vst [vmem:[#allocation2 + $0x70] sm:$0xff] %v1395
  %v1408 = vld [vmem:[#allocation2] sm:$0xff]
  %v1409 = vld [vmem:[#allocation2 + $0x8] sm:$0xff]
  %v1410 = vld [vmem:[#allocation2 + $0x10] sm:$0xff]
  %v1411 = vld [vmem:[#allocation2 + $0x18] sm:$0xff]
  %v1412 = vld [vmem:[#allocation2 + $0x20] sm:$0xff]
  %v1413 = vld [vmem:[#allocation2 + $0x28] sm:$0xff]
  %v1414 = vld [vmem:[#allocation2 + $0x30] sm:$0xff]
  %v1415 = vld [vmem:[#allocation2 + $0x40] sm:$0xff]
  %v1416 = vld [vmem:[#allocation2 + $0x48] sm:$0xff]
  %v1417 = vld [vmem:[#allocation2 + $0x50] sm:$0xff]
  %v1418 = vld [vmem:[#allocation2 + $0x58] sm:$0xff]
  %v1419 = vld [vmem:[#allocation2 + $0x60] sm:$0xff]
  %v1420 = vld [vmem:[#allocation2 + $0x68] sm:$0xff]
  %v1421 = vld [vmem:[#allocation2 + $0x70] sm:$0xff]
  %1436 = vrot.lane.b32.xlu0 %v1408, 19
  %v1437 = vpop.permute.xlu0 %1436
  %1438 = vrot.lane.b32.xlu0 %v1409, 19
  %v1439 = vpop.permute.xlu0 %1438
  %1440 = vrot.lane.b32.xlu0 %v1410, 19
  %v1441 = vpop.permute.xlu0 %1440
  %1442 = vrot.lane.b32.xlu0 %v1411, 19
  %v1443 = vpop.permute.xlu0 %1442
  %1444 = vrot.lane.b32.xlu0 %v1412, 19
  %v1445 = vpop.permute.xlu0 %1444
  %1446 = vrot.lane.b32.xlu0 %v1413, 19
  %v1447 = vpop.permute.xlu0 %1446
  %1448 = vrot.lane.b32.xlu0 %v1414, 19
  %v1449 = vpop.permute.xlu0 %1448
  %1450 = vrot.lane.b32.xlu0 %v1415, 19
  %v1451 = vpop.permute.xlu0 %1450
  %1452 = vrot.lane.b32.xlu0 %v1416, 19
  %v1453 = vpop.permute.xlu0 %1452
  %1454 = vrot.lane.b32.xlu0 %v1417, 19
  %v1455 = vpop.permute.xlu0 %1454
  %1456 = vrot.lane.b32.xlu0 %v1418, 19
  %v1457 = vpop.permute.xlu0 %1456
  %1458 = vrot.lane.b32.xlu0 %v1419, 19
  %v1459 = vpop.permute.xlu0 %1458
  %1460 = vrot.lane.b32.xlu0 %v1420, 19
  %v1461 = vpop.permute.xlu0 %1460
  %1462 = vrot.lane.b32.xlu0 %v1421, 19
  %v1463 = vpop.permute.xlu0 %1462
  %v1464 = vsel %vm166, %v1437, %v1439
  %v1465 = vsel %vm166, %v1439, %v1441
  %v1466 = vsel %vm166, %v1441, %v1443
  %v1467 = vsel %vm166, %v1443, %v1445
  %v1468 = vsel %vm166, %v1445, %v1447
  %v1469 = vsel %vm166, %v1447, %v1449
  %v1470 = vsel %vm166, %v1451, %v1453
  %v1471 = vsel %vm166, %v1453, %v1455
  %v1472 = vsel %vm166, %v1455, %v1457
  %v1473 = vsel %vm166, %v1457, %v1459
  %v1474 = vsel %vm166, %v1459, %v1461
  %v1475 = vsel %vm166, %v1461, %v1463
  %1488 = vst [vmem:[#allocation4] sm:$0xff] %v1464
  %1489 = vst [vmem:[#allocation4 + $0x8] sm:$0xff] %v1465
  %1490 = vst [vmem:[#allocation4 + $0x10] sm:$0xff] %v1466
  %1491 = vst [vmem:[#allocation4 + $0x18] sm:$0xff] %v1467
  %1492 = vst [vmem:[#allocation4 + $0x20] sm:$0xff] %v1468
  %1493 = vst [vmem:[#allocation4 + $0x28] sm:$0xff] %v1469
  %1494 = vst [vmem:[#allocation4 + $0x30] sm:$0xff] %v1470
  %1495 = vst [vmem:[#allocation4 + $0x38] sm:$0xff] %v1471
  %1496 = vst [vmem:[#allocation4 + $0x40] sm:$0xff] %v1472
  %1497 = vst [vmem:[#allocation4 + $0x48] sm:$0xff] %v1473
  %1498 = vst [vmem:[#allocation4 + $0x50] sm:$0xff] %v1474
  %1499 = vst [vmem:[#allocation4 + $0x58] sm:$0xff] %v1475
  %v1500 = vld [vmem:[#allocation2] sm:$0xff]
  %v1501 = vld [vmem:[#allocation2 + $0x8] sm:$0xff]
  %v1502 = vld [vmem:[#allocation2 + $0x10] sm:$0xff]
  %v1503 = vld [vmem:[#allocation2 + $0x18] sm:$0xff]
  %v1504 = vld [vmem:[#allocation2 + $0x20] sm:$0xff]
  %v1505 = vld [vmem:[#allocation2 + $0x28] sm:$0xff]
  %v1506 = vld [vmem:[#allocation2 + $0x30] sm:$0xff]
  %v1507 = vld [vmem:[#allocation2 + $0x40] sm:$0xff]
  %v1508 = vld [vmem:[#allocation2 + $0x48] sm:$0xff]
  %v1509 = vld [vmem:[#allocation2 + $0x50] sm:$0xff]
  %v1510 = vld [vmem:[#allocation2 + $0x58] sm:$0xff]
  %v1511 = vld [vmem:[#allocation2 + $0x60] sm:$0xff]
  %v1512 = vld [vmem:[#allocation2 + $0x68] sm:$0xff]
  %v1513 = vld [vmem:[#allocation2 + $0x70] sm:$0xff]
  %1528 = vrot.lane.b32.xlu0 %v1500, 18
  %v1529 = vpop.permute.xlu0 %1528
  %1530 = vrot.lane.b32.xlu0 %v1501, 18
  %v1531 = vpop.permute.xlu0 %1530
  %1532 = vrot.lane.b32.xlu0 %v1502, 18
  %v1533 = vpop.permute.xlu0 %1532
  %1534 = vrot.lane.b32.xlu0 %v1503, 18
  %v1535 = vpop.permute.xlu0 %1534
  %1536 = vrot.lane.b32.xlu0 %v1504, 18
  %v1537 = vpop.permute.xlu0 %1536
  %1538 = vrot.lane.b32.xlu0 %v1505, 18
  %v1539 = vpop.permute.xlu0 %1538
  %1540 = vrot.lane.b32.xlu0 %v1506, 18
  %v1541 = vpop.permute.xlu0 %1540
  %1542 = vrot.lane.b32.xlu0 %v1507, 18
  %v1543 = vpop.permute.xlu0 %1542
  %1544 = vrot.lane.b32.xlu0 %v1508, 18
  %v1545 = vpop.permute.xlu0 %1544
  %1546 = vrot.lane.b32.xlu0 %v1509, 18
  %v1547 = vpop.permute.xlu0 %1546
  %1548 = vrot.lane.b32.xlu0 %v1510, 18
  %v1549 = vpop.permute.xlu0 %1548
  %1550 = vrot.lane.b32.xlu0 %v1511, 18
  %v1551 = vpop.permute.xlu0 %1550
  %1552 = vrot.lane.b32.xlu0 %v1512, 18
  %v1553 = vpop.permute.xlu0 %1552
  %1554 = vrot.lane.b32.xlu0 %v1513, 18
  %v1555 = vpop.permute.xlu0 %1554
  %v1556 = vsel %vm259, %v1529, %v1531
  %v1557 = vsel %vm259, %v1531, %v1533
  %v1558 = vsel %vm259, %v1533, %v1535
  %v1559 = vsel %vm259, %v1535, %v1537
  %v1560 = vsel %vm259, %v1537, %v1539
  %v1561 = vsel %vm259, %v1539, %v1541
  %v1562 = vsel %vm259, %v1543, %v1545
  %v1563 = vsel %vm259, %v1545, %v1547
  %v1564 = vsel %vm259, %v1547, %v1549
  %v1565 = vsel %vm259, %v1549, %v1551
  %v1566 = vsel %vm259, %v1551, %v1553
  %v1567 = vsel %vm259, %v1553, %v1555
  %1580 = vst [vmem:[#allocation4 + $0x60] sm:$0xff] %v1556
  %1581 = vst [vmem:[#allocation4 + $0x68] sm:$0xff] %v1557
  %1582 = vst [vmem:[#allocation4 + $0x70] sm:$0xff] %v1558
  %1583 = vst [vmem:[#allocation4 + $0x78] sm:$0xff] %v1559
  %1584 = vst [vmem:[#allocation4 + $0x80] sm:$0xff] %v1560
  %1585 = vst [vmem:[#allocation4 + $0x88] sm:$0xff] %v1561
  %1586 = vst [vmem:[#allocation4 + $0x90] sm:$0xff] %v1562
  %1587 = vst [vmem:[#allocation4 + $0x98] sm:$0xff] %v1563
  %1588 = vst [vmem:[#allocation4 + $0xa0] sm:$0xff] %v1564
  %1589 = vst [vmem:[#allocation4 + $0xa8] sm:$0xff] %v1565
  %1590 = vst [vmem:[#allocation4 + $0xb0] sm:$0xff] %v1566
  %1591 = vst [vmem:[#allocation4 + $0xb8] sm:$0xff] %v1567
  %v1592 = vld [vmem:[#allocation2] sm:$0xff]
  %v1593 = vld [vmem:[#allocation2 + $0x8] sm:$0xff]
  %v1594 = vld [vmem:[#allocation2 + $0x10] sm:$0xff]
  %v1595 = vld [vmem:[#allocation2 + $0x18] sm:$0xff]
  %v1596 = vld [vmem:[#allocation2 + $0x20] sm:$0xff]
  %v1597 = vld [vmem:[#allocation2 + $0x28] sm:$0xff]
  %v1598 = vld [vmem:[#allocation2 + $0x30] sm:$0xff]
  %v1599 = vld [vmem:[#allocation2 + $0x40] sm:$0xff]
  %v1600 = vld [vmem:[#allocation2 + $0x48] sm:$0xff]
  %v1601 = vld [vmem:[#allocation2 + $0x50] sm:$0xff]
  %v1602 = vld [vmem:[#allocation2 + $0x58] sm:$0xff]
  %v1603 = vld [vmem:[#allocation2 + $0x60] sm:$0xff]
  %v1604 = vld [vmem:[#allocation2 + $0x68] sm:$0xff]
  %v1605 = vld [vmem:[#allocation2 + $0x70] sm:$0xff]
  %1620 = vrot.lane.b32.xlu0 %v1592, 17
  %v1621 = vpop.permute.xlu0 %1620
  %1622 = vrot.lane.b32.xlu0 %v1593, 17
  %v1623 = vpop.permute.xlu0 %1622
  %1624 = vrot.lane.b32.xlu0 %v1594, 17
  %v1625 = vpop.permute.xlu0 %1624
  %1626 = vrot.lane.b32.xlu0 %v1595, 17
  %v1627 = vpop.permute.xlu0 %1626
  %1628 = vrot.lane.b32.xlu0 %v1596, 17
  %v1629 = vpop.permute.xlu0 %1628
  %1630 = vrot.lane.b32.xlu0 %v1597, 17
  %v1631 = vpop.permute.xlu0 %1630
  %1632 = vrot.lane.b32.xlu0 %v1598, 17
  %v1633 = vpop.permute.xlu0 %1632
  %1634 = vrot.lane.b32.xlu0 %v1599, 17
  %v1635 = vpop.permute.xlu0 %1634
  %1636 = vrot.lane.b32.xlu0 %v1600, 17
  %v1637 = vpop.permute.xlu0 %1636
  %1638 = vrot.lane.b32.xlu0 %v1601, 17
  %v1639 = vpop.permute.xlu0 %1638
  %1640 = vrot.lane.b32.xlu0 %v1602, 17
  %v1641 = vpop.permute.xlu0 %1640
  %1642 = vrot.lane.b32.xlu0 %v1603, 17
  %v1643 = vpop.permute.xlu0 %1642
  %1644 = vrot.lane.b32.xlu0 %v1604, 17
  %v1645 = vpop.permute.xlu0 %1644
  %1646 = vrot.lane.b32.xlu0 %v1605, 17
  %v1647 = vpop.permute.xlu0 %1646
  %v1648 = vsel %vm352, %v1621, %v1623
  %v1649 = vsel %vm352, %v1623, %v1625
  %v1650 = vsel %vm352, %v1625, %v1627
  %v1651 = vsel %vm352, %v1627, %v1629
  %v1652 = vsel %vm352, %v1629, %v1631
  %v1653 = vsel %vm352, %v1631, %v1633
  %v1654 = vsel %vm352, %v1635, %v1637
  %v1655 = vsel %vm352, %v1637, %v1639
  %v1656 = vsel %vm352, %v1639, %v1641
  %v1657 = vsel %vm352, %v1641, %v1643
  %v1658 = vsel %vm352, %v1643, %v1645
  %v1659 = vsel %vm352, %v1645, %v1647
  %1672 = vst [vmem:[#allocation4 + $0xc0] sm:$0xff] %v1648
  %1673 = vst [vmem:[#allocation4 + $0xc8] sm:$0xff] %v1649
  %1674 = vst [vmem:[#allocation4 + $0xd0] sm:$0xff] %v1650
  %1675 = vst [vmem:[#allocation4 + $0xd8] sm:$0xff] %v1651
  %1676 = vst [vmem:[#allocation4 + $0xe0] sm:$0xff] %v1652
  %1677 = vst [vmem:[#allocation4 + $0xe8] sm:$0xff] %v1653
  %1678 = vst [vmem:[#allocation4 + $0xf0] sm:$0xff] %v1654
  %1679 = vst [vmem:[#allocation4 + $0xf8] sm:$0xff] %v1655
  %1680 = vst [vmem:[#allocation4 + $0x100] sm:$0xff] %v1656
  %1681 = vst [vmem:[#allocation4 + $0x108] sm:$0xff] %v1657
  %1682 = vst [vmem:[#allocation4 + $0x110] sm:$0xff] %v1658
  %1683 = vst [vmem:[#allocation4 + $0x118] sm:$0xff] %v1659
  %v1684 = vld [vmem:[#allocation2] sm:$0xff]
  %v1685 = vld [vmem:[#allocation2 + $0x8] sm:$0xff]
  %v1686 = vld [vmem:[#allocation2 + $0x10] sm:$0xff]
  %v1687 = vld [vmem:[#allocation2 + $0x18] sm:$0xff]
  %v1688 = vld [vmem:[#allocation2 + $0x20] sm:$0xff]
  %v1689 = vld [vmem:[#allocation2 + $0x28] sm:$0xff]
  %v1690 = vld [vmem:[#allocation2 + $0x30] sm:$0xff]
  %v1691 = vld [vmem:[#allocation2 + $0x40] sm:$0xff]
  %v1692 = vld [vmem:[#allocation2 + $0x48] sm:$0xff]
  %v1693 = vld [vmem:[#allocation2 + $0x50] sm:$0xff]
  %v1694 = vld [vmem:[#allocation2 + $0x58] sm:$0xff]
  %v1695 = vld [vmem:[#allocation2 + $0x60] sm:$0xff]
  %v1696 = vld [vmem:[#allocation2 + $0x68] sm:$0xff]
  %v1697 = vld [vmem:[#allocation2 + $0x70] sm:$0xff]
  %1712 = vrot.lane.b32.xlu0 %v1684, 1
  %v1713 = vpop.permute.xlu0 %1712
  %1714 = vrot.lane.b32.xlu0 %v1685, 1
  %v1715 = vpop.permute.xlu0 %1714
  %1716 = vrot.lane.b32.xlu0 %v1686, 1
  %v1717 = vpop.permute.xlu0 %1716
  %1718 = vrot.lane.b32.xlu0 %v1687, 1
  %v1719 = vpop.permute.xlu0 %1718
  %1720 = vrot.lane.b32.xlu0 %v1688, 1
  %v1721 = vpop.permute.xlu0 %1720
  %1722 = vrot.lane.b32.xlu0 %v1689, 1
  %v1723 = vpop.permute.xlu0 %1722
  %1724 = vrot.lane.b32.xlu0 %v1690, 1
  %v1725 = vpop.permute.xlu0 %1724
  %1726 = vrot.lane.b32.xlu0 %v1691, 1
  %v1727 = vpop.permute.xlu0 %1726
  %1728 = vrot.lane.b32.xlu0 %v1692, 1
  %v1729 = vpop.permute.xlu0 %1728
  %1730 = vrot.lane.b32.xlu0 %v1693, 1
  %v1731 = vpop.permute.xlu0 %1730
  %1732 = vrot.lane.b32.xlu0 %v1694, 1
  %v1733 = vpop.permute.xlu0 %1732
  %1734 = vrot.lane.b32.xlu0 %v1695, 1
  %v1735 = vpop.permute.xlu0 %1734
  %1736 = vrot.lane.b32.xlu0 %v1696, 1
  %v1737 = vpop.permute.xlu0 %1736
  %1738 = vrot.lane.b32.xlu0 %v1697, 1
  %v1739 = vpop.permute.xlu0 %1738
  %v1740 = vsel %vm445, %v1713, %v1715
  %v1741 = vsel %vm445, %v1715, %v1717
  %v1742 = vsel %vm445, %v1717, %v1719
  %v1743 = vsel %vm445, %v1719, %v1721
  %v1744 = vsel %vm445, %v1721, %v1723
  %v1745 = vsel %vm445, %v1723, %v1725
  %v1746 = vsel %vm445, %v1727, %v1729
  %v1747 = vsel %vm445, %v1729, %v1731
  %v1748 = vsel %vm445, %v1731, %v1733
  %v1749 = vsel %vm445, %v1733, %v1735
  %v1750 = vsel %vm445, %v1735, %v1737
  %v1751 = vsel %vm445, %v1737, %v1739
  %1764 = vst [vmem:[#allocation4 + $0x120] sm:$0xff] %v1740
  %1765 = vst [vmem:[#allocation4 + $0x128] sm:$0xff] %v1741
  %1766 = vst [vmem:[#allocation4 + $0x130] sm:$0xff] %v1742
  %1767 = vst [vmem:[#allocation4 + $0x138] sm:$0xff] %v1743
  %1768 = vst [vmem:[#allocation4 + $0x140] sm:$0xff] %v1744
  %1769 = vst [vmem:[#allocation4 + $0x148] sm:$0xff] %v1745
  %1770 = vst [vmem:[#allocation4 + $0x150] sm:$0xff] %v1746
  %1771 = vst [vmem:[#allocation4 + $0x158] sm:$0xff] %v1747
  %1772 = vst [vmem:[#allocation4 + $0x160] sm:$0xff] %v1748
  %1773 = vst [vmem:[#allocation4 + $0x168] sm:$0xff] %v1749
  %1774 = vst [vmem:[#allocation4 + $0x170] sm:$0xff] %v1750
  %1775 = vst [vmem:[#allocation4 + $0x178] sm:$0xff] %v1751
  %v1776 = vld [vmem:[#allocation2 + $0x8] sm:$0xff]
  %v1777 = vld [vmem:[#allocation2 + $0x10] sm:$0xff]
  %v1778 = vld [vmem:[#allocation2 + $0x18] sm:$0xff]
  %v1779 = vld [vmem:[#allocation2 + $0x20] sm:$0xff]
  %v1780 = vld [vmem:[#allocation2 + $0x28] sm:$0xff]
  %v1781 = vld [vmem:[#allocation2 + $0x30] sm:$0xff]
  %v1782 = vld [vmem:[#allocation2 + $0x48] sm:$0xff]
  %v1783 = vld [vmem:[#allocation2 + $0x50] sm:$0xff]
  %v1784 = vld [vmem:[#allocation2 + $0x58] sm:$0xff]
  %v1785 = vld [vmem:[#allocation2 + $0x60] sm:$0xff]
  %v1786 = vld [vmem:[#allocation2 + $0x68] sm:$0xff]
  %v1787 = vld [vmem:[#allocation2 + $0x70] sm:$0xff]
  %1788 = vst [vmem:[#allocation4 + $0x180] sm:$0xff] %v1776
  %1789 = vst [vmem:[#allocation4 + $0x188] sm:$0xff] %v1777
  %1790 = vst [vmem:[#allocation4 + $0x190] sm:$0xff] %v1778
  %1791 = vst [vmem:[#allocation4 + $0x198] sm:$0xff] %v1779
  %1792 = vst [vmem:[#allocation4 + $0x1a0] sm:$0xff] %v1780
  %1793 = vst [vmem:[#allocation4 + $0x1a8] sm:$0xff] %v1781
  %1794 = vst [vmem:[#allocation4 + $0x1b0] sm:$0xff] %v1782
  %1795 = vst [vmem:[#allocation4 + $0x1b8] sm:$0xff] %v1783
  %1796 = vst [vmem:[#allocation4 + $0x1c0] sm:$0xff] %v1784
  %1797 = vst [vmem:[#allocation4 + $0x1c8] sm:$0xff] %v1785
  %1798 = vst [vmem:[#allocation4 + $0x1d0] sm:$0xff] %v1786
  %1799 = vst [vmem:[#allocation4 + $0x1d8] sm:$0xff] %v1787
  %v1800 = vld [vmem:[#allocation2 + $0x8] sm:$0xff]
  %v1801 = vld [vmem:[#allocation2 + $0x10] sm:$0xff]
  %v1802 = vld [vmem:[#allocation2 + $0x18] sm:$0xff]
  %v1803 = vld [vmem:[#allocation2 + $0x20] sm:$0xff]
  %v1804 = vld [vmem:[#allocation2 + $0x28] sm:$0xff]
  %v1805 = vld [vmem:[#allocation2 + $0x30] sm:$0xff]
  %v1806 = vld [vmem:[#allocation2 + $0x38] sm:$0xff]
  %v1807 = vld [vmem:[#allocation2 + $0x48] sm:$0xff]
  %v1808 = vld [vmem:[#allocation2 + $0x50] sm:$0xff]
  %v1809 = vld [vmem:[#allocation2 + $0x58] sm:$0xff]
  %v1810 = vld [vmem:[#allocation2 + $0x60] sm:$0xff]
  %v1811 = vld [vmem:[#allocation2 + $0x68] sm:$0xff]
  %v1812 = vld [vmem:[#allocation2 + $0x70] sm:$0xff]
  %v1813 = vld [vmem:[#allocation2 + $0x78] sm:$0xff]
  %1828 = vrot.lane.b32.xlu0 %v1800, 127
  %v1829 = vpop.permute.xlu0 %1828
  %1830 = vrot.lane.b32.xlu0 %v1801, 127
  %v1831 = vpop.permute.xlu0 %1830
  %1832 = vrot.lane.b32.xlu0 %v1802, 127
  %v1833 = vpop.permute.xlu0 %1832
  %1834 = vrot.lane.b32.xlu0 %v1803, 127
  %v1835 = vpop.permute.xlu0 %1834
  %1836 = vrot.lane.b32.xlu0 %v1804, 127
  %v1837 = vpop.permute.xlu0 %1836
  %1838 = vrot.lane.b32.xlu0 %v1805, 127
  %v1839 = vpop.permute.xlu0 %1838
  %1840 = vrot.lane.b32.xlu0 %v1806, 127
  %v1841 = vpop.permute.xlu0 %1840
  %1842 = vrot.lane.b32.xlu0 %v1807, 127
  %v1843 = vpop.permute.xlu0 %1842
  %1844 = vrot.lane.b32.xlu0 %v1808, 127
  %v1845 = vpop.permute.xlu0 %1844
  %1846 = vrot.lane.b32.xlu0 %v1809, 127
  %v1847 = vpop.permute.xlu0 %1846
  %1848 = vrot.lane.b32.xlu0 %v1810, 127
  %v1849 = vpop.permute.xlu0 %1848
  %1850 = vrot.lane.b32.xlu0 %v1811, 127
  %v1851 = vpop.permute.xlu0 %1850
  %1852 = vrot.lane.b32.xlu0 %v1812, 127
  %v1853 = vpop.permute.xlu0 %1852
  %1854 = vrot.lane.b32.xlu0 %v1813, 127
  %v1855 = vpop.permute.xlu0 %1854
  %v1856 = vsel %vm562, %v1829, %v1831
  %v1857 = vsel %vm562, %v1831, %v1833
  %v1858 = vsel %vm562, %v1833, %v1835
  %v1859 = vsel %vm562, %v1835, %v1837
  %v1860 = vsel %vm562, %v1837, %v1839
  %v1861 = vsel %vm562, %v1839, %v1841
  %v1862 = vsel %vm562, %v1843, %v1845
  %v1863 = vsel %vm562, %v1845, %v1847
  %v1864 = vsel %vm562, %v1847, %v1849
  %v1865 = vsel %vm562, %v1849, %v1851
  %v1866 = vsel %vm562, %v1851, %v1853
  %v1867 = vsel %vm562, %v1853, %v1855
  %1880 = vst [vmem:[#allocation4 + $0x1e0] sm:$0xff] %v1856
  %1881 = vst [vmem:[#allocation4 + $0x1e8] sm:$0xff] %v1857
  %1882 = vst [vmem:[#allocation4 + $0x1f0] sm:$0xff] %v1858
  %1883 = vst [vmem:[#allocation4 + $0x1f8] sm:$0xff] %v1859
  %1884 = vst [vmem:[#allocation4 + $0x200] sm:$0xff] %v1860
  %1885 = vst [vmem:[#allocation4 + $0x208] sm:$0xff] %v1861
  %1886 = vst [vmem:[#allocation4 + $0x210] sm:$0xff] %v1862
  %1887 = vst [vmem:[#allocation4 + $0x218] sm:$0xff] %v1863
  %1888 = vst [vmem:[#allocation4 + $0x220] sm:$0xff] %v1864
  %1889 = vst [vmem:[#allocation4 + $0x228] sm:$0xff] %v1865
  %1890 = vst [vmem:[#allocation4 + $0x230] sm:$0xff] %v1866
  %1891 = vst [vmem:[#allocation4 + $0x238] sm:$0xff] %v1867
  %v1892 = vld [vmem:[#allocation2 + $0x8] sm:$0xff]
  %v1893 = vld [vmem:[#allocation2 + $0x10] sm:$0xff]
  %v1894 = vld [vmem:[#allocation2 + $0x18] sm:$0xff]
  %v1895 = vld [vmem:[#allocation2 + $0x20] sm:$0xff]
  %v1896 = vld [vmem:[#allocation2 + $0x28] sm:$0xff]
  %v1897 = vld [vmem:[#allocation2 + $0x30] sm:$0xff]
  %v1898 = vld [vmem:[#allocation2 + $0x38] sm:$0xff]
  %v1899 = vld [vmem:[#allocation2 + $0x48] sm:$0xff]
  %v1900 = vld [vmem:[#allocation2 + $0x50] sm:$0xff]
  %v1901 = vld [vmem:[#allocation2 + $0x58] sm:$0xff]
  %v1902 = vld [vmem:[#allocation2 + $0x60] sm:$0xff]
  %v1903 = vld [vmem:[#allocation2 + $0x68] sm:$0xff]
  %v1904 = vld [vmem:[#allocation2 + $0x70] sm:$0xff]
  %v1905 = vld [vmem:[#allocation2 + $0x78] sm:$0xff]
  %1920 = vrot.lane.b32.xlu0 %v1892, 111
  %v1921 = vpop.permute.xlu0 %1920
  %1922 = vrot.lane.b32.xlu0 %v1893, 111
  %v1923 = vpop.permute.xlu0 %1922
  %1924 = vrot.lane.b32.xlu0 %v1894, 111
  %v1925 = vpop.permute.xlu0 %1924
  %1926 = vrot.lane.b32.xlu0 %v1895, 111
  %v1927 = vpop.permute.xlu0 %1926
  %1928 = vrot.lane.b32.xlu0 %v1896, 111
  %v1929 = vpop.permute.xlu0 %1928
  %1930 = vrot.lane.b32.xlu0 %v1897, 111
  %v1931 = vpop.permute.xlu0 %1930
  %1932 = vrot.lane.b32.xlu0 %v1898, 111
  %v1933 = vpop.permute.xlu0 %1932
  %1934 = vrot.lane.b32.xlu0 %v1899, 111
  %v1935 = vpop.permute.xlu0 %1934
  %1936 = vrot.lane.b32.xlu0 %v1900, 111
  %v1937 = vpop.permute.xlu0 %1936
  %1938 = vrot.lane.b32.xlu0 %v1901, 111
  %v1939 = vpop.permute.xlu0 %1938
  %1940 = vrot.lane.b32.xlu0 %v1902, 111
  %v1941 = vpop.permute.xlu0 %1940
  %1942 = vrot.lane.b32.xlu0 %v1903, 111
  %v1943 = vpop.permute.xlu0 %1942
  %1944 = vrot.lane.b32.xlu0 %v1904, 111
  %v1945 = vpop.permute.xlu0 %1944
  %1946 = vrot.lane.b32.xlu0 %v1905, 111
  %v1947 = vpop.permute.xlu0 %1946
  %v1948 = vsel %vm655, %v1921, %v1923
  %v1949 = vsel %vm655, %v1923, %v1925
  %v1950 = vsel %vm655, %v1925, %v1927
  %v1951 = vsel %vm655, %v1927, %v1929
  %v1952 = vsel %vm655, %v1929, %v1931
  %v1953 = vsel %vm655, %v1931, %v1933
  %v1954 = vsel %vm655, %v1935, %v1937
  %v1955 = vsel %vm655, %v1937, %v1939
  %v1956 = vsel %vm655, %v1939, %v1941
  %v1957 = vsel %vm655, %v1941, %v1943
  %v1958 = vsel %vm655, %v1943, %v1945
  %v1959 = vsel %vm655, %v1945, %v1947
  %1972 = vst [vmem:[#allocation4 + $0x240] sm:$0xff] %v1948
  %1973 = vst [vmem:[#allocation4 + $0x248] sm:$0xff] %v1949
  %1974 = vst [vmem:[#allocation4 + $0x250] sm:$0xff] %v1950
  %1975 = vst [vmem:[#allocation4 + $0x258] sm:$0xff] %v1951
  %1976 = vst [vmem:[#allocation4 + $0x260] sm:$0xff] %v1952
  %1977 = vst [vmem:[#allocation4 + $0x268] sm:$0xff] %v1953
  %1978 = vst [vmem:[#allocation4 + $0x270] sm:$0xff] %v1954
  %1979 = vst [vmem:[#allocation4 + $0x278] sm:$0xff] %v1955
  %1980 = vst [vmem:[#allocation4 + $0x280] sm:$0xff] %v1956
  %1981 = vst [vmem:[#allocation4 + $0x288] sm:$0xff] %v1957
  %1982 = vst [vmem:[#allocation4 + $0x290] sm:$0xff] %v1958
  %1983 = vst [vmem:[#allocation4 + $0x298] sm:$0xff] %v1959
  %v1984 = vld [vmem:[#allocation2 + $0x8] sm:$0xff]
  %v1985 = vld [vmem:[#allocation2 + $0x10] sm:$0xff]
  %v1986 = vld [vmem:[#allocation2 + $0x18] sm:$0xff]
  %v1987 = vld [vmem:[#allocation2 + $0x20] sm:$0xff]
  %v1988 = vld [vmem:[#allocation2 + $0x28] sm:$0xff]
  %v1989 = vld [vmem:[#allocation2 + $0x30] sm:$0xff]
  %v1990 = vld [vmem:[#allocation2 + $0x38] sm:$0xff]
  %v1991 = vld [vmem:[#allocation2 + $0x48] sm:$0xff]
  %v1992 = vld [vmem:[#allocation2 + $0x50] sm:$0xff]
  %v1993 = vld [vmem:[#allocation2 + $0x58] sm:$0xff]
  %v1994 = vld [vmem:[#allocation2 + $0x60] sm:$0xff]
  %v1995 = vld [vmem:[#allocation2 + $0x68] sm:$0xff]
  %v1996 = vld [vmem:[#allocation2 + $0x70] sm:$0xff]
  %v1997 = vld [vmem:[#allocation2 + $0x78] sm:$0xff]
  %2012 = vrot.lane.b32.xlu0 %v1984, 110
  %v2013 = vpop.permute.xlu0 %2012
  %2014 = vrot.lane.b32.xlu0 %v1985, 110
  %v2015 = vpop.permute.xlu0 %2014
  %2016 = vrot.lane.b32.xlu0 %v1986, 110
  %v2017 = vpop.permute.xlu0 %2016
  %2018 = vrot.lane.b32.xlu0 %v1987, 110
  %v2019 = vpop.permute.xlu0 %2018
  %2020 = vrot.lane.b32.xlu0 %v1988, 110
  %v2021 = vpop.permute.xlu0 %2020
  %2022 = vrot.lane.b32.xlu0 %v1989, 110
  %v2023 = vpop.permute.xlu0 %2022
  %2024 = vrot.lane.b32.xlu0 %v1990, 110
  %v2025 = vpop.permute.xlu0 %2024
  %2026 = vrot.lane.b32.xlu0 %v1991, 110
  %v2027 = vpop.permute.xlu0 %2026
  %2028 = vrot.lane.b32.xlu0 %v1992, 110
  %v2029 = vpop.permute.xlu0 %2028
  %2030 = vrot.lane.b32.xlu0 %v1993, 110
  %v2031 = vpop.permute.xlu0 %2030
  %2032 = vrot.lane.b32.xlu0 %v1994, 110
  %v2033 = vpop.permute.xlu0 %2032
  %2034 = vrot.lane.b32.xlu0 %v1995, 110
  %v2035 = vpop.permute.xlu0 %2034
  %2036 = vrot.lane.b32.xlu0 %v1996, 110
  %v2037 = vpop.permute.xlu0 %2036
  %2038 = vrot.lane.b32.xlu0 %v1997, 110
  %v2039 = vpop.permute.xlu0 %2038
  %v2040 = vsel %vm748, %v2013, %v2015
  %v2041 = vsel %vm748, %v2015, %v2017
  %v2042 = vsel %vm748, %v2017, %v2019
  %v2043 = vsel %vm748, %v2019, %v2021
  %v2044 = vsel %vm748, %v2021, %v2023
  %v2045 = vsel %vm748, %v2023, %v2025
  %v2046 = vsel %vm748, %v2027, %v2029
  %v2047 = vsel %vm748, %v2029, %v2031
  %v2048 = vsel %vm748, %v2031, %v2033
  %v2049 = vsel %vm748, %v2033, %v2035
  %v2050 = vsel %vm748, %v2035, %v2037
  %v2051 = vsel %vm748, %v2037, %v2039
  %2064 = vst [vmem:[#allocation4 + $0x2a0] sm:$0xff] %v2040
  %2065 = vst [vmem:[#allocation4 + $0x2a8] sm:$0xff] %v2041
  %2066 = vst [vmem:[#allocation4 + $0x2b0] sm:$0xff] %v2042
  %2067 = vst [vmem:[#allocation4 + $0x2b8] sm:$0xff] %v2043
  %2068 = vst [vmem:[#allocation4 + $0x2c0] sm:$0xff] %v2044
  %2069 = vst [vmem:[#allocation4 + $0x2c8] sm:$0xff] %v2045
  %2070 = vst [vmem:[#allocation4 + $0x2d0] sm:$0xff] %v2046
  %2071 = vst [vmem:[#allocation4 + $0x2d8] sm:$0xff] %v2047
  %2072 = vst [vmem:[#allocation4 + $0x2e0] sm:$0xff] %v2048
  %2073 = vst [vmem:[#allocation4 + $0x2e8] sm:$0xff] %v2049
  %2074 = vst [vmem:[#allocation4 + $0x2f0] sm:$0xff] %v2050
  %2075 = vst [vmem:[#allocation4 + $0x2f8] sm:$0xff] %v2051
  %v2076 = vld [vmem:[#allocation2 + $0x8] sm:$0xff]
  %v2077 = vld [vmem:[#allocation2 + $0x10] sm:$0xff]
  %v2078 = vld [vmem:[#allocation2 + $0x18] sm:$0xff]
  %v2079 = vld [vmem:[#allocation2 + $0x20] sm:$0xff]
  %v2080 = vld [vmem:[#allocation2 + $0x28] sm:$0xff]
  %v2081 = vld [vmem:[#allocation2 + $0x30] sm:$0xff]
  %v2082 = vld [vmem:[#allocation2 + $0x38] sm:$0xff]
  %v2083 = vld [vmem:[#allocation2 + $0x48] sm:$0xff]
  %v2084 = vld [vmem:[#allocation2 + $0x50] sm:$0xff]
  %v2085 = vld [vmem:[#allocation2 + $0x58] sm:$0xff]
  %v2086 = vld [vmem:[#allocation2 + $0x60] sm:$0xff]
  %v2087 = vld [vmem:[#allocation2 + $0x68] sm:$0xff]
  %v2088 = vld [vmem:[#allocation2 + $0x70] sm:$0xff]
  %v2089 = vld [vmem:[#allocation2 + $0x78] sm:$0xff]
  %2104 = vrot.lane.b32.xlu0 %v2076, 109
  %v2105 = vpop.permute.xlu0 %2104
  %2106 = vrot.lane.b32.xlu0 %v2077, 109
  %v2107 = vpop.permute.xlu0 %2106
  %2108 = vrot.lane.b32.xlu0 %v2078, 109
  %v2109 = vpop.permute.xlu0 %2108
  %2110 = vrot.lane.b32.xlu0 %v2079, 109
  %v2111 = vpop.permute.xlu0 %2110
  %2112 = vrot.lane.b32.xlu0 %v2080, 109
  %v2113 = vpop.permute.xlu0 %2112
  %2114 = vrot.lane.b32.xlu0 %v2081, 109
  %v2115 = vpop.permute.xlu0 %2114
  %2116 = vrot.lane.b32.xlu0 %v2082, 109
  %v2117 = vpop.permute.xlu0 %2116
  %2118 = vrot.lane.b32.xlu0 %v2083, 109
  %v2119 = vpop.permute.xlu0 %2118
  %2120 = vrot.lane.b32.xlu0 %v2084, 109
  %v2121 = vpop.permute.xlu0 %2120
  %2122 = vrot.lane.b32.xlu0 %v2085, 109
  %v2123 = vpop.permute.xlu0 %2122
  %2124 = vrot.lane.b32.xlu0 %v2086, 109
  %v2125 = vpop.permute.xlu0 %2124
  %2126 = vrot.lane.b32.xlu0 %v2087, 109
  %v2127 = vpop.permute.xlu0 %2126
  %2128 = vrot.lane.b32.xlu0 %v2088, 109
  %v2129 = vpop.permute.xlu0 %2128
  %2130 = vrot.lane.b32.xlu0 %v2089, 109
  %v2131 = vpop.permute.xlu0 %2130
  %v2132 = vsel %vm841, %v2105, %v2107
  %v2133 = vsel %vm841, %v2107, %v2109
  %v2134 = vsel %vm841, %v2109, %v2111
  %v2135 = vsel %vm841, %v2111, %v2113
  %v2136 = vsel %vm841, %v2113, %v2115
  %v2137 = vsel %vm841, %v2115, %v2117
  %v2138 = vsel %vm841, %v2119, %v2121
  %v2139 = vsel %vm841, %v2121, %v2123
  %v2140 = vsel %vm841, %v2123, %v2125
  %v2141 = vsel %vm841, %v2125, %v2127
  %v2142 = vsel %vm841, %v2127, %v2129
  %v2143 = vsel %vm841, %v2129, %v2131
  %2156 = vst [vmem:[#allocation4 + $0x300] sm:$0xff] %v2132
  %2157 = vst [vmem:[#allocation4 + $0x308] sm:$0xff] %v2133
  %2158 = vst [vmem:[#allocation4 + $0x310] sm:$0xff] %v2134
  %2159 = vst [vmem:[#allocation4 + $0x318] sm:$0xff] %v2135
  %2160 = vst [vmem:[#allocation4 + $0x320] sm:$0xff] %v2136
  %2161 = vst [vmem:[#allocation4 + $0x328] sm:$0xff] %v2137
  %2162 = vst [vmem:[#allocation4 + $0x330] sm:$0xff] %v2138
  %2163 = vst [vmem:[#allocation4 + $0x338] sm:$0xff] %v2139
  %2164 = vst [vmem:[#allocation4 + $0x340] sm:$0xff] %v2140
  %2165 = vst [vmem:[#allocation4 + $0x348] sm:$0xff] %v2141
  %2166 = vst [vmem:[#allocation4 + $0x350] sm:$0xff] %v2142
  %2167 = vst [vmem:[#allocation4 + $0x358] sm:$0xff] %v2143
  %s2168 = scalar_lea.vmem %s1, 32
  %v2169 = vld [vmem:[%s2168] sm:$0xff]
  %v2170 = vld [vmem:[%s2168 + $0x8] sm:$0xff]
  %v2171 = vld [vmem:[%s2168 + $0x10] sm:$0xff]
  %v2172 = vld [vmem:[%s2168 + $0x18] sm:$0xff]
  %v2173 = vld [vmem:[#allocation4] sm:$0xff]
  %v2174 = vld [vmem:[#allocation4 + $0x8] sm:$0xff]
  %v2175 = vld [vmem:[#allocation4 + $0x10] sm:$0xff]
  %v2176 = vld [vmem:[#allocation4 + $0x18] sm:$0xff]
  %v2177 = vld [vmem:[#allocation4 + $0x20] sm:$0xff]
  %v2178 = vld [vmem:[#allocation4 + $0x28] sm:$0xff]
  %v2179 = vld [vmem:[#allocation4 + $0x30] sm:$0xff]
  %v2180 = vld [vmem:[#allocation4 + $0x38] sm:$0xff]
  %v2181 = vld [vmem:[#allocation4 + $0x40] sm:$0xff]
  %v2182 = vld [vmem:[#allocation4 + $0x48] sm:$0xff]
  %v2183 = vld [vmem:[#allocation4 + $0x50] sm:$0xff]
  %v2184 = vld [vmem:[#allocation4 + $0x58] sm:$0xff]
  %v2185 = vld [vmem:[#allocation4 + $0x60] sm:$0xff]
  %v2186 = vld [vmem:[#allocation4 + $0x68] sm:$0xff]
  %v2187 = vld [vmem:[#allocation4 + $0x70] sm:$0xff]
  %v2188 = vld [vmem:[#allocation4 + $0x78] sm:$0xff]
  %v2189 = vld [vmem:[#allocation4 + $0x80] sm:$0xff]
  %v2190 = vld [vmem:[#allocation4 + $0x88] sm:$0xff]
  %v2191 = vld [vmem:[#allocation4 + $0x90] sm:$0xff]
  %v2192 = vld [vmem:[#allocation4 + $0x98] sm:$0xff]
  %v2193 = vld [vmem:[#allocation4 + $0xa0] sm:$0xff]
  %v2194 = vld [vmem:[#allocation4 + $0xa8] sm:$0xff]
  %v2195 = vld [vmem:[#allocation4 + $0xb0] sm:$0xff]
  %v2196 = vld [vmem:[#allocation4 + $0xb8] sm:$0xff]
  %v2197 = vld [vmem:[#allocation4 + $0xc0] sm:$0xff]
  %v2198 = vld [vmem:[#allocation4 + $0xc8] sm:$0xff]
  %v2199 = vld [vmem:[#allocation4 + $0xd0] sm:$0xff]
  %v2200 = vld [vmem:[#allocation4 + $0xd8] sm:$0xff]
  %v2201 = vld [vmem:[#allocation4 + $0xe0] sm:$0xff]
  %v2202 = vld [vmem:[#allocation4 + $0xe8] sm:$0xff]
  %v2203 = vld [vmem:[#allocation4 + $0xf0] sm:$0xff]
  %v2204 = vld [vmem:[#allocation4 + $0xf8] sm:$0xff]
  %v2205 = vld [vmem:[#allocation4 + $0x100] sm:$0xff]
  %v2206 = vld [vmem:[#allocation4 + $0x108] sm:$0xff]
  %v2207 = vld [vmem:[#allocation4 + $0x110] sm:$0xff]
  %v2208 = vld [vmem:[#allocation4 + $0x118] sm:$0xff]
  %v2209 = vld [vmem:[#allocation4 + $0x120] sm:$0xff]
  %v2210 = vld [vmem:[#allocation4 + $0x128] sm:$0xff]
  %v2211 = vld [vmem:[#allocation4 + $0x130] sm:$0xff]
  %v2212 = vld [vmem:[#allocation4 + $0x138] sm:$0xff]
  %v2213 = vld [vmem:[#allocation4 + $0x140] sm:$0xff]
  %v2214 = vld [vmem:[#allocation4 + $0x148] sm:$0xff]
  %v2215 = vld [vmem:[#allocation4 + $0x150] sm:$0xff]
  %v2216 = vld [vmem:[#allocation4 + $0x158] sm:$0xff]
  %v2217 = vld [vmem:[#allocation4 + $0x160] sm:$0xff]
  %v2218 = vld [vmem:[#allocation4 + $0x168] sm:$0xff]
  %v2219 = vld [vmem:[#allocation4 + $0x170] sm:$0xff]
  %v2220 = vld [vmem:[#allocation4 + $0x178] sm:$0xff]
  %v2221 = vld [vmem:[#allocation4 + $0x180] sm:$0xff]
  %v2222 = vld [vmem:[#allocation4 + $0x188] sm:$0xff]
  %v2223 = vld [vmem:[#allocation4 + $0x190] sm:$0xff]
  %v2224 = vld [vmem:[#allocation4 + $0x198] sm:$0xff]
  %v2225 = vld [vmem:[#allocation4 + $0x1a0] sm:$0xff]
  %v2226 = vld [vmem:[#allocation4 + $0x1a8] sm:$0xff]
  %v2227 = vld [vmem:[#allocation4 + $0x1b0] sm:$0xff]
  %v2228 = vld [vmem:[#allocation4 + $0x1b8] sm:$0xff]
  %v2229 = vld [vmem:[#allocation4 + $0x1c0] sm:$0xff]
  %v2230 = vld [vmem:[#allocation4 + $0x1c8] sm:$0xff]
  %v2231 = vld [vmem:[#allocation4 + $0x1d0] sm:$0xff]
  %v2232 = vld [vmem:[#allocation4 + $0x1d8] sm:$0xff]
  %v2233 = vld [vmem:[#allocation4 + $0x1e0] sm:$0xff]
  %v2234 = vld [vmem:[#allocation4 + $0x1e8] sm:$0xff]
  %v2235 = vld [vmem:[#allocation4 + $0x1f0] sm:$0xff]
  %v2236 = vld [vmem:[#allocation4 + $0x1f8] sm:$0xff]
  %v2237 = vld [vmem:[#allocation4 + $0x200] sm:$0xff]
  %v2238 = vld [vmem:[#allocation4 + $0x208] sm:$0xff]
  %v2239 = vld [vmem:[#allocation4 + $0x210] sm:$0xff]
  %v2240 = vld [vmem:[#allocation4 + $0x218] sm:$0xff]
  %v2241 = vld [vmem:[#allocation4 + $0x220] sm:$0xff]
  %v2242 = vld [vmem:[#allocation4 + $0x228] sm:$0xff]
  %v2243 = vld [vmem:[#allocation4 + $0x230] sm:$0xff]
  %v2244 = vld [vmem:[#allocation4 + $0x238] sm:$0xff]
  %v2245 = vld [vmem:[#allocation4 + $0x240] sm:$0xff]
  %v2246 = vld [vmem:[#allocation4 + $0x248] sm:$0xff]
  %v2247 = vld [vmem:[#allocation4 + $0x250] sm:$0xff]
  %v2248 = vld [vmem:[#allocation4 + $0x258] sm:$0xff]
  %v2249 = vld [vmem:[#allocation4 + $0x260] sm:$0xff]
  %v2250 = vld [vmem:[#allocation4 + $0x268] sm:$0xff]
  %v2251 = vld [vmem:[#allocation4 + $0x270] sm:$0xff]
  %v2252 = vld [vmem:[#allocation4 + $0x278] sm:$0xff]
  %v2253 = vld [vmem:[#allocation4 + $0x280] sm:$0xff]
  %v2254 = vld [vmem:[#allocation4 + $0x288] sm:$0xff]
  %v2255 = vld [vmem:[#allocation4 + $0x290] sm:$0xff]
  %v2256 = vld [vmem:[#allocation4 + $0x298] sm:$0xff]
  %v2257 = vld [vmem:[#allocation4 + $0x2a0] sm:$0xff]
  %v2258 = vld [vmem:[#allocation4 + $0x2a8] sm:$0xff]
  %v2259 = vld [vmem:[#allocation4 + $0x2b0] sm:$0xff]
  %v2260 = vld [vmem:[#allocation4 + $0x2b8] sm:$0xff]
  %v2261 = vld [vmem:[#allocation4 + $0x2c0] sm:$0xff]
  %v2262 = vld [vmem:[#allocation4 + $0x2c8] sm:$0xff]
  %v2263 = vld [vmem:[#allocation4 + $0x2d0] sm:$0xff]
  %v2264 = vld [vmem:[#allocation4 + $0x2d8] sm:$0xff]
  %v2265 = vld [vmem:[#allocation4 + $0x2e0] sm:$0xff]
  %v2266 = vld [vmem:[#allocation4 + $0x2e8] sm:$0xff]
  %v2267 = vld [vmem:[#allocation4 + $0x2f0] sm:$0xff]
  %v2268 = vld [vmem:[#allocation4 + $0x2f8] sm:$0xff]
  %v2269 = vld [vmem:[#allocation4 + $0x300] sm:$0xff]
  %v2270 = vld [vmem:[#allocation4 + $0x308] sm:$0xff]
  %v2271 = vld [vmem:[#allocation4 + $0x310] sm:$0xff]
  %v2272 = vld [vmem:[#allocation4 + $0x318] sm:$0xff]
  %v2273 = vld [vmem:[#allocation4 + $0x320] sm:$0xff]
  %v2274 = vld [vmem:[#allocation4 + $0x328] sm:$0xff]
  %v2275 = vld [vmem:[#allocation4 + $0x330] sm:$0xff]
  %v2276 = vld [vmem:[#allocation4 + $0x338] sm:$0xff]
  %v2277 = vld [vmem:[#allocation4 + $0x340] sm:$0xff]
  %v2278 = vld [vmem:[#allocation4 + $0x348] sm:$0xff]
  %v2279 = vld [vmem:[#allocation4 + $0x350] sm:$0xff]
  %v2280 = vld [vmem:[#allocation4 + $0x358] sm:$0xff]
  %v2281 = vld [vmem:[#allocation4 + $0x360] sm:$0xff]
  %v2282 = vld [vmem:[#allocation4 + $0x368] sm:$0xff]
  %v2283 = vld [vmem:[#allocation4 + $0x370] sm:$0xff]
  %v2284 = vld [vmem:[#allocation4 + $0x378] sm:$0xff]
  %v2285 = vld [vmem:[#allocation4 + $0x380] sm:$0xff]
  %v2286 = vld [vmem:[#allocation4 + $0x388] sm:$0xff]
  %v2287 = vld [vmem:[#allocation4 + $0x390] sm:$0xff]
  %v2288 = vld [vmem:[#allocation4 + $0x398] sm:$0xff]
  %v2289 = vld [vmem:[#allocation4 + $0x3a0] sm:$0xff]
  %v2290 = vld [vmem:[#allocation4 + $0x3a8] sm:$0xff]
  %v2291 = vld [vmem:[#allocation4 + $0x3b0] sm:$0xff]
  %v2292 = vld [vmem:[#allocation4 + $0x3b8] sm:$0xff]
  %v2293 = vld [vmem:[#allocation4 + $0x3c0] sm:$0xff]
  %v2294 = vld [vmem:[#allocation4 + $0x3c8] sm:$0xff]
  %v2295 = vld [vmem:[#allocation4 + $0x3d0] sm:$0xff]
  %v2296 = vld [vmem:[#allocation4 + $0x3d8] sm:$0xff]
  %v2297 = vld [vmem:[#allocation4 + $0x3e0] sm:$0xff]
  %v2298 = vld [vmem:[#allocation4 + $0x3e8] sm:$0xff]
  %v2299 = vld [vmem:[#allocation4 + $0x3f0] sm:$0xff]
  %v2300 = vld [vmem:[#allocation4 + $0x3f8] sm:$0xff]
  %v2301 = vld [vmem:[#allocation4 + $0x400] sm:$0xff]
  %v2302 = vld [vmem:[#allocation4 + $0x408] sm:$0xff]
  %v2303 = vld [vmem:[#allocation4 + $0x410] sm:$0xff]
  %v2304 = vld [vmem:[#allocation4 + $0x418] sm:$0xff]
  %v2305 = vld [vmem:[#allocation4 + $0x420] sm:$0xff]
  %v2306 = vld [vmem:[#allocation4 + $0x428] sm:$0xff]
  %v2307 = vld [vmem:[#allocation4 + $0x430] sm:$0xff]
  %v2308 = vld [vmem:[#allocation4 + $0x438] sm:$0xff]
  %v2309 = vld [vmem:[#allocation4 + $0x440] sm:$0xff]
  %v2310 = vld [vmem:[#allocation4 + $0x448] sm:$0xff]
  %v2311 = vld [vmem:[#allocation4 + $0x450] sm:$0xff]
  %v2312 = vld [vmem:[#allocation4 + $0x458] sm:$0xff]
  %v2313 = vld [vmem:[#allocation4 + $0x460] sm:$0xff]
  %v2314 = vld [vmem:[#allocation4 + $0x468] sm:$0xff]
  %v2315 = vld [vmem:[#allocation4 + $0x470] sm:$0xff]
  %v2316 = vld [vmem:[#allocation4 + $0x478] sm:$0xff]
  %v2317 = vld [vmem:[#allocation4 + $0x480] sm:$0xff]
  %v2318 = vld [vmem:[#allocation4 + $0x488] sm:$0xff]
  %v2319 = vld [vmem:[#allocation4 + $0x490] sm:$0xff]
  %v2320 = vld [vmem:[#allocation4 + $0x498] sm:$0xff]
  %v2321 = vld [vmem:[#allocation4 + $0x4a0] sm:$0xff]
  %v2322 = vld [vmem:[#allocation4 + $0x4a8] sm:$0xff]
  %v2323 = vld [vmem:[#allocation4 + $0x4b0] sm:$0xff]
  %v2324 = vld [vmem:[#allocation4 + $0x4b8] sm:$0xff]
  %v2325 = vld [vmem:[#allocation4 + $0x4c0] sm:$0xff]
  %v2326 = vld [vmem:[#allocation4 + $0x4c8] sm:$0xff]
  %v2327 = vld [vmem:[#allocation4 + $0x4d0] sm:$0xff]
  %v2328 = vld [vmem:[#allocation4 + $0x4d8] sm:$0xff]
  %v2329 = vld [vmem:[#allocation4 + $0x4e0] sm:$0xff]
  %v2330 = vld [vmem:[#allocation4 + $0x4e8] sm:$0xff]
  %v2331 = vld [vmem:[#allocation4 + $0x4f0] sm:$0xff]
  %v2332 = vld [vmem:[#allocation4 + $0x4f8] sm:$0xff]
  %v2333 = vld [vmem:[#allocation4 + $0x500] sm:$0xff]
  %v2334 = vld [vmem:[#allocation4 + $0x508] sm:$0xff]
  %v2335 = vld [vmem:[#allocation4 + $0x510] sm:$0xff]
  %v2336 = vld [vmem:[#allocation4 + $0x518] sm:$0xff]
  %v2337 = vld [vmem:[#allocation4 + $0x520] sm:$0xff]
  %v2338 = vld [vmem:[#allocation4 + $0x528] sm:$0xff]
  %v2339 = vld [vmem:[#allocation4 + $0x530] sm:$0xff]
  %v2340 = vld [vmem:[#allocation4 + $0x538] sm:$0xff]
  %v2341 = vld [vmem:[#allocation4 + $0x540] sm:$0xff]
  %v2342 = vld [vmem:[#allocation4 + $0x548] sm:$0xff]
  %v2343 = vld [vmem:[#allocation4 + $0x550] sm:$0xff]
  %v2344 = vld [vmem:[#allocation4 + $0x558] sm:$0xff]
  %v2345 = vld [vmem:[#allocation4 + $0x560] sm:$0xff]
  %v2346 = vld [vmem:[#allocation4 + $0x568] sm:$0xff]
  %v2347 = vld [vmem:[#allocation4 + $0x570] sm:$0xff]
  %v2348 = vld [vmem:[#allocation4 + $0x578] sm:$0xff]
  %v2349 = vld [vmem:[#allocation4 + $0x580] sm:$0xff]
  %v2350 = vld [vmem:[#allocation4 + $0x588] sm:$0xff]
  %v2351 = vld [vmem:[#allocation4 + $0x590] sm:$0xff]
  %v2352 = vld [vmem:[#allocation4 + $0x598] sm:$0xff]
  %v2353 = vld [vmem:[#allocation4 + $0x5a0] sm:$0xff]
  %v2354 = vld [vmem:[#allocation4 + $0x5a8] sm:$0xff]
  %v2355 = vld [vmem:[#allocation4 + $0x5b0] sm:$0xff]
  %v2356 = vld [vmem:[#allocation4 + $0x5b8] sm:$0xff]
  %v2357 = vld [vmem:[#allocation4 + $0x5c0] sm:$0xff]
  %v2358 = vld [vmem:[#allocation4 + $0x5c8] sm:$0xff]
  %v2359 = vld [vmem:[#allocation4 + $0x5d0] sm:$0xff]
  %v2360 = vld [vmem:[#allocation4 + $0x5d8] sm:$0xff]
  %v2361 = vld [vmem:[#allocation4 + $0x5e0] sm:$0xff]
  %v2362 = vld [vmem:[#allocation4 + $0x5e8] sm:$0xff]
  %v2363 = vld [vmem:[#allocation4 + $0x5f0] sm:$0xff]
  %v2364 = vld [vmem:[#allocation4 + $0x5f8] sm:$0xff]
  %s2365 = scalar_lea.vmem %s2, 16
  %v2366 = vld [vmem:[%s2365] sm:$0xff]
  %v2367 = vld [vmem:[%s2365 + $0x8] sm:$0xff]
  %2369 = vset.pattern.permute.xlu0 0
  %2370 = vperm.xlu0 %2369, %v2366
  %v2371 = vpop.permute.xlu0 %2370
  %2374 = vset.pattern.permute.xlu0 0
  %2375 = vperm.xlu0 %2374, %v2367
  %v2376 = vpop.permute.xlu0 %2375
  %2378 = vmatprep.subr.mxu0 %v2264
  %2379 = vmatpush1.msra.mxu0 %v2263
  %2380 = vmatprep.subr.mxu0 %v2258
  %2381 = vmatpush1.msra.mxu0 %v2257
  %2382 = vmatprep.subr.mxu0 %v2252
  %2383 = vmatpush1.msra.mxu0 %v2251
  %2384 = vmatprep.subr.mxu0 %v2246
  %2385 = vmatpush1.msra.mxu0 %v2245
  %2386 = vmatprep.subr.mxu0 %v2240
  %2387 = vmatpush1.msra.mxu0 %v2239
  %2388 = vmatprep.subr.mxu0 %v2234
  %2389 = vmatpush1.msra.mxu0 %v2233
  %2390 = vmatprep.subr.mxu0 %v2228
  %2391 = vmatpush1.msra.mxu0 %v2227
  %2392 = vmatprep.subr.mxu0 %v2222
  %2393 = vmatpush1.msra.mxu0 %v2221
  %2394 = vmatprep.subr.mxu0 %v2216
  %2395 = vmatpush1.msra.mxu0 %v2215
  %2396 = vmatprep.subr.mxu0 %v2210
  %2397 = vmatpush1.msra.mxu0 %v2209
  %2398 = vmatprep.subr.mxu0 %v2204
  %2399 = vmatpush1.msra.mxu0 %v2203
  %2400 = vmatprep.subr.mxu0 %v2198
  %2401 = vmatpush1.msra.mxu0 %v2197
  %2402 = vmatprep.subr.mxu0 %v2192
  %2403 = vmatpush1.msra.mxu0 %v2191
  %2404 = vmatprep.subr.mxu0 %v2186
  %2405 = vmatpush1.msra.mxu0 %v2185
  %2406 = vmatprep.subr.mxu0 %v2180
  %2407 = vmatpush1.msra.mxu0 %v2179
  %2408 = vmatprep.subr.mxu0 %v2174
  %2409 = vmatpush1.msra.mxu0 %v2173
  %2410 = vmatprep.subr.mxu0 %v2360
  %2411 = vmatpush2.msra.mxu0 %v2359
  %2412 = vmatprep.subr.mxu0 %v2354
  %2413 = vmatpush2.msra.mxu0 %v2353
  %2414 = vmatprep.subr.mxu0 %v2348
  %2415 = vmatpush2.msra.mxu0 %v2347
  %2416 = vmatprep.subr.mxu0 %v2342
  %2417 = vmatpush2.msra.mxu0 %v2341
  %2418 = vmatprep.subr.mxu0 %v2336
  %2419 = vmatpush2.msra.mxu0 %v2335
  %2420 = vmatprep.subr.mxu0 %v2330
  %2421 = vmatpush2.msra.mxu0 %v2329
  %2422 = vmatprep.subr.mxu0 %v2324
  %2423 = vmatpush2.msra.mxu0 %v2323
  %2424 = vmatprep.subr.mxu0 %v2318
  %2425 = vmatpush2.msra.mxu0 %v2317
  %2426 = vmatprep.subr.mxu0 %v2312
  %2427 = vmatpush2.msra.mxu0 %v2311
  %2428 = vmatprep.subr.mxu0 %v2306
  %2429 = vmatpush2.msra.mxu0 %v2305
  %2430 = vmatprep.subr.mxu0 %v2300
  %2431 = vmatpush2.msra.mxu0 %v2299
  %2432 = vmatprep.subr.mxu0 %v2294
  %2433 = vmatpush2.msra.mxu0 %v2293
  %2434 = vmatprep.subr.mxu0 %v2288
  %2435 = vmatpush2.msra.mxu0 %v2287
  %2436 = vmatprep.subr.mxu0 %v2282
  %2437 = vmatpush2.msra.mxu0 %v2281
  %2438 = vmatprep.subr.mxu0 %v2276
  %2439 = vmatpush2.msra.mxu0 %v2275
  %2440 = vmatprep.subr.mxu0 %v2270
  %2441 = vmatpush2.msra.mxu0 %v2269
  %2442 = vmatprep.mubr.f32.mxu0 %v2170
  %2443 = vmatmul.mubr.f32.gmra.mxu0 %v2169
  %v2444 = vpop.f32.mrf.mxu0
  %v2445 = vadd.f32 %v2371, %v2444
  %v2446 = vpop.f32.mrf.mxu0
  %v2447 = vadd.f32 %v2371, %v2446
  %2448 = vmatprep.mubr.f32.mxu0 %v2172
  %2449 = vmatmul.mubr.f32.gmra.mxu0 %v2171
  %v2450 = vpop.f32.mrf.mxu0
  %v2451 = vadd.f32 %v2376, %v2450
  %v2452 = vpop.f32.mrf.mxu0
  %v2453 = vadd.f32 %v2376, %v2452
  %2454 = vdwg.mxu0
  %2455 = vmatprep.subr.mxu0 %v2266
  %2456 = vmatpush1.msra.mxu0 %v2265
  %2457 = vmatprep.subr.mxu0 %v2260
  %2458 = vmatpush1.msra.mxu0 %v2259
  %2459 = vmatprep.subr.mxu0 %v2254
  %2460 = vmatpush1.msra.mxu0 %v2253
  %2461 = vmatprep.subr.mxu0 %v2248
  %2462 = vmatpush1.msra.mxu0 %v2247
  %2463 = vmatprep.subr.mxu0 %v2242
  %2464 = vmatpush1.msra.mxu0 %v2241
  %2465 = vmatprep.subr.mxu0 %v2236
  %2466 = vmatpush1.msra.mxu0 %v2235
  %2467 = vmatprep.subr.mxu0 %v2230
  %2468 = vmatpush1.msra.mxu0 %v2229
  %2469 = vmatprep.subr.mxu0 %v2224
  %2470 = vmatpush1.msra.mxu0 %v2223
  %2471 = vmatprep.subr.mxu0 %v2218
  %2472 = vmatpush1.msra.mxu0 %v2217
  %2473 = vmatprep.subr.mxu0 %v2212
  %2474 = vmatpush1.msra.mxu0 %v2211
  %2475 = vmatprep.subr.mxu0 %v2206
  %2476 = vmatpush1.msra.mxu0 %v2205
  %2477 = vmatprep.subr.mxu0 %v2200
  %2478 = vmatpush1.msra.mxu0 %v2199
  %2479 = vmatprep.subr.mxu0 %v2194
  %2480 = vmatpush1.msra.mxu0 %v2193
  %2481 = vmatprep.subr.mxu0 %v2188
  %2482 = vmatpush1.msra.mxu0 %v2187
  %2483 = vmatprep.subr.mxu0 %v2182
  %2484 = vmatpush1.msra.mxu0 %v2181
  %2485 = vmatprep.subr.mxu0 %v2176
  %2486 = vmatpush1.msra.mxu0 %v2175
  %2487 = vmatprep.subr.mxu0 %v2362
  %2488 = vmatpush2.msra.mxu0 %v2361
  %2489 = vmatprep.subr.mxu0 %v2356
  %2490 = vmatpush2.msra.mxu0 %v2355
  %2491 = vmatprep.subr.mxu0 %v2350
  %2492 = vmatpush2.msra.mxu0 %v2349
  %2493 = vmatprep.subr.mxu0 %v2344
  %2494 = vmatpush2.msra.mxu0 %v2343
  %2495 = vmatprep.subr.mxu0 %v2338
  %2496 = vmatpush2.msra.mxu0 %v2337
  %2497 = vmatprep.subr.mxu0 %v2332
  %2498 = vmatpush2.msra.mxu0 %v2331
  %2499 = vmatprep.subr.mxu0 %v2326
  %2500 = vmatpush2.msra.mxu0 %v2325
  %2501 = vmatprep.subr.mxu0 %v2320
  %2502 = vmatpush2.msra.mxu0 %v2319
  %2503 = vmatprep.subr.mxu0 %v2314
  %2504 = vmatpush2.msra.mxu0 %v2313
  %2505 = vmatprep.subr.mxu0 %v2308
  %2506 = vmatpush2.msra.mxu0 %v2307
  %2507 = vmatprep.subr.mxu0 %v2302
  %2508 = vmatpush2.msra.mxu0 %v2301
  %2509 = vmatprep.subr.mxu0 %v2296
  %2510 = vmatpush2.msra.mxu0 %v2295
  %2511 = vmatprep.subr.mxu0 %v2290
  %2512 = vmatpush2.msra.mxu0 %v2289
  %2513 = vmatprep.subr.mxu0 %v2284
  %2514 = vmatpush2.msra.mxu0 %v2283
  %2515 = vmatprep.subr.mxu0 %v2278
  %2516 = vmatpush2.msra.mxu0 %v2277
  %2517 = vmatprep.subr.mxu0 %v2272
  %2518 = vmatpush2.msra.mxu0 %v2271
  %2519 = vmatprep.mubr.f32.mxu0 %v2170
  %2520 = vmatmul.mubr.f32.gmra.mxu0 %v2169
  %v2521 = vpop.f32.mrf.mxu0
  %v2522 = vadd.f32 %v2371, %v2521
  %v2523 = vpop.f32.mrf.mxu0
  %v2524 = vadd.f32 %v2371, %v2523
  %2525 = vmatprep.mubr.f32.mxu0 %v2172
  %2526 = vmatmul.mubr.f32.gmra.mxu0 %v2171
  %v2527 = vpop.f32.mrf.mxu0
  %v2528 = vadd.f32 %v2376, %v2527
  %v2529 = vpop.f32.mrf.mxu0
  %v2530 = vadd.f32 %v2376, %v2529
  %2531 = vdwg.mxu0
  %2532 = vmatprep.subr.mxu0 %v2268
  %2533 = vmatpush1.msra.mxu0 %v2267
  %2534 = vmatprep.subr.mxu0 %v2262
  %2535 = vmatpush1.msra.mxu0 %v2261
  %2536 = vmatprep.subr.mxu0 %v2256
  %2537 = vmatpush1.msra.mxu0 %v2255
  %2538 = vmatprep.subr.mxu0 %v2250
  %2539 = vmatpush1.msra.mxu0 %v2249
  %2540 = vmatprep.subr.mxu0 %v2244
  %2541 = vmatpush1.msra.mxu0 %v2243
  %2542 = vmatprep.subr.mxu0 %v2238
  %2543 = vmatpush1.msra.mxu0 %v2237
  %2544 = vmatprep.subr.mxu0 %v2232
  %2545 = vmatpush1.msra.mxu0 %v2231
  %2546 = vmatprep.subr.mxu0 %v2226
  %2547 = vmatpush1.msra.mxu0 %v2225
  %2548 = vmatprep.subr.mxu0 %v2220
  %2549 = vmatpush1.msra.mxu0 %v2219
  %2550 = vmatprep.subr.mxu0 %v2214
  %2551 = vmatpush1.msra.mxu0 %v2213
  %2552 = vmatprep.subr.mxu0 %v2208
  %2553 = vmatpush1.msra.mxu0 %v2207
  %2554 = vmatprep.subr.mxu0 %v2202
  %2555 = vmatpush1.msra.mxu0 %v2201
  %2556 = vmatprep.subr.mxu0 %v2196
  %2557 = vmatpush1.msra.mxu0 %v2195
  %2558 = vmatprep.subr.mxu0 %v2190
  %2559 = vmatpush1.msra.mxu0 %v2189
  %2560 = vmatprep.subr.mxu0 %v2184
  %2561 = vmatpush1.msra.mxu0 %v2183
  %2562 = vmatprep.subr.mxu0 %v2178
  %2563 = vmatpush1.msra.mxu0 %v2177
  %2564 = vmatprep.subr.mxu0 %v2364
  %2565 = vmatpush2.msra.mxu0 %v2363
  %2566 = vmatprep.subr.mxu0 %v2358
  %2567 = vmatpush2.msra.mxu0 %v2357
  %2568 = vmatprep.subr.mxu0 %v2352
  %2569 = vmatpush2.msra.mxu0 %v2351
  %2570 = vmatprep.subr.mxu0 %v2346
  %2571 = vmatpush2.msra.mxu0 %v2345
  %2572 = vmatprep.subr.mxu0 %v2340
  %2573 = vmatpush2.msra.mxu0 %v2339
  %2574 = vmatprep.subr.mxu0 %v2334
  %2575 = vmatpush2.msra.mxu0 %v2333
  %2576 = vmatprep.subr.mxu0 %v2328
  %2577 = vmatpush2.msra.mxu0 %v2327
  %2578 = vmatprep.subr.mxu0 %v2322
  %2579 = vmatpush2.msra.mxu0 %v2321
  %2580 = vmatprep.subr.mxu0 %v2316
  %2581 = vmatpush2.msra.mxu0 %v2315
  %2582 = vmatprep.subr.mxu0 %v2310
  %2583 = vmatpush2.msra.mxu0 %v2309
  %2584 = vmatprep.subr.mxu0 %v2304
  %2585 = vmatpush2.msra.mxu0 %v2303
  %2586 = vmatprep.subr.mxu0 %v2298
  %2587 = vmatpush2.msra.mxu0 %v2297
  %2588 = vmatprep.subr.mxu0 %v2292
  %2589 = vmatpush2.msra.mxu0 %v2291
  %2590 = vmatprep.subr.mxu0 %v2286
  %2591 = vmatpush2.msra.mxu0 %v2285
  %2592 = vmatprep.subr.mxu0 %v2280
  %2593 = vmatpush2.msra.mxu0 %v2279
  %2594 = vmatprep.subr.mxu0 %v2274
  %2595 = vmatpush2.msra.mxu0 %v2273
  %2596 = vmatprep.mubr.f32.mxu0 %v2170
  %2597 = vmatmul.mubr.f32.gmra.mxu0 %v2169
  %v2598 = vpop.f32.mrf.mxu0
  %v2599 = vadd.f32 %v2371, %v2598
  %v2600 = vpop.f32.mrf.mxu0
  %v2601 = vadd.f32 %v2371, %v2600
  %2602 = vmatprep.mubr.f32.mxu0 %v2172
  %2603 = vmatmul.mubr.f32.gmra.mxu0 %v2171
  %v2604 = vpop.f32.mrf.mxu0
  %v2605 = vadd.f32 %v2376, %v2604
  %v2606 = vpop.f32.mrf.mxu0
  %v2607 = vadd.f32 %v2376, %v2606
  %2608 = vdwg.mxu0
  %vm2609 = vcmp.gt.f32.partialorder %v2445, 0.0
  %vm2610 = vcmp.gt.f32.partialorder %v2447, 0.0
  %vm2611 = vcmp.gt.f32.partialorder %v2522, 0.0
  %vm2612 = vcmp.gt.f32.partialorder %v2524, 0.0
  %vm2613 = vcmp.gt.f32.partialorder %v2599, 0.0
  %vm2614 = vcmp.gt.f32.partialorder %v2601, 0.0
  %vm2615 = vcmp.gt.f32.partialorder %v2451, 0.0
  %vm2616 = vcmp.gt.f32.partialorder %v2453, 0.0
  %vm2617 = vcmp.gt.f32.partialorder %v2528, 0.0
  %vm2618 = vcmp.gt.f32.partialorder %v2530, 0.0
  %vm2619 = vcmp.gt.f32.partialorder %v2605, 0.0
  %vm2620 = vcmp.gt.f32.partialorder %v2607, 0.0
  %v2621 = vmul.f32 %v2445, 0.2
  %v2622 = vmul.f32 %v2447, 0.2
  %v2623 = vmul.f32 %v2522, 0.2
  %v2624 = vmul.f32 %v2524, 0.2
  %v2625 = vmul.f32 %v2599, 0.2
  %v2626 = vmul.f32 %v2601, 0.2
  %v2627 = vmul.f32 %v2451, 0.2
  %v2628 = vmul.f32 %v2453, 0.2
  %v2629 = vmul.f32 %v2528, 0.2
  %v2630 = vmul.f32 %v2530, 0.2
  %v2631 = vmul.f32 %v2605, 0.2
  %v2632 = vmul.f32 %v2607, 0.2
  %v2633 = vsel %vm2609, %v2445, %v2621
  %v2634 = vsel %vm2610, %v2447, %v2622
  %v2635 = vsel %vm2611, %v2522, %v2623
  %v2636 = vsel %vm2612, %v2524, %v2624
  %v2637 = vsel %vm2613, %v2599, %v2625
  %v2638 = vsel %vm2614, %v2601, %v2626
  %v2639 = vsel %vm2615, %v2451, %v2627
  %v2640 = vsel %vm2616, %v2453, %v2628
  %v2641 = vsel %vm2617, %v2528, %v2629
  %v2642 = vsel %vm2618, %v2530, %v2630
  %v2643 = vsel %vm2619, %v2605, %v2631
  %v2644 = vsel %vm2620, %v2607, %v2632
  %v2645 = vmul.f32 %v2633, %v1357
  %v2646 = vmul.f32 %v2634, %v1361
  %v2647 = vmul.f32 %v2635, %v1365
  %v2648 = vmul.f32 %v2636, %v1369
  %v2649 = vmul.f32 %v2637, %v1373
  %v2650 = vmul.f32 %v2638, %v1377
  %v2651 = vmul.f32 %v2639, %v1357
  %v2652 = vmul.f32 %v2640, %v1361
  %v2653 = vmul.f32 %v2641, %v1365
  %v2654 = vmul.f32 %v2642, %v1369
  %v2655 = vmul.f32 %v2643, %v1373
  %v2656 = vmul.f32 %v2644, %v1377
  %2657 = vst [vmem:[#allocation3 + $0x8] sm:$0xff] %v2645
  %2658 = vst [vmem:[#allocation3 + $0x10] sm:$0xff] %v2646
  %2659 = vst [vmem:[#allocation3 + $0x18] sm:$0xff] %v2647
  %2660 = vst [vmem:[#allocation3 + $0x20] sm:$0xff] %v2648
  %2661 = vst [vmem:[#allocation3 + $0x28] sm:$0xff] %v2649
  %2662 = vst [vmem:[#allocation3 + $0x30] sm:$0xff] %v2650
  %2663 = vst [vmem:[#allocation3 + $0x48] sm:$0xff] %v2651
  %2664 = vst [vmem:[#allocation3 + $0x50] sm:$0xff] %v2652
  %2665 = vst [vmem:[#allocation3 + $0x58] sm:$0xff] %v2653
  %2666 = vst [vmem:[#allocation3 + $0x60] sm:$0xff] %v2654
  %2667 = vst [vmem:[#allocation3 + $0x68] sm:$0xff] %v2655
  %2668 = vst [vmem:[#allocation3 + $0x70] sm:$0xff] %v2656
  %v2669 = vld [vmem:[#allocation3] sm:$0xff]
  %v2670 = vld [vmem:[#allocation3 + $0x8] sm:$0xff]
  %v2671 = vld [vmem:[#allocation3 + $0x10] sm:$0xff]
  %v2672 = vld [vmem:[#allocation3 + $0x18] sm:$0xff]
  %v2673 = vld [vmem:[#allocation3 + $0x20] sm:$0xff]
  %v2674 = vld [vmem:[#allocation3 + $0x28] sm:$0xff]
  %v2675 = vld [vmem:[#allocation3 + $0x30] sm:$0xff]
  %v2676 = vld [vmem:[#allocation3 + $0x40] sm:$0xff]
  %v2677 = vld [vmem:[#allocation3 + $0x48] sm:$0xff]
  %v2678 = vld [vmem:[#allocation3 + $0x50] sm:$0xff]
  %v2679 = vld [vmem:[#allocation3 + $0x58] sm:$0xff]
  %v2680 = vld [vmem:[#allocation3 + $0x60] sm:$0xff]
  %v2681 = vld [vmem:[#allocation3 + $0x68] sm:$0xff]
  %v2682 = vld [vmem:[#allocation3 + $0x70] sm:$0xff]
  %2697 = vrot.lane.b32.xlu0 %v2669, 19
  %v2698 = vpop.permute.xlu0 %2697
  %2699 = vrot.lane.b32.xlu0 %v2670, 19
  %v2700 = vpop.permute.xlu0 %2699
  %2701 = vrot.lane.b32.xlu0 %v2671, 19
  %v2702 = vpop.permute.xlu0 %2701
  %2703 = vrot.lane.b32.xlu0 %v2672, 19
  %v2704 = vpop.permute.xlu0 %2703
  %2705 = vrot.lane.b32.xlu0 %v2673, 19
  %v2706 = vpop.permute.xlu0 %2705
  %2707 = vrot.lane.b32.xlu0 %v2674, 19
  %v2708 = vpop.permute.xlu0 %2707
  %2709 = vrot.lane.b32.xlu0 %v2675, 19
  %v2710 = vpop.permute.xlu0 %2709
  %2711 = vrot.lane.b32.xlu0 %v2676, 19
  %v2712 = vpop.permute.xlu0 %2711
  %2713 = vrot.lane.b32.xlu0 %v2677, 19
  %v2714 = vpop.permute.xlu0 %2713
  %2715 = vrot.lane.b32.xlu0 %v2678, 19
  %v2716 = vpop.permute.xlu0 %2715
  %2717 = vrot.lane.b32.xlu0 %v2679, 19
  %v2718 = vpop.permute.xlu0 %2717
  %2719 = vrot.lane.b32.xlu0 %v2680, 19
  %v2720 = vpop.permute.xlu0 %2719
  %2721 = vrot.lane.b32.xlu0 %v2681, 19
  %v2722 = vpop.permute.xlu0 %2721
  %2723 = vrot.lane.b32.xlu0 %v2682, 19
  %v2724 = vpop.permute.xlu0 %2723
  %v2725 = vsel %vm166, %v2698, %v2700
  %v2726 = vsel %vm166, %v2700, %v2702
  %v2727 = vsel %vm166, %v2702, %v2704
  %v2728 = vsel %vm166, %v2704, %v2706
  %v2729 = vsel %vm166, %v2706, %v2708
  %v2730 = vsel %vm166, %v2708, %v2710
  %v2731 = vsel %vm166, %v2712, %v2714
  %v2732 = vsel %vm166, %v2714, %v2716
  %v2733 = vsel %vm166, %v2716, %v2718
  %v2734 = vsel %vm166, %v2718, %v2720
  %v2735 = vsel %vm166, %v2720, %v2722
  %v2736 = vsel %vm166, %v2722, %v2724
  %2749 = vst [vmem:[#allocation4] sm:$0xff] %v2725
  %2750 = vst [vmem:[#allocation4 + $0x8] sm:$0xff] %v2726
  %2751 = vst [vmem:[#allocation4 + $0x10] sm:$0xff] %v2727
  %2752 = vst [vmem:[#allocation4 + $0x18] sm:$0xff] %v2728
  %2753 = vst [vmem:[#allocation4 + $0x20] sm:$0xff] %v2729
  %2754 = vst [vmem:[#allocation4 + $0x28] sm:$0xff] %v2730
  %2755 = vst [vmem:[#allocation4 + $0x30] sm:$0xff] %v2731
  %2756 = vst [vmem:[#allocation4 + $0x38] sm:$0xff] %v2732
  %2757 = vst [vmem:[#allocation4 + $0x40] sm:$0xff] %v2733
  %2758 = vst [vmem:[#allocation4 + $0x48] sm:$0xff] %v2734
  %2759 = vst [vmem:[#allocation4 + $0x50] sm:$0xff] %v2735
  %2760 = vst [vmem:[#allocation4 + $0x58] sm:$0xff] %v2736
  %v2761 = vld [vmem:[#allocation3] sm:$0xff]
  %v2762 = vld [vmem:[#allocation3 + $0x8] sm:$0xff]
  %v2763 = vld [vmem:[#allocation3 + $0x10] sm:$0xff]
  %v2764 = vld [vmem:[#allocation3 + $0x18] sm:$0xff]
  %v2765 = vld [vmem:[#allocation3 + $0x20] sm:$0xff]
  %v2766 = vld [vmem:[#allocation3 + $0x28] sm:$0xff]
  %v2767 = vld [vmem:[#allocation3 + $0x30] sm:$0xff]
  %v2768 = vld [vmem:[#allocation3 + $0x40] sm:$0xff]
  %v2769 = vld [vmem:[#allocation3 + $0x48] sm:$0xff]
  %v2770 = vld [vmem:[#allocation3 + $0x50] sm:$0xff]
  %v2771 = vld [vmem:[#allocation3 + $0x58] sm:$0xff]
  %v2772 = vld [vmem:[#allocation3 + $0x60] sm:$0xff]
  %v2773 = vld [vmem:[#allocation3 + $0x68] sm:$0xff]
  %v2774 = vld [vmem:[#allocation3 + $0x70] sm:$0xff]
  %2789 = vrot.lane.b32.xlu0 %v2761, 18
  %v2790 = vpop.permute.xlu0 %2789
  %2791 = vrot.lane.b32.xlu0 %v2762, 18
  %v2792 = vpop.permute.xlu0 %2791
  %2793 = vrot.lane.b32.xlu0 %v2763, 18
  %v2794 = vpop.permute.xlu0 %2793
  %2795 = vrot.lane.b32.xlu0 %v2764, 18
  %v2796 = vpop.permute.xlu0 %2795
  %2797 = vrot.lane.b32.xlu0 %v2765, 18
  %v2798 = vpop.permute.xlu0 %2797
  %2799 = vrot.lane.b32.xlu0 %v2766, 18
  %v2800 = vpop.permute.xlu0 %2799
  %2801 = vrot.lane.b32.xlu0 %v2767, 18
  %v2802 = vpop.permute.xlu0 %2801
  %2803 = vrot.lane.b32.xlu0 %v2768, 18
  %v2804 = vpop.permute.xlu0 %2803
  %2805 = vrot.lane.b32.xlu0 %v2769, 18
  %v2806 = vpop.permute.xlu0 %2805
  %2807 = vrot.lane.b32.xlu0 %v2770, 18
  %v2808 = vpop.permute.xlu0 %2807
  %2809 = vrot.lane.b32.xlu0 %v2771, 18
  %v2810 = vpop.permute.xlu0 %2809
  %2811 = vrot.lane.b32.xlu0 %v2772, 18
  %v2812 = vpop.permute.xlu0 %2811
  %2813 = vrot.lane.b32.xlu0 %v2773, 18
  %v2814 = vpop.permute.xlu0 %2813
  %2815 = vrot.lane.b32.xlu0 %v2774, 18
  %v2816 = vpop.permute.xlu0 %2815
  %v2817 = vsel %vm259, %v2790, %v2792
  %v2818 = vsel %vm259, %v2792, %v2794
  %v2819 = vsel %vm259, %v2794, %v2796
  %v2820 = vsel %vm259, %v2796, %v2798
  %v2821 = vsel %vm259, %v2798, %v2800
  %v2822 = vsel %vm259, %v2800, %v2802
  %v2823 = vsel %vm259, %v2804, %v2806
  %v2824 = vsel %vm259, %v2806, %v2808
  %v2825 = vsel %vm259, %v2808, %v2810
  %v2826 = vsel %vm259, %v2810, %v2812
  %v2827 = vsel %vm259, %v2812, %v2814
  %v2828 = vsel %vm259, %v2814, %v2816
  %2841 = vst [vmem:[#allocation4 + $0x60] sm:$0xff] %v2817
  %2842 = vst [vmem:[#allocation4 + $0x68] sm:$0xff] %v2818
  %2843 = vst [vmem:[#allocation4 + $0x70] sm:$0xff] %v2819
  %2844 = vst [vmem:[#allocation4 + $0x78] sm:$0xff] %v2820
  %2845 = vst [vmem:[#allocation4 + $0x80] sm:$0xff] %v2821
  %2846 = vst [vmem:[#allocation4 + $0x88] sm:$0xff] %v2822
  %2847 = vst [vmem:[#allocation4 + $0x90] sm:$0xff] %v2823
  %2848 = vst [vmem:[#allocation4 + $0x98] sm:$0xff] %v2824
  %2849 = vst [vmem:[#allocation4 + $0xa0] sm:$0xff] %v2825
  %2850 = vst [vmem:[#allocation4 + $0xa8] sm:$0xff] %v2826
  %2851 = vst [vmem:[#allocation4 + $0xb0] sm:$0xff] %v2827
  %2852 = vst [vmem:[#allocation4 + $0xb8] sm:$0xff] %v2828
  %v2853 = vld [vmem:[#allocation3] sm:$0xff]
  %v2854 = vld [vmem:[#allocation3 + $0x8] sm:$0xff]
  %v2855 = vld [vmem:[#allocation3 + $0x10] sm:$0xff]
  %v2856 = vld [vmem:[#allocation3 + $0x18] sm:$0xff]
  %v2857 = vld [vmem:[#allocation3 + $0x20] sm:$0xff]
  %v2858 = vld [vmem:[#allocation3 + $0x28] sm:$0xff]
  %v2859 = vld [vmem:[#allocation3 + $0x30] sm:$0xff]
  %v2860 = vld [vmem:[#allocation3 + $0x40] sm:$0xff]
  %v2861 = vld [vmem:[#allocation3 + $0x48] sm:$0xff]
  %v2862 = vld [vmem:[#allocation3 + $0x50] sm:$0xff]
  %v2863 = vld [vmem:[#allocation3 + $0x58] sm:$0xff]
  %v2864 = vld [vmem:[#allocation3 + $0x60] sm:$0xff]
  %v2865 = vld [vmem:[#allocation3 + $0x68] sm:$0xff]
  %v2866 = vld [vmem:[#allocation3 + $0x70] sm:$0xff]
  %2881 = vrot.lane.b32.xlu0 %v2853, 17
  %v2882 = vpop.permute.xlu0 %2881
  %2883 = vrot.lane.b32.xlu0 %v2854, 17
  %v2884 = vpop.permute.xlu0 %2883
  %2885 = vrot.lane.b32.xlu0 %v2855, 17
  %v2886 = vpop.permute.xlu0 %2885
  %2887 = vrot.lane.b32.xlu0 %v2856, 17
  %v2888 = vpop.permute.xlu0 %2887
  %2889 = vrot.lane.b32.xlu0 %v2857, 17
  %v2890 = vpop.permute.xlu0 %2889
  %2891 = vrot.lane.b32.xlu0 %v2858, 17
  %v2892 = vpop.permute.xlu0 %2891
  %2893 = vrot.lane.b32.xlu0 %v2859, 17
  %v2894 = vpop.permute.xlu0 %2893
  %2895 = vrot.lane.b32.xlu0 %v2860, 17
  %v2896 = vpop.permute.xlu0 %2895
  %2897 = vrot.lane.b32.xlu0 %v2861, 17
  %v2898 = vpop.permute.xlu0 %2897
  %2899 = vrot.lane.b32.xlu0 %v2862, 17
  %v2900 = vpop.permute.xlu0 %2899
  %2901 = vrot.lane.b32.xlu0 %v2863, 17
  %v2902 = vpop.permute.xlu0 %2901
  %2903 = vrot.lane.b32.xlu0 %v2864, 17
  %v2904 = vpop.permute.xlu0 %2903
  %2905 = vrot.lane.b32.xlu0 %v2865, 17
  %v2906 = vpop.permute.xlu0 %2905
  %2907 = vrot.lane.b32.xlu0 %v2866, 17
  %v2908 = vpop.permute.xlu0 %2907
  %v2909 = vsel %vm352, %v2882, %v2884
  %v2910 = vsel %vm352, %v2884, %v2886
  %v2911 = vsel %vm352, %v2886, %v2888
  %v2912 = vsel %vm352, %v2888, %v2890
  %v2913 = vsel %vm352, %v2890, %v2892
  %v2914 = vsel %vm352, %v2892, %v2894
  %v2915 = vsel %vm352, %v2896, %v2898
  %v2916 = vsel %vm352, %v2898, %v2900
  %v2917 = vsel %vm352, %v2900, %v2902
  %v2918 = vsel %vm352, %v2902, %v2904
  %v2919 = vsel %vm352, %v2904, %v2906
  %v2920 = vsel %vm352, %v2906, %v2908
  %2933 = vst [vmem:[#allocation4 + $0xc0] sm:$0xff] %v2909
  %2934 = vst [vmem:[#allocation4 + $0xc8] sm:$0xff] %v2910
  %2935 = vst [vmem:[#allocation4 + $0xd0] sm:$0xff] %v2911
  %2936 = vst [vmem:[#allocation4 + $0xd8] sm:$0xff] %v2912
  %2937 = vst [vmem:[#allocation4 + $0xe0] sm:$0xff] %v2913
  %2938 = vst [vmem:[#allocation4 + $0xe8] sm:$0xff] %v2914
  %2939 = vst [vmem:[#allocation4 + $0xf0] sm:$0xff] %v2915
  %2940 = vst [vmem:[#allocation4 + $0xf8] sm:$0xff] %v2916
  %2941 = vst [vmem:[#allocation4 + $0x100] sm:$0xff] %v2917
  %2942 = vst [vmem:[#allocation4 + $0x108] sm:$0xff] %v2918
  %2943 = vst [vmem:[#allocation4 + $0x110] sm:$0xff] %v2919
  %2944 = vst [vmem:[#allocation4 + $0x118] sm:$0xff] %v2920
  %v2945 = vld [vmem:[#allocation3] sm:$0xff]
  %v2946 = vld [vmem:[#allocation3 + $0x8] sm:$0xff]
  %v2947 = vld [vmem:[#allocation3 + $0x10] sm:$0xff]
  %v2948 = vld [vmem:[#allocation3 + $0x18] sm:$0xff]
  %v2949 = vld [vmem:[#allocation3 + $0x20] sm:$0xff]
  %v2950 = vld [vmem:[#allocation3 + $0x28] sm:$0xff]
  %v2951 = vld [vmem:[#allocation3 + $0x30] sm:$0xff]
  %v2952 = vld [vmem:[#allocation3 + $0x40] sm:$0xff]
  %v2953 = vld [vmem:[#allocation3 + $0x48] sm:$0xff]
  %v2954 = vld [vmem:[#allocation3 + $0x50] sm:$0xff]
  %v2955 = vld [vmem:[#allocation3 + $0x58] sm:$0xff]
  %v2956 = vld [vmem:[#allocation3 + $0x60] sm:$0xff]
  %v2957 = vld [vmem:[#allocation3 + $0x68] sm:$0xff]
  %v2958 = vld [vmem:[#allocation3 + $0x70] sm:$0xff]
  %2973 = vrot.lane.b32.xlu0 %v2945, 1
  %v2974 = vpop.permute.xlu0 %2973
  %2975 = vrot.lane.b32.xlu0 %v2946, 1
  %v2976 = vpop.permute.xlu0 %2975
  %2977 = vrot.lane.b32.xlu0 %v2947, 1
  %v2978 = vpop.permute.xlu0 %2977
  %2979 = vrot.lane.b32.xlu0 %v2948, 1
  %v2980 = vpop.permute.xlu0 %2979
  %2981 = vrot.lane.b32.xlu0 %v2949, 1
  %v2982 = vpop.permute.xlu0 %2981
  %2983 = vrot.lane.b32.xlu0 %v2950, 1
  %v2984 = vpop.permute.xlu0 %2983
  %2985 = vrot.lane.b32.xlu0 %v2951, 1
  %v2986 = vpop.permute.xlu0 %2985
  %2987 = vrot.lane.b32.xlu0 %v2952, 1
  %v2988 = vpop.permute.xlu0 %2987
  %2989 = vrot.lane.b32.xlu0 %v2953, 1
  %v2990 = vpop.permute.xlu0 %2989
  %2991 = vrot.lane.b32.xlu0 %v2954, 1
  %v2992 = vpop.permute.xlu0 %2991
  %2993 = vrot.lane.b32.xlu0 %v2955, 1
  %v2994 = vpop.permute.xlu0 %2993
  %2995 = vrot.lane.b32.xlu0 %v2956, 1
  %v2996 = vpop.permute.xlu0 %2995
  %2997 = vrot.lane.b32.xlu0 %v2957, 1
  %v2998 = vpop.permute.xlu0 %2997
  %2999 = vrot.lane.b32.xlu0 %v2958, 1
  %v3000 = vpop.permute.xlu0 %2999
  %v3001 = vsel %vm445, %v2974, %v2976
  %v3002 = vsel %vm445, %v2976, %v2978
  %v3003 = vsel %vm445, %v2978, %v2980
  %v3004 = vsel %vm445, %v2980, %v2982
  %v3005 = vsel %vm445, %v2982, %v2984
  %v3006 = vsel %vm445, %v2984, %v2986
  %v3007 = vsel %vm445, %v2988, %v2990
  %v3008 = vsel %vm445, %v2990, %v2992
  %v3009 = vsel %vm445, %v2992, %v2994
  %v3010 = vsel %vm445, %v2994, %v2996
  %v3011 = vsel %vm445, %v2996, %v2998
  %v3012 = vsel %vm445, %v2998, %v3000
  %3025 = vst [vmem:[#allocation4 + $0x120] sm:$0xff] %v3001
  %3026 = vst [vmem:[#allocation4 + $0x128] sm:$0xff] %v3002
  %3027 = vst [vmem:[#allocation4 + $0x130] sm:$0xff] %v3003
  %3028 = vst [vmem:[#allocation4 + $0x138] sm:$0xff] %v3004
  %3029 = vst [vmem:[#allocation4 + $0x140] sm:$0xff] %v3005
  %3030 = vst [vmem:[#allocation4 + $0x148] sm:$0xff] %v3006
  %3031 = vst [vmem:[#allocation4 + $0x150] sm:$0xff] %v3007
  %3032 = vst [vmem:[#allocation4 + $0x158] sm:$0xff] %v3008
  %3033 = vst [vmem:[#allocation4 + $0x160] sm:$0xff] %v3009
  %3034 = vst [vmem:[#allocation4 + $0x168] sm:$0xff] %v3010
  %3035 = vst [vmem:[#allocation4 + $0x170] sm:$0xff] %v3011
  %3036 = vst [vmem:[#allocation4 + $0x178] sm:$0xff] %v3012
  %v3037 = vld [vmem:[#allocation3 + $0x8] sm:$0xff]
  %v3038 = vld [vmem:[#allocation3 + $0x10] sm:$0xff]
  %v3039 = vld [vmem:[#allocation3 + $0x18] sm:$0xff]
  %v3040 = vld [vmem:[#allocation3 + $0x20] sm:$0xff]
  %v3041 = vld [vmem:[#allocation3 + $0x28] sm:$0xff]
  %v3042 = vld [vmem:[#allocation3 + $0x30] sm:$0xff]
  %v3043 = vld [vmem:[#allocation3 + $0x48] sm:$0xff]
  %v3044 = vld [vmem:[#allocation3 + $0x50] sm:$0xff]
  %v3045 = vld [vmem:[#allocation3 + $0x58] sm:$0xff]
  %v3046 = vld [vmem:[#allocation3 + $0x60] sm:$0xff]
  %v3047 = vld [vmem:[#allocation3 + $0x68] sm:$0xff]
  %v3048 = vld [vmem:[#allocation3 + $0x70] sm:$0xff]
  %3049 = vst [vmem:[#allocation4 + $0x180] sm:$0xff] %v3037
  %3050 = vst [vmem:[#allocation4 + $0x188] sm:$0xff] %v3038
  %3051 = vst [vmem:[#allocation4 + $0x190] sm:$0xff] %v3039
  %3052 = vst [vmem:[#allocation4 + $0x198] sm:$0xff] %v3040
  %3053 = vst [vmem:[#allocation4 + $0x1a0] sm:$0xff] %v3041
  %3054 = vst [vmem:[#allocation4 + $0x1a8] sm:$0xff] %v3042
  %3055 = vst [vmem:[#allocation4 + $0x1b0] sm:$0xff] %v3043
  %3056 = vst [vmem:[#allocation4 + $0x1b8] sm:$0xff] %v3044
  %3057 = vst [vmem:[#allocation4 + $0x1c0] sm:$0xff] %v3045
  %3058 = vst [vmem:[#allocation4 + $0x1c8] sm:$0xff] %v3046
  %3059 = vst [vmem:[#allocation4 + $0x1d0] sm:$0xff] %v3047
  %3060 = vst [vmem:[#allocation4 + $0x1d8] sm:$0xff] %v3048
  %v3061 = vld [vmem:[#allocation3 + $0x8] sm:$0xff]
  %v3062 = vld [vmem:[#allocation3 + $0x10] sm:$0xff]
  %v3063 = vld [vmem:[#allocation3 + $0x18] sm:$0xff]
  %v3064 = vld [vmem:[#allocation3 + $0x20] sm:$0xff]
  %v3065 = vld [vmem:[#allocation3 + $0x28] sm:$0xff]
  %v3066 = vld [vmem:[#allocation3 + $0x30] sm:$0xff]
  %v3067 = vld [vmem:[#allocation3 + $0x38] sm:$0xff]
  %v3068 = vld [vmem:[#allocation3 + $0x48] sm:$0xff]
  %v3069 = vld [vmem:[#allocation3 + $0x50] sm:$0xff]
  %v3070 = vld [vmem:[#allocation3 + $0x58] sm:$0xff]
  %v3071 = vld [vmem:[#allocation3 + $0x60] sm:$0xff]
  %v3072 = vld [vmem:[#allocation3 + $0x68] sm:$0xff]
  %v3073 = vld [vmem:[#allocation3 + $0x70] sm:$0xff]
  %v3074 = vld [vmem:[#allocation3 + $0x78] sm:$0xff]
  %3089 = vrot.lane.b32.xlu0 %v3061, 127
  %v3090 = vpop.permute.xlu0 %3089
  %3091 = vrot.lane.b32.xlu0 %v3062, 127
  %v3092 = vpop.permute.xlu0 %3091
  %3093 = vrot.lane.b32.xlu0 %v3063, 127
  %v3094 = vpop.permute.xlu0 %3093
  %3095 = vrot.lane.b32.xlu0 %v3064, 127
  %v3096 = vpop.permute.xlu0 %3095
  %3097 = vrot.lane.b32.xlu0 %v3065, 127
  %v3098 = vpop.permute.xlu0 %3097
  %3099 = vrot.lane.b32.xlu0 %v3066, 127
  %v3100 = vpop.permute.xlu0 %3099
  %3101 = vrot.lane.b32.xlu0 %v3067, 127
  %v3102 = vpop.permute.xlu0 %3101
  %3103 = vrot.lane.b32.xlu0 %v3068, 127
  %v3104 = vpop.permute.xlu0 %3103
  %3105 = vrot.lane.b32.xlu0 %v3069, 127
  %v3106 = vpop.permute.xlu0 %3105
  %3107 = vrot.lane.b32.xlu0 %v3070, 127
  %v3108 = vpop.permute.xlu0 %3107
  %3109 = vrot.lane.b32.xlu0 %v3071, 127
  %v3110 = vpop.permute.xlu0 %3109
  %3111 = vrot.lane.b32.xlu0 %v3072, 127
  %v3112 = vpop.permute.xlu0 %3111
  %3113 = vrot.lane.b32.xlu0 %v3073, 127
  %v3114 = vpop.permute.xlu0 %3113
  %3115 = vrot.lane.b32.xlu0 %v3074, 127
  %v3116 = vpop.permute.xlu0 %3115
  %v3117 = vsel %vm562, %v3090, %v3092
  %v3118 = vsel %vm562, %v3092, %v3094
  %v3119 = vsel %vm562, %v3094, %v3096
  %v3120 = vsel %vm562, %v3096, %v3098
  %v3121 = vsel %vm562, %v3098, %v3100
  %v3122 = vsel %vm562, %v3100, %v3102
  %v3123 = vsel %vm562, %v3104, %v3106
  %v3124 = vsel %vm562, %v3106, %v3108
  %v3125 = vsel %vm562, %v3108, %v3110
  %v3126 = vsel %vm562, %v3110, %v3112
  %v3127 = vsel %vm562, %v3112, %v3114
  %v3128 = vsel %vm562, %v3114, %v3116
  %3141 = vst [vmem:[#allocation4 + $0x1e0] sm:$0xff] %v3117
  %3142 = vst [vmem:[#allocation4 + $0x1e8] sm:$0xff] %v3118
  %3143 = vst [vmem:[#allocation4 + $0x1f0] sm:$0xff] %v3119
  %3144 = vst [vmem:[#allocation4 + $0x1f8] sm:$0xff] %v3120
  %3145 = vst [vmem:[#allocation4 + $0x200] sm:$0xff] %v3121
  %3146 = vst [vmem:[#allocation4 + $0x208] sm:$0xff] %v3122
  %3147 = vst [vmem:[#allocation4 + $0x210] sm:$0xff] %v3123
  %3148 = vst [vmem:[#allocation4 + $0x218] sm:$0xff] %v3124
  %3149 = vst [vmem:[#allocation4 + $0x220] sm:$0xff] %v3125
  %3150 = vst [vmem:[#allocation4 + $0x228] sm:$0xff] %v3126
  %3151 = vst [vmem:[#allocation4 + $0x230] sm:$0xff] %v3127
  %3152 = vst [vmem:[#allocation4 + $0x238] sm:$0xff] %v3128
  %v3153 = vld [vmem:[#allocation3 + $0x8] sm:$0xff]
  %v3154 = vld [vmem:[#allocation3 + $0x10] sm:$0xff]
  %v3155 = vld [vmem:[#allocation3 + $0x18] sm:$0xff]
  %v3156 = vld [vmem:[#allocation3 + $0x20] sm:$0xff]
  %v3157 = vld [vmem:[#allocation3 + $0x28] sm:$0xff]
  %v3158 = vld [vmem:[#allocation3 + $0x30] sm:$0xff]
  %v3159 = vld [vmem:[#allocation3 + $0x38] sm:$0xff]
  %v3160 = vld [vmem:[#allocation3 + $0x48] sm:$0xff]
  %v3161 = vld [vmem:[#allocation3 + $0x50] sm:$0xff]
  %v3162 = vld [vmem:[#allocation3 + $0x58] sm:$0xff]
  %v3163 = vld [vmem:[#allocation3 + $0x60] sm:$0xff]
  %v3164 = vld [vmem:[#allocation3 + $0x68] sm:$0xff]
  %v3165 = vld [vmem:[#allocation3 + $0x70] sm:$0xff]
  %v3166 = vld [vmem:[#allocation3 + $0x78] sm:$0xff]
  %3181 = vrot.lane.b32.xlu0 %v3153, 111
  %v3182 = vpop.permute.xlu0 %3181
  %3183 = vrot.lane.b32.xlu0 %v3154, 111
  %v3184 = vpop.permute.xlu0 %3183
  %3185 = vrot.lane.b32.xlu0 %v3155, 111
  %v3186 = vpop.permute.xlu0 %3185
  %3187 = vrot.lane.b32.xlu0 %v3156, 111
  %v3188 = vpop.permute.xlu0 %3187
  %3189 = vrot.lane.b32.xlu0 %v3157, 111
  %v3190 = vpop.permute.xlu0 %3189
  %3191 = vrot.lane.b32.xlu0 %v3158, 111
  %v3192 = vpop.permute.xlu0 %3191
  %3193 = vrot.lane.b32.xlu0 %v3159, 111
  %v3194 = vpop.permute.xlu0 %3193
  %3195 = vrot.lane.b32.xlu0 %v3160, 111
  %v3196 = vpop.permute.xlu0 %3195
  %3197 = vrot.lane.b32.xlu0 %v3161, 111
  %v3198 = vpop.permute.xlu0 %3197
  %3199 = vrot.lane.b32.xlu0 %v3162, 111
  %v3200 = vpop.permute.xlu0 %3199
  %3201 = vrot.lane.b32.xlu0 %v3163, 111
  %v3202 = vpop.permute.xlu0 %3201
  %3203 = vrot.lane.b32.xlu0 %v3164, 111
  %v3204 = vpop.permute.xlu0 %3203
  %3205 = vrot.lane.b32.xlu0 %v3165, 111
  %v3206 = vpop.permute.xlu0 %3205
  %3207 = vrot.lane.b32.xlu0 %v3166, 111
  %v3208 = vpop.permute.xlu0 %3207
  %v3209 = vsel %vm655, %v3182, %v3184
  %v3210 = vsel %vm655, %v3184, %v3186
  %v3211 = vsel %vm655, %v3186, %v3188
  %v3212 = vsel %vm655, %v3188, %v3190
  %v3213 = vsel %vm655, %v3190, %v3192
  %v3214 = vsel %vm655, %v3192, %v3194
  %v3215 = vsel %vm655, %v3196, %v3198
  %v3216 = vsel %vm655, %v3198, %v3200
  %v3217 = vsel %vm655, %v3200, %v3202
  %v3218 = vsel %vm655, %v3202, %v3204
  %v3219 = vsel %vm655, %v3204, %v3206
  %v3220 = vsel %vm655, %v3206, %v3208
  %3233 = vst [vmem:[#allocation4 + $0x240] sm:$0xff] %v3209
  %3234 = vst [vmem:[#allocation4 + $0x248] sm:$0xff] %v3210
  %3235 = vst [vmem:[#allocation4 + $0x250] sm:$0xff] %v3211
  %3236 = vst [vmem:[#allocation4 + $0x258] sm:$0xff] %v3212
  %3237 = vst [vmem:[#allocation4 + $0x260] sm:$0xff] %v3213
  %3238 = vst [vmem:[#allocation4 + $0x268] sm:$0xff] %v3214
  %3239 = vst [vmem:[#allocation4 + $0x270] sm:$0xff] %v3215
  %3240 = vst [vmem:[#allocation4 + $0x278] sm:$0xff] %v3216
  %3241 = vst [vmem:[#allocation4 + $0x280] sm:$0xff] %v3217
  %3242 = vst [vmem:[#allocation4 + $0x288] sm:$0xff] %v3218
  %3243 = vst [vmem:[#allocation4 + $0x290] sm:$0xff] %v3219
  %3244 = vst [vmem:[#allocation4 + $0x298] sm:$0xff] %v3220
  %v3245 = vld [vmem:[#allocation3 + $0x8] sm:$0xff]
  %v3246 = vld [vmem:[#allocation3 + $0x10] sm:$0xff]
  %v3247 = vld [vmem:[#allocation3 + $0x18] sm:$0xff]
  %v3248 = vld [vmem:[#allocation3 + $0x20] sm:$0xff]
  %v3249 = vld [vmem:[#allocation3 + $0x28] sm:$0xff]
  %v3250 = vld [vmem:[#allocation3 + $0x30] sm:$0xff]
  %v3251 = vld [vmem:[#allocation3 + $0x38] sm:$0xff]
  %v3252 = vld [vmem:[#allocation3 + $0x48] sm:$0xff]
  %v3253 = vld [vmem:[#allocation3 + $0x50] sm:$0xff]
  %v3254 = vld [vmem:[#allocation3 + $0x58] sm:$0xff]
  %v3255 = vld [vmem:[#allocation3 + $0x60] sm:$0xff]
  %v3256 = vld [vmem:[#allocation3 + $0x68] sm:$0xff]
  %v3257 = vld [vmem:[#allocation3 + $0x70] sm:$0xff]
  %v3258 = vld [vmem:[#allocation3 + $0x78] sm:$0xff]
  %3273 = vrot.lane.b32.xlu0 %v3245, 110
  %v3274 = vpop.permute.xlu0 %3273
  %3275 = vrot.lane.b32.xlu0 %v3246, 110
  %v3276 = vpop.permute.xlu0 %3275
  %3277 = vrot.lane.b32.xlu0 %v3247, 110
  %v3278 = vpop.permute.xlu0 %3277
  %3279 = vrot.lane.b32.xlu0 %v3248, 110
  %v3280 = vpop.permute.xlu0 %3279
  %3281 = vrot.lane.b32.xlu0 %v3249, 110
  %v3282 = vpop.permute.xlu0 %3281
  %3283 = vrot.lane.b32.xlu0 %v3250, 110
  %v3284 = vpop.permute.xlu0 %3283
  %3285 = vrot.lane.b32.xlu0 %v3251, 110
  %v3286 = vpop.permute.xlu0 %3285
  %3287 = vrot.lane.b32.xlu0 %v3252, 110
  %v3288 = vpop.permute.xlu0 %3287
  %3289 = vrot.lane.b32.xlu0 %v3253, 110
  %v3290 = vpop.permute.xlu0 %3289
  %3291 = vrot.lane.b32.xlu0 %v3254, 110
  %v3292 = vpop.permute.xlu0 %3291
  %3293 = vrot.lane.b32.xlu0 %v3255, 110
  %v3294 = vpop.permute.xlu0 %3293
  %3295 = vrot.lane.b32.xlu0 %v3256, 110
  %v3296 = vpop.permute.xlu0 %3295
  %3297 = vrot.lane.b32.xlu0 %v3257, 110
  %v3298 = vpop.permute.xlu0 %3297
  %3299 = vrot.lane.b32.xlu0 %v3258, 110
  %v3300 = vpop.permute.xlu0 %3299
  %v3301 = vsel %vm748, %v3274, %v3276
  %v3302 = vsel %vm748, %v3276, %v3278
  %v3303 = vsel %vm748, %v3278, %v3280
  %v3304 = vsel %vm748, %v3280, %v3282
  %v3305 = vsel %vm748, %v3282, %v3284
  %v3306 = vsel %vm748, %v3284, %v3286
  %v3307 = vsel %vm748, %v3288, %v3290
  %v3308 = vsel %vm748, %v3290, %v3292
  %v3309 = vsel %vm748, %v3292, %v3294
  %v3310 = vsel %vm748, %v3294, %v3296
  %v3311 = vsel %vm748, %v3296, %v3298
  %v3312 = vsel %vm748, %v3298, %v3300
  %3325 = vst [vmem:[#allocation4 + $0x2a0] sm:$0xff] %v3301
  %3326 = vst [vmem:[#allocation4 + $0x2a8] sm:$0xff] %v3302
  %3327 = vst [vmem:[#allocation4 + $0x2b0] sm:$0xff] %v3303
  %3328 = vst [vmem:[#allocation4 + $0x2b8] sm:$0xff] %v3304
  %3329 = vst [vmem:[#allocation4 + $0x2c0] sm:$0xff] %v3305
  %3330 = vst [vmem:[#allocation4 + $0x2c8] sm:$0xff] %v3306
  %3331 = vst [vmem:[#allocation4 + $0x2d0] sm:$0xff] %v3307
  %3332 = vst [vmem:[#allocation4 + $0x2d8] sm:$0xff] %v3308
  %3333 = vst [vmem:[#allocation4 + $0x2e0] sm:$0xff] %v3309
  %3334 = vst [vmem:[#allocation4 + $0x2e8] sm:$0xff] %v3310
  %3335 = vst [vmem:[#allocation4 + $0x2f0] sm:$0xff] %v3311
  %3336 = vst [vmem:[#allocation4 + $0x2f8] sm:$0xff] %v3312
  %v3337 = vld [vmem:[#allocation3 + $0x8] sm:$0xff]
  %v3338 = vld [vmem:[#allocation3 + $0x10] sm:$0xff]
  %v3339 = vld [vmem:[#allocation3 + $0x18] sm:$0xff]
  %v3340 = vld [vmem:[#allocation3 + $0x20] sm:$0xff]
  %v3341 = vld [vmem:[#allocation3 + $0x28] sm:$0xff]
  %v3342 = vld [vmem:[#allocation3 + $0x30] sm:$0xff]
  %v3343 = vld [vmem:[#allocation3 + $0x38] sm:$0xff]
  %v3344 = vld [vmem:[#allocation3 + $0x48] sm:$0xff]
  %v3345 = vld [vmem:[#allocation3 + $0x50] sm:$0xff]
  %v3346 = vld [vmem:[#allocation3 + $0x58] sm:$0xff]
  %v3347 = vld [vmem:[#allocation3 + $0x60] sm:$0xff]
  %v3348 = vld [vmem:[#allocation3 + $0x68] sm:$0xff]
  %v3349 = vld [vmem:[#allocation3 + $0x70] sm:$0xff]
  %v3350 = vld [vmem:[#allocation3 + $0x78] sm:$0xff]
  %3365 = vrot.lane.b32.xlu0 %v3337, 109
  %v3366 = vpop.permute.xlu0 %3365
  %3367 = vrot.lane.b32.xlu0 %v3338, 109
  %v3368 = vpop.permute.xlu0 %3367
  %3369 = vrot.lane.b32.xlu0 %v3339, 109
  %v3370 = vpop.permute.xlu0 %3369
  %3371 = vrot.lane.b32.xlu0 %v3340, 109
  %v3372 = vpop.permute.xlu0 %3371
  %3373 = vrot.lane.b32.xlu0 %v3341, 109
  %v3374 = vpop.permute.xlu0 %3373
  %3375 = vrot.lane.b32.xlu0 %v3342, 109
  %v3376 = vpop.permute.xlu0 %3375
  %3377 = vrot.lane.b32.xlu0 %v3343, 109
  %v3378 = vpop.permute.xlu0 %3377
  %3379 = vrot.lane.b32.xlu0 %v3344, 109
  %v3380 = vpop.permute.xlu0 %3379
  %3381 = vrot.lane.b32.xlu0 %v3345, 109
  %v3382 = vpop.permute.xlu0 %3381
  %3383 = vrot.lane.b32.xlu0 %v3346, 109
  %v3384 = vpop.permute.xlu0 %3383
  %3385 = vrot.lane.b32.xlu0 %v3347, 109
  %v3386 = vpop.permute.xlu0 %3385
  %3387 = vrot.lane.b32.xlu0 %v3348, 109
  %v3388 = vpop.permute.xlu0 %3387
  %3389 = vrot.lane.b32.xlu0 %v3349, 109
  %v3390 = vpop.permute.xlu0 %3389
  %3391 = vrot.lane.b32.xlu0 %v3350, 109
  %v3392 = vpop.permute.xlu0 %3391
  %v3393 = vsel %vm841, %v3366, %v3368
  %v3394 = vsel %vm841, %v3368, %v3370
  %v3395 = vsel %vm841, %v3370, %v3372
  %v3396 = vsel %vm841, %v3372, %v3374
  %v3397 = vsel %vm841, %v3374, %v3376
  %v3398 = vsel %vm841, %v3376, %v3378
  %v3399 = vsel %vm841, %v3380, %v3382
  %v3400 = vsel %vm841, %v3382, %v3384
  %v3401 = vsel %vm841, %v3384, %v3386
  %v3402 = vsel %vm841, %v3386, %v3388
  %v3403 = vsel %vm841, %v3388, %v3390
  %v3404 = vsel %vm841, %v3390, %v3392
  %3417 = vst [vmem:[#allocation4 + $0x300] sm:$0xff] %v3393
  %3418 = vst [vmem:[#allocation4 + $0x308] sm:$0xff] %v3394
  %3419 = vst [vmem:[#allocation4 + $0x310] sm:$0xff] %v3395
  %3420 = vst [vmem:[#allocation4 + $0x318] sm:$0xff] %v3396
  %3421 = vst [vmem:[#allocation4 + $0x320] sm:$0xff] %v3397
  %3422 = vst [vmem:[#allocation4 + $0x328] sm:$0xff] %v3398
  %3423 = vst [vmem:[#allocation4 + $0x330] sm:$0xff] %v3399
  %3424 = vst [vmem:[#allocation4 + $0x338] sm:$0xff] %v3400
  %3425 = vst [vmem:[#allocation4 + $0x340] sm:$0xff] %v3401
  %3426 = vst [vmem:[#allocation4 + $0x348] sm:$0xff] %v3402
  %3427 = vst [vmem:[#allocation4 + $0x350] sm:$0xff] %v3403
  %3428 = vst [vmem:[#allocation4 + $0x358] sm:$0xff] %v3404
  %s3429 = scalar_lea.vmem %s1, 64
  %v3430 = vld [vmem:[%s3429] sm:$0xff]
  %v3431 = vld [vmem:[%s3429 + $0x8] sm:$0xff]
  %v3432 = vld [vmem:[%s3429 + $0x10] sm:$0xff]
  %v3433 = vld [vmem:[%s3429 + $0x18] sm:$0xff]
  %v3434 = vld [vmem:[#allocation4] sm:$0xff]
  %v3435 = vld [vmem:[#allocation4 + $0x8] sm:$0xff]
  %v3436 = vld [vmem:[#allocation4 + $0x10] sm:$0xff]
  %v3437 = vld [vmem:[#allocation4 + $0x18] sm:$0xff]
  %v3438 = vld [vmem:[#allocation4 + $0x20] sm:$0xff]
  %v3439 = vld [vmem:[#allocation4 + $0x28] sm:$0xff]
  %v3440 = vld [vmem:[#allocation4 + $0x30] sm:$0xff]
  %v3441 = vld [vmem:[#allocation4 + $0x38] sm:$0xff]
  %v3442 = vld [vmem:[#allocation4 + $0x40] sm:$0xff]
  %v3443 = vld [vmem:[#allocation4 + $0x48] sm:$0xff]
  %v3444 = vld [vmem:[#allocation4 + $0x50] sm:$0xff]
  %v3445 = vld [vmem:[#allocation4 + $0x58] sm:$0xff]
  %v3446 = vld [vmem:[#allocation4 + $0x60] sm:$0xff]
  %v3447 = vld [vmem:[#allocation4 + $0x68] sm:$0xff]
  %v3448 = vld [vmem:[#allocation4 + $0x70] sm:$0xff]
  %v3449 = vld [vmem:[#allocation4 + $0x78] sm:$0xff]
  %v3450 = vld [vmem:[#allocation4 + $0x80] sm:$0xff]
  %v3451 = vld [vmem:[#allocation4 + $0x88] sm:$0xff]
  %v3452 = vld [vmem:[#allocation4 + $0x90] sm:$0xff]
  %v3453 = vld [vmem:[#allocation4 + $0x98] sm:$0xff]
  %v3454 = vld [vmem:[#allocation4 + $0xa0] sm:$0xff]
  %v3455 = vld [vmem:[#allocation4 + $0xa8] sm:$0xff]
  %v3456 = vld [vmem:[#allocation4 + $0xb0] sm:$0xff]
  %v3457 = vld [vmem:[#allocation4 + $0xb8] sm:$0xff]
  %v3458 = vld [vmem:[#allocation4 + $0xc0] sm:$0xff]
  %v3459 = vld [vmem:[#allocation4 + $0xc8] sm:$0xff]
  %v3460 = vld [vmem:[#allocation4 + $0xd0] sm:$0xff]
  %v3461 = vld [vmem:[#allocation4 + $0xd8] sm:$0xff]
  %v3462 = vld [vmem:[#allocation4 + $0xe0] sm:$0xff]
  %v3463 = vld [vmem:[#allocation4 + $0xe8] sm:$0xff]
  %v3464 = vld [vmem:[#allocation4 + $0xf0] sm:$0xff]
  %v3465 = vld [vmem:[#allocation4 + $0xf8] sm:$0xff]
  %v3466 = vld [vmem:[#allocation4 + $0x100] sm:$0xff]
  %v3467 = vld [vmem:[#allocation4 + $0x108] sm:$0xff]
  %v3468 = vld [vmem:[#allocation4 + $0x110] sm:$0xff]
  %v3469 = vld [vmem:[#allocation4 + $0x118] sm:$0xff]
  %v3470 = vld [vmem:[#allocation4 + $0x120] sm:$0xff]
  %v3471 = vld [vmem:[#allocation4 + $0x128] sm:$0xff]
  %v3472 = vld [vmem:[#allocation4 + $0x130] sm:$0xff]
  %v3473 = vld [vmem:[#allocation4 + $0x138] sm:$0xff]
  %v3474 = vld [vmem:[#allocation4 + $0x140] sm:$0xff]
  %v3475 = vld [vmem:[#allocation4 + $0x148] sm:$0xff]
  %v3476 = vld [vmem:[#allocation4 + $0x150] sm:$0xff]
  %v3477 = vld [vmem:[#allocation4 + $0x158] sm:$0xff]
  %v3478 = vld [vmem:[#allocation4 + $0x160] sm:$0xff]
  %v3479 = vld [vmem:[#allocation4 + $0x168] sm:$0xff]
  %v3480 = vld [vmem:[#allocation4 + $0x170] sm:$0xff]
  %v3481 = vld [vmem:[#allocation4 + $0x178] sm:$0xff]
  %v3482 = vld [vmem:[#allocation4 + $0x180] sm:$0xff]
  %v3483 = vld [vmem:[#allocation4 + $0x188] sm:$0xff]
  %v3484 = vld [vmem:[#allocation4 + $0x190] sm:$0xff]
  %v3485 = vld [vmem:[#allocation4 + $0x198] sm:$0xff]
  %v3486 = vld [vmem:[#allocation4 + $0x1a0] sm:$0xff]
  %v3487 = vld [vmem:[#allocation4 + $0x1a8] sm:$0xff]
  %v3488 = vld [vmem:[#allocation4 + $0x1b0] sm:$0xff]
  %v3489 = vld [vmem:[#allocation4 + $0x1b8] sm:$0xff]
  %v3490 = vld [vmem:[#allocation4 + $0x1c0] sm:$0xff]
  %v3491 = vld [vmem:[#allocation4 + $0x1c8] sm:$0xff]
  %v3492 = vld [vmem:[#allocation4 + $0x1d0] sm:$0xff]
  %v3493 = vld [vmem:[#allocation4 + $0x1d8] sm:$0xff]
  %v3494 = vld [vmem:[#allocation4 + $0x1e0] sm:$0xff]
  %v3495 = vld [vmem:[#allocation4 + $0x1e8] sm:$0xff]
  %v3496 = vld [vmem:[#allocation4 + $0x1f0] sm:$0xff]
  %v3497 = vld [vmem:[#allocation4 + $0x1f8] sm:$0xff]
  %v3498 = vld [vmem:[#allocation4 + $0x200] sm:$0xff]
  %v3499 = vld [vmem:[#allocation4 + $0x208] sm:$0xff]
  %v3500 = vld [vmem:[#allocation4 + $0x210] sm:$0xff]
  %v3501 = vld [vmem:[#allocation4 + $0x218] sm:$0xff]
  %v3502 = vld [vmem:[#allocation4 + $0x220] sm:$0xff]
  %v3503 = vld [vmem:[#allocation4 + $0x228] sm:$0xff]
  %v3504 = vld [vmem:[#allocation4 + $0x230] sm:$0xff]
  %v3505 = vld [vmem:[#allocation4 + $0x238] sm:$0xff]
  %v3506 = vld [vmem:[#allocation4 + $0x240] sm:$0xff]
  %v3507 = vld [vmem:[#allocation4 + $0x248] sm:$0xff]
  %v3508 = vld [vmem:[#allocation4 + $0x250] sm:$0xff]
  %v3509 = vld [vmem:[#allocation4 + $0x258] sm:$0xff]
  %v3510 = vld [vmem:[#allocation4 + $0x260] sm:$0xff]
  %v3511 = vld [vmem:[#allocation4 + $0x268] sm:$0xff]
  %v3512 = vld [vmem:[#allocation4 + $0x270] sm:$0xff]
  %v3513 = vld [vmem:[#allocation4 + $0x278] sm:$0xff]
  %v3514 = vld [vmem:[#allocation4 + $0x280] sm:$0xff]
  %v3515 = vld [vmem:[#allocation4 + $0x288] sm:$0xff]
  %v3516 = vld [vmem:[#allocation4 + $0x290] sm:$0xff]
  %v3517 = vld [vmem:[#allocation4 + $0x298] sm:$0xff]
  %v3518 = vld [vmem:[#allocation4 + $0x2a0] sm:$0xff]
  %v3519 = vld [vmem:[#allocation4 + $0x2a8] sm:$0xff]
  %v3520 = vld [vmem:[#allocation4 + $0x2b0] sm:$0xff]
  %v3521 = vld [vmem:[#allocation4 + $0x2b8] sm:$0xff]
  %v3522 = vld [vmem:[#allocation4 + $0x2c0] sm:$0xff]
  %v3523 = vld [vmem:[#allocation4 + $0x2c8] sm:$0xff]
  %v3524 = vld [vmem:[#allocation4 + $0x2d0] sm:$0xff]
  %v3525 = vld [vmem:[#allocation4 + $0x2d8] sm:$0xff]
  %v3526 = vld [vmem:[#allocation4 + $0x2e0] sm:$0xff]
  %v3527 = vld [vmem:[#allocation4 + $0x2e8] sm:$0xff]
  %v3528 = vld [vmem:[#allocation4 + $0x2f0] sm:$0xff]
  %v3529 = vld [vmem:[#allocation4 + $0x2f8] sm:$0xff]
  %v3530 = vld [vmem:[#allocation4 + $0x300] sm:$0xff]
  %v3531 = vld [vmem:[#allocation4 + $0x308] sm:$0xff]
  %v3532 = vld [vmem:[#allocation4 + $0x310] sm:$0xff]
  %v3533 = vld [vmem:[#allocation4 + $0x318] sm:$0xff]
  %v3534 = vld [vmem:[#allocation4 + $0x320] sm:$0xff]
  %v3535 = vld [vmem:[#allocation4 + $0x328] sm:$0xff]
  %v3536 = vld [vmem:[#allocation4 + $0x330] sm:$0xff]
  %v3537 = vld [vmem:[#allocation4 + $0x338] sm:$0xff]
  %v3538 = vld [vmem:[#allocation4 + $0x340] sm:$0xff]
  %v3539 = vld [vmem:[#allocation4 + $0x348] sm:$0xff]
  %v3540 = vld [vmem:[#allocation4 + $0x350] sm:$0xff]
  %v3541 = vld [vmem:[#allocation4 + $0x358] sm:$0xff]
  %v3542 = vld [vmem:[#allocation4 + $0x360] sm:$0xff]
  %v3543 = vld [vmem:[#allocation4 + $0x368] sm:$0xff]
  %v3544 = vld [vmem:[#allocation4 + $0x370] sm:$0xff]
  %v3545 = vld [vmem:[#allocation4 + $0x378] sm:$0xff]
  %v3546 = vld [vmem:[#allocation4 + $0x380] sm:$0xff]
  %v3547 = vld [vmem:[#allocation4 + $0x388] sm:$0xff]
  %v3548 = vld [vmem:[#allocation4 + $0x390] sm:$0xff]
  %v3549 = vld [vmem:[#allocation4 + $0x398] sm:$0xff]
  %v3550 = vld [vmem:[#allocation4 + $0x3a0] sm:$0xff]
  %v3551 = vld [vmem:[#allocation4 + $0x3a8] sm:$0xff]
  %v3552 = vld [vmem:[#allocation4 + $0x3b0] sm:$0xff]
  %v3553 = vld [vmem:[#allocation4 + $0x3b8] sm:$0xff]
  %v3554 = vld [vmem:[#allocation4 + $0x3c0] sm:$0xff]
  %v3555 = vld [vmem:[#allocation4 + $0x3c8] sm:$0xff]
  %v3556 = vld [vmem:[#allocation4 + $0x3d0] sm:$0xff]
  %v3557 = vld [vmem:[#allocation4 + $0x3d8] sm:$0xff]
  %v3558 = vld [vmem:[#allocation4 + $0x3e0] sm:$0xff]
  %v3559 = vld [vmem:[#allocation4 + $0x3e8] sm:$0xff]
  %v3560 = vld [vmem:[#allocation4 + $0x3f0] sm:$0xff]
  %v3561 = vld [vmem:[#allocation4 + $0x3f8] sm:$0xff]
  %v3562 = vld [vmem:[#allocation4 + $0x400] sm:$0xff]
  %v3563 = vld [vmem:[#allocation4 + $0x408] sm:$0xff]
  %v3564 = vld [vmem:[#allocation4 + $0x410] sm:$0xff]
  %v3565 = vld [vmem:[#allocation4 + $0x418] sm:$0xff]
  %v3566 = vld [vmem:[#allocation4 + $0x420] sm:$0xff]
  %v3567 = vld [vmem:[#allocation4 + $0x428] sm:$0xff]
  %v3568 = vld [vmem:[#allocation4 + $0x430] sm:$0xff]
  %v3569 = vld [vmem:[#allocation4 + $0x438] sm:$0xff]
  %v3570 = vld [vmem:[#allocation4 + $0x440] sm:$0xff]
  %v3571 = vld [vmem:[#allocation4 + $0x448] sm:$0xff]
  %v3572 = vld [vmem:[#allocation4 + $0x450] sm:$0xff]
  %v3573 = vld [vmem:[#allocation4 + $0x458] sm:$0xff]
  %v3574 = vld [vmem:[#allocation4 + $0x460] sm:$0xff]
  %v3575 = vld [vmem:[#allocation4 + $0x468] sm:$0xff]
  %v3576 = vld [vmem:[#allocation4 + $0x470] sm:$0xff]
  %v3577 = vld [vmem:[#allocation4 + $0x478] sm:$0xff]
  %v3578 = vld [vmem:[#allocation4 + $0x480] sm:$0xff]
  %v3579 = vld [vmem:[#allocation4 + $0x488] sm:$0xff]
  %v3580 = vld [vmem:[#allocation4 + $0x490] sm:$0xff]
  %v3581 = vld [vmem:[#allocation4 + $0x498] sm:$0xff]
  %v3582 = vld [vmem:[#allocation4 + $0x4a0] sm:$0xff]
  %v3583 = vld [vmem:[#allocation4 + $0x4a8] sm:$0xff]
  %v3584 = vld [vmem:[#allocation4 + $0x4b0] sm:$0xff]
  %v3585 = vld [vmem:[#allocation4 + $0x4b8] sm:$0xff]
  %v3586 = vld [vmem:[#allocation4 + $0x4c0] sm:$0xff]
  %v3587 = vld [vmem:[#allocation4 + $0x4c8] sm:$0xff]
  %v3588 = vld [vmem:[#allocation4 + $0x4d0] sm:$0xff]
  %v3589 = vld [vmem:[#allocation4 + $0x4d8] sm:$0xff]
  %v3590 = vld [vmem:[#allocation4 + $0x4e0] sm:$0xff]
  %v3591 = vld [vmem:[#allocation4 + $0x4e8] sm:$0xff]
  %v3592 = vld [vmem:[#allocation4 + $0x4f0] sm:$0xff]
  %v3593 = vld [vmem:[#allocation4 + $0x4f8] sm:$0xff]
  %v3594 = vld [vmem:[#allocation4 + $0x500] sm:$0xff]
  %v3595 = vld [vmem:[#allocation4 + $0x508] sm:$0xff]
  %v3596 = vld [vmem:[#allocation4 + $0x510] sm:$0xff]
  %v3597 = vld [vmem:[#allocation4 + $0x518] sm:$0xff]
  %v3598 = vld [vmem:[#allocation4 + $0x520] sm:$0xff]
  %v3599 = vld [vmem:[#allocation4 + $0x528] sm:$0xff]
  %v3600 = vld [vmem:[#allocation4 + $0x530] sm:$0xff]
  %v3601 = vld [vmem:[#allocation4 + $0x538] sm:$0xff]
  %v3602 = vld [vmem:[#allocation4 + $0x540] sm:$0xff]
  %v3603 = vld [vmem:[#allocation4 + $0x548] sm:$0xff]
  %v3604 = vld [vmem:[#allocation4 + $0x550] sm:$0xff]
  %v3605 = vld [vmem:[#allocation4 + $0x558] sm:$0xff]
  %v3606 = vld [vmem:[#allocation4 + $0x560] sm:$0xff]
  %v3607 = vld [vmem:[#allocation4 + $0x568] sm:$0xff]
  %v3608 = vld [vmem:[#allocation4 + $0x570] sm:$0xff]
  %v3609 = vld [vmem:[#allocation4 + $0x578] sm:$0xff]
  %v3610 = vld [vmem:[#allocation4 + $0x580] sm:$0xff]
  %v3611 = vld [vmem:[#allocation4 + $0x588] sm:$0xff]
  %v3612 = vld [vmem:[#allocation4 + $0x590] sm:$0xff]
  %v3613 = vld [vmem:[#allocation4 + $0x598] sm:$0xff]
  %v3614 = vld [vmem:[#allocation4 + $0x5a0] sm:$0xff]
  %v3615 = vld [vmem:[#allocation4 + $0x5a8] sm:$0xff]
  %v3616 = vld [vmem:[#allocation4 + $0x5b0] sm:$0xff]
  %v3617 = vld [vmem:[#allocation4 + $0x5b8] sm:$0xff]
  %v3618 = vld [vmem:[#allocation4 + $0x5c0] sm:$0xff]
  %v3619 = vld [vmem:[#allocation4 + $0x5c8] sm:$0xff]
  %v3620 = vld [vmem:[#allocation4 + $0x5d0] sm:$0xff]
  %v3621 = vld [vmem:[#allocation4 + $0x5d8] sm:$0xff]
  %v3622 = vld [vmem:[#allocation4 + $0x5e0] sm:$0xff]
  %v3623 = vld [vmem:[#allocation4 + $0x5e8] sm:$0xff]
  %v3624 = vld [vmem:[#allocation4 + $0x5f0] sm:$0xff]
  %v3625 = vld [vmem:[#allocation4 + $0x5f8] sm:$0xff]
  %s3626 = scalar_lea.vmem %s2, 32
  %v3627 = vld [vmem:[%s3626] sm:$0xff]
  %v3628 = vld [vmem:[%s3626 + $0x8] sm:$0xff]
  %3630 = vset.pattern.permute.xlu0 0
  %3631 = vperm.xlu0 %3630, %v3627
  %v3632 = vpop.permute.xlu0 %3631
  %3635 = vset.pattern.permute.xlu0 0
  %3636 = vperm.xlu0 %3635, %v3628
  %v3637 = vpop.permute.xlu0 %3636
  %3639 = vmatprep.subr.mxu0 %v3525
  %3640 = vmatpush1.msra.mxu0 %v3524
  %3641 = vmatprep.subr.mxu0 %v3519
  %3642 = vmatpush1.msra.mxu0 %v3518
  %3643 = vmatprep.subr.mxu0 %v3513
  %3644 = vmatpush1.msra.mxu0 %v3512
  %3645 = vmatprep.subr.mxu0 %v3507
  %3646 = vmatpush1.msra.mxu0 %v3506
  %3647 = vmatprep.subr.mxu0 %v3501
  %3648 = vmatpush1.msra.mxu0 %v3500
  %3649 = vmatprep.subr.mxu0 %v3495
  %3650 = vmatpush1.msra.mxu0 %v3494
  %3651 = vmatprep.subr.mxu0 %v3489
  %3652 = vmatpush1.msra.mxu0 %v3488
  %3653 = vmatprep.subr.mxu0 %v3483
  %3654 = vmatpush1.msra.mxu0 %v3482
  %3655 = vmatprep.subr.mxu0 %v3477
  %3656 = vmatpush1.msra.mxu0 %v3476
  %3657 = vmatprep.subr.mxu0 %v3471
  %3658 = vmatpush1.msra.mxu0 %v3470
  %3659 = vmatprep.subr.mxu0 %v3465
  %3660 = vmatpush1.msra.mxu0 %v3464
  %3661 = vmatprep.subr.mxu0 %v3459
  %3662 = vmatpush1.msra.mxu0 %v3458
  %3663 = vmatprep.subr.mxu0 %v3453
  %3664 = vmatpush1.msra.mxu0 %v3452
  %3665 = vmatprep.subr.mxu0 %v3447
  %3666 = vmatpush1.msra.mxu0 %v3446
  %3667 = vmatprep.subr.mxu0 %v3441
  %3668 = vmatpush1.msra.mxu0 %v3440
  %3669 = vmatprep.subr.mxu0 %v3435
  %3670 = vmatpush1.msra.mxu0 %v3434
  %3671 = vmatprep.subr.mxu0 %v3621
  %3672 = vmatpush2.msra.mxu0 %v3620
  %3673 = vmatprep.subr.mxu0 %v3615
  %3674 = vmatpush2.msra.mxu0 %v3614
  %3675 = vmatprep.subr.mxu0 %v3609
  %3676 = vmatpush2.msra.mxu0 %v3608
  %3677 = vmatprep.subr.mxu0 %v3603
  %3678 = vmatpush2.msra.mxu0 %v3602
  %3679 = vmatprep.subr.mxu0 %v3597
  %3680 = vmatpush2.msra.mxu0 %v3596
  %3681 = vmatprep.subr.mxu0 %v3591
  %3682 = vmatpush2.msra.mxu0 %v3590
  %3683 = vmatprep.subr.mxu0 %v3585
  %3684 = vmatpush2.msra.mxu0 %v3584
  %3685 = vmatprep.subr.mxu0 %v3579
  %3686 = vmatpush2.msra.mxu0 %v3578
  %3687 = vmatprep.subr.mxu0 %v3573
  %3688 = vmatpush2.msra.mxu0 %v3572
  %3689 = vmatprep.subr.mxu0 %v3567
  %3690 = vmatpush2.msra.mxu0 %v3566
  %3691 = vmatprep.subr.mxu0 %v3561
  %3692 = vmatpush2.msra.mxu0 %v3560
  %3693 = vmatprep.subr.mxu0 %v3555
  %3694 = vmatpush2.msra.mxu0 %v3554
  %3695 = vmatprep.subr.mxu0 %v3549
  %3696 = vmatpush2.msra.mxu0 %v3548
  %3697 = vmatprep.subr.mxu0 %v3543
  %3698 = vmatpush2.msra.mxu0 %v3542
  %3699 = vmatprep.subr.mxu0 %v3537
  %3700 = vmatpush2.msra.mxu0 %v3536
  %3701 = vmatprep.subr.mxu0 %v3531
  %3702 = vmatpush2.msra.mxu0 %v3530
  %3703 = vmatprep.mubr.f32.mxu0 %v3431
  %3704 = vmatmul.mubr.f32.gmra.mxu0 %v3430
  %v3705 = vpop.f32.mrf.mxu0
  %v3706 = vadd.f32 %v3632, %v3705
  %v3707 = vpop.f32.mrf.mxu0
  %v3708 = vadd.f32 %v3632, %v3707
  %3709 = vmatprep.mubr.f32.mxu0 %v3433
  %3710 = vmatmul.mubr.f32.gmra.mxu0 %v3432
  %v3711 = vpop.f32.mrf.mxu0
  %v3712 = vadd.f32 %v3637, %v3711
  %v3713 = vpop.f32.mrf.mxu0
  %v3714 = vadd.f32 %v3637, %v3713
  %3715 = vdwg.mxu0
  %3716 = vmatprep.subr.mxu0 %v3527
  %3717 = vmatpush1.msra.mxu0 %v3526
  %3718 = vmatprep.subr.mxu0 %v3521
  %3719 = vmatpush1.msra.mxu0 %v3520
  %3720 = vmatprep.subr.mxu0 %v3515
  %3721 = vmatpush1.msra.mxu0 %v3514
  %3722 = vmatprep.subr.mxu0 %v3509
  %3723 = vmatpush1.msra.mxu0 %v3508
  %3724 = vmatprep.subr.mxu0 %v3503
  %3725 = vmatpush1.msra.mxu0 %v3502
  %3726 = vmatprep.subr.mxu0 %v3497
  %3727 = vmatpush1.msra.mxu0 %v3496
  %3728 = vmatprep.subr.mxu0 %v3491
  %3729 = vmatpush1.msra.mxu0 %v3490
  %3730 = vmatprep.subr.mxu0 %v3485
  %3731 = vmatpush1.msra.mxu0 %v3484
  %3732 = vmatprep.subr.mxu0 %v3479
  %3733 = vmatpush1.msra.mxu0 %v3478
  %3734 = vmatprep.subr.mxu0 %v3473
  %3735 = vmatpush1.msra.mxu0 %v3472
  %3736 = vmatprep.subr.mxu0 %v3467
  %3737 = vmatpush1.msra.mxu0 %v3466
  %3738 = vmatprep.subr.mxu0 %v3461
  %3739 = vmatpush1.msra.mxu0 %v3460
  %3740 = vmatprep.subr.mxu0 %v3455
  %3741 = vmatpush1.msra.mxu0 %v3454
  %3742 = vmatprep.subr.mxu0 %v3449
  %3743 = vmatpush1.msra.mxu0 %v3448
  %3744 = vmatprep.subr.mxu0 %v3443
  %3745 = vmatpush1.msra.mxu0 %v3442
  %3746 = vmatprep.subr.mxu0 %v3437
  %3747 = vmatpush1.msra.mxu0 %v3436
  %3748 = vmatprep.subr.mxu0 %v3623
  %3749 = vmatpush2.msra.mxu0 %v3622
  %3750 = vmatprep.subr.mxu0 %v3617
  %3751 = vmatpush2.msra.mxu0 %v3616
  %3752 = vmatprep.subr.mxu0 %v3611
  %3753 = vmatpush2.msra.mxu0 %v3610
  %3754 = vmatprep.subr.mxu0 %v3605
  %3755 = vmatpush2.msra.mxu0 %v3604
  %3756 = vmatprep.subr.mxu0 %v3599
  %3757 = vmatpush2.msra.mxu0 %v3598
  %3758 = vmatprep.subr.mxu0 %v3593
  %3759 = vmatpush2.msra.mxu0 %v3592
  %3760 = vmatprep.subr.mxu0 %v3587
  %3761 = vmatpush2.msra.mxu0 %v3586
  %3762 = vmatprep.subr.mxu0 %v3581
  %3763 = vmatpush2.msra.mxu0 %v3580
  %3764 = vmatprep.subr.mxu0 %v3575
  %3765 = vmatpush2.msra.mxu0 %v3574
  %3766 = vmatprep.subr.mxu0 %v3569
  %3767 = vmatpush2.msra.mxu0 %v3568
  %3768 = vmatprep.subr.mxu0 %v3563
  %3769 = vmatpush2.msra.mxu0 %v3562
  %3770 = vmatprep.subr.mxu0 %v3557
  %3771 = vmatpush2.msra.mxu0 %v3556
  %3772 = vmatprep.subr.mxu0 %v3551
  %3773 = vmatpush2.msra.mxu0 %v3550
  %3774 = vmatprep.subr.mxu0 %v3545
  %3775 = vmatpush2.msra.mxu0 %v3544
  %3776 = vmatprep.subr.mxu0 %v3539
  %3777 = vmatpush2.msra.mxu0 %v3538
  %3778 = vmatprep.subr.mxu0 %v3533
  %3779 = vmatpush2.msra.mxu0 %v3532
  %3780 = vmatprep.mubr.f32.mxu0 %v3431
  %3781 = vmatmul.mubr.f32.gmra.mxu0 %v3430
  %v3782 = vpop.f32.mrf.mxu0
  %v3783 = vadd.f32 %v3632, %v3782
  %v3784 = vpop.f32.mrf.mxu0
  %v3785 = vadd.f32 %v3632, %v3784
  %3786 = vmatprep.mubr.f32.mxu0 %v3433
  %3787 = vmatmul.mubr.f32.gmra.mxu0 %v3432
  %v3788 = vpop.f32.mrf.mxu0
  %v3789 = vadd.f32 %v3637, %v3788
  %v3790 = vpop.f32.mrf.mxu0
  %v3791 = vadd.f32 %v3637, %v3790
  %3792 = vdwg.mxu0
  %3793 = vmatprep.subr.mxu0 %v3529
  %3794 = vmatpush1.msra.mxu0 %v3528
  %3795 = vmatprep.subr.mxu0 %v3523
  %3796 = vmatpush1.msra.mxu0 %v3522
  %3797 = vmatprep.subr.mxu0 %v3517
  %3798 = vmatpush1.msra.mxu0 %v3516
  %3799 = vmatprep.subr.mxu0 %v3511
  %3800 = vmatpush1.msra.mxu0 %v3510
  %3801 = vmatprep.subr.mxu0 %v3505
  %3802 = vmatpush1.msra.mxu0 %v3504
  %3803 = vmatprep.subr.mxu0 %v3499
  %3804 = vmatpush1.msra.mxu0 %v3498
  %3805 = vmatprep.subr.mxu0 %v3493
  %3806 = vmatpush1.msra.mxu0 %v3492
  %3807 = vmatprep.subr.mxu0 %v3487
  %3808 = vmatpush1.msra.mxu0 %v3486
  %3809 = vmatprep.subr.mxu0 %v3481
  %3810 = vmatpush1.msra.mxu0 %v3480
  %3811 = vmatprep.subr.mxu0 %v3475
  %3812 = vmatpush1.msra.mxu0 %v3474
  %3813 = vmatprep.subr.mxu0 %v3469
  %3814 = vmatpush1.msra.mxu0 %v3468
  %3815 = vmatprep.subr.mxu0 %v3463
  %3816 = vmatpush1.msra.mxu0 %v3462
  %3817 = vmatprep.subr.mxu0 %v3457
  %3818 = vmatpush1.msra.mxu0 %v3456
  %3819 = vmatprep.subr.mxu0 %v3451
  %3820 = vmatpush1.msra.mxu0 %v3450
  %3821 = vmatprep.subr.mxu0 %v3445
  %3822 = vmatpush1.msra.mxu0 %v3444
  %3823 = vmatprep.subr.mxu0 %v3439
  %3824 = vmatpush1.msra.mxu0 %v3438
  %3825 = vmatprep.subr.mxu0 %v3625
  %3826 = vmatpush2.msra.mxu0 %v3624
  %3827 = vmatprep.subr.mxu0 %v3619
  %3828 = vmatpush2.msra.mxu0 %v3618
  %3829 = vmatprep.subr.mxu0 %v3613
  %3830 = vmatpush2.msra.mxu0 %v3612
  %3831 = vmatprep.subr.mxu0 %v3607
  %3832 = vmatpush2.msra.mxu0 %v3606
  %3833 = vmatprep.subr.mxu0 %v3601
  %3834 = vmatpush2.msra.mxu0 %v3600
  %3835 = vmatprep.subr.mxu0 %v3595
  %3836 = vmatpush2.msra.mxu0 %v3594
  %3837 = vmatprep.subr.mxu0 %v3589
  %3838 = vmatpush2.msra.mxu0 %v3588
  %3839 = vmatprep.subr.mxu0 %v3583
  %3840 = vmatpush2.msra.mxu0 %v3582
  %3841 = vmatprep.subr.mxu0 %v3577
  %3842 = vmatpush2.msra.mxu0 %v3576
  %3843 = vmatprep.subr.mxu0 %v3571
  %3844 = vmatpush2.msra.mxu0 %v3570
  %3845 = vmatprep.subr.mxu0 %v3565
  %3846 = vmatpush2.msra.mxu0 %v3564
  %3847 = vmatprep.subr.mxu0 %v3559
  %3848 = vmatpush2.msra.mxu0 %v3558
  %3849 = vmatprep.subr.mxu0 %v3553
  %3850 = vmatpush2.msra.mxu0 %v3552
  %3851 = vmatprep.subr.mxu0 %v3547
  %3852 = vmatpush2.msra.mxu0 %v3546
  %3853 = vmatprep.subr.mxu0 %v3541
  %3854 = vmatpush2.msra.mxu0 %v3540
  %3855 = vmatprep.subr.mxu0 %v3535
  %3856 = vmatpush2.msra.mxu0 %v3534
  %3857 = vmatprep.mubr.f32.mxu0 %v3431
  %3858 = vmatmul.mubr.f32.gmra.mxu0 %v3430
  %v3859 = vpop.f32.mrf.mxu0
  %v3860 = vadd.f32 %v3632, %v3859
  %v3861 = vpop.f32.mrf.mxu0
  %v3862 = vadd.f32 %v3632, %v3861
  %3863 = vmatprep.mubr.f32.mxu0 %v3433
  %3864 = vmatmul.mubr.f32.gmra.mxu0 %v3432
  %v3865 = vpop.f32.mrf.mxu0
  %v3866 = vadd.f32 %v3637, %v3865
  %v3867 = vpop.f32.mrf.mxu0
  %v3868 = vadd.f32 %v3637, %v3867
  %3869 = vdwg.mxu0
  %vm3870 = vcmp.gt.f32.partialorder %v3706, 0.0
  %vm3871 = vcmp.gt.f32.partialorder %v3708, 0.0
  %vm3872 = vcmp.gt.f32.partialorder %v3783, 0.0
  %vm3873 = vcmp.gt.f32.partialorder %v3785, 0.0
  %vm3874 = vcmp.gt.f32.partialorder %v3860, 0.0
  %vm3875 = vcmp.gt.f32.partialorder %v3862, 0.0
  %vm3876 = vcmp.gt.f32.partialorder %v3712, 0.0
  %vm3877 = vcmp.gt.f32.partialorder %v3714, 0.0
  %vm3878 = vcmp.gt.f32.partialorder %v3789, 0.0
  %vm3879 = vcmp.gt.f32.partialorder %v3791, 0.0
  %vm3880 = vcmp.gt.f32.partialorder %v3866, 0.0
  %vm3881 = vcmp.gt.f32.partialorder %v3868, 0.0
  %v3882 = vmul.f32 %v3706, 0.2
  %v3883 = vmul.f32 %v3708, 0.2
  %v3884 = vmul.f32 %v3783, 0.2
  %v3885 = vmul.f32 %v3785, 0.2
  %v3886 = vmul.f32 %v3860, 0.2
  %v3887 = vmul.f32 %v3862, 0.2
  %v3888 = vmul.f32 %v3712, 0.2
  %v3889 = vmul.f32 %v3714, 0.2
  %v3890 = vmul.f32 %v3789, 0.2
  %v3891 = vmul.f32 %v3791, 0.2
  %v3892 = vmul.f32 %v3866, 0.2
  %v3893 = vmul.f32 %v3868, 0.2
  %v3894 = vsel %vm3870, %v3706, %v3882
  %v3895 = vsel %vm3871, %v3708, %v3883
  %v3896 = vsel %vm3872, %v3783, %v3884
  %v3897 = vsel %vm3873, %v3785, %v3885
  %v3898 = vsel %vm3874, %v3860, %v3886
  %v3899 = vsel %vm3875, %v3862, %v3887
  %v3900 = vsel %vm3876, %v3712, %v3888
  %v3901 = vsel %vm3877, %v3714, %v3889
  %v3902 = vsel %vm3878, %v3789, %v3890
  %v3903 = vsel %vm3879, %v3791, %v3891
  %v3904 = vsel %vm3880, %v3866, %v3892
  %v3905 = vsel %vm3881, %v3868, %v3893
  %v3906 = vmul.f32 %v3894, %v1357
  %v3907 = vmul.f32 %v3895, %v1361
  %v3908 = vmul.f32 %v3896, %v1365
  %v3909 = vmul.f32 %v3897, %v1369
  %v3910 = vmul.f32 %v3898, %v1373
  %v3911 = vmul.f32 %v3899, %v1377
  %v3912 = vmul.f32 %v3900, %v1357
  %v3913 = vmul.f32 %v3901, %v1361
  %v3914 = vmul.f32 %v3902, %v1365
  %v3915 = vmul.f32 %v3903, %v1369
  %v3916 = vmul.f32 %v3904, %v1373
  %v3917 = vmul.f32 %v3905, %v1377
  %3918 = vst [vmem:[#allocation2 + $0x8] sm:$0xff] %v3906
  %3919 = vst [vmem:[#allocation2 + $0x10] sm:$0xff] %v3907
  %3920 = vst [vmem:[#allocation2 + $0x18] sm:$0xff] %v3908
  %3921 = vst [vmem:[#allocation2 + $0x20] sm:$0xff] %v3909
  %3922 = vst [vmem:[#allocation2 + $0x28] sm:$0xff] %v3910
  %3923 = vst [vmem:[#allocation2 + $0x30] sm:$0xff] %v3911
  %3924 = vst [vmem:[#allocation2 + $0x48] sm:$0xff] %v3912
  %3925 = vst [vmem:[#allocation2 + $0x50] sm:$0xff] %v3913
  %3926 = vst [vmem:[#allocation2 + $0x58] sm:$0xff] %v3914
  %3927 = vst [vmem:[#allocation2 + $0x60] sm:$0xff] %v3915
  %3928 = vst [vmem:[#allocation2 + $0x68] sm:$0xff] %v3916
  %3929 = vst [vmem:[#allocation2 + $0x70] sm:$0xff] %v3917
  %v3930 = vld [vmem:[#allocation3 + $0x8] sm:$0xff]
  %v3931 = vld [vmem:[#allocation3 + $0x10] sm:$0xff]
  %v3932 = vld [vmem:[#allocation3 + $0x18] sm:$0xff]
  %v3933 = vld [vmem:[#allocation3 + $0x20] sm:$0xff]
  %v3934 = vld [vmem:[#allocation3 + $0x28] sm:$0xff]
  %v3935 = vld [vmem:[#allocation3 + $0x30] sm:$0xff]
  %v3936 = vld [vmem:[#allocation3 + $0x48] sm:$0xff]
  %v3937 = vld [vmem:[#allocation3 + $0x50] sm:$0xff]
  %v3938 = vld [vmem:[#allocation3 + $0x58] sm:$0xff]
  %v3939 = vld [vmem:[#allocation3 + $0x60] sm:$0xff]
  %v3940 = vld [vmem:[#allocation3 + $0x68] sm:$0xff]
  %v3941 = vld [vmem:[#allocation3 + $0x70] sm:$0xff]
  %v3942 = vld [vmem:[#allocation2] sm:$0xff]
  %v3943 = vld [vmem:[#allocation2 + $0x8] sm:$0xff]
  %v3944 = vld [vmem:[#allocation2 + $0x10] sm:$0xff]
  %v3945 = vld [vmem:[#allocation2 + $0x18] sm:$0xff]
  %v3946 = vld [vmem:[#allocation2 + $0x20] sm:$0xff]
  %v3947 = vld [vmem:[#allocation2 + $0x28] sm:$0xff]
  %v3948 = vld [vmem:[#allocation2 + $0x30] sm:$0xff]
  %v3949 = vld [vmem:[#allocation2 + $0x40] sm:$0xff]
  %v3950 = vld [vmem:[#allocation2 + $0x48] sm:$0xff]
  %v3951 = vld [vmem:[#allocation2 + $0x50] sm:$0xff]
  %v3952 = vld [vmem:[#allocation2 + $0x58] sm:$0xff]
  %v3953 = vld [vmem:[#allocation2 + $0x60] sm:$0xff]
  %v3954 = vld [vmem:[#allocation2 + $0x68] sm:$0xff]
  %v3955 = vld [vmem:[#allocation2 + $0x70] sm:$0xff]
  %3970 = vrot.lane.b32.xlu0 %v3942, 19
  %v3971 = vpop.permute.xlu0 %3970
  %3972 = vrot.lane.b32.xlu0 %v3943, 19
  %v3973 = vpop.permute.xlu0 %3972
  %3974 = vrot.lane.b32.xlu0 %v3944, 19
  %v3975 = vpop.permute.xlu0 %3974
  %3976 = vrot.lane.b32.xlu0 %v3945, 19
  %v3977 = vpop.permute.xlu0 %3976
  %3978 = vrot.lane.b32.xlu0 %v3946, 19
  %v3979 = vpop.permute.xlu0 %3978
  %3980 = vrot.lane.b32.xlu0 %v3947, 19
  %v3981 = vpop.permute.xlu0 %3980
  %3982 = vrot.lane.b32.xlu0 %v3948, 19
  %v3983 = vpop.permute.xlu0 %3982
  %3984 = vrot.lane.b32.xlu0 %v3949, 19
  %v3985 = vpop.permute.xlu0 %3984
  %3986 = vrot.lane.b32.xlu0 %v3950, 19
  %v3987 = vpop.permute.xlu0 %3986
  %3988 = vrot.lane.b32.xlu0 %v3951, 19
  %v3989 = vpop.permute.xlu0 %3988
  %3990 = vrot.lane.b32.xlu0 %v3952, 19
  %v3991 = vpop.permute.xlu0 %3990
  %3992 = vrot.lane.b32.xlu0 %v3953, 19
  %v3993 = vpop.permute.xlu0 %3992
  %3994 = vrot.lane.b32.xlu0 %v3954, 19
  %v3995 = vpop.permute.xlu0 %3994
  %3996 = vrot.lane.b32.xlu0 %v3955, 19
  %v3997 = vpop.permute.xlu0 %3996
  %v3998 = vsel %vm166, %v3971, %v3973
  %v3999 = vsel %vm166, %v3973, %v3975
  %v4000 = vsel %vm166, %v3975, %v3977
  %v4001 = vsel %vm166, %v3977, %v3979
  %v4002 = vsel %vm166, %v3979, %v3981
  %v4003 = vsel %vm166, %v3981, %v3983
  %v4004 = vsel %vm166, %v3985, %v3987
  %v4005 = vsel %vm166, %v3987, %v3989
  %v4006 = vsel %vm166, %v3989, %v3991
  %v4007 = vsel %vm166, %v3991, %v3993
  %v4008 = vsel %vm166, %v3993, %v3995
  %v4009 = vsel %vm166, %v3995, %v3997
  %4022 = vst [vmem:[#allocation4] sm:$0xff] %v3998
  %4023 = vst [vmem:[#allocation4 + $0x8] sm:$0xff] %v3999
  %4024 = vst [vmem:[#allocation4 + $0x10] sm:$0xff] %v4000
  %4025 = vst [vmem:[#allocation4 + $0x18] sm:$0xff] %v4001
  %4026 = vst [vmem:[#allocation4 + $0x20] sm:$0xff] %v4002
  %4027 = vst [vmem:[#allocation4 + $0x28] sm:$0xff] %v4003
  %4028 = vst [vmem:[#allocation4 + $0x30] sm:$0xff] %v4004
  %4029 = vst [vmem:[#allocation4 + $0x38] sm:$0xff] %v4005
  %4030 = vst [vmem:[#allocation4 + $0x40] sm:$0xff] %v4006
  %4031 = vst [vmem:[#allocation4 + $0x48] sm:$0xff] %v4007
  %4032 = vst [vmem:[#allocation4 + $0x50] sm:$0xff] %v4008
  %4033 = vst [vmem:[#allocation4 + $0x58] sm:$0xff] %v4009
  %v4034 = vld [vmem:[#allocation2] sm:$0xff]
  %v4035 = vld [vmem:[#allocation2 + $0x8] sm:$0xff]
  %v4036 = vld [vmem:[#allocation2 + $0x10] sm:$0xff]
  %v4037 = vld [vmem:[#allocation2 + $0x18] sm:$0xff]
  %v4038 = vld [vmem:[#allocation2 + $0x20] sm:$0xff]
  %v4039 = vld [vmem:[#allocation2 + $0x28] sm:$0xff]
  %v4040 = vld [vmem:[#allocation2 + $0x30] sm:$0xff]
  %v4041 = vld [vmem:[#allocation2 + $0x40] sm:$0xff]
  %v4042 = vld [vmem:[#allocation2 + $0x48] sm:$0xff]
  %v4043 = vld [vmem:[#allocation2 + $0x50] sm:$0xff]
  %v4044 = vld [vmem:[#allocation2 + $0x58] sm:$0xff]
  %v4045 = vld [vmem:[#allocation2 + $0x60] sm:$0xff]
  %v4046 = vld [vmem:[#allocation2 + $0x68] sm:$0xff]
  %v4047 = vld [vmem:[#allocation2 + $0x70] sm:$0xff]
  %4062 = vrot.lane.b32.xlu0 %v4034, 18
  %v4063 = vpop.permute.xlu0 %4062
  %4064 = vrot.lane.b32.xlu0 %v4035, 18
  %v4065 = vpop.permute.xlu0 %4064
  %4066 = vrot.lane.b32.xlu0 %v4036, 18
  %v4067 = vpop.permute.xlu0 %4066
  %4068 = vrot.lane.b32.xlu0 %v4037, 18
  %v4069 = vpop.permute.xlu0 %4068
  %4070 = vrot.lane.b32.xlu0 %v4038, 18
  %v4071 = vpop.permute.xlu0 %4070
  %4072 = vrot.lane.b32.xlu0 %v4039, 18
  %v4073 = vpop.permute.xlu0 %4072
  %4074 = vrot.lane.b32.xlu0 %v4040, 18
  %v4075 = vpop.permute.xlu0 %4074
  %4076 = vrot.lane.b32.xlu0 %v4041, 18
  %v4077 = vpop.permute.xlu0 %4076
  %4078 = vrot.lane.b32.xlu0 %v4042, 18
  %v4079 = vpop.permute.xlu0 %4078
  %4080 = vrot.lane.b32.xlu0 %v4043, 18
  %v4081 = vpop.permute.xlu0 %4080
  %4082 = vrot.lane.b32.xlu0 %v4044, 18
  %v4083 = vpop.permute.xlu0 %4082
  %4084 = vrot.lane.b32.xlu0 %v4045, 18
  %v4085 = vpop.permute.xlu0 %4084
  %4086 = vrot.lane.b32.xlu0 %v4046, 18
  %v4087 = vpop.permute.xlu0 %4086
  %4088 = vrot.lane.b32.xlu0 %v4047, 18
  %v4089 = vpop.permute.xlu0 %4088
  %v4090 = vsel %vm259, %v4063, %v4065
  %v4091 = vsel %vm259, %v4065, %v4067
  %v4092 = vsel %vm259, %v4067, %v4069
  %v4093 = vsel %vm259, %v4069, %v4071
  %v4094 = vsel %vm259, %v4071, %v4073
  %v4095 = vsel %vm259, %v4073, %v4075
  %v4096 = vsel %vm259, %v4077, %v4079
  %v4097 = vsel %vm259, %v4079, %v4081
  %v4098 = vsel %vm259, %v4081, %v4083
  %v4099 = vsel %vm259, %v4083, %v4085
  %v4100 = vsel %vm259, %v4085, %v4087
  %v4101 = vsel %vm259, %v4087, %v4089
  %4114 = vst [vmem:[#allocation4 + $0x60] sm:$0xff] %v4090
  %4115 = vst [vmem:[#allocation4 + $0x68] sm:$0xff] %v4091
  %4116 = vst [vmem:[#allocation4 + $0x70] sm:$0xff] %v4092
  %4117 = vst [vmem:[#allocation4 + $0x78] sm:$0xff] %v4093
  %4118 = vst [vmem:[#allocation4 + $0x80] sm:$0xff] %v4094
  %4119 = vst [vmem:[#allocation4 + $0x88] sm:$0xff] %v4095
  %4120 = vst [vmem:[#allocation4 + $0x90] sm:$0xff] %v4096
  %4121 = vst [vmem:[#allocation4 + $0x98] sm:$0xff] %v4097
  %4122 = vst [vmem:[#allocation4 + $0xa0] sm:$0xff] %v4098
  %4123 = vst [vmem:[#allocation4 + $0xa8] sm:$0xff] %v4099
  %4124 = vst [vmem:[#allocation4 + $0xb0] sm:$0xff] %v4100
  %4125 = vst [vmem:[#allocation4 + $0xb8] sm:$0xff] %v4101
  %v4126 = vld [vmem:[#allocation2] sm:$0xff]
  %v4127 = vld [vmem:[#allocation2 + $0x8] sm:$0xff]
  %v4128 = vld [vmem:[#allocation2 + $0x10] sm:$0xff]
  %v4129 = vld [vmem:[#allocation2 + $0x18] sm:$0xff]
  %v4130 = vld [vmem:[#allocation2 + $0x20] sm:$0xff]
  %v4131 = vld [vmem:[#allocation2 + $0x28] sm:$0xff]
  %v4132 = vld [vmem:[#allocation2 + $0x30] sm:$0xff]
  %v4133 = vld [vmem:[#allocation2 + $0x40] sm:$0xff]
  %v4134 = vld [vmem:[#allocation2 + $0x48] sm:$0xff]
  %v4135 = vld [vmem:[#allocation2 + $0x50] sm:$0xff]
  %v4136 = vld [vmem:[#allocation2 + $0x58] sm:$0xff]
  %v4137 = vld [vmem:[#allocation2 + $0x60] sm:$0xff]
  %v4138 = vld [vmem:[#allocation2 + $0x68] sm:$0xff]
  %v4139 = vld [vmem:[#allocation2 + $0x70] sm:$0xff]
  %4154 = vrot.lane.b32.xlu0 %v4126, 17
  %v4155 = vpop.permute.xlu0 %4154
  %4156 = vrot.lane.b32.xlu0 %v4127, 17
  %v4157 = vpop.permute.xlu0 %4156
  %4158 = vrot.lane.b32.xlu0 %v4128, 17
  %v4159 = vpop.permute.xlu0 %4158
  %4160 = vrot.lane.b32.xlu0 %v4129, 17
  %v4161 = vpop.permute.xlu0 %4160
  %4162 = vrot.lane.b32.xlu0 %v4130, 17
  %v4163 = vpop.permute.xlu0 %4162
  %4164 = vrot.lane.b32.xlu0 %v4131, 17
  %v4165 = vpop.permute.xlu0 %4164
  %4166 = vrot.lane.b32.xlu0 %v4132, 17
  %v4167 = vpop.permute.xlu0 %4166
  %4168 = vrot.lane.b32.xlu0 %v4133, 17
  %v4169 = vpop.permute.xlu0 %4168
  %4170 = vrot.lane.b32.xlu0 %v4134, 17
  %v4171 = vpop.permute.xlu0 %4170
  %4172 = vrot.lane.b32.xlu0 %v4135, 17
  %v4173 = vpop.permute.xlu0 %4172
  %4174 = vrot.lane.b32.xlu0 %v4136, 17
  %v4175 = vpop.permute.xlu0 %4174
  %4176 = vrot.lane.b32.xlu0 %v4137, 17
  %v4177 = vpop.permute.xlu0 %4176
  %4178 = vrot.lane.b32.xlu0 %v4138, 17
  %v4179 = vpop.permute.xlu0 %4178
  %4180 = vrot.lane.b32.xlu0 %v4139, 17
  %v4181 = vpop.permute.xlu0 %4180
  %v4182 = vsel %vm352, %v4155, %v4157
  %v4183 = vsel %vm352, %v4157, %v4159
  %v4184 = vsel %vm352, %v4159, %v4161
  %v4185 = vsel %vm352, %v4161, %v4163
  %v4186 = vsel %vm352, %v4163, %v4165
  %v4187 = vsel %vm352, %v4165, %v4167
  %v4188 = vsel %vm352, %v4169, %v4171
  %v4189 = vsel %vm352, %v4171, %v4173
  %v4190 = vsel %vm352, %v4173, %v4175
  %v4191 = vsel %vm352, %v4175, %v4177
  %v4192 = vsel %vm352, %v4177, %v4179
  %v4193 = vsel %vm352, %v4179, %v4181
  %4206 = vst [vmem:[#allocation4 + $0xc0] sm:$0xff] %v4182
  %4207 = vst [vmem:[#allocation4 + $0xc8] sm:$0xff] %v4183
  %4208 = vst [vmem:[#allocation4 + $0xd0] sm:$0xff] %v4184
  %4209 = vst [vmem:[#allocation4 + $0xd8] sm:$0xff] %v4185
  %4210 = vst [vmem:[#allocation4 + $0xe0] sm:$0xff] %v4186
  %4211 = vst [vmem:[#allocation4 + $0xe8] sm:$0xff] %v4187
  %4212 = vst [vmem:[#allocation4 + $0xf0] sm:$0xff] %v4188
  %4213 = vst [vmem:[#allocation4 + $0xf8] sm:$0xff] %v4189
  %4214 = vst [vmem:[#allocation4 + $0x100] sm:$0xff] %v4190
  %4215 = vst [vmem:[#allocation4 + $0x108] sm:$0xff] %v4191
  %4216 = vst [vmem:[#allocation4 + $0x110] sm:$0xff] %v4192
  %4217 = vst [vmem:[#allocation4 + $0x118] sm:$0xff] %v4193
  %v4218 = vld [vmem:[#allocation2] sm:$0xff]
  %v4219 = vld [vmem:[#allocation2 + $0x8] sm:$0xff]
  %v4220 = vld [vmem:[#allocation2 + $0x10] sm:$0xff]
  %v4221 = vld [vmem:[#allocation2 + $0x18] sm:$0xff]
  %v4222 = vld [vmem:[#allocation2 + $0x20] sm:$0xff]
  %v4223 = vld [vmem:[#allocation2 + $0x28] sm:$0xff]
  %v4224 = vld [vmem:[#allocation2 + $0x30] sm:$0xff]
  %v4225 = vld [vmem:[#allocation2 + $0x40] sm:$0xff]
  %v4226 = vld [vmem:[#allocation2 + $0x48] sm:$0xff]
  %v4227 = vld [vmem:[#allocation2 + $0x50] sm:$0xff]
  %v4228 = vld [vmem:[#allocation2 + $0x58] sm:$0xff]
  %v4229 = vld [vmem:[#allocation2 + $0x60] sm:$0xff]
  %v4230 = vld [vmem:[#allocation2 + $0x68] sm:$0xff]
  %v4231 = vld [vmem:[#allocation2 + $0x70] sm:$0xff]
  %4246 = vrot.lane.b32.xlu0 %v4218, 1
  %v4247 = vpop.permute.xlu0 %4246
  %4248 = vrot.lane.b32.xlu0 %v4219, 1
  %v4249 = vpop.permute.xlu0 %4248
  %4250 = vrot.lane.b32.xlu0 %v4220, 1
  %v4251 = vpop.permute.xlu0 %4250
  %4252 = vrot.lane.b32.xlu0 %v4221, 1
  %v4253 = vpop.permute.xlu0 %4252
  %4254 = vrot.lane.b32.xlu0 %v4222, 1
  %v4255 = vpop.permute.xlu0 %4254
  %4256 = vrot.lane.b32.xlu0 %v4223, 1
  %v4257 = vpop.permute.xlu0 %4256
  %4258 = vrot.lane.b32.xlu0 %v4224, 1
  %v4259 = vpop.permute.xlu0 %4258
  %4260 = vrot.lane.b32.xlu0 %v4225, 1
  %v4261 = vpop.permute.xlu0 %4260
  %4262 = vrot.lane.b32.xlu0 %v4226, 1
  %v4263 = vpop.permute.xlu0 %4262
  %4264 = vrot.lane.b32.xlu0 %v4227, 1
  %v4265 = vpop.permute.xlu0 %4264
  %4266 = vrot.lane.b32.xlu0 %v4228, 1
  %v4267 = vpop.permute.xlu0 %4266
  %4268 = vrot.lane.b32.xlu0 %v4229, 1
  %v4269 = vpop.permute.xlu0 %4268
  %4270 = vrot.lane.b32.xlu0 %v4230, 1
  %v4271 = vpop.permute.xlu0 %4270
  %4272 = vrot.lane.b32.xlu0 %v4231, 1
  %v4273 = vpop.permute.xlu0 %4272
  %v4274 = vsel %vm445, %v4247, %v4249
  %v4275 = vsel %vm445, %v4249, %v4251
  %v4276 = vsel %vm445, %v4251, %v4253
  %v4277 = vsel %vm445, %v4253, %v4255
  %v4278 = vsel %vm445, %v4255, %v4257
  %v4279 = vsel %vm445, %v4257, %v4259
  %v4280 = vsel %vm445, %v4261, %v4263
  %v4281 = vsel %vm445, %v4263, %v4265
  %v4282 = vsel %vm445, %v4265, %v4267
  %v4283 = vsel %vm445, %v4267, %v4269
  %v4284 = vsel %vm445, %v4269, %v4271
  %v4285 = vsel %vm445, %v4271, %v4273
  %4298 = vst [vmem:[#allocation4 + $0x120] sm:$0xff] %v4274
  %4299 = vst [vmem:[#allocation4 + $0x128] sm:$0xff] %v4275
  %4300 = vst [vmem:[#allocation4 + $0x130] sm:$0xff] %v4276
  %4301 = vst [vmem:[#allocation4 + $0x138] sm:$0xff] %v4277
  %4302 = vst [vmem:[#allocation4 + $0x140] sm:$0xff] %v4278
  %4303 = vst [vmem:[#allocation4 + $0x148] sm:$0xff] %v4279
  %4304 = vst [vmem:[#allocation4 + $0x150] sm:$0xff] %v4280
  %4305 = vst [vmem:[#allocation4 + $0x158] sm:$0xff] %v4281
  %4306 = vst [vmem:[#allocation4 + $0x160] sm:$0xff] %v4282
  %4307 = vst [vmem:[#allocation4 + $0x168] sm:$0xff] %v4283
  %4308 = vst [vmem:[#allocation4 + $0x170] sm:$0xff] %v4284
  %4309 = vst [vmem:[#allocation4 + $0x178] sm:$0xff] %v4285
  %v4310 = vld [vmem:[#allocation2 + $0x8] sm:$0xff]
  %v4311 = vld [vmem:[#allocation2 + $0x10] sm:$0xff]
  %v4312 = vld [vmem:[#allocation2 + $0x18] sm:$0xff]
  %v4313 = vld [vmem:[#allocation2 + $0x20] sm:$0xff]
  %v4314 = vld [vmem:[#allocation2 + $0x28] sm:$0xff]
  %v4315 = vld [vmem:[#allocation2 + $0x30] sm:$0xff]
  %v4316 = vld [vmem:[#allocation2 + $0x48] sm:$0xff]
  %v4317 = vld [vmem:[#allocation2 + $0x50] sm:$0xff]
  %v4318 = vld [vmem:[#allocation2 + $0x58] sm:$0xff]
  %v4319 = vld [vmem:[#allocation2 + $0x60] sm:$0xff]
  %v4320 = vld [vmem:[#allocation2 + $0x68] sm:$0xff]
  %v4321 = vld [vmem:[#allocation2 + $0x70] sm:$0xff]
  %4322 = vst [vmem:[#allocation4 + $0x180] sm:$0xff] %v4310
  %4323 = vst [vmem:[#allocation4 + $0x188] sm:$0xff] %v4311
  %4324 = vst [vmem:[#allocation4 + $0x190] sm:$0xff] %v4312
  %4325 = vst [vmem:[#allocation4 + $0x198] sm:$0xff] %v4313
  %4326 = vst [vmem:[#allocation4 + $0x1a0] sm:$0xff] %v4314
  %4327 = vst [vmem:[#allocation4 + $0x1a8] sm:$0xff] %v4315
  %4328 = vst [vmem:[#allocation4 + $0x1b0] sm:$0xff] %v4316
  %4329 = vst [vmem:[#allocation4 + $0x1b8] sm:$0xff] %v4317
  %4330 = vst [vmem:[#allocation4 + $0x1c0] sm:$0xff] %v4318
  %4331 = vst [vmem:[#allocation4 + $0x1c8] sm:$0xff] %v4319
  %4332 = vst [vmem:[#allocation4 + $0x1d0] sm:$0xff] %v4320
  %4333 = vst [vmem:[#allocation4 + $0x1d8] sm:$0xff] %v4321
  %v4334 = vld [vmem:[#allocation2 + $0x8] sm:$0xff]
  %v4335 = vld [vmem:[#allocation2 + $0x10] sm:$0xff]
  %v4336 = vld [vmem:[#allocation2 + $0x18] sm:$0xff]
  %v4337 = vld [vmem:[#allocation2 + $0x20] sm:$0xff]
  %v4338 = vld [vmem:[#allocation2 + $0x28] sm:$0xff]
  %v4339 = vld [vmem:[#allocation2 + $0x30] sm:$0xff]
  %v4340 = vld [vmem:[#allocation2 + $0x38] sm:$0xff]
  %v4341 = vld [vmem:[#allocation2 + $0x48] sm:$0xff]
  %v4342 = vld [vmem:[#allocation2 + $0x50] sm:$0xff]
  %v4343 = vld [vmem:[#allocation2 + $0x58] sm:$0xff]
  %v4344 = vld [vmem:[#allocation2 + $0x60] sm:$0xff]
  %v4345 = vld [vmem:[#allocation2 + $0x68] sm:$0xff]
  %v4346 = vld [vmem:[#allocation2 + $0x70] sm:$0xff]
  %v4347 = vld [vmem:[#allocation2 + $0x78] sm:$0xff]
  %4362 = vrot.lane.b32.xlu0 %v4334, 127
  %v4363 = vpop.permute.xlu0 %4362
  %4364 = vrot.lane.b32.xlu0 %v4335, 127
  %v4365 = vpop.permute.xlu0 %4364
  %4366 = vrot.lane.b32.xlu0 %v4336, 127
  %v4367 = vpop.permute.xlu0 %4366
  %4368 = vrot.lane.b32.xlu0 %v4337, 127
  %v4369 = vpop.permute.xlu0 %4368
  %4370 = vrot.lane.b32.xlu0 %v4338, 127
  %v4371 = vpop.permute.xlu0 %4370
  %4372 = vrot.lane.b32.xlu0 %v4339, 127
  %v4373 = vpop.permute.xlu0 %4372
  %4374 = vrot.lane.b32.xlu0 %v4340, 127
  %v4375 = vpop.permute.xlu0 %4374
  %4376 = vrot.lane.b32.xlu0 %v4341, 127
  %v4377 = vpop.permute.xlu0 %4376
  %4378 = vrot.lane.b32.xlu0 %v4342, 127
  %v4379 = vpop.permute.xlu0 %4378
  %4380 = vrot.lane.b32.xlu0 %v4343, 127
  %v4381 = vpop.permute.xlu0 %4380
  %4382 = vrot.lane.b32.xlu0 %v4344, 127
  %v4383 = vpop.permute.xlu0 %4382
  %4384 = vrot.lane.b32.xlu0 %v4345, 127
  %v4385 = vpop.permute.xlu0 %4384
  %4386 = vrot.lane.b32.xlu0 %v4346, 127
  %v4387 = vpop.permute.xlu0 %4386
  %4388 = vrot.lane.b32.xlu0 %v4347, 127
  %v4389 = vpop.permute.xlu0 %4388
  %v4390 = vsel %vm562, %v4363, %v4365
  %v4391 = vsel %vm562, %v4365, %v4367
  %v4392 = vsel %vm562, %v4367, %v4369
  %v4393 = vsel %vm562, %v4369, %v4371
  %v4394 = vsel %vm562, %v4371, %v4373
  %v4395 = vsel %vm562, %v4373, %v4375
  %v4396 = vsel %vm562, %v4377, %v4379
  %v4397 = vsel %vm562, %v4379, %v4381
  %v4398 = vsel %vm562, %v4381, %v4383
  %v4399 = vsel %vm562, %v4383, %v4385
  %v4400 = vsel %vm562, %v4385, %v4387
  %v4401 = vsel %vm562, %v4387, %v4389
  %4414 = vst [vmem:[#allocation4 + $0x1e0] sm:$0xff] %v4390
  %4415 = vst [vmem:[#allocation4 + $0x1e8] sm:$0xff] %v4391
  %4416 = vst [vmem:[#allocation4 + $0x1f0] sm:$0xff] %v4392
  %4417 = vst [vmem:[#allocation4 + $0x1f8] sm:$0xff] %v4393
  %4418 = vst [vmem:[#allocation4 + $0x200] sm:$0xff] %v4394
  %4419 = vst [vmem:[#allocation4 + $0x208] sm:$0xff] %v4395
  %4420 = vst [vmem:[#allocation4 + $0x210] sm:$0xff] %v4396
  %4421 = vst [vmem:[#allocation4 + $0x218] sm:$0xff] %v4397
  %4422 = vst [vmem:[#allocation4 + $0x220] sm:$0xff] %v4398
  %4423 = vst [vmem:[#allocation4 + $0x228] sm:$0xff] %v4399
  %4424 = vst [vmem:[#allocation4 + $0x230] sm:$0xff] %v4400
  %4425 = vst [vmem:[#allocation4 + $0x238] sm:$0xff] %v4401
  %v4426 = vld [vmem:[#allocation2 + $0x8] sm:$0xff]
  %v4427 = vld [vmem:[#allocation2 + $0x10] sm:$0xff]
  %v4428 = vld [vmem:[#allocation2 + $0x18] sm:$0xff]
  %v4429 = vld [vmem:[#allocation2 + $0x20] sm:$0xff]
  %v4430 = vld [vmem:[#allocation2 + $0x28] sm:$0xff]
  %v4431 = vld [vmem:[#allocation2 + $0x30] sm:$0xff]
  %v4432 = vld [vmem:[#allocation2 + $0x38] sm:$0xff]
  %v4433 = vld [vmem:[#allocation2 + $0x48] sm:$0xff]
  %v4434 = vld [vmem:[#allocation2 + $0x50] sm:$0xff]
  %v4435 = vld [vmem:[#allocation2 + $0x58] sm:$0xff]
  %v4436 = vld [vmem:[#allocation2 + $0x60] sm:$0xff]
  %v4437 = vld [vmem:[#allocation2 + $0x68] sm:$0xff]
  %v4438 = vld [vmem:[#allocation2 + $0x70] sm:$0xff]
  %v4439 = vld [vmem:[#allocation2 + $0x78] sm:$0xff]
  %4454 = vrot.lane.b32.xlu0 %v4426, 111
  %v4455 = vpop.permute.xlu0 %4454
  %4456 = vrot.lane.b32.xlu0 %v4427, 111
  %v4457 = vpop.permute.xlu0 %4456
  %4458 = vrot.lane.b32.xlu0 %v4428, 111
  %v4459 = vpop.permute.xlu0 %4458
  %4460 = vrot.lane.b32.xlu0 %v4429, 111
  %v4461 = vpop.permute.xlu0 %4460
  %4462 = vrot.lane.b32.xlu0 %v4430, 111
  %v4463 = vpop.permute.xlu0 %4462
  %4464 = vrot.lane.b32.xlu0 %v4431, 111
  %v4465 = vpop.permute.xlu0 %4464
  %4466 = vrot.lane.b32.xlu0 %v4432, 111
  %v4467 = vpop.permute.xlu0 %4466
  %4468 = vrot.lane.b32.xlu0 %v4433, 111
  %v4469 = vpop.permute.xlu0 %4468
  %4470 = vrot.lane.b32.xlu0 %v4434, 111
  %v4471 = vpop.permute.xlu0 %4470
  %4472 = vrot.lane.b32.xlu0 %v4435, 111
  %v4473 = vpop.permute.xlu0 %4472
  %4474 = vrot.lane.b32.xlu0 %v4436, 111
  %v4475 = vpop.permute.xlu0 %4474
  %4476 = vrot.lane.b32.xlu0 %v4437, 111
  %v4477 = vpop.permute.xlu0 %4476
  %4478 = vrot.lane.b32.xlu0 %v4438, 111
  %v4479 = vpop.permute.xlu0 %4478
  %4480 = vrot.lane.b32.xlu0 %v4439, 111
  %v4481 = vpop.permute.xlu0 %4480
  %v4482 = vsel %vm655, %v4455, %v4457
  %v4483 = vsel %vm655, %v4457, %v4459
  %v4484 = vsel %vm655, %v4459, %v4461
  %v4485 = vsel %vm655, %v4461, %v4463
  %v4486 = vsel %vm655, %v4463, %v4465
  %v4487 = vsel %vm655, %v4465, %v4467
  %v4488 = vsel %vm655, %v4469, %v4471
  %v4489 = vsel %vm655, %v4471, %v4473
  %v4490 = vsel %vm655, %v4473, %v4475
  %v4491 = vsel %vm655, %v4475, %v4477
  %v4492 = vsel %vm655, %v4477, %v4479
  %v4493 = vsel %vm655, %v4479, %v4481
  %4506 = vst [vmem:[#allocation4 + $0x240] sm:$0xff] %v4482
  %4507 = vst [vmem:[#allocation4 + $0x248] sm:$0xff] %v4483
  %4508 = vst [vmem:[#allocation4 + $0x250] sm:$0xff] %v4484
  %4509 = vst [vmem:[#allocation4 + $0x258] sm:$0xff] %v4485
  %4510 = vst [vmem:[#allocation4 + $0x260] sm:$0xff] %v4486
  %4511 = vst [vmem:[#allocation4 + $0x268] sm:$0xff] %v4487
  %4512 = vst [vmem:[#allocation4 + $0x270] sm:$0xff] %v4488
  %4513 = vst [vmem:[#allocation4 + $0x278] sm:$0xff] %v4489
  %4514 = vst [vmem:[#allocation4 + $0x280] sm:$0xff] %v4490
  %4515 = vst [vmem:[#allocation4 + $0x288] sm:$0xff] %v4491
  %4516 = vst [vmem:[#allocation4 + $0x290] sm:$0xff] %v4492
  %4517 = vst [vmem:[#allocation4 + $0x298] sm:$0xff] %v4493
  %v4518 = vld [vmem:[#allocation2 + $0x8] sm:$0xff]
  %v4519 = vld [vmem:[#allocation2 + $0x10] sm:$0xff]
  %v4520 = vld [vmem:[#allocation2 + $0x18] sm:$0xff]
  %v4521 = vld [vmem:[#allocation2 + $0x20] sm:$0xff]
  %v4522 = vld [vmem:[#allocation2 + $0x28] sm:$0xff]
  %v4523 = vld [vmem:[#allocation2 + $0x30] sm:$0xff]
  %v4524 = vld [vmem:[#allocation2 + $0x38] sm:$0xff]
  %v4525 = vld [vmem:[#allocation2 + $0x48] sm:$0xff]
  %v4526 = vld [vmem:[#allocation2 + $0x50] sm:$0xff]
  %v4527 = vld [vmem:[#allocation2 + $0x58] sm:$0xff]
  %v4528 = vld [vmem:[#allocation2 + $0x60] sm:$0xff]
  %v4529 = vld [vmem:[#allocation2 + $0x68] sm:$0xff]
  %v4530 = vld [vmem:[#allocation2 + $0x70] sm:$0xff]
  %v4531 = vld [vmem:[#allocation2 + $0x78] sm:$0xff]
  %4546 = vrot.lane.b32.xlu0 %v4518, 110
  %v4547 = vpop.permute.xlu0 %4546
  %4548 = vrot.lane.b32.xlu0 %v4519, 110
  %v4549 = vpop.permute.xlu0 %4548
  %4550 = vrot.lane.b32.xlu0 %v4520, 110
  %v4551 = vpop.permute.xlu0 %4550
  %4552 = vrot.lane.b32.xlu0 %v4521, 110
  %v4553 = vpop.permute.xlu0 %4552
  %4554 = vrot.lane.b32.xlu0 %v4522, 110
  %v4555 = vpop.permute.xlu0 %4554
  %4556 = vrot.lane.b32.xlu0 %v4523, 110
  %v4557 = vpop.permute.xlu0 %4556
  %4558 = vrot.lane.b32.xlu0 %v4524, 110
  %v4559 = vpop.permute.xlu0 %4558
  %4560 = vrot.lane.b32.xlu0 %v4525, 110
  %v4561 = vpop.permute.xlu0 %4560
  %4562 = vrot.lane.b32.xlu0 %v4526, 110
  %v4563 = vpop.permute.xlu0 %4562
  %4564 = vrot.lane.b32.xlu0 %v4527, 110
  %v4565 = vpop.permute.xlu0 %4564
  %4566 = vrot.lane.b32.xlu0 %v4528, 110
  %v4567 = vpop.permute.xlu0 %4566
  %4568 = vrot.lane.b32.xlu0 %v4529, 110
  %v4569 = vpop.permute.xlu0 %4568
  %4570 = vrot.lane.b32.xlu0 %v4530, 110
  %v4571 = vpop.permute.xlu0 %4570
  %4572 = vrot.lane.b32.xlu0 %v4531, 110
  %v4573 = vpop.permute.xlu0 %4572
  %v4574 = vsel %vm748, %v4547, %v4549
  %v4575 = vsel %vm748, %v4549, %v4551
  %v4576 = vsel %vm748, %v4551, %v4553
  %v4577 = vsel %vm748, %v4553, %v4555
  %v4578 = vsel %vm748, %v4555, %v4557
  %v4579 = vsel %vm748, %v4557, %v4559
  %v4580 = vsel %vm748, %v4561, %v4563
  %v4581 = vsel %vm748, %v4563, %v4565
  %v4582 = vsel %vm748, %v4565, %v4567
  %v4583 = vsel %vm748, %v4567, %v4569
  %v4584 = vsel %vm748, %v4569, %v4571
  %v4585 = vsel %vm748, %v4571, %v4573
  %4598 = vst [vmem:[#allocation4 + $0x2a0] sm:$0xff] %v4574
  %4599 = vst [vmem:[#allocation4 + $0x2a8] sm:$0xff] %v4575
  %4600 = vst [vmem:[#allocation4 + $0x2b0] sm:$0xff] %v4576
  %4601 = vst [vmem:[#allocation4 + $0x2b8] sm:$0xff] %v4577
  %4602 = vst [vmem:[#allocation4 + $0x2c0] sm:$0xff] %v4578
  %4603 = vst [vmem:[#allocation4 + $0x2c8] sm:$0xff] %v4579
  %4604 = vst [vmem:[#allocation4 + $0x2d0] sm:$0xff] %v4580
  %4605 = vst [vmem:[#allocation4 + $0x2d8] sm:$0xff] %v4581
  %4606 = vst [vmem:[#allocation4 + $0x2e0] sm:$0xff] %v4582
  %4607 = vst [vmem:[#allocation4 + $0x2e8] sm:$0xff] %v4583
  %4608 = vst [vmem:[#allocation4 + $0x2f0] sm:$0xff] %v4584
  %4609 = vst [vmem:[#allocation4 + $0x2f8] sm:$0xff] %v4585
  %v4610 = vld [vmem:[#allocation2 + $0x8] sm:$0xff]
  %v4611 = vld [vmem:[#allocation2 + $0x10] sm:$0xff]
  %v4612 = vld [vmem:[#allocation2 + $0x18] sm:$0xff]
  %v4613 = vld [vmem:[#allocation2 + $0x20] sm:$0xff]
  %v4614 = vld [vmem:[#allocation2 + $0x28] sm:$0xff]
  %v4615 = vld [vmem:[#allocation2 + $0x30] sm:$0xff]
  %v4616 = vld [vmem:[#allocation2 + $0x38] sm:$0xff]
  %v4617 = vld [vmem:[#allocation2 + $0x48] sm:$0xff]
  %v4618 = vld [vmem:[#allocation2 + $0x50] sm:$0xff]
  %v4619 = vld [vmem:[#allocation2 + $0x58] sm:$0xff]
  %v4620 = vld [vmem:[#allocation2 + $0x60] sm:$0xff]
  %v4621 = vld [vmem:[#allocation2 + $0x68] sm:$0xff]
  %v4622 = vld [vmem:[#allocation2 + $0x70] sm:$0xff]
  %v4623 = vld [vmem:[#allocation2 + $0x78] sm:$0xff]
  %4638 = vrot.lane.b32.xlu0 %v4610, 109
  %v4639 = vpop.permute.xlu0 %4638
  %4640 = vrot.lane.b32.xlu0 %v4611, 109
  %v4641 = vpop.permute.xlu0 %4640
  %4642 = vrot.lane.b32.xlu0 %v4612, 109
  %v4643 = vpop.permute.xlu0 %4642
  %4644 = vrot.lane.b32.xlu0 %v4613, 109
  %v4645 = vpop.permute.xlu0 %4644
  %4646 = vrot.lane.b32.xlu0 %v4614, 109
  %v4647 = vpop.permute.xlu0 %4646
  %4648 = vrot.lane.b32.xlu0 %v4615, 109
  %v4649 = vpop.permute.xlu0 %4648
  %4650 = vrot.lane.b32.xlu0 %v4616, 109
  %v4651 = vpop.permute.xlu0 %4650
  %4652 = vrot.lane.b32.xlu0 %v4617, 109
  %v4653 = vpop.permute.xlu0 %4652
  %4654 = vrot.lane.b32.xlu0 %v4618, 109
  %v4655 = vpop.permute.xlu0 %4654
  %4656 = vrot.lane.b32.xlu0 %v4619, 109
  %v4657 = vpop.permute.xlu0 %4656
  %4658 = vrot.lane.b32.xlu0 %v4620, 109
  %v4659 = vpop.permute.xlu0 %4658
  %4660 = vrot.lane.b32.xlu0 %v4621, 109
  %v4661 = vpop.permute.xlu0 %4660
  %4662 = vrot.lane.b32.xlu0 %v4622, 109
  %v4663 = vpop.permute.xlu0 %4662
  %4664 = vrot.lane.b32.xlu0 %v4623, 109
  %v4665 = vpop.permute.xlu0 %4664
  %v4666 = vsel %vm841, %v4639, %v4641
  %v4667 = vsel %vm841, %v4641, %v4643
  %v4668 = vsel %vm841, %v4643, %v4645
  %v4669 = vsel %vm841, %v4645, %v4647
  %v4670 = vsel %vm841, %v4647, %v4649
  %v4671 = vsel %vm841, %v4649, %v4651
  %v4672 = vsel %vm841, %v4653, %v4655
  %v4673 = vsel %vm841, %v4655, %v4657
  %v4674 = vsel %vm841, %v4657, %v4659
  %v4675 = vsel %vm841, %v4659, %v4661
  %v4676 = vsel %vm841, %v4661, %v4663
  %v4677 = vsel %vm841, %v4663, %v4665
  %4690 = vst [vmem:[#allocation4 + $0x300] sm:$0xff] %v4666
  %4691 = vst [vmem:[#allocation4 + $0x308] sm:$0xff] %v4667
  %4692 = vst [vmem:[#allocation4 + $0x310] sm:$0xff] %v4668
  %4693 = vst [vmem:[#allocation4 + $0x318] sm:$0xff] %v4669
  %4694 = vst [vmem:[#allocation4 + $0x320] sm:$0xff] %v4670
  %4695 = vst [vmem:[#allocation4 + $0x328] sm:$0xff] %v4671
  %4696 = vst [vmem:[#allocation4 + $0x330] sm:$0xff] %v4672
  %4697 = vst [vmem:[#allocation4 + $0x338] sm:$0xff] %v4673
  %4698 = vst [vmem:[#allocation4 + $0x340] sm:$0xff] %v4674
  %4699 = vst [vmem:[#allocation4 + $0x348] sm:$0xff] %v4675
  %4700 = vst [vmem:[#allocation4 + $0x350] sm:$0xff] %v4676
  %4701 = vst [vmem:[#allocation4 + $0x358] sm:$0xff] %v4677
  %s4702 = scalar_lea.vmem %s1, 96
  %v4703 = vld [vmem:[%s4702] sm:$0xff]
  %v4704 = vld [vmem:[%s4702 + $0x8] sm:$0xff]
  %v4705 = vld [vmem:[%s4702 + $0x10] sm:$0xff]
  %v4706 = vld [vmem:[%s4702 + $0x18] sm:$0xff]
  %v4707 = vld [vmem:[#allocation4] sm:$0xff]
  %v4708 = vld [vmem:[#allocation4 + $0x8] sm:$0xff]
  %v4709 = vld [vmem:[#allocation4 + $0x10] sm:$0xff]
  %v4710 = vld [vmem:[#allocation4 + $0x18] sm:$0xff]
  %v4711 = vld [vmem:[#allocation4 + $0x20] sm:$0xff]
  %v4712 = vld [vmem:[#allocation4 + $0x28] sm:$0xff]
  %v4713 = vld [vmem:[#allocation4 + $0x30] sm:$0xff]
  %v4714 = vld [vmem:[#allocation4 + $0x38] sm:$0xff]
  %v4715 = vld [vmem:[#allocation4 + $0x40] sm:$0xff]
  %v4716 = vld [vmem:[#allocation4 + $0x48] sm:$0xff]
  %v4717 = vld [vmem:[#allocation4 + $0x50] sm:$0xff]
  %v4718 = vld [vmem:[#allocation4 + $0x58] sm:$0xff]
  %v4719 = vld [vmem:[#allocation4 + $0x60] sm:$0xff]
  %v4720 = vld [vmem:[#allocation4 + $0x68] sm:$0xff]
  %v4721 = vld [vmem:[#allocation4 + $0x70] sm:$0xff]
  %v4722 = vld [vmem:[#allocation4 + $0x78] sm:$0xff]
  %v4723 = vld [vmem:[#allocation4 + $0x80] sm:$0xff]
  %v4724 = vld [vmem:[#allocation4 + $0x88] sm:$0xff]
  %v4725 = vld [vmem:[#allocation4 + $0x90] sm:$0xff]
  %v4726 = vld [vmem:[#allocation4 + $0x98] sm:$0xff]
  %v4727 = vld [vmem:[#allocation4 + $0xa0] sm:$0xff]
  %v4728 = vld [vmem:[#allocation4 + $0xa8] sm:$0xff]
  %v4729 = vld [vmem:[#allocation4 + $0xb0] sm:$0xff]
  %v4730 = vld [vmem:[#allocation4 + $0xb8] sm:$0xff]
  %v4731 = vld [vmem:[#allocation4 + $0xc0] sm:$0xff]
  %v4732 = vld [vmem:[#allocation4 + $0xc8] sm:$0xff]
  %v4733 = vld [vmem:[#allocation4 + $0xd0] sm:$0xff]
  %v4734 = vld [vmem:[#allocation4 + $0xd8] sm:$0xff]
  %v4735 = vld [vmem:[#allocation4 + $0xe0] sm:$0xff]
  %v4736 = vld [vmem:[#allocation4 + $0xe8] sm:$0xff]
  %v4737 = vld [vmem:[#allocation4 + $0xf0] sm:$0xff]
  %v4738 = vld [vmem:[#allocation4 + $0xf8] sm:$0xff]
  %v4739 = vld [vmem:[#allocation4 + $0x100] sm:$0xff]
  %v4740 = vld [vmem:[#allocation4 + $0x108] sm:$0xff]
  %v4741 = vld [vmem:[#allocation4 + $0x110] sm:$0xff]
  %v4742 = vld [vmem:[#allocation4 + $0x118] sm:$0xff]
  %v4743 = vld [vmem:[#allocation4 + $0x120] sm:$0xff]
  %v4744 = vld [vmem:[#allocation4 + $0x128] sm:$0xff]
  %v4745 = vld [vmem:[#allocation4 + $0x130] sm:$0xff]
  %v4746 = vld [vmem:[#allocation4 + $0x138] sm:$0xff]
  %v4747 = vld [vmem:[#allocation4 + $0x140] sm:$0xff]
  %v4748 = vld [vmem:[#allocation4 + $0x148] sm:$0xff]
  %v4749 = vld [vmem:[#allocation4 + $0x150] sm:$0xff]
  %v4750 = vld [vmem:[#allocation4 + $0x158] sm:$0xff]
  %v4751 = vld [vmem:[#allocation4 + $0x160] sm:$0xff]
  %v4752 = vld [vmem:[#allocation4 + $0x168] sm:$0xff]
  %v4753 = vld [vmem:[#allocation4 + $0x170] sm:$0xff]
  %v4754 = vld [vmem:[#allocation4 + $0x178] sm:$0xff]
  %v4755 = vld [vmem:[#allocation4 + $0x180] sm:$0xff]
  %v4756 = vld [vmem:[#allocation4 + $0x188] sm:$0xff]
  %v4757 = vld [vmem:[#allocation4 + $0x190] sm:$0xff]
  %v4758 = vld [vmem:[#allocation4 + $0x198] sm:$0xff]
  %v4759 = vld [vmem:[#allocation4 + $0x1a0] sm:$0xff]
  %v4760 = vld [vmem:[#allocation4 + $0x1a8] sm:$0xff]
  %v4761 = vld [vmem:[#allocation4 + $0x1b0] sm:$0xff]
  %v4762 = vld [vmem:[#allocation4 + $0x1b8] sm:$0xff]
  %v4763 = vld [vmem:[#allocation4 + $0x1c0] sm:$0xff]
  %v4764 = vld [vmem:[#allocation4 + $0x1c8] sm:$0xff]
  %v4765 = vld [vmem:[#allocation4 + $0x1d0] sm:$0xff]
  %v4766 = vld [vmem:[#allocation4 + $0x1d8] sm:$0xff]
  %v4767 = vld [vmem:[#allocation4 + $0x1e0] sm:$0xff]
  %v4768 = vld [vmem:[#allocation4 + $0x1e8] sm:$0xff]
  %v4769 = vld [vmem:[#allocation4 + $0x1f0] sm:$0xff]
  %v4770 = vld [vmem:[#allocation4 + $0x1f8] sm:$0xff]
  %v4771 = vld [vmem:[#allocation4 + $0x200] sm:$0xff]
  %v4772 = vld [vmem:[#allocation4 + $0x208] sm:$0xff]
  %v4773 = vld [vmem:[#allocation4 + $0x210] sm:$0xff]
  %v4774 = vld [vmem:[#allocation4 + $0x218] sm:$0xff]
  %v4775 = vld [vmem:[#allocation4 + $0x220] sm:$0xff]
  %v4776 = vld [vmem:[#allocation4 + $0x228] sm:$0xff]
  %v4777 = vld [vmem:[#allocation4 + $0x230] sm:$0xff]
  %v4778 = vld [vmem:[#allocation4 + $0x238] sm:$0xff]
  %v4779 = vld [vmem:[#allocation4 + $0x240] sm:$0xff]
  %v4780 = vld [vmem:[#allocation4 + $0x248] sm:$0xff]
  %v4781 = vld [vmem:[#allocation4 + $0x250] sm:$0xff]
  %v4782 = vld [vmem:[#allocation4 + $0x258] sm:$0xff]
  %v4783 = vld [vmem:[#allocation4 + $0x260] sm:$0xff]
  %v4784 = vld [vmem:[#allocation4 + $0x268] sm:$0xff]
  %v4785 = vld [vmem:[#allocation4 + $0x270] sm:$0xff]
  %v4786 = vld [vmem:[#allocation4 + $0x278] sm:$0xff]
  %v4787 = vld [vmem:[#allocation4 + $0x280] sm:$0xff]
  %v4788 = vld [vmem:[#allocation4 + $0x288] sm:$0xff]
  %v4789 = vld [vmem:[#allocation4 + $0x290] sm:$0xff]
  %v4790 = vld [vmem:[#allocation4 + $0x298] sm:$0xff]
  %v4791 = vld [vmem:[#allocation4 + $0x2a0] sm:$0xff]
  %v4792 = vld [vmem:[#allocation4 + $0x2a8] sm:$0xff]
  %v4793 = vld [vmem:[#allocation4 + $0x2b0] sm:$0xff]
  %v4794 = vld [vmem:[#allocation4 + $0x2b8] sm:$0xff]
  %v4795 = vld [vmem:[#allocation4 + $0x2c0] sm:$0xff]
  %v4796 = vld [vmem:[#allocation4 + $0x2c8] sm:$0xff]
  %v4797 = vld [vmem:[#allocation4 + $0x2d0] sm:$0xff]
  %v4798 = vld [vmem:[#allocation4 + $0x2d8] sm:$0xff]
  %v4799 = vld [vmem:[#allocation4 + $0x2e0] sm:$0xff]
  %v4800 = vld [vmem:[#allocation4 + $0x2e8] sm:$0xff]
  %v4801 = vld [vmem:[#allocation4 + $0x2f0] sm:$0xff]
  %v4802 = vld [vmem:[#allocation4 + $0x2f8] sm:$0xff]
  %v4803 = vld [vmem:[#allocation4 + $0x300] sm:$0xff]
  %v4804 = vld [vmem:[#allocation4 + $0x308] sm:$0xff]
  %v4805 = vld [vmem:[#allocation4 + $0x310] sm:$0xff]
  %v4806 = vld [vmem:[#allocation4 + $0x318] sm:$0xff]
  %v4807 = vld [vmem:[#allocation4 + $0x320] sm:$0xff]
  %v4808 = vld [vmem:[#allocation4 + $0x328] sm:$0xff]
  %v4809 = vld [vmem:[#allocation4 + $0x330] sm:$0xff]
  %v4810 = vld [vmem:[#allocation4 + $0x338] sm:$0xff]
  %v4811 = vld [vmem:[#allocation4 + $0x340] sm:$0xff]
  %v4812 = vld [vmem:[#allocation4 + $0x348] sm:$0xff]
  %v4813 = vld [vmem:[#allocation4 + $0x350] sm:$0xff]
  %v4814 = vld [vmem:[#allocation4 + $0x358] sm:$0xff]
  %v4815 = vld [vmem:[#allocation4 + $0x360] sm:$0xff]
  %v4816 = vld [vmem:[#allocation4 + $0x368] sm:$0xff]
  %v4817 = vld [vmem:[#allocation4 + $0x370] sm:$0xff]
  %v4818 = vld [vmem:[#allocation4 + $0x378] sm:$0xff]
  %v4819 = vld [vmem:[#allocation4 + $0x380] sm:$0xff]
  %v4820 = vld [vmem:[#allocation4 + $0x388] sm:$0xff]
  %v4821 = vld [vmem:[#allocation4 + $0x390] sm:$0xff]
  %v4822 = vld [vmem:[#allocation4 + $0x398] sm:$0xff]
  %v4823 = vld [vmem:[#allocation4 + $0x3a0] sm:$0xff]
  %v4824 = vld [vmem:[#allocation4 + $0x3a8] sm:$0xff]
  %v4825 = vld [vmem:[#allocation4 + $0x3b0] sm:$0xff]
  %v4826 = vld [vmem:[#allocation4 + $0x3b8] sm:$0xff]
  %v4827 = vld [vmem:[#allocation4 + $0x3c0] sm:$0xff]
  %v4828 = vld [vmem:[#allocation4 + $0x3c8] sm:$0xff]
  %v4829 = vld [vmem:[#allocation4 + $0x3d0] sm:$0xff]
  %v4830 = vld [vmem:[#allocation4 + $0x3d8] sm:$0xff]
  %v4831 = vld [vmem:[#allocation4 + $0x3e0] sm:$0xff]
  %v4832 = vld [vmem:[#allocation4 + $0x3e8] sm:$0xff]
  %v4833 = vld [vmem:[#allocation4 + $0x3f0] sm:$0xff]
  %v4834 = vld [vmem:[#allocation4 + $0x3f8] sm:$0xff]
  %v4835 = vld [vmem:[#allocation4 + $0x400] sm:$0xff]
  %v4836 = vld [vmem:[#allocation4 + $0x408] sm:$0xff]
  %v4837 = vld [vmem:[#allocation4 + $0x410] sm:$0xff]
  %v4838 = vld [vmem:[#allocation4 + $0x418] sm:$0xff]
  %v4839 = vld [vmem:[#allocation4 + $0x420] sm:$0xff]
  %v4840 = vld [vmem:[#allocation4 + $0x428] sm:$0xff]
  %v4841 = vld [vmem:[#allocation4 + $0x430] sm:$0xff]
  %v4842 = vld [vmem:[#allocation4 + $0x438] sm:$0xff]
  %v4843 = vld [vmem:[#allocation4 + $0x440] sm:$0xff]
  %v4844 = vld [vmem:[#allocation4 + $0x448] sm:$0xff]
  %v4845 = vld [vmem:[#allocation4 + $0x450] sm:$0xff]
  %v4846 = vld [vmem:[#allocation4 + $0x458] sm:$0xff]
  %v4847 = vld [vmem:[#allocation4 + $0x460] sm:$0xff]
  %v4848 = vld [vmem:[#allocation4 + $0x468] sm:$0xff]
  %v4849 = vld [vmem:[#allocation4 + $0x470] sm:$0xff]
  %v4850 = vld [vmem:[#allocation4 + $0x478] sm:$0xff]
  %v4851 = vld [vmem:[#allocation4 + $0x480] sm:$0xff]
  %v4852 = vld [vmem:[#allocation4 + $0x488] sm:$0xff]
  %v4853 = vld [vmem:[#allocation4 + $0x490] sm:$0xff]
  %v4854 = vld [vmem:[#allocation4 + $0x498] sm:$0xff]
  %v4855 = vld [vmem:[#allocation4 + $0x4a0] sm:$0xff]
  %v4856 = vld [vmem:[#allocation4 + $0x4a8] sm:$0xff]
  %v4857 = vld [vmem:[#allocation4 + $0x4b0] sm:$0xff]
  %v4858 = vld [vmem:[#allocation4 + $0x4b8] sm:$0xff]
  %v4859 = vld [vmem:[#allocation4 + $0x4c0] sm:$0xff]
  %v4860 = vld [vmem:[#allocation4 + $0x4c8] sm:$0xff]
  %v4861 = vld [vmem:[#allocation4 + $0x4d0] sm:$0xff]
  %v4862 = vld [vmem:[#allocation4 + $0x4d8] sm:$0xff]
  %v4863 = vld [vmem:[#allocation4 + $0x4e0] sm:$0xff]
  %v4864 = vld [vmem:[#allocation4 + $0x4e8] sm:$0xff]
  %v4865 = vld [vmem:[#allocation4 + $0x4f0] sm:$0xff]
  %v4866 = vld [vmem:[#allocation4 + $0x4f8] sm:$0xff]
  %v4867 = vld [vmem:[#allocation4 + $0x500] sm:$0xff]
  %v4868 = vld [vmem:[#allocation4 + $0x508] sm:$0xff]
  %v4869 = vld [vmem:[#allocation4 + $0x510] sm:$0xff]
  %v4870 = vld [vmem:[#allocation4 + $0x518] sm:$0xff]
  %v4871 = vld [vmem:[#allocation4 + $0x520] sm:$0xff]
  %v4872 = vld [vmem:[#allocation4 + $0x528] sm:$0xff]
  %v4873 = vld [vmem:[#allocation4 + $0x530] sm:$0xff]
  %v4874 = vld [vmem:[#allocation4 + $0x538] sm:$0xff]
  %v4875 = vld [vmem:[#allocation4 + $0x540] sm:$0xff]
  %v4876 = vld [vmem:[#allocation4 + $0x548] sm:$0xff]
  %v4877 = vld [vmem:[#allocation4 + $0x550] sm:$0xff]
  %v4878 = vld [vmem:[#allocation4 + $0x558] sm:$0xff]
  %v4879 = vld [vmem:[#allocation4 + $0x560] sm:$0xff]
  %v4880 = vld [vmem:[#allocation4 + $0x568] sm:$0xff]
  %v4881 = vld [vmem:[#allocation4 + $0x570] sm:$0xff]
  %v4882 = vld [vmem:[#allocation4 + $0x578] sm:$0xff]
  %v4883 = vld [vmem:[#allocation4 + $0x580] sm:$0xff]
  %v4884 = vld [vmem:[#allocation4 + $0x588] sm:$0xff]
  %v4885 = vld [vmem:[#allocation4 + $0x590] sm:$0xff]
  %v4886 = vld [vmem:[#allocation4 + $0x598] sm:$0xff]
  %v4887 = vld [vmem:[#allocation4 + $0x5a0] sm:$0xff]
  %v4888 = vld [vmem:[#allocation4 + $0x5a8] sm:$0xff]
  %v4889 = vld [vmem:[#allocation4 + $0x5b0] sm:$0xff]
  %v4890 = vld [vmem:[#allocation4 + $0x5b8] sm:$0xff]
  %v4891 = vld [vmem:[#allocation4 + $0x5c0] sm:$0xff]
  %v4892 = vld [vmem:[#allocation4 + $0x5c8] sm:$0xff]
  %v4893 = vld [vmem:[#allocation4 + $0x5d0] sm:$0xff]
  %v4894 = vld [vmem:[#allocation4 + $0x5d8] sm:$0xff]
  %v4895 = vld [vmem:[#allocation4 + $0x5e0] sm:$0xff]
  %v4896 = vld [vmem:[#allocation4 + $0x5e8] sm:$0xff]
  %v4897 = vld [vmem:[#allocation4 + $0x5f0] sm:$0xff]
  %v4898 = vld [vmem:[#allocation4 + $0x5f8] sm:$0xff]
  %s4899 = scalar_lea.vmem %s2, 48
  %v4900 = vld [vmem:[%s4899] sm:$0xff]
  %v4901 = vld [vmem:[%s4899 + $0x8] sm:$0xff]
  %4903 = vset.pattern.permute.xlu0 0
  %4904 = vperm.xlu0 %4903, %v4900
  %v4905 = vpop.permute.xlu0 %4904
  %4908 = vset.pattern.permute.xlu0 0
  %4909 = vperm.xlu0 %4908, %v4901
  %v4910 = vpop.permute.xlu0 %4909
  %4912 = vmatprep.subr.mxu0 %v4798
  %4913 = vmatpush1.msra.mxu0 %v4797
  %4914 = vmatprep.subr.mxu0 %v4792
  %4915 = vmatpush1.msra.mxu0 %v4791
  %4916 = vmatprep.subr.mxu0 %v4786
  %4917 = vmatpush1.msra.mxu0 %v4785
  %4918 = vmatprep.subr.mxu0 %v4780
  %4919 = vmatpush1.msra.mxu0 %v4779
  %4920 = vmatprep.subr.mxu0 %v4774
  %4921 = vmatpush1.msra.mxu0 %v4773
  %4922 = vmatprep.subr.mxu0 %v4768
  %4923 = vmatpush1.msra.mxu0 %v4767
  %4924 = vmatprep.subr.mxu0 %v4762
  %4925 = vmatpush1.msra.mxu0 %v4761
  %4926 = vmatprep.subr.mxu0 %v4756
  %4927 = vmatpush1.msra.mxu0 %v4755
  %4928 = vmatprep.subr.mxu0 %v4750
  %4929 = vmatpush1.msra.mxu0 %v4749
  %4930 = vmatprep.subr.mxu0 %v4744
  %4931 = vmatpush1.msra.mxu0 %v4743
  %4932 = vmatprep.subr.mxu0 %v4738
  %4933 = vmatpush1.msra.mxu0 %v4737
  %4934 = vmatprep.subr.mxu0 %v4732
  %4935 = vmatpush1.msra.mxu0 %v4731
  %4936 = vmatprep.subr.mxu0 %v4726
  %4937 = vmatpush1.msra.mxu0 %v4725
  %4938 = vmatprep.subr.mxu0 %v4720
  %4939 = vmatpush1.msra.mxu0 %v4719
  %4940 = vmatprep.subr.mxu0 %v4714
  %4941 = vmatpush1.msra.mxu0 %v4713
  %4942 = vmatprep.subr.mxu0 %v4708
  %4943 = vmatpush1.msra.mxu0 %v4707
  %4944 = vmatprep.subr.mxu0 %v4894
  %4945 = vmatpush2.msra.mxu0 %v4893
  %4946 = vmatprep.subr.mxu0 %v4888
  %4947 = vmatpush2.msra.mxu0 %v4887
  %4948 = vmatprep.subr.mxu0 %v4882
  %4949 = vmatpush2.msra.mxu0 %v4881
  %4950 = vmatprep.subr.mxu0 %v4876
  %4951 = vmatpush2.msra.mxu0 %v4875
  %4952 = vmatprep.subr.mxu0 %v4870
  %4953 = vmatpush2.msra.mxu0 %v4869
  %4954 = vmatprep.subr.mxu0 %v4864
  %4955 = vmatpush2.msra.mxu0 %v4863
  %4956 = vmatprep.subr.mxu0 %v4858
  %4957 = vmatpush2.msra.mxu0 %v4857
  %4958 = vmatprep.subr.mxu0 %v4852
  %4959 = vmatpush2.msra.mxu0 %v4851
  %4960 = vmatprep.subr.mxu0 %v4846
  %4961 = vmatpush2.msra.mxu0 %v4845
  %4962 = vmatprep.subr.mxu0 %v4840
  %4963 = vmatpush2.msra.mxu0 %v4839
  %4964 = vmatprep.subr.mxu0 %v4834
  %4965 = vmatpush2.msra.mxu0 %v4833
  %4966 = vmatprep.subr.mxu0 %v4828
  %4967 = vmatpush2.msra.mxu0 %v4827
  %4968 = vmatprep.subr.mxu0 %v4822
  %4969 = vmatpush2.msra.mxu0 %v4821
  %4970 = vmatprep.subr.mxu0 %v4816
  %4971 = vmatpush2.msra.mxu0 %v4815
  %4972 = vmatprep.subr.mxu0 %v4810
  %4973 = vmatpush2.msra.mxu0 %v4809
  %4974 = vmatprep.subr.mxu0 %v4804
  %4975 = vmatpush2.msra.mxu0 %v4803
  %4976 = vmatprep.mubr.f32.mxu0 %v4704
  %4977 = vmatmul.mubr.f32.gmra.mxu0 %v4703
  %v4978 = vpop.f32.mrf.mxu0
  %v4979 = vadd.f32 %v4905, %v4978
  %v4980 = vpop.f32.mrf.mxu0
  %v4981 = vadd.f32 %v4905, %v4980
  %4982 = vmatprep.mubr.f32.mxu0 %v4706
  %4983 = vmatmul.mubr.f32.gmra.mxu0 %v4705
  %v4984 = vpop.f32.mrf.mxu0
  %v4985 = vadd.f32 %v4910, %v4984
  %v4986 = vpop.f32.mrf.mxu0
  %v4987 = vadd.f32 %v4910, %v4986
  %4988 = vdwg.mxu0
  %4989 = vmatprep.subr.mxu0 %v4800
  %4990 = vmatpush1.msra.mxu0 %v4799
  %4991 = vmatprep.subr.mxu0 %v4794
  %4992 = vmatpush1.msra.mxu0 %v4793
  %4993 = vmatprep.subr.mxu0 %v4788
  %4994 = vmatpush1.msra.mxu0 %v4787
  %4995 = vmatprep.subr.mxu0 %v4782
  %4996 = vmatpush1.msra.mxu0 %v4781
  %4997 = vmatprep.subr.mxu0 %v4776
  %4998 = vmatpush1.msra.mxu0 %v4775
  %4999 = vmatprep.subr.mxu0 %v4770
  %5000 = vmatpush1.msra.mxu0 %v4769
  %5001 = vmatprep.subr.mxu0 %v4764
  %5002 = vmatpush1.msra.mxu0 %v4763
  %5003 = vmatprep.subr.mxu0 %v4758
  %5004 = vmatpush1.msra.mxu0 %v4757
  %5005 = vmatprep.subr.mxu0 %v4752
  %5006 = vmatpush1.msra.mxu0 %v4751
  %5007 = vmatprep.subr.mxu0 %v4746
  %5008 = vmatpush1.msra.mxu0 %v4745
  %5009 = vmatprep.subr.mxu0 %v4740
  %5010 = vmatpush1.msra.mxu0 %v4739
  %5011 = vmatprep.subr.mxu0 %v4734
  %5012 = vmatpush1.msra.mxu0 %v4733
  %5013 = vmatprep.subr.mxu0 %v4728
  %5014 = vmatpush1.msra.mxu0 %v4727
  %5015 = vmatprep.subr.mxu0 %v4722
  %5016 = vmatpush1.msra.mxu0 %v4721
  %5017 = vmatprep.subr.mxu0 %v4716
  %5018 = vmatpush1.msra.mxu0 %v4715
  %5019 = vmatprep.subr.mxu0 %v4710
  %5020 = vmatpush1.msra.mxu0 %v4709
  %5021 = vmatprep.subr.mxu0 %v4896
  %5022 = vmatpush2.msra.mxu0 %v4895
  %5023 = vmatprep.subr.mxu0 %v4890
  %5024 = vmatpush2.msra.mxu0 %v4889
  %5025 = vmatprep.subr.mxu0 %v4884
  %5026 = vmatpush2.msra.mxu0 %v4883
  %5027 = vmatprep.subr.mxu0 %v4878
  %5028 = vmatpush2.msra.mxu0 %v4877
  %5029 = vmatprep.subr.mxu0 %v4872
  %5030 = vmatpush2.msra.mxu0 %v4871
  %5031 = vmatprep.subr.mxu0 %v4866
  %5032 = vmatpush2.msra.mxu0 %v4865
  %5033 = vmatprep.subr.mxu0 %v4860
  %5034 = vmatpush2.msra.mxu0 %v4859
  %5035 = vmatprep.subr.mxu0 %v4854
  %5036 = vmatpush2.msra.mxu0 %v4853
  %5037 = vmatprep.subr.mxu0 %v4848
  %5038 = vmatpush2.msra.mxu0 %v4847
  %5039 = vmatprep.subr.mxu0 %v4842
  %5040 = vmatpush2.msra.mxu0 %v4841
  %5041 = vmatprep.subr.mxu0 %v4836
  %5042 = vmatpush2.msra.mxu0 %v4835
  %5043 = vmatprep.subr.mxu0 %v4830
  %5044 = vmatpush2.msra.mxu0 %v4829
  %5045 = vmatprep.subr.mxu0 %v4824
  %5046 = vmatpush2.msra.mxu0 %v4823
  %5047 = vmatprep.subr.mxu0 %v4818
  %5048 = vmatpush2.msra.mxu0 %v4817
  %5049 = vmatprep.subr.mxu0 %v4812
  %5050 = vmatpush2.msra.mxu0 %v4811
  %5051 = vmatprep.subr.mxu0 %v4806
  %5052 = vmatpush2.msra.mxu0 %v4805
  %5053 = vmatprep.mubr.f32.mxu0 %v4704
  %5054 = vmatmul.mubr.f32.gmra.mxu0 %v4703
  %v5055 = vpop.f32.mrf.mxu0
  %v5056 = vadd.f32 %v4905, %v5055
  %v5057 = vpop.f32.mrf.mxu0
  %v5058 = vadd.f32 %v4905, %v5057
  %5059 = vmatprep.mubr.f32.mxu0 %v4706
  %5060 = vmatmul.mubr.f32.gmra.mxu0 %v4705
  %v5061 = vpop.f32.mrf.mxu0
  %v5062 = vadd.f32 %v4910, %v5061
  %v5063 = vpop.f32.mrf.mxu0
  %v5064 = vadd.f32 %v4910, %v5063
  %5065 = vdwg.mxu0
  %5066 = vmatprep.subr.mxu0 %v4802
  %5067 = vmatpush1.msra.mxu0 %v4801
  %5068 = vmatprep.subr.mxu0 %v4796
  %5069 = vmatpush1.msra.mxu0 %v4795
  %5070 = vmatprep.subr.mxu0 %v4790
  %5071 = vmatpush1.msra.mxu0 %v4789
  %5072 = vmatprep.subr.mxu0 %v4784
  %5073 = vmatpush1.msra.mxu0 %v4783
  %5074 = vmatprep.subr.mxu0 %v4778
  %5075 = vmatpush1.msra.mxu0 %v4777
  %5076 = vmatprep.subr.mxu0 %v4772
  %5077 = vmatpush1.msra.mxu0 %v4771
  %5078 = vmatprep.subr.mxu0 %v4766
  %5079 = vmatpush1.msra.mxu0 %v4765
  %5080 = vmatprep.subr.mxu0 %v4760
  %5081 = vmatpush1.msra.mxu0 %v4759
  %5082 = vmatprep.subr.mxu0 %v4754
  %5083 = vmatpush1.msra.mxu0 %v4753
  %5084 = vmatprep.subr.mxu0 %v4748
  %5085 = vmatpush1.msra.mxu0 %v4747
  %5086 = vmatprep.subr.mxu0 %v4742
  %5087 = vmatpush1.msra.mxu0 %v4741
  %5088 = vmatprep.subr.mxu0 %v4736
  %5089 = vmatpush1.msra.mxu0 %v4735
  %5090 = vmatprep.subr.mxu0 %v4730
  %5091 = vmatpush1.msra.mxu0 %v4729
  %5092 = vmatprep.subr.mxu0 %v4724
  %5093 = vmatpush1.msra.mxu0 %v4723
  %5094 = vmatprep.subr.mxu0 %v4718
  %5095 = vmatpush1.msra.mxu0 %v4717
  %5096 = vmatprep.subr.mxu0 %v4712
  %5097 = vmatpush1.msra.mxu0 %v4711
  %5098 = vmatprep.subr.mxu0 %v4898
  %5099 = vmatpush2.msra.mxu0 %v4897
  %5100 = vmatprep.subr.mxu0 %v4892
  %5101 = vmatpush2.msra.mxu0 %v4891
  %5102 = vmatprep.subr.mxu0 %v4886
  %5103 = vmatpush2.msra.mxu0 %v4885
  %5104 = vmatprep.subr.mxu0 %v4880
  %5105 = vmatpush2.msra.mxu0 %v4879
  %5106 = vmatprep.subr.mxu0 %v4874
  %5107 = vmatpush2.msra.mxu0 %v4873
  %5108 = vmatprep.subr.mxu0 %v4868
  %5109 = vmatpush2.msra.mxu0 %v4867
  %5110 = vmatprep.subr.mxu0 %v4862
  %5111 = vmatpush2.msra.mxu0 %v4861
  %5112 = vmatprep.subr.mxu0 %v4856
  %5113 = vmatpush2.msra.mxu0 %v4855
  %5114 = vmatprep.subr.mxu0 %v4850
  %5115 = vmatpush2.msra.mxu0 %v4849
  %5116 = vmatprep.subr.mxu0 %v4844
  %5117 = vmatpush2.msra.mxu0 %v4843
  %5118 = vmatprep.subr.mxu0 %v4838
  %5119 = vmatpush2.msra.mxu0 %v4837
  %5120 = vmatprep.subr.mxu0 %v4832
  %5121 = vmatpush2.msra.mxu0 %v4831
  %5122 = vmatprep.subr.mxu0 %v4826
  %5123 = vmatpush2.msra.mxu0 %v4825
  %5124 = vmatprep.subr.mxu0 %v4820
  %5125 = vmatpush2.msra.mxu0 %v4819
  %5126 = vmatprep.subr.mxu0 %v4814
  %5127 = vmatpush2.msra.mxu0 %v4813
  %5128 = vmatprep.subr.mxu0 %v4808
  %5129 = vmatpush2.msra.mxu0 %v4807
  %5130 = vmatprep.mubr.f32.mxu0 %v4704
  %5131 = vmatmul.mubr.f32.gmra.mxu0 %v4703
  %v5132 = vpop.f32.mrf.mxu0
  %v5133 = vadd.f32 %v4905, %v5132
  %v5134 = vpop.f32.mrf.mxu0
  %v5135 = vadd.f32 %v4905, %v5134
  %5136 = vmatprep.mubr.f32.mxu0 %v4706
  %5137 = vmatmul.mubr.f32.gmra.mxu0 %v4705
  %v5138 = vpop.f32.mrf.mxu0
  %v5139 = vadd.f32 %v4910, %v5138
  %v5140 = vpop.f32.mrf.mxu0
  %v5141 = vadd.f32 %v4910, %v5140
  %5142 = vdwg.mxu0
  %v5143 = vadd.f32 %v4979, %v3930
  %v5144 = vadd.f32 %v4981, %v3931
  %v5145 = vadd.f32 %v5056, %v3932
  %v5146 = vadd.f32 %v5058, %v3933
  %v5147 = vadd.f32 %v5133, %v3934
  %v5148 = vadd.f32 %v5135, %v3935
  %v5149 = vadd.f32 %v4985, %v3936
  %v5150 = vadd.f32 %v4987, %v3937
  %v5151 = vadd.f32 %v5062, %v3938
  %v5152 = vadd.f32 %v5064, %v3939
  %v5153 = vadd.f32 %v5139, %v3940
  %v5154 = vadd.f32 %v5141, %v3941
  %v5155 = vmul.f32 %v5143, %v1357
  %v5156 = vmul.f32 %v5144, %v1361
  %v5157 = vmul.f32 %v5145, %v1365
  %v5158 = vmul.f32 %v5146, %v1369
  %v5159 = vmul.f32 %v5147, %v1373
  %v5160 = vmul.f32 %v5148, %v1377
  %v5161 = vmul.f32 %v5149, %v1357
  %v5162 = vmul.f32 %v5150, %v1361
  %v5163 = vmul.f32 %v5151, %v1365
  %v5164 = vmul.f32 %v5152, %v1369
  %v5165 = vmul.f32 %v5153, %v1373
  %v5166 = vmul.f32 %v5154, %v1377
  %5167 = vst [vmem:[#allocation3 + $0x8] sm:$0xff] %v5155
  %5168 = vst [vmem:[#allocation3 + $0x10] sm:$0xff] %v5156
  %5169 = vst [vmem:[#allocation3 + $0x18] sm:$0xff] %v5157
  %5170 = vst [vmem:[#allocation3 + $0x20] sm:$0xff] %v5158
  %5171 = vst [vmem:[#allocation3 + $0x28] sm:$0xff] %v5159
  %5172 = vst [vmem:[#allocation3 + $0x30] sm:$0xff] %v5160
  %5173 = vst [vmem:[#allocation3 + $0x48] sm:$0xff] %v5161
  %5174 = vst [vmem:[#allocation3 + $0x50] sm:$0xff] %v5162
  %5175 = vst [vmem:[#allocation3 + $0x58] sm:$0xff] %v5163
  %5176 = vst [vmem:[#allocation3 + $0x60] sm:$0xff] %v5164
  %5177 = vst [vmem:[#allocation3 + $0x68] sm:$0xff] %v5165
  %5178 = vst [vmem:[#allocation3 + $0x70] sm:$0xff] %v5166
  %v5179 = vld [vmem:[#allocation3] sm:$0xff]
  %v5180 = vld [vmem:[#allocation3 + $0x8] sm:$0xff]
  %v5181 = vld [vmem:[#allocation3 + $0x10] sm:$0xff]
  %v5182 = vld [vmem:[#allocation3 + $0x18] sm:$0xff]
  %v5183 = vld [vmem:[#allocation3 + $0x20] sm:$0xff]
  %v5184 = vld [vmem:[#allocation3 + $0x28] sm:$0xff]
  %v5185 = vld [vmem:[#allocation3 + $0x30] sm:$0xff]
  %v5186 = vld [vmem:[#allocation3 + $0x40] sm:$0xff]
  %v5187 = vld [vmem:[#allocation3 + $0x48] sm:$0xff]
  %v5188 = vld [vmem:[#allocation3 + $0x50] sm:$0xff]
  %v5189 = vld [vmem:[#allocation3 + $0x58] sm:$0xff]
  %v5190 = vld [vmem:[#allocation3 + $0x60] sm:$0xff]
  %v5191 = vld [vmem:[#allocation3 + $0x68] sm:$0xff]
  %v5192 = vld [vmem:[#allocation3 + $0x70] sm:$0xff]
  %5207 = vrot.lane.b32.xlu0 %v5179, 19
  %v5208 = vpop.permute.xlu0 %5207
  %5209 = vrot.lane.b32.xlu0 %v5180, 19
  %v5210 = vpop.permute.xlu0 %5209
  %5211 = vrot.lane.b32.xlu0 %v5181, 19
  %v5212 = vpop.permute.xlu0 %5211
  %5213 = vrot.lane.b32.xlu0 %v5182, 19
  %v5214 = vpop.permute.xlu0 %5213
  %5215 = vrot.lane.b32.xlu0 %v5183, 19
  %v5216 = vpop.permute.xlu0 %5215
  %5217 = vrot.lane.b32.xlu0 %v5184, 19
  %v5218 = vpop.permute.xlu0 %5217
  %5219 = vrot.lane.b32.xlu0 %v5185, 19
  %v5220 = vpop.permute.xlu0 %5219
  %5221 = vrot.lane.b32.xlu0 %v5186, 19
  %v5222 = vpop.permute.xlu0 %5221
  %5223 = vrot.lane.b32.xlu0 %v5187, 19
  %v5224 = vpop.permute.xlu0 %5223
  %5225 = vrot.lane.b32.xlu0 %v5188, 19
  %v5226 = vpop.permute.xlu0 %5225
  %5227 = vrot.lane.b32.xlu0 %v5189, 19
  %v5228 = vpop.permute.xlu0 %5227
  %5229 = vrot.lane.b32.xlu0 %v5190, 19
  %v5230 = vpop.permute.xlu0 %5229
  %5231 = vrot.lane.b32.xlu0 %v5191, 19
  %v5232 = vpop.permute.xlu0 %5231
  %5233 = vrot.lane.b32.xlu0 %v5192, 19
  %v5234 = vpop.permute.xlu0 %5233
  %v5235 = vsel %vm166, %v5208, %v5210
  %v5236 = vsel %vm166, %v5210, %v5212
  %v5237 = vsel %vm166, %v5212, %v5214
  %v5238 = vsel %vm166, %v5214, %v5216
  %v5239 = vsel %vm166, %v5216, %v5218
  %v5240 = vsel %vm166, %v5218, %v5220
  %v5241 = vsel %vm166, %v5222, %v5224
  %v5242 = vsel %vm166, %v5224, %v5226
  %v5243 = vsel %vm166, %v5226, %v5228
  %v5244 = vsel %vm166, %v5228, %v5230
  %v5245 = vsel %vm166, %v5230, %v5232
  %v5246 = vsel %vm166, %v5232, %v5234
  %5259 = vst [vmem:[#allocation4] sm:$0xff] %v5235
  %5260 = vst [vmem:[#allocation4 + $0x8] sm:$0xff] %v5236
  %5261 = vst [vmem:[#allocation4 + $0x10] sm:$0xff] %v5237
  %5262 = vst [vmem:[#allocation4 + $0x18] sm:$0xff] %v5238
  %5263 = vst [vmem:[#allocation4 + $0x20] sm:$0xff] %v5239
  %5264 = vst [vmem:[#allocation4 + $0x28] sm:$0xff] %v5240
  %5265 = vst [vmem:[#allocation4 + $0x30] sm:$0xff] %v5241
  %5266 = vst [vmem:[#allocation4 + $0x38] sm:$0xff] %v5242
  %5267 = vst [vmem:[#allocation4 + $0x40] sm:$0xff] %v5243
  %5268 = vst [vmem:[#allocation4 + $0x48] sm:$0xff] %v5244
  %5269 = vst [vmem:[#allocation4 + $0x50] sm:$0xff] %v5245
  %5270 = vst [vmem:[#allocation4 + $0x58] sm:$0xff] %v5246
  %v5271 = vld [vmem:[#allocation3] sm:$0xff]
  %v5272 = vld [vmem:[#allocation3 + $0x8] sm:$0xff]
  %v5273 = vld [vmem:[#allocation3 + $0x10] sm:$0xff]
  %v5274 = vld [vmem:[#allocation3 + $0x18] sm:$0xff]
  %v5275 = vld [vmem:[#allocation3 + $0x20] sm:$0xff]
  %v5276 = vld [vmem:[#allocation3 + $0x28] sm:$0xff]
  %v5277 = vld [vmem:[#allocation3 + $0x30] sm:$0xff]
  %v5278 = vld [vmem:[#allocation3 + $0x40] sm:$0xff]
  %v5279 = vld [vmem:[#allocation3 + $0x48] sm:$0xff]
  %v5280 = vld [vmem:[#allocation3 + $0x50] sm:$0xff]
  %v5281 = vld [vmem:[#allocation3 + $0x58] sm:$0xff]
  %v5282 = vld [vmem:[#allocation3 + $0x60] sm:$0xff]
  %v5283 = vld [vmem:[#allocation3 + $0x68] sm:$0xff]
  %v5284 = vld [vmem:[#allocation3 + $0x70] sm:$0xff]
  %5299 = vrot.lane.b32.xlu0 %v5271, 18
  %v5300 = vpop.permute.xlu0 %5299
  %5301 = vrot.lane.b32.xlu0 %v5272, 18
  %v5302 = vpop.permute.xlu0 %5301
  %5303 = vrot.lane.b32.xlu0 %v5273, 18
  %v5304 = vpop.permute.xlu0 %5303
  %5305 = vrot.lane.b32.xlu0 %v5274, 18
  %v5306 = vpop.permute.xlu0 %5305
  %5307 = vrot.lane.b32.xlu0 %v5275, 18
  %v5308 = vpop.permute.xlu0 %5307
  %5309 = vrot.lane.b32.xlu0 %v5276, 18
  %v5310 = vpop.permute.xlu0 %5309
  %5311 = vrot.lane.b32.xlu0 %v5277, 18
  %v5312 = vpop.permute.xlu0 %5311
  %5313 = vrot.lane.b32.xlu0 %v5278, 18
  %v5314 = vpop.permute.xlu0 %5313
  %5315 = vrot.lane.b32.xlu0 %v5279, 18
  %v5316 = vpop.permute.xlu0 %5315
  %5317 = vrot.lane.b32.xlu0 %v5280, 18
  %v5318 = vpop.permute.xlu0 %5317
  %5319 = vrot.lane.b32.xlu0 %v5281, 18
  %v5320 = vpop.permute.xlu0 %5319
  %5321 = vrot.lane.b32.xlu0 %v5282, 18
  %v5322 = vpop.permute.xlu0 %5321
  %5323 = vrot.lane.b32.xlu0 %v5283, 18
  %v5324 = vpop.permute.xlu0 %5323
  %5325 = vrot.lane.b32.xlu0 %v5284, 18
  %v5326 = vpop.permute.xlu0 %5325
  %v5327 = vsel %vm259, %v5300, %v5302
  %v5328 = vsel %vm259, %v5302, %v5304
  %v5329 = vsel %vm259, %v5304, %v5306
  %v5330 = vsel %vm259, %v5306, %v5308
  %v5331 = vsel %vm259, %v5308, %v5310
  %v5332 = vsel %vm259, %v5310, %v5312
  %v5333 = vsel %vm259, %v5314, %v5316
  %v5334 = vsel %vm259, %v5316, %v5318
  %v5335 = vsel %vm259, %v5318, %v5320
  %v5336 = vsel %vm259, %v5320, %v5322
  %v5337 = vsel %vm259, %v5322, %v5324
  %v5338 = vsel %vm259, %v5324, %v5326
  %5351 = vst [vmem:[#allocation4 + $0x60] sm:$0xff] %v5327
  %5352 = vst [vmem:[#allocation4 + $0x68] sm:$0xff] %v5328
  %5353 = vst [vmem:[#allocation4 + $0x70] sm:$0xff] %v5329
  %5354 = vst [vmem:[#allocation4 + $0x78] sm:$0xff] %v5330
  %5355 = vst [vmem:[#allocation4 + $0x80] sm:$0xff] %v5331
  %5356 = vst [vmem:[#allocation4 + $0x88] sm:$0xff] %v5332
  %5357 = vst [vmem:[#allocation4 + $0x90] sm:$0xff] %v5333
  %5358 = vst [vmem:[#allocation4 + $0x98] sm:$0xff] %v5334
  %5359 = vst [vmem:[#allocation4 + $0xa0] sm:$0xff] %v5335
  %5360 = vst [vmem:[#allocation4 + $0xa8] sm:$0xff] %v5336
  %5361 = vst [vmem:[#allocation4 + $0xb0] sm:$0xff] %v5337
  %5362 = vst [vmem:[#allocation4 + $0xb8] sm:$0xff] %v5338
  %v5363 = vld [vmem:[#allocation3] sm:$0xff]
  %v5364 = vld [vmem:[#allocation3 + $0x8] sm:$0xff]
  %v5365 = vld [vmem:[#allocation3 + $0x10] sm:$0xff]
  %v5366 = vld [vmem:[#allocation3 + $0x18] sm:$0xff]
  %v5367 = vld [vmem:[#allocation3 + $0x20] sm:$0xff]
  %v5368 = vld [vmem:[#allocation3 + $0x28] sm:$0xff]
  %v5369 = vld [vmem:[#allocation3 + $0x30] sm:$0xff]
  %v5370 = vld [vmem:[#allocation3 + $0x40] sm:$0xff]
  %v5371 = vld [vmem:[#allocation3 + $0x48] sm:$0xff]
  %v5372 = vld [vmem:[#allocation3 + $0x50] sm:$0xff]
  %v5373 = vld [vmem:[#allocation3 + $0x58] sm:$0xff]
  %v5374 = vld [vmem:[#allocation3 + $0x60] sm:$0xff]
  %v5375 = vld [vmem:[#allocation3 + $0x68] sm:$0xff]
  %v5376 = vld [vmem:[#allocation3 + $0x70] sm:$0xff]
  %5391 = vrot.lane.b32.xlu0 %v5363, 17
  %v5392 = vpop.permute.xlu0 %5391
  %5393 = vrot.lane.b32.xlu0 %v5364, 17
  %v5394 = vpop.permute.xlu0 %5393
  %5395 = vrot.lane.b32.xlu0 %v5365, 17
  %v5396 = vpop.permute.xlu0 %5395
  %5397 = vrot.lane.b32.xlu0 %v5366, 17
  %v5398 = vpop.permute.xlu0 %5397
  %5399 = vrot.lane.b32.xlu0 %v5367, 17
  %v5400 = vpop.permute.xlu0 %5399
  %5401 = vrot.lane.b32.xlu0 %v5368, 17
  %v5402 = vpop.permute.xlu0 %5401
  %5403 = vrot.lane.b32.xlu0 %v5369, 17
  %v5404 = vpop.permute.xlu0 %5403
  %5405 = vrot.lane.b32.xlu0 %v5370, 17
  %v5406 = vpop.permute.xlu0 %5405
  %5407 = vrot.lane.b32.xlu0 %v5371, 17
  %v5408 = vpop.permute.xlu0 %5407
  %5409 = vrot.lane.b32.xlu0 %v5372, 17
  %v5410 = vpop.permute.xlu0 %5409
  %5411 = vrot.lane.b32.xlu0 %v5373, 17
  %v5412 = vpop.permute.xlu0 %5411
  %5413 = vrot.lane.b32.xlu0 %v5374, 17
  %v5414 = vpop.permute.xlu0 %5413
  %5415 = vrot.lane.b32.xlu0 %v5375, 17
  %v5416 = vpop.permute.xlu0 %5415
  %5417 = vrot.lane.b32.xlu0 %v5376, 17
  %v5418 = vpop.permute.xlu0 %5417
  %v5419 = vsel %vm352, %v5392, %v5394
  %v5420 = vsel %vm352, %v5394, %v5396
  %v5421 = vsel %vm352, %v5396, %v5398
  %v5422 = vsel %vm352, %v5398, %v5400
  %v5423 = vsel %vm352, %v5400, %v5402
  %v5424 = vsel %vm352, %v5402, %v5404
  %v5425 = vsel %vm352, %v5406, %v5408
  %v5426 = vsel %vm352, %v5408, %v5410
  %v5427 = vsel %vm352, %v5410, %v5412
  %v5428 = vsel %vm352, %v5412, %v5414
  %v5429 = vsel %vm352, %v5414, %v5416
  %v5430 = vsel %vm352, %v5416, %v5418
  %5443 = vst [vmem:[#allocation4 + $0xc0] sm:$0xff] %v5419
  %5444 = vst [vmem:[#allocation4 + $0xc8] sm:$0xff] %v5420
  %5445 = vst [vmem:[#allocation4 + $0xd0] sm:$0xff] %v5421
  %5446 = vst [vmem:[#allocation4 + $0xd8] sm:$0xff] %v5422
  %5447 = vst [vmem:[#allocation4 + $0xe0] sm:$0xff] %v5423
  %5448 = vst [vmem:[#allocation4 + $0xe8] sm:$0xff] %v5424
  %5449 = vst [vmem:[#allocation4 + $0xf0] sm:$0xff] %v5425
  %5450 = vst [vmem:[#allocation4 + $0xf8] sm:$0xff] %v5426
  %5451 = vst [vmem:[#allocation4 + $0x100] sm:$0xff] %v5427
  %5452 = vst [vmem:[#allocation4 + $0x108] sm:$0xff] %v5428
  %5453 = vst [vmem:[#allocation4 + $0x110] sm:$0xff] %v5429
  %5454 = vst [vmem:[#allocation4 + $0x118] sm:$0xff] %v5430
  %v5455 = vld [vmem:[#allocation3] sm:$0xff]
  %v5456 = vld [vmem:[#allocation3 + $0x8] sm:$0xff]
  %v5457 = vld [vmem:[#allocation3 + $0x10] sm:$0xff]
  %v5458 = vld [vmem:[#allocation3 + $0x18] sm:$0xff]
  %v5459 = vld [vmem:[#allocation3 + $0x20] sm:$0xff]
  %v5460 = vld [vmem:[#allocation3 + $0x28] sm:$0xff]
  %v5461 = vld [vmem:[#allocation3 + $0x30] sm:$0xff]
  %v5462 = vld [vmem:[#allocation3 + $0x40] sm:$0xff]
  %v5463 = vld [vmem:[#allocation3 + $0x48] sm:$0xff]
  %v5464 = vld [vmem:[#allocation3 + $0x50] sm:$0xff]
  %v5465 = vld [vmem:[#allocation3 + $0x58] sm:$0xff]
  %v5466 = vld [vmem:[#allocation3 + $0x60] sm:$0xff]
  %v5467 = vld [vmem:[#allocation3 + $0x68] sm:$0xff]
  %v5468 = vld [vmem:[#allocation3 + $0x70] sm:$0xff]
  %5483 = vrot.lane.b32.xlu0 %v5455, 1
  %v5484 = vpop.permute.xlu0 %5483
  %5485 = vrot.lane.b32.xlu0 %v5456, 1
  %v5486 = vpop.permute.xlu0 %5485
  %5487 = vrot.lane.b32.xlu0 %v5457, 1
  %v5488 = vpop.permute.xlu0 %5487
  %5489 = vrot.lane.b32.xlu0 %v5458, 1
  %v5490 = vpop.permute.xlu0 %5489
  %5491 = vrot.lane.b32.xlu0 %v5459, 1
  %v5492 = vpop.permute.xlu0 %5491
  %5493 = vrot.lane.b32.xlu0 %v5460, 1
  %v5494 = vpop.permute.xlu0 %5493
  %5495 = vrot.lane.b32.xlu0 %v5461, 1
  %v5496 = vpop.permute.xlu0 %5495
  %5497 = vrot.lane.b32.xlu0 %v5462, 1
  %v5498 = vpop.permute.xlu0 %5497
  %5499 = vrot.lane.b32.xlu0 %v5463, 1
  %v5500 = vpop.permute.xlu0 %5499
  %5501 = vrot.lane.b32.xlu0 %v5464, 1
  %v5502 = vpop.permute.xlu0 %5501
  %5503 = vrot.lane.b32.xlu0 %v5465, 1
  %v5504 = vpop.permute.xlu0 %5503
  %5505 = vrot.lane.b32.xlu0 %v5466, 1
  %v5506 = vpop.permute.xlu0 %5505
  %5507 = vrot.lane.b32.xlu0 %v5467, 1
  %v5508 = vpop.permute.xlu0 %5507
  %5509 = vrot.lane.b32.xlu0 %v5468, 1
  %v5510 = vpop.permute.xlu0 %5509
  %v5511 = vsel %vm445, %v5484, %v5486
  %v5512 = vsel %vm445, %v5486, %v5488
  %v5513 = vsel %vm445, %v5488, %v5490
  %v5514 = vsel %vm445, %v5490, %v5492
  %v5515 = vsel %vm445, %v5492, %v5494
  %v5516 = vsel %vm445, %v5494, %v5496
  %v5517 = vsel %vm445, %v5498, %v5500
  %v5518 = vsel %vm445, %v5500, %v5502
  %v5519 = vsel %vm445, %v5502, %v5504
  %v5520 = vsel %vm445, %v5504, %v5506
  %v5521 = vsel %vm445, %v5506, %v5508
  %v5522 = vsel %vm445, %v5508, %v5510
  %5535 = vst [vmem:[#allocation4 + $0x120] sm:$0xff] %v5511
  %5536 = vst [vmem:[#allocation4 + $0x128] sm:$0xff] %v5512
  %5537 = vst [vmem:[#allocation4 + $0x130] sm:$0xff] %v5513
  %5538 = vst [vmem:[#allocation4 + $0x138] sm:$0xff] %v5514
  %5539 = vst [vmem:[#allocation4 + $0x140] sm:$0xff] %v5515
  %5540 = vst [vmem:[#allocation4 + $0x148] sm:$0xff] %v5516
  %5541 = vst [vmem:[#allocation4 + $0x150] sm:$0xff] %v5517
  %5542 = vst [vmem:[#allocation4 + $0x158] sm:$0xff] %v5518
  %5543 = vst [vmem:[#allocation4 + $0x160] sm:$0xff] %v5519
  %5544 = vst [vmem:[#allocation4 + $0x168] sm:$0xff] %v5520
  %5545 = vst [vmem:[#allocation4 + $0x170] sm:$0xff] %v5521
  %5546 = vst [vmem:[#allocation4 + $0x178] sm:$0xff] %v5522
  %v5547 = vld [vmem:[#allocation3 + $0x8] sm:$0xff]
  %v5548 = vld [vmem:[#allocation3 + $0x10] sm:$0xff]
  %v5549 = vld [vmem:[#allocation3 + $0x18] sm:$0xff]
  %v5550 = vld [vmem:[#allocation3 + $0x20] sm:$0xff]
  %v5551 = vld [vmem:[#allocation3 + $0x28] sm:$0xff]
  %v5552 = vld [vmem:[#allocation3 + $0x30] sm:$0xff]
  %v5553 = vld [vmem:[#allocation3 + $0x48] sm:$0xff]
  %v5554 = vld [vmem:[#allocation3 + $0x50] sm:$0xff]
  %v5555 = vld [vmem:[#allocation3 + $0x58] sm:$0xff]
  %v5556 = vld [vmem:[#allocation3 + $0x60] sm:$0xff]
  %v5557 = vld [vmem:[#allocation3 + $0x68] sm:$0xff]
  %v5558 = vld [vmem:[#allocation3 + $0x70] sm:$0xff]
  %5559 = vst [vmem:[#allocation4 + $0x180] sm:$0xff] %v5547
  %5560 = vst [vmem:[#allocation4 + $0x188] sm:$0xff] %v5548
  %5561 = vst [vmem:[#allocation4 + $0x190] sm:$0xff] %v5549
  %5562 = vst [vmem:[#allocation4 + $0x198] sm:$0xff] %v5550
  %5563 = vst [vmem:[#allocation4 + $0x1a0] sm:$0xff] %v5551
  %5564 = vst [vmem:[#allocation4 + $0x1a8] sm:$0xff] %v5552
  %5565 = vst [vmem:[#allocation4 + $0x1b0] sm:$0xff] %v5553
  %5566 = vst [vmem:[#allocation4 + $0x1b8] sm:$0xff] %v5554
  %5567 = vst [vmem:[#allocation4 + $0x1c0] sm:$0xff] %v5555
  %5568 = vst [vmem:[#allocation4 + $0x1c8] sm:$0xff] %v5556
  %5569 = vst [vmem:[#allocation4 + $0x1d0] sm:$0xff] %v5557
  %5570 = vst [vmem:[#allocation4 + $0x1d8] sm:$0xff] %v5558
  %v5571 = vld [vmem:[#allocation3 + $0x8] sm:$0xff]
  %v5572 = vld [vmem:[#allocation3 + $0x10] sm:$0xff]
  %v5573 = vld [vmem:[#allocation3 + $0x18] sm:$0xff]
  %v5574 = vld [vmem:[#allocation3 + $0x20] sm:$0xff]
  %v5575 = vld [vmem:[#allocation3 + $0x28] sm:$0xff]
  %v5576 = vld [vmem:[#allocation3 + $0x30] sm:$0xff]
  %v5577 = vld [vmem:[#allocation3 + $0x38] sm:$0xff]
  %v5578 = vld [vmem:[#allocation3 + $0x48] sm:$0xff]
  %v5579 = vld [vmem:[#allocation3 + $0x50] sm:$0xff]
  %v5580 = vld [vmem:[#allocation3 + $0x58] sm:$0xff]
  %v5581 = vld [vmem:[#allocation3 + $0x60] sm:$0xff]
  %v5582 = vld [vmem:[#allocation3 + $0x68] sm:$0xff]
  %v5583 = vld [vmem:[#allocation3 + $0x70] sm:$0xff]
  %v5584 = vld [vmem:[#allocation3 + $0x78] sm:$0xff]
  %5599 = vrot.lane.b32.xlu0 %v5571, 127
  %v5600 = vpop.permute.xlu0 %5599
  %5601 = vrot.lane.b32.xlu0 %v5572, 127
  %v5602 = vpop.permute.xlu0 %5601
  %5603 = vrot.lane.b32.xlu0 %v5573, 127
  %v5604 = vpop.permute.xlu0 %5603
  %5605 = vrot.lane.b32.xlu0 %v5574, 127
  %v5606 = vpop.permute.xlu0 %5605
  %5607 = vrot.lane.b32.xlu0 %v5575, 127
  %v5608 = vpop.permute.xlu0 %5607
  %5609 = vrot.lane.b32.xlu0 %v5576, 127
  %v5610 = vpop.permute.xlu0 %5609
  %5611 = vrot.lane.b32.xlu0 %v5577, 127
  %v5612 = vpop.permute.xlu0 %5611
  %5613 = vrot.lane.b32.xlu0 %v5578, 127
  %v5614 = vpop.permute.xlu0 %5613
  %5615 = vrot.lane.b32.xlu0 %v5579, 127
  %v5616 = vpop.permute.xlu0 %5615
  %5617 = vrot.lane.b32.xlu0 %v5580, 127
  %v5618 = vpop.permute.xlu0 %5617
  %5619 = vrot.lane.b32.xlu0 %v5581, 127
  %v5620 = vpop.permute.xlu0 %5619
  %5621 = vrot.lane.b32.xlu0 %v5582, 127
  %v5622 = vpop.permute.xlu0 %5621
  %5623 = vrot.lane.b32.xlu0 %v5583, 127
  %v5624 = vpop.permute.xlu0 %5623
  %5625 = vrot.lane.b32.xlu0 %v5584, 127
  %v5626 = vpop.permute.xlu0 %5625
  %v5627 = vsel %vm562, %v5600, %v5602
  %v5628 = vsel %vm562, %v5602, %v5604
  %v5629 = vsel %vm562, %v5604, %v5606
  %v5630 = vsel %vm562, %v5606, %v5608
  %v5631 = vsel %vm562, %v5608, %v5610
  %v5632 = vsel %vm562, %v5610, %v5612
  %v5633 = vsel %vm562, %v5614, %v5616
  %v5634 = vsel %vm562, %v5616, %v5618
  %v5635 = vsel %vm562, %v5618, %v5620
  %v5636 = vsel %vm562, %v5620, %v5622
  %v5637 = vsel %vm562, %v5622, %v5624
  %v5638 = vsel %vm562, %v5624, %v5626
  %5651 = vst [vmem:[#allocation4 + $0x1e0] sm:$0xff] %v5627
  %5652 = vst [vmem:[#allocation4 + $0x1e8] sm:$0xff] %v5628
  %5653 = vst [vmem:[#allocation4 + $0x1f0] sm:$0xff] %v5629
  %5654 = vst [vmem:[#allocation4 + $0x1f8] sm:$0xff] %v5630
  %5655 = vst [vmem:[#allocation4 + $0x200] sm:$0xff] %v5631
  %5656 = vst [vmem:[#allocation4 + $0x208] sm:$0xff] %v5632
  %5657 = vst [vmem:[#allocation4 + $0x210] sm:$0xff] %v5633
  %5658 = vst [vmem:[#allocation4 + $0x218] sm:$0xff] %v5634
  %5659 = vst [vmem:[#allocation4 + $0x220] sm:$0xff] %v5635
  %5660 = vst [vmem:[#allocation4 + $0x228] sm:$0xff] %v5636
  %5661 = vst [vmem:[#allocation4 + $0x230] sm:$0xff] %v5637
  %5662 = vst [vmem:[#allocation4 + $0x238] sm:$0xff] %v5638
  %v5663 = vld [vmem:[#allocation3 + $0x8] sm:$0xff]
  %v5664 = vld [vmem:[#allocation3 + $0x10] sm:$0xff]
  %v5665 = vld [vmem:[#allocation3 + $0x18] sm:$0xff]
  %v5666 = vld [vmem:[#allocation3 + $0x20] sm:$0xff]
  %v5667 = vld [vmem:[#allocation3 + $0x28] sm:$0xff]
  %v5668 = vld [vmem:[#allocation3 + $0x30] sm:$0xff]
  %v5669 = vld [vmem:[#allocation3 + $0x38] sm:$0xff]
  %v5670 = vld [vmem:[#allocation3 + $0x48] sm:$0xff]
  %v5671 = vld [vmem:[#allocation3 + $0x50] sm:$0xff]
  %v5672 = vld [vmem:[#allocation3 + $0x58] sm:$0xff]
  %v5673 = vld [vmem:[#allocation3 + $0x60] sm:$0xff]
  %v5674 = vld [vmem:[#allocation3 + $0x68] sm:$0xff]
  %v5675 = vld [vmem:[#allocation3 + $0x70] sm:$0xff]
  %v5676 = vld [vmem:[#allocation3 + $0x78] sm:$0xff]
  %5691 = vrot.lane.b32.xlu0 %v5663, 111
  %v5692 = vpop.permute.xlu0 %5691
  %5693 = vrot.lane.b32.xlu0 %v5664, 111
  %v5694 = vpop.permute.xlu0 %5693
  %5695 = vrot.lane.b32.xlu0 %v5665, 111
  %v5696 = vpop.permute.xlu0 %5695
  %5697 = vrot.lane.b32.xlu0 %v5666, 111
  %v5698 = vpop.permute.xlu0 %5697
  %5699 = vrot.lane.b32.xlu0 %v5667, 111
  %v5700 = vpop.permute.xlu0 %5699
  %5701 = vrot.lane.b32.xlu0 %v5668, 111
  %v5702 = vpop.permute.xlu0 %5701
  %5703 = vrot.lane.b32.xlu0 %v5669, 111
  %v5704 = vpop.permute.xlu0 %5703
  %5705 = vrot.lane.b32.xlu0 %v5670, 111
  %v5706 = vpop.permute.xlu0 %5705
  %5707 = vrot.lane.b32.xlu0 %v5671, 111
  %v5708 = vpop.permute.xlu0 %5707
  %5709 = vrot.lane.b32.xlu0 %v5672, 111
  %v5710 = vpop.permute.xlu0 %5709
  %5711 = vrot.lane.b32.xlu0 %v5673, 111
  %v5712 = vpop.permute.xlu0 %5711
  %5713 = vrot.lane.b32.xlu0 %v5674, 111
  %v5714 = vpop.permute.xlu0 %5713
  %5715 = vrot.lane.b32.xlu0 %v5675, 111
  %v5716 = vpop.permute.xlu0 %5715
  %5717 = vrot.lane.b32.xlu0 %v5676, 111
  %v5718 = vpop.permute.xlu0 %5717
  %v5719 = vsel %vm655, %v5692, %v5694
  %v5720 = vsel %vm655, %v5694, %v5696
  %v5721 = vsel %vm655, %v5696, %v5698
  %v5722 = vsel %vm655, %v5698, %v5700
  %v5723 = vsel %vm655, %v5700, %v5702
  %v5724 = vsel %vm655, %v5702, %v5704
  %v5725 = vsel %vm655, %v5706, %v5708
  %v5726 = vsel %vm655, %v5708, %v5710
  %v5727 = vsel %vm655, %v5710, %v5712
  %v5728 = vsel %vm655, %v5712, %v5714
  %v5729 = vsel %vm655, %v5714, %v5716
  %v5730 = vsel %vm655, %v5716, %v5718
  %5743 = vst [vmem:[#allocation4 + $0x240] sm:$0xff] %v5719
  %5744 = vst [vmem:[#allocation4 + $0x248] sm:$0xff] %v5720
  %5745 = vst [vmem:[#allocation4 + $0x250] sm:$0xff] %v5721
  %5746 = vst [vmem:[#allocation4 + $0x258] sm:$0xff] %v5722
  %5747 = vst [vmem:[#allocation4 + $0x260] sm:$0xff] %v5723
  %5748 = vst [vmem:[#allocation4 + $0x268] sm:$0xff] %v5724
  %5749 = vst [vmem:[#allocation4 + $0x270] sm:$0xff] %v5725
  %5750 = vst [vmem:[#allocation4 + $0x278] sm:$0xff] %v5726
  %5751 = vst [vmem:[#allocation4 + $0x280] sm:$0xff] %v5727
  %5752 = vst [vmem:[#allocation4 + $0x288] sm:$0xff] %v5728
  %5753 = vst [vmem:[#allocation4 + $0x290] sm:$0xff] %v5729
  %5754 = vst [vmem:[#allocation4 + $0x298] sm:$0xff] %v5730
  %v5755 = vld [vmem:[#allocation3 + $0x8] sm:$0xff]
  %v5756 = vld [vmem:[#allocation3 + $0x10] sm:$0xff]
  %v5757 = vld [vmem:[#allocation3 + $0x18] sm:$0xff]
  %v5758 = vld [vmem:[#allocation3 + $0x20] sm:$0xff]
  %v5759 = vld [vmem:[#allocation3 + $0x28] sm:$0xff]
  %v5760 = vld [vmem:[#allocation3 + $0x30] sm:$0xff]
  %v5761 = vld [vmem:[#allocation3 + $0x38] sm:$0xff]
  %v5762 = vld [vmem:[#allocation3 + $0x48] sm:$0xff]
  %v5763 = vld [vmem:[#allocation3 + $0x50] sm:$0xff]
  %v5764 = vld [vmem:[#allocation3 + $0x58] sm:$0xff]
  %v5765 = vld [vmem:[#allocation3 + $0x60] sm:$0xff]
  %v5766 = vld [vmem:[#allocation3 + $0x68] sm:$0xff]
  %v5767 = vld [vmem:[#allocation3 + $0x70] sm:$0xff]
  %v5768 = vld [vmem:[#allocation3 + $0x78] sm:$0xff]
  %5783 = vrot.lane.b32.xlu0 %v5755, 110
  %v5784 = vpop.permute.xlu0 %5783
  %5785 = vrot.lane.b32.xlu0 %v5756, 110
  %v5786 = vpop.permute.xlu0 %5785
  %5787 = vrot.lane.b32.xlu0 %v5757, 110
  %v5788 = vpop.permute.xlu0 %5787
  %5789 = vrot.lane.b32.xlu0 %v5758, 110
  %v5790 = vpop.permute.xlu0 %5789
  %5791 = vrot.lane.b32.xlu0 %v5759, 110
  %v5792 = vpop.permute.xlu0 %5791
  %5793 = vrot.lane.b32.xlu0 %v5760, 110
  %v5794 = vpop.permute.xlu0 %5793
  %5795 = vrot.lane.b32.xlu0 %v5761, 110
  %v5796 = vpop.permute.xlu0 %5795
  %5797 = vrot.lane.b32.xlu0 %v5762, 110
  %v5798 = vpop.permute.xlu0 %5797
  %5799 = vrot.lane.b32.xlu0 %v5763, 110
  %v5800 = vpop.permute.xlu0 %5799
  %5801 = vrot.lane.b32.xlu0 %v5764, 110
  %v5802 = vpop.permute.xlu0 %5801
  %5803 = vrot.lane.b32.xlu0 %v5765, 110
  %v5804 = vpop.permute.xlu0 %5803
  %5805 = vrot.lane.b32.xlu0 %v5766, 110
  %v5806 = vpop.permute.xlu0 %5805
  %5807 = vrot.lane.b32.xlu0 %v5767, 110
  %v5808 = vpop.permute.xlu0 %5807
  %5809 = vrot.lane.b32.xlu0 %v5768, 110
  %v5810 = vpop.permute.xlu0 %5809
  %v5811 = vsel %vm748, %v5784, %v5786
  %v5812 = vsel %vm748, %v5786, %v5788
  %v5813 = vsel %vm748, %v5788, %v5790
  %v5814 = vsel %vm748, %v5790, %v5792
  %v5815 = vsel %vm748, %v5792, %v5794
  %v5816 = vsel %vm748, %v5794, %v5796
  %v5817 = vsel %vm748, %v5798, %v5800
  %v5818 = vsel %vm748, %v5800, %v5802
  %v5819 = vsel %vm748, %v5802, %v5804
  %v5820 = vsel %vm748, %v5804, %v5806
  %v5821 = vsel %vm748, %v5806, %v5808
  %v5822 = vsel %vm748, %v5808, %v5810
  %5835 = vst [vmem:[#allocation4 + $0x2a0] sm:$0xff] %v5811
  %5836 = vst [vmem:[#allocation4 + $0x2a8] sm:$0xff] %v5812
  %5837 = vst [vmem:[#allocation4 + $0x2b0] sm:$0xff] %v5813
  %5838 = vst [vmem:[#allocation4 + $0x2b8] sm:$0xff] %v5814
  %5839 = vst [vmem:[#allocation4 + $0x2c0] sm:$0xff] %v5815
  %5840 = vst [vmem:[#allocation4 + $0x2c8] sm:$0xff] %v5816
  %5841 = vst [vmem:[#allocation4 + $0x2d0] sm:$0xff] %v5817
  %5842 = vst [vmem:[#allocation4 + $0x2d8] sm:$0xff] %v5818
  %5843 = vst [vmem:[#allocation4 + $0x2e0] sm:$0xff] %v5819
  %5844 = vst [vmem:[#allocation4 + $0x2e8] sm:$0xff] %v5820
  %5845 = vst [vmem:[#allocation4 + $0x2f0] sm:$0xff] %v5821
  %5846 = vst [vmem:[#allocation4 + $0x2f8] sm:$0xff] %v5822
  %v5847 = vld [vmem:[#allocation3 + $0x8] sm:$0xff]
  %v5848 = vld [vmem:[#allocation3 + $0x10] sm:$0xff]
  %v5849 = vld [vmem:[#allocation3 + $0x18] sm:$0xff]
  %v5850 = vld [vmem:[#allocation3 + $0x20] sm:$0xff]
  %v5851 = vld [vmem:[#allocation3 + $0x28] sm:$0xff]
  %v5852 = vld [vmem:[#allocation3 + $0x30] sm:$0xff]
  %v5853 = vld [vmem:[#allocation3 + $0x38] sm:$0xff]
  %v5854 = vld [vmem:[#allocation3 + $0x48] sm:$0xff]
  %v5855 = vld [vmem:[#allocation3 + $0x50] sm:$0xff]
  %v5856 = vld [vmem:[#allocation3 + $0x58] sm:$0xff]
  %v5857 = vld [vmem:[#allocation3 + $0x60] sm:$0xff]
  %v5858 = vld [vmem:[#allocation3 + $0x68] sm:$0xff]
  %v5859 = vld [vmem:[#allocation3 + $0x70] sm:$0xff]
  %v5860 = vld [vmem:[#allocation3 + $0x78] sm:$0xff]
  %5875 = vrot.lane.b32.xlu0 %v5847, 109
  %v5876 = vpop.permute.xlu0 %5875
  %5877 = vrot.lane.b32.xlu0 %v5848, 109
  %v5878 = vpop.permute.xlu0 %5877
  %5879 = vrot.lane.b32.xlu0 %v5849, 109
  %v5880 = vpop.permute.xlu0 %5879
  %5881 = vrot.lane.b32.xlu0 %v5850, 109
  %v5882 = vpop.permute.xlu0 %5881
  %5883 = vrot.lane.b32.xlu0 %v5851, 109
  %v5884 = vpop.permute.xlu0 %5883
  %5885 = vrot.lane.b32.xlu0 %v5852, 109
  %v5886 = vpop.permute.xlu0 %5885
  %5887 = vrot.lane.b32.xlu0 %v5853, 109
  %v5888 = vpop.permute.xlu0 %5887
  %5889 = vrot.lane.b32.xlu0 %v5854, 109
  %v5890 = vpop.permute.xlu0 %5889
  %5891 = vrot.lane.b32.xlu0 %v5855, 109
  %v5892 = vpop.permute.xlu0 %5891
  %5893 = vrot.lane.b32.xlu0 %v5856, 109
  %v5894 = vpop.permute.xlu0 %5893
  %5895 = vrot.lane.b32.xlu0 %v5857, 109
  %v5896 = vpop.permute.xlu0 %5895
  %5897 = vrot.lane.b32.xlu0 %v5858, 109
  %v5898 = vpop.permute.xlu0 %5897
  %5899 = vrot.lane.b32.xlu0 %v5859, 109
  %v5900 = vpop.permute.xlu0 %5899
  %5901 = vrot.lane.b32.xlu0 %v5860, 109
  %v5902 = vpop.permute.xlu0 %5901
  %v5903 = vsel %vm841, %v5876, %v5878
  %v5904 = vsel %vm841, %v5878, %v5880
  %v5905 = vsel %vm841, %v5880, %v5882
  %v5906 = vsel %vm841, %v5882, %v5884
  %v5907 = vsel %vm841, %v5884, %v5886
  %v5908 = vsel %vm841, %v5886, %v5888
  %v5909 = vsel %vm841, %v5890, %v5892
  %v5910 = vsel %vm841, %v5892, %v5894
  %v5911 = vsel %vm841, %v5894, %v5896
  %v5912 = vsel %vm841, %v5896, %v5898
  %v5913 = vsel %vm841, %v5898, %v5900
  %v5914 = vsel %vm841, %v5900, %v5902
  %5927 = vst [vmem:[#allocation4 + $0x300] sm:$0xff] %v5903
  %5928 = vst [vmem:[#allocation4 + $0x308] sm:$0xff] %v5904
  %5929 = vst [vmem:[#allocation4 + $0x310] sm:$0xff] %v5905
  %5930 = vst [vmem:[#allocation4 + $0x318] sm:$0xff] %v5906
  %5931 = vst [vmem:[#allocation4 + $0x320] sm:$0xff] %v5907
  %5932 = vst [vmem:[#allocation4 + $0x328] sm:$0xff] %v5908
  %5933 = vst [vmem:[#allocation4 + $0x330] sm:$0xff] %v5909
  %5934 = vst [vmem:[#allocation4 + $0x338] sm:$0xff] %v5910
  %5935 = vst [vmem:[#allocation4 + $0x340] sm:$0xff] %v5911
  %5936 = vst [vmem:[#allocation4 + $0x348] sm:$0xff] %v5912
  %5937 = vst [vmem:[#allocation4 + $0x350] sm:$0xff] %v5913
  %5938 = vst [vmem:[#allocation4 + $0x358] sm:$0xff] %v5914
  %s5939 = scalar_lea.vmem %s1, 128
  %v5940 = vld [vmem:[%s5939] sm:$0xff]
  %v5941 = vld [vmem:[%s5939 + $0x8] sm:$0xff]
  %v5942 = vld [vmem:[%s5939 + $0x10] sm:$0xff]
  %v5943 = vld [vmem:[%s5939 + $0x18] sm:$0xff]
  %v5944 = vld [vmem:[#allocation4] sm:$0xff]
  %v5945 = vld [vmem:[#allocation4 + $0x8] sm:$0xff]
  %v5946 = vld [vmem:[#allocation4 + $0x10] sm:$0xff]
  %v5947 = vld [vmem:[#allocation4 + $0x18] sm:$0xff]
  %v5948 = vld [vmem:[#allocation4 + $0x20] sm:$0xff]
  %v5949 = vld [vmem:[#allocation4 + $0x28] sm:$0xff]
  %v5950 = vld [vmem:[#allocation4 + $0x30] sm:$0xff]
  %v5951 = vld [vmem:[#allocation4 + $0x38] sm:$0xff]
  %v5952 = vld [vmem:[#allocation4 + $0x40] sm:$0xff]
  %v5953 = vld [vmem:[#allocation4 + $0x48] sm:$0xff]
  %v5954 = vld [vmem:[#allocation4 + $0x50] sm:$0xff]
  %v5955 = vld [vmem:[#allocation4 + $0x58] sm:$0xff]
  %v5956 = vld [vmem:[#allocation4 + $0x60] sm:$0xff]
  %v5957 = vld [vmem:[#allocation4 + $0x68] sm:$0xff]
  %v5958 = vld [vmem:[#allocation4 + $0x70] sm:$0xff]
  %v5959 = vld [vmem:[#allocation4 + $0x78] sm:$0xff]
  %v5960 = vld [vmem:[#allocation4 + $0x80] sm:$0xff]
  %v5961 = vld [vmem:[#allocation4 + $0x88] sm:$0xff]
  %v5962 = vld [vmem:[#allocation4 + $0x90] sm:$0xff]
  %v5963 = vld [vmem:[#allocation4 + $0x98] sm:$0xff]
  %v5964 = vld [vmem:[#allocation4 + $0xa0] sm:$0xff]
  %v5965 = vld [vmem:[#allocation4 + $0xa8] sm:$0xff]
  %v5966 = vld [vmem:[#allocation4 + $0xb0] sm:$0xff]
  %v5967 = vld [vmem:[#allocation4 + $0xb8] sm:$0xff]
  %v5968 = vld [vmem:[#allocation4 + $0xc0] sm:$0xff]
  %v5969 = vld [vmem:[#allocation4 + $0xc8] sm:$0xff]
  %v5970 = vld [vmem:[#allocation4 + $0xd0] sm:$0xff]
  %v5971 = vld [vmem:[#allocation4 + $0xd8] sm:$0xff]
  %v5972 = vld [vmem:[#allocation4 + $0xe0] sm:$0xff]
  %v5973 = vld [vmem:[#allocation4 + $0xe8] sm:$0xff]
  %v5974 = vld [vmem:[#allocation4 + $0xf0] sm:$0xff]
  %v5975 = vld [vmem:[#allocation4 + $0xf8] sm:$0xff]
  %v5976 = vld [vmem:[#allocation4 + $0x100] sm:$0xff]
  %v5977 = vld [vmem:[#allocation4 + $0x108] sm:$0xff]
  %v5978 = vld [vmem:[#allocation4 + $0x110] sm:$0xff]
  %v5979 = vld [vmem:[#allocation4 + $0x118] sm:$0xff]
  %v5980 = vld [vmem:[#allocation4 + $0x120] sm:$0xff]
  %v5981 = vld [vmem:[#allocation4 + $0x128] sm:$0xff]
  %v5982 = vld [vmem:[#allocation4 + $0x130] sm:$0xff]
  %v5983 = vld [vmem:[#allocation4 + $0x138] sm:$0xff]
  %v5984 = vld [vmem:[#allocation4 + $0x140] sm:$0xff]
  %v5985 = vld [vmem:[#allocation4 + $0x148] sm:$0xff]
  %v5986 = vld [vmem:[#allocation4 + $0x150] sm:$0xff]
  %v5987 = vld [vmem:[#allocation4 + $0x158] sm:$0xff]
  %v5988 = vld [vmem:[#allocation4 + $0x160] sm:$0xff]
  %v5989 = vld [vmem:[#allocation4 + $0x168] sm:$0xff]
  %v5990 = vld [vmem:[#allocation4 + $0x170] sm:$0xff]
  %v5991 = vld [vmem:[#allocation4 + $0x178] sm:$0xff]
  %v5992 = vld [vmem:[#allocation4 + $0x180] sm:$0xff]
  %v5993 = vld [vmem:[#allocation4 + $0x188] sm:$0xff]
  %v5994 = vld [vmem:[#allocation4 + $0x190] sm:$0xff]
  %v5995 = vld [vmem:[#allocation4 + $0x198] sm:$0xff]
  %v5996 = vld [vmem:[#allocation4 + $0x1a0] sm:$0xff]
  %v5997 = vld [vmem:[#allocation4 + $0x1a8] sm:$0xff]
  %v5998 = vld [vmem:[#allocation4 + $0x1b0] sm:$0xff]
  %v5999 = vld [vmem:[#allocation4 + $0x1b8] sm:$0xff]
  %v6000 = vld [vmem:[#allocation4 + $0x1c0] sm:$0xff]
  %v6001 = vld [vmem:[#allocation4 + $0x1c8] sm:$0xff]
  %v6002 = vld [vmem:[#allocation4 + $0x1d0] sm:$0xff]
  %v6003 = vld [vmem:[#allocation4 + $0x1d8] sm:$0xff]
  %v6004 = vld [vmem:[#allocation4 + $0x1e0] sm:$0xff]
  %v6005 = vld [vmem:[#allocation4 + $0x1e8] sm:$0xff]
  %v6006 = vld [vmem:[#allocation4 + $0x1f0] sm:$0xff]
  %v6007 = vld [vmem:[#allocation4 + $0x1f8] sm:$0xff]
  %v6008 = vld [vmem:[#allocation4 + $0x200] sm:$0xff]
  %v6009 = vld [vmem:[#allocation4 + $0x208] sm:$0xff]
  %v6010 = vld [vmem:[#allocation4 + $0x210] sm:$0xff]
  %v6011 = vld [vmem:[#allocation4 + $0x218] sm:$0xff]
  %v6012 = vld [vmem:[#allocation4 + $0x220] sm:$0xff]
  %v6013 = vld [vmem:[#allocation4 + $0x228] sm:$0xff]
  %v6014 = vld [vmem:[#allocation4 + $0x230] sm:$0xff]
  %v6015 = vld [vmem:[#allocation4 + $0x238] sm:$0xff]
  %v6016 = vld [vmem:[#allocation4 + $0x240] sm:$0xff]
  %v6017 = vld [vmem:[#allocation4 + $0x248] sm:$0xff]
  %v6018 = vld [vmem:[#allocation4 + $0x250] sm:$0xff]
  %v6019 = vld [vmem:[#allocation4 + $0x258] sm:$0xff]
  %v6020 = vld [vmem:[#allocation4 + $0x260] sm:$0xff]
  %v6021 = vld [vmem:[#allocation4 + $0x268] sm:$0xff]
  %v6022 = vld [vmem:[#allocation4 + $0x270] sm:$0xff]
  %v6023 = vld [vmem:[#allocation4 + $0x278] sm:$0xff]
  %v6024 = vld [vmem:[#allocation4 + $0x280] sm:$0xff]
  %v6025 = vld [vmem:[#allocation4 + $0x288] sm:$0xff]
  %v6026 = vld [vmem:[#allocation4 + $0x290] sm:$0xff]
  %v6027 = vld [vmem:[#allocation4 + $0x298] sm:$0xff]
  %v6028 = vld [vmem:[#allocation4 + $0x2a0] sm:$0xff]
  %v6029 = vld [vmem:[#allocation4 + $0x2a8] sm:$0xff]
  %v6030 = vld [vmem:[#allocation4 + $0x2b0] sm:$0xff]
  %v6031 = vld [vmem:[#allocation4 + $0x2b8] sm:$0xff]
  %v6032 = vld [vmem:[#allocation4 + $0x2c0] sm:$0xff]
  %v6033 = vld [vmem:[#allocation4 + $0x2c8] sm:$0xff]
  %v6034 = vld [vmem:[#allocation4 + $0x2d0] sm:$0xff]
  %v6035 = vld [vmem:[#allocation4 + $0x2d8] sm:$0xff]
  %v6036 = vld [vmem:[#allocation4 + $0x2e0] sm:$0xff]
  %v6037 = vld [vmem:[#allocation4 + $0x2e8] sm:$0xff]
  %v6038 = vld [vmem:[#allocation4 + $0x2f0] sm:$0xff]
  %v6039 = vld [vmem:[#allocation4 + $0x2f8] sm:$0xff]
  %v6040 = vld [vmem:[#allocation4 + $0x300] sm:$0xff]
  %v6041 = vld [vmem:[#allocation4 + $0x308] sm:$0xff]
  %v6042 = vld [vmem:[#allocation4 + $0x310] sm:$0xff]
  %v6043 = vld [vmem:[#allocation4 + $0x318] sm:$0xff]
  %v6044 = vld [vmem:[#allocation4 + $0x320] sm:$0xff]
  %v6045 = vld [vmem:[#allocation4 + $0x328] sm:$0xff]
  %v6046 = vld [vmem:[#allocation4 + $0x330] sm:$0xff]
  %v6047 = vld [vmem:[#allocation4 + $0x338] sm:$0xff]
  %v6048 = vld [vmem:[#allocation4 + $0x340] sm:$0xff]
  %v6049 = vld [vmem:[#allocation4 + $0x348] sm:$0xff]
  %v6050 = vld [vmem:[#allocation4 + $0x350] sm:$0xff]
  %v6051 = vld [vmem:[#allocation4 + $0x358] sm:$0xff]
  %v6052 = vld [vmem:[#allocation4 + $0x360] sm:$0xff]
  %v6053 = vld [vmem:[#allocation4 + $0x368] sm:$0xff]
  %v6054 = vld [vmem:[#allocation4 + $0x370] sm:$0xff]
  %v6055 = vld [vmem:[#allocation4 + $0x378] sm:$0xff]
  %v6056 = vld [vmem:[#allocation4 + $0x380] sm:$0xff]
  %v6057 = vld [vmem:[#allocation4 + $0x388] sm:$0xff]
  %v6058 = vld [vmem:[#allocation4 + $0x390] sm:$0xff]
  %v6059 = vld [vmem:[#allocation4 + $0x398] sm:$0xff]
  %v6060 = vld [vmem:[#allocation4 + $0x3a0] sm:$0xff]
  %v6061 = vld [vmem:[#allocation4 + $0x3a8] sm:$0xff]
  %v6062 = vld [vmem:[#allocation4 + $0x3b0] sm:$0xff]
  %v6063 = vld [vmem:[#allocation4 + $0x3b8] sm:$0xff]
  %v6064 = vld [vmem:[#allocation4 + $0x3c0] sm:$0xff]
  %v6065 = vld [vmem:[#allocation4 + $0x3c8] sm:$0xff]
  %v6066 = vld [vmem:[#allocation4 + $0x3d0] sm:$0xff]
  %v6067 = vld [vmem:[#allocation4 + $0x3d8] sm:$0xff]
  %v6068 = vld [vmem:[#allocation4 + $0x3e0] sm:$0xff]
  %v6069 = vld [vmem:[#allocation4 + $0x3e8] sm:$0xff]
  %v6070 = vld [vmem:[#allocation4 + $0x3f0] sm:$0xff]
  %v6071 = vld [vmem:[#allocation4 + $0x3f8] sm:$0xff]
  %v6072 = vld [vmem:[#allocation4 + $0x400] sm:$0xff]
  %v6073 = vld [vmem:[#allocation4 + $0x408] sm:$0xff]
  %v6074 = vld [vmem:[#allocation4 + $0x410] sm:$0xff]
  %v6075 = vld [vmem:[#allocation4 + $0x418] sm:$0xff]
  %v6076 = vld [vmem:[#allocation4 + $0x420] sm:$0xff]
  %v6077 = vld [vmem:[#allocation4 + $0x428] sm:$0xff]
  %v6078 = vld [vmem:[#allocation4 + $0x430] sm:$0xff]
  %v6079 = vld [vmem:[#allocation4 + $0x438] sm:$0xff]
  %v6080 = vld [vmem:[#allocation4 + $0x440] sm:$0xff]
  %v6081 = vld [vmem:[#allocation4 + $0x448] sm:$0xff]
  %v6082 = vld [vmem:[#allocation4 + $0x450] sm:$0xff]
  %v6083 = vld [vmem:[#allocation4 + $0x458] sm:$0xff]
  %v6084 = vld [vmem:[#allocation4 + $0x460] sm:$0xff]
  %v6085 = vld [vmem:[#allocation4 + $0x468] sm:$0xff]
  %v6086 = vld [vmem:[#allocation4 + $0x470] sm:$0xff]
  %v6087 = vld [vmem:[#allocation4 + $0x478] sm:$0xff]
  %v6088 = vld [vmem:[#allocation4 + $0x480] sm:$0xff]
  %v6089 = vld [vmem:[#allocation4 + $0x488] sm:$0xff]
  %v6090 = vld [vmem:[#allocation4 + $0x490] sm:$0xff]
  %v6091 = vld [vmem:[#allocation4 + $0x498] sm:$0xff]
  %v6092 = vld [vmem:[#allocation4 + $0x4a0] sm:$0xff]
  %v6093 = vld [vmem:[#allocation4 + $0x4a8] sm:$0xff]
  %v6094 = vld [vmem:[#allocation4 + $0x4b0] sm:$0xff]
  %v6095 = vld [vmem:[#allocation4 + $0x4b8] sm:$0xff]
  %v6096 = vld [vmem:[#allocation4 + $0x4c0] sm:$0xff]
  %v6097 = vld [vmem:[#allocation4 + $0x4c8] sm:$0xff]
  %v6098 = vld [vmem:[#allocation4 + $0x4d0] sm:$0xff]
  %v6099 = vld [vmem:[#allocation4 + $0x4d8] sm:$0xff]
  %v6100 = vld [vmem:[#allocation4 + $0x4e0] sm:$0xff]
  %v6101 = vld [vmem:[#allocation4 + $0x4e8] sm:$0xff]
  %v6102 = vld [vmem:[#allocation4 + $0x4f0] sm:$0xff]
  %v6103 = vld [vmem:[#allocation4 + $0x4f8] sm:$0xff]
  %v6104 = vld [vmem:[#allocation4 + $0x500] sm:$0xff]
  %v6105 = vld [vmem:[#allocation4 + $0x508] sm:$0xff]
  %v6106 = vld [vmem:[#allocation4 + $0x510] sm:$0xff]
  %v6107 = vld [vmem:[#allocation4 + $0x518] sm:$0xff]
  %v6108 = vld [vmem:[#allocation4 + $0x520] sm:$0xff]
  %v6109 = vld [vmem:[#allocation4 + $0x528] sm:$0xff]
  %v6110 = vld [vmem:[#allocation4 + $0x530] sm:$0xff]
  %v6111 = vld [vmem:[#allocation4 + $0x538] sm:$0xff]
  %v6112 = vld [vmem:[#allocation4 + $0x540] sm:$0xff]
  %v6113 = vld [vmem:[#allocation4 + $0x548] sm:$0xff]
  %v6114 = vld [vmem:[#allocation4 + $0x550] sm:$0xff]
  %v6115 = vld [vmem:[#allocation4 + $0x558] sm:$0xff]
  %v6116 = vld [vmem:[#allocation4 + $0x560] sm:$0xff]
  %v6117 = vld [vmem:[#allocation4 + $0x568] sm:$0xff]
  %v6118 = vld [vmem:[#allocation4 + $0x570] sm:$0xff]
  %v6119 = vld [vmem:[#allocation4 + $0x578] sm:$0xff]
  %v6120 = vld [vmem:[#allocation4 + $0x580] sm:$0xff]
  %v6121 = vld [vmem:[#allocation4 + $0x588] sm:$0xff]
  %v6122 = vld [vmem:[#allocation4 + $0x590] sm:$0xff]
  %v6123 = vld [vmem:[#allocation4 + $0x598] sm:$0xff]
  %v6124 = vld [vmem:[#allocation4 + $0x5a0] sm:$0xff]
  %v6125 = vld [vmem:[#allocation4 + $0x5a8] sm:$0xff]
  %v6126 = vld [vmem:[#allocation4 + $0x5b0] sm:$0xff]
  %v6127 = vld [vmem:[#allocation4 + $0x5b8] sm:$0xff]
  %v6128 = vld [vmem:[#allocation4 + $0x5c0] sm:$0xff]
  %v6129 = vld [vmem:[#allocation4 + $0x5c8] sm:$0xff]
  %v6130 = vld [vmem:[#allocation4 + $0x5d0] sm:$0xff]
  %v6131 = vld [vmem:[#allocation4 + $0x5d8] sm:$0xff]
  %v6132 = vld [vmem:[#allocation4 + $0x5e0] sm:$0xff]
  %v6133 = vld [vmem:[#allocation4 + $0x5e8] sm:$0xff]
  %v6134 = vld [vmem:[#allocation4 + $0x5f0] sm:$0xff]
  %v6135 = vld [vmem:[#allocation4 + $0x5f8] sm:$0xff]
  %s6136 = scalar_lea.vmem %s2, 64
  %v6137 = vld [vmem:[%s6136] sm:$0xff]
  %v6138 = vld [vmem:[%s6136 + $0x8] sm:$0xff]
  %6140 = vset.pattern.permute.xlu0 0
  %6141 = vperm.xlu0 %6140, %v6137
  %v6142 = vpop.permute.xlu0 %6141
  %6145 = vset.pattern.permute.xlu0 0
  %6146 = vperm.xlu0 %6145, %v6138
  %v6147 = vpop.permute.xlu0 %6146
  %6149 = vmatprep.subr.mxu0 %v6035
  %6150 = vmatpush1.msra.mxu0 %v6034
  %6151 = vmatprep.subr.mxu0 %v6029
  %6152 = vmatpush1.msra.mxu0 %v6028
  %6153 = vmatprep.subr.mxu0 %v6023
  %6154 = vmatpush1.msra.mxu0 %v6022
  %6155 = vmatprep.subr.mxu0 %v6017
  %6156 = vmatpush1.msra.mxu0 %v6016
  %6157 = vmatprep.subr.mxu0 %v6011
  %6158 = vmatpush1.msra.mxu0 %v6010
  %6159 = vmatprep.subr.mxu0 %v6005
  %6160 = vmatpush1.msra.mxu0 %v6004
  %6161 = vmatprep.subr.mxu0 %v5999
  %6162 = vmatpush1.msra.mxu0 %v5998
  %6163 = vmatprep.subr.mxu0 %v5993
  %6164 = vmatpush1.msra.mxu0 %v5992
  %6165 = vmatprep.subr.mxu0 %v5987
  %6166 = vmatpush1.msra.mxu0 %v5986
  %6167 = vmatprep.subr.mxu0 %v5981
  %6168 = vmatpush1.msra.mxu0 %v5980
  %6169 = vmatprep.subr.mxu0 %v5975
  %6170 = vmatpush1.msra.mxu0 %v5974
  %6171 = vmatprep.subr.mxu0 %v5969
  %6172 = vmatpush1.msra.mxu0 %v5968
  %6173 = vmatprep.subr.mxu0 %v5963
  %6174 = vmatpush1.msra.mxu0 %v5962
  %6175 = vmatprep.subr.mxu0 %v5957
  %6176 = vmatpush1.msra.mxu0 %v5956
  %6177 = vmatprep.subr.mxu0 %v5951
  %6178 = vmatpush1.msra.mxu0 %v5950
  %6179 = vmatprep.subr.mxu0 %v5945
  %6180 = vmatpush1.msra.mxu0 %v5944
  %6181 = vmatprep.subr.mxu0 %v6131
  %6182 = vmatpush2.msra.mxu0 %v6130
  %6183 = vmatprep.subr.mxu0 %v6125
  %6184 = vmatpush2.msra.mxu0 %v6124
  %6185 = vmatprep.subr.mxu0 %v6119
  %6186 = vmatpush2.msra.mxu0 %v6118
  %6187 = vmatprep.subr.mxu0 %v6113
  %6188 = vmatpush2.msra.mxu0 %v6112
  %6189 = vmatprep.subr.mxu0 %v6107
  %6190 = vmatpush2.msra.mxu0 %v6106
  %6191 = vmatprep.subr.mxu0 %v6101
  %6192 = vmatpush2.msra.mxu0 %v6100
  %6193 = vmatprep.subr.mxu0 %v6095
  %6194 = vmatpush2.msra.mxu0 %v6094
  %6195 = vmatprep.subr.mxu0 %v6089
  %6196 = vmatpush2.msra.mxu0 %v6088
  %6197 = vmatprep.subr.mxu0 %v6083
  %6198 = vmatpush2.msra.mxu0 %v6082
  %6199 = vmatprep.subr.mxu0 %v6077
  %6200 = vmatpush2.msra.mxu0 %v6076
  %6201 = vmatprep.subr.mxu0 %v6071
  %6202 = vmatpush2.msra.mxu0 %v6070
  %6203 = vmatprep.subr.mxu0 %v6065
  %6204 = vmatpush2.msra.mxu0 %v6064
  %6205 = vmatprep.subr.mxu0 %v6059
  %6206 = vmatpush2.msra.mxu0 %v6058
  %6207 = vmatprep.subr.mxu0 %v6053
  %6208 = vmatpush2.msra.mxu0 %v6052
  %6209 = vmatprep.subr.mxu0 %v6047
  %6210 = vmatpush2.msra.mxu0 %v6046
  %6211 = vmatprep.subr.mxu0 %v6041
  %6212 = vmatpush2.msra.mxu0 %v6040
  %6213 = vmatprep.mubr.f32.mxu0 %v5941
  %6214 = vmatmul.mubr.f32.gmra.mxu0 %v5940
  %v6215 = vpop.f32.mrf.mxu0
  %v6216 = vadd.f32 %v6142, %v6215
  %v6217 = vpop.f32.mrf.mxu0
  %v6218 = vadd.f32 %v6142, %v6217
  %6219 = vmatprep.mubr.f32.mxu0 %v5943
  %6220 = vmatmul.mubr.f32.gmra.mxu0 %v5942
  %v6221 = vpop.f32.mrf.mxu0
  %v6222 = vadd.f32 %v6147, %v6221
  %v6223 = vpop.f32.mrf.mxu0
  %v6224 = vadd.f32 %v6147, %v6223
  %6225 = vdwg.mxu0
  %6226 = vmatprep.subr.mxu0 %v6037
  %6227 = vmatpush1.msra.mxu0 %v6036
  %6228 = vmatprep.subr.mxu0 %v6031
  %6229 = vmatpush1.msra.mxu0 %v6030
  %6230 = vmatprep.subr.mxu0 %v6025
  %6231 = vmatpush1.msra.mxu0 %v6024
  %6232 = vmatprep.subr.mxu0 %v6019
  %6233 = vmatpush1.msra.mxu0 %v6018
  %6234 = vmatprep.subr.mxu0 %v6013
  %6235 = vmatpush1.msra.mxu0 %v6012
  %6236 = vmatprep.subr.mxu0 %v6007
  %6237 = vmatpush1.msra.mxu0 %v6006
  %6238 = vmatprep.subr.mxu0 %v6001
  %6239 = vmatpush1.msra.mxu0 %v6000
  %6240 = vmatprep.subr.mxu0 %v5995
  %6241 = vmatpush1.msra.mxu0 %v5994
  %6242 = vmatprep.subr.mxu0 %v5989
  %6243 = vmatpush1.msra.mxu0 %v5988
  %6244 = vmatprep.subr.mxu0 %v5983
  %6245 = vmatpush1.msra.mxu0 %v5982
  %6246 = vmatprep.subr.mxu0 %v5977
  %6247 = vmatpush1.msra.mxu0 %v5976
  %6248 = vmatprep.subr.mxu0 %v5971
  %6249 = vmatpush1.msra.mxu0 %v5970
  %6250 = vmatprep.subr.mxu0 %v5965
  %6251 = vmatpush1.msra.mxu0 %v5964
  %6252 = vmatprep.subr.mxu0 %v5959
  %6253 = vmatpush1.msra.mxu0 %v5958
  %6254 = vmatprep.subr.mxu0 %v5953
  %6255 = vmatpush1.msra.mxu0 %v5952
  %6256 = vmatprep.subr.mxu0 %v5947
  %6257 = vmatpush1.msra.mxu0 %v5946
  %6258 = vmatprep.subr.mxu0 %v6133
  %6259 = vmatpush2.msra.mxu0 %v6132
  %6260 = vmatprep.subr.mxu0 %v6127
  %6261 = vmatpush2.msra.mxu0 %v6126
  %6262 = vmatprep.subr.mxu0 %v6121
  %6263 = vmatpush2.msra.mxu0 %v6120
  %6264 = vmatprep.subr.mxu0 %v6115
  %6265 = vmatpush2.msra.mxu0 %v6114
  %6266 = vmatprep.subr.mxu0 %v6109
  %6267 = vmatpush2.msra.mxu0 %v6108
  %6268 = vmatprep.subr.mxu0 %v6103
  %6269 = vmatpush2.msra.mxu0 %v6102
  %6270 = vmatprep.subr.mxu0 %v6097
  %6271 = vmatpush2.msra.mxu0 %v6096
  %6272 = vmatprep.subr.mxu0 %v6091
  %6273 = vmatpush2.msra.mxu0 %v6090
  %6274 = vmatprep.subr.mxu0 %v6085
  %6275 = vmatpush2.msra.mxu0 %v6084
  %6276 = vmatprep.subr.mxu0 %v6079
  %6277 = vmatpush2.msra.mxu0 %v6078
  %6278 = vmatprep.subr.mxu0 %v6073
  %6279 = vmatpush2.msra.mxu0 %v6072
  %6280 = vmatprep.subr.mxu0 %v6067
  %6281 = vmatpush2.msra.mxu0 %v6066
  %6282 = vmatprep.subr.mxu0 %v6061
  %6283 = vmatpush2.msra.mxu0 %v6060
  %6284 = vmatprep.subr.mxu0 %v6055
  %6285 = vmatpush2.msra.mxu0 %v6054
  %6286 = vmatprep.subr.mxu0 %v6049
  %6287 = vmatpush2.msra.mxu0 %v6048
  %6288 = vmatprep.subr.mxu0 %v6043
  %6289 = vmatpush2.msra.mxu0 %v6042
  %6290 = vmatprep.mubr.f32.mxu0 %v5941
  %6291 = vmatmul.mubr.f32.gmra.mxu0 %v5940
  %v6292 = vpop.f32.mrf.mxu0
  %v6293 = vadd.f32 %v6142, %v6292
  %v6294 = vpop.f32.mrf.mxu0
  %v6295 = vadd.f32 %v6142, %v6294
  %6296 = vmatprep.mubr.f32.mxu0 %v5943
  %6297 = vmatmul.mubr.f32.gmra.mxu0 %v5942
  %v6298 = vpop.f32.mrf.mxu0
  %v6299 = vadd.f32 %v6147, %v6298
  %v6300 = vpop.f32.mrf.mxu0
  %v6301 = vadd.f32 %v6147, %v6300
  %6302 = vdwg.mxu0
  %6303 = vmatprep.subr.mxu0 %v6039
  %6304 = vmatpush1.msra.mxu0 %v6038
  %6305 = vmatprep.subr.mxu0 %v6033
  %6306 = vmatpush1.msra.mxu0 %v6032
  %6307 = vmatprep.subr.mxu0 %v6027
  %6308 = vmatpush1.msra.mxu0 %v6026
  %6309 = vmatprep.subr.mxu0 %v6021
  %6310 = vmatpush1.msra.mxu0 %v6020
  %6311 = vmatprep.subr.mxu0 %v6015
  %6312 = vmatpush1.msra.mxu0 %v6014
  %6313 = vmatprep.subr.mxu0 %v6009
  %6314 = vmatpush1.msra.mxu0 %v6008
  %6315 = vmatprep.subr.mxu0 %v6003
  %6316 = vmatpush1.msra.mxu0 %v6002
  %6317 = vmatprep.subr.mxu0 %v5997
  %6318 = vmatpush1.msra.mxu0 %v5996
  %6319 = vmatprep.subr.mxu0 %v5991
  %6320 = vmatpush1.msra.mxu0 %v5990
  %6321 = vmatprep.subr.mxu0 %v5985
  %6322 = vmatpush1.msra.mxu0 %v5984
  %6323 = vmatprep.subr.mxu0 %v5979
  %6324 = vmatpush1.msra.mxu0 %v5978
  %6325 = vmatprep.subr.mxu0 %v5973
  %6326 = vmatpush1.msra.mxu0 %v5972
  %6327 = vmatprep.subr.mxu0 %v5967
  %6328 = vmatpush1.msra.mxu0 %v5966
  %6329 = vmatprep.subr.mxu0 %v5961
  %6330 = vmatpush1.msra.mxu0 %v5960
  %6331 = vmatprep.subr.mxu0 %v5955
  %6332 = vmatpush1.msra.mxu0 %v5954
  %6333 = vmatprep.subr.mxu0 %v5949
  %6334 = vmatpush1.msra.mxu0 %v5948
  %6335 = vmatprep.subr.mxu0 %v6135
  %6336 = vmatpush2.msra.mxu0 %v6134
  %6337 = vmatprep.subr.mxu0 %v6129
  %6338 = vmatpush2.msra.mxu0 %v6128
  %6339 = vmatprep.subr.mxu0 %v6123
  %6340 = vmatpush2.msra.mxu0 %v6122
  %6341 = vmatprep.subr.mxu0 %v6117
  %6342 = vmatpush2.msra.mxu0 %v6116
  %6343 = vmatprep.subr.mxu0 %v6111
  %6344 = vmatpush2.msra.mxu0 %v6110
  %6345 = vmatprep.subr.mxu0 %v6105
  %6346 = vmatpush2.msra.mxu0 %v6104
  %6347 = vmatprep.subr.mxu0 %v6099
  %6348 = vmatpush2.msra.mxu0 %v6098
  %6349 = vmatprep.subr.mxu0 %v6093
  %6350 = vmatpush2.msra.mxu0 %v6092
  %6351 = vmatprep.subr.mxu0 %v6087
  %6352 = vmatpush2.msra.mxu0 %v6086
  %6353 = vmatprep.subr.mxu0 %v6081
  %6354 = vmatpush2.msra.mxu0 %v6080
  %6355 = vmatprep.subr.mxu0 %v6075
  %6356 = vmatpush2.msra.mxu0 %v6074
  %6357 = vmatprep.subr.mxu0 %v6069
  %6358 = vmatpush2.msra.mxu0 %v6068
  %6359 = vmatprep.subr.mxu0 %v6063
  %6360 = vmatpush2.msra.mxu0 %v6062
  %6361 = vmatprep.subr.mxu0 %v6057
  %6362 = vmatpush2.msra.mxu0 %v6056
  %6363 = vmatprep.subr.mxu0 %v6051
  %6364 = vmatpush2.msra.mxu0 %v6050
  %6365 = vmatprep.subr.mxu0 %v6045
  %6366 = vmatpush2.msra.mxu0 %v6044
  %6367 = vmatprep.mubr.f32.mxu0 %v5941
  %6368 = vmatmul.mubr.f32.gmra.mxu0 %v5940
  %v6369 = vpop.f32.mrf.mxu0
  %v6370 = vadd.f32 %v6142, %v6369
  %v6371 = vpop.f32.mrf.mxu0
  %v6372 = vadd.f32 %v6142, %v6371
  %6373 = vmatprep.mubr.f32.mxu0 %v5943
  %6374 = vmatmul.mubr.f32.gmra.mxu0 %v5942
  %v6375 = vpop.f32.mrf.mxu0
  %v6376 = vadd.f32 %v6147, %v6375
  %v6377 = vpop.f32.mrf.mxu0
  %v6378 = vadd.f32 %v6147, %v6377
  %6379 = vdwg.mxu0
  %vm6380 = vcmp.gt.f32.partialorder %v6216, 0.0
  %vm6381 = vcmp.gt.f32.partialorder %v6218, 0.0
  %vm6382 = vcmp.gt.f32.partialorder %v6293, 0.0
  %vm6383 = vcmp.gt.f32.partialorder %v6295, 0.0
  %vm6384 = vcmp.gt.f32.partialorder %v6370, 0.0
  %vm6385 = vcmp.gt.f32.partialorder %v6372, 0.0
  %vm6386 = vcmp.gt.f32.partialorder %v6222, 0.0
  %vm6387 = vcmp.gt.f32.partialorder %v6224, 0.0
  %vm6388 = vcmp.gt.f32.partialorder %v6299, 0.0
  %vm6389 = vcmp.gt.f32.partialorder %v6301, 0.0
  %vm6390 = vcmp.gt.f32.partialorder %v6376, 0.0
  %vm6391 = vcmp.gt.f32.partialorder %v6378, 0.0
  %v6392 = vmul.f32 %v6216, 0.2
  %v6393 = vmul.f32 %v6218, 0.2
  %v6394 = vmul.f32 %v6293, 0.2
  %v6395 = vmul.f32 %v6295, 0.2
  %v6396 = vmul.f32 %v6370, 0.2
  %v6397 = vmul.f32 %v6372, 0.2
  %v6398 = vmul.f32 %v6222, 0.2
  %v6399 = vmul.f32 %v6224, 0.2
  %v6400 = vmul.f32 %v6299, 0.2
  %v6401 = vmul.f32 %v6301, 0.2
  %v6402 = vmul.f32 %v6376, 0.2
  %v6403 = vmul.f32 %v6378, 0.2
  %v6404 = vsel %vm6380, %v6216, %v6392
  %v6405 = vsel %vm6381, %v6218, %v6393
  %v6406 = vsel %vm6382, %v6293, %v6394
  %v6407 = vsel %vm6383, %v6295, %v6395
  %v6408 = vsel %vm6384, %v6370, %v6396
  %v6409 = vsel %vm6385, %v6372, %v6397
  %v6410 = vsel %vm6386, %v6222, %v6398
  %v6411 = vsel %vm6387, %v6224, %v6399
  %v6412 = vsel %vm6388, %v6299, %v6400
  %v6413 = vsel %vm6389, %v6301, %v6401
  %v6414 = vsel %vm6390, %v6376, %v6402
  %v6415 = vsel %vm6391, %v6378, %v6403
  %v6416 = vmul.f32 %v6404, %v1357
  %v6417 = vmul.f32 %v6405, %v1361
  %v6418 = vmul.f32 %v6406, %v1365
  %v6419 = vmul.f32 %v6407, %v1369
  %v6420 = vmul.f32 %v6408, %v1373
  %v6421 = vmul.f32 %v6409, %v1377
  %v6422 = vmul.f32 %v6410, %v1357
  %v6423 = vmul.f32 %v6411, %v1361
  %v6424 = vmul.f32 %v6412, %v1365
  %v6425 = vmul.f32 %v6413, %v1369
  %v6426 = vmul.f32 %v6414, %v1373
  %v6427 = vmul.f32 %v6415, %v1377
  %6428 = vst [vmem:[#allocation2 + $0x8] sm:$0xff] %v6416
  %6429 = vst [vmem:[#allocation2 + $0x10] sm:$0xff] %v6417
  %6430 = vst [vmem:[#allocation2 + $0x18] sm:$0xff] %v6418
  %6431 = vst [vmem:[#allocation2 + $0x20] sm:$0xff] %v6419
  %6432 = vst [vmem:[#allocation2 + $0x28] sm:$0xff] %v6420
  %6433 = vst [vmem:[#allocation2 + $0x30] sm:$0xff] %v6421
  %6434 = vst [vmem:[#allocation2 + $0x48] sm:$0xff] %v6422
  %6435 = vst [vmem:[#allocation2 + $0x50] sm:$0xff] %v6423
  %6436 = vst [vmem:[#allocation2 + $0x58] sm:$0xff] %v6424
  %6437 = vst [vmem:[#allocation2 + $0x60] sm:$0xff] %v6425
  %6438 = vst [vmem:[#allocation2 + $0x68] sm:$0xff] %v6426
  %6439 = vst [vmem:[#allocation2 + $0x70] sm:$0xff] %v6427
  %v6440 = vld [vmem:[#allocation3 + $0x8] sm:$0xff]
  %v6441 = vld [vmem:[#allocation3 + $0x10] sm:$0xff]
  %v6442 = vld [vmem:[#allocation3 + $0x18] sm:$0xff]
  %v6443 = vld [vmem:[#allocation3 + $0x20] sm:$0xff]
  %v6444 = vld [vmem:[#allocation3 + $0x28] sm:$0xff]
  %v6445 = vld [vmem:[#allocation3 + $0x30] sm:$0xff]
  %v6446 = vld [vmem:[#allocation3 + $0x48] sm:$0xff]
  %v6447 = vld [vmem:[#allocation3 + $0x50] sm:$0xff]
  %v6448 = vld [vmem:[#allocation3 + $0x58] sm:$0xff]
  %v6449 = vld [vmem:[#allocation3 + $0x60] sm:$0xff]
  %v6450 = vld [vmem:[#allocation3 + $0x68] sm:$0xff]
  %v6451 = vld [vmem:[#allocation3 + $0x70] sm:$0xff]
  %v6452 = vld [vmem:[#allocation2] sm:$0xff]
  %v6453 = vld [vmem:[#allocation2 + $0x8] sm:$0xff]
  %v6454 = vld [vmem:[#allocation2 + $0x10] sm:$0xff]
  %v6455 = vld [vmem:[#allocation2 + $0x18] sm:$0xff]
  %v6456 = vld [vmem:[#allocation2 + $0x20] sm:$0xff]
  %v6457 = vld [vmem:[#allocation2 + $0x28] sm:$0xff]
  %v6458 = vld [vmem:[#allocation2 + $0x30] sm:$0xff]
  %v6459 = vld [vmem:[#allocation2 + $0x40] sm:$0xff]
  %v6460 = vld [vmem:[#allocation2 + $0x48] sm:$0xff]
  %v6461 = vld [vmem:[#allocation2 + $0x50] sm:$0xff]
  %v6462 = vld [vmem:[#allocation2 + $0x58] sm:$0xff]
  %v6463 = vld [vmem:[#allocation2 + $0x60] sm:$0xff]
  %v6464 = vld [vmem:[#allocation2 + $0x68] sm:$0xff]
  %v6465 = vld [vmem:[#allocation2 + $0x70] sm:$0xff]
  %6480 = vrot.lane.b32.xlu0 %v6452, 19
  %v6481 = vpop.permute.xlu0 %6480
  %6482 = vrot.lane.b32.xlu0 %v6453, 19
  %v6483 = vpop.permute.xlu0 %6482
  %6484 = vrot.lane.b32.xlu0 %v6454, 19
  %v6485 = vpop.permute.xlu0 %6484
  %6486 = vrot.lane.b32.xlu0 %v6455, 19
  %v6487 = vpop.permute.xlu0 %6486
  %6488 = vrot.lane.b32.xlu0 %v6456, 19
  %v6489 = vpop.permute.xlu0 %6488
  %6490 = vrot.lane.b32.xlu0 %v6457, 19
  %v6491 = vpop.permute.xlu0 %6490
  %6492 = vrot.lane.b32.xlu0 %v6458, 19
  %v6493 = vpop.permute.xlu0 %6492
  %6494 = vrot.lane.b32.xlu0 %v6459, 19
  %v6495 = vpop.permute.xlu0 %6494
  %6496 = vrot.lane.b32.xlu0 %v6460, 19
  %v6497 = vpop.permute.xlu0 %6496
  %6498 = vrot.lane.b32.xlu0 %v6461, 19
  %v6499 = vpop.permute.xlu0 %6498
  %6500 = vrot.lane.b32.xlu0 %v6462, 19
  %v6501 = vpop.permute.xlu0 %6500
  %6502 = vrot.lane.b32.xlu0 %v6463, 19
  %v6503 = vpop.permute.xlu0 %6502
  %6504 = vrot.lane.b32.xlu0 %v6464, 19
  %v6505 = vpop.permute.xlu0 %6504
  %6506 = vrot.lane.b32.xlu0 %v6465, 19
  %v6507 = vpop.permute.xlu0 %6506
  %v6508 = vsel %vm166, %v6481, %v6483
  %v6509 = vsel %vm166, %v6483, %v6485
  %v6510 = vsel %vm166, %v6485, %v6487
  %v6511 = vsel %vm166, %v6487, %v6489
  %v6512 = vsel %vm166, %v6489, %v6491
  %v6513 = vsel %vm166, %v6491, %v6493
  %v6514 = vsel %vm166, %v6495, %v6497
  %v6515 = vsel %vm166, %v6497, %v6499
  %v6516 = vsel %vm166, %v6499, %v6501
  %v6517 = vsel %vm166, %v6501, %v6503
  %v6518 = vsel %vm166, %v6503, %v6505
  %v6519 = vsel %vm166, %v6505, %v6507
  %6532 = vst [vmem:[#allocation4] sm:$0xff] %v6508
  %6533 = vst [vmem:[#allocation4 + $0x8] sm:$0xff] %v6509
  %6534 = vst [vmem:[#allocation4 + $0x10] sm:$0xff] %v6510
  %6535 = vst [vmem:[#allocation4 + $0x18] sm:$0xff] %v6511
  %6536 = vst [vmem:[#allocation4 + $0x20] sm:$0xff] %v6512
  %6537 = vst [vmem:[#allocation4 + $0x28] sm:$0xff] %v6513
  %6538 = vst [vmem:[#allocation4 + $0x30] sm:$0xff] %v6514
  %6539 = vst [vmem:[#allocation4 + $0x38] sm:$0xff] %v6515
  %6540 = vst [vmem:[#allocation4 + $0x40] sm:$0xff] %v6516
  %6541 = vst [vmem:[#allocation4 + $0x48] sm:$0xff] %v6517
  %6542 = vst [vmem:[#allocation4 + $0x50] sm:$0xff] %v6518
  %6543 = vst [vmem:[#allocation4 + $0x58] sm:$0xff] %v6519
  %v6544 = vld [vmem:[#allocation2] sm:$0xff]
  %v6545 = vld [vmem:[#allocation2 + $0x8] sm:$0xff]
  %v6546 = vld [vmem:[#allocation2 + $0x10] sm:$0xff]
  %v6547 = vld [vmem:[#allocation2 + $0x18] sm:$0xff]
  %v6548 = vld [vmem:[#allocation2 + $0x20] sm:$0xff]
  %v6549 = vld [vmem:[#allocation2 + $0x28] sm:$0xff]
  %v6550 = vld [vmem:[#allocation2 + $0x30] sm:$0xff]
  %v6551 = vld [vmem:[#allocation2 + $0x40] sm:$0xff]
  %v6552 = vld [vmem:[#allocation2 + $0x48] sm:$0xff]
  %v6553 = vld [vmem:[#allocation2 + $0x50] sm:$0xff]
  %v6554 = vld [vmem:[#allocation2 + $0x58] sm:$0xff]
  %v6555 = vld [vmem:[#allocation2 + $0x60] sm:$0xff]
  %v6556 = vld [vmem:[#allocation2 + $0x68] sm:$0xff]
  %v6557 = vld [vmem:[#allocation2 + $0x70] sm:$0xff]
  %6572 = vrot.lane.b32.xlu0 %v6544, 18
  %v6573 = vpop.permute.xlu0 %6572
  %6574 = vrot.lane.b32.xlu0 %v6545, 18
  %v6575 = vpop.permute.xlu0 %6574
  %6576 = vrot.lane.b32.xlu0 %v6546, 18
  %v6577 = vpop.permute.xlu0 %6576
  %6578 = vrot.lane.b32.xlu0 %v6547, 18
  %v6579 = vpop.permute.xlu0 %6578
  %6580 = vrot.lane.b32.xlu0 %v6548, 18
  %v6581 = vpop.permute.xlu0 %6580
  %6582 = vrot.lane.b32.xlu0 %v6549, 18
  %v6583 = vpop.permute.xlu0 %6582
  %6584 = vrot.lane.b32.xlu0 %v6550, 18
  %v6585 = vpop.permute.xlu0 %6584
  %6586 = vrot.lane.b32.xlu0 %v6551, 18
  %v6587 = vpop.permute.xlu0 %6586
  %6588 = vrot.lane.b32.xlu0 %v6552, 18
  %v6589 = vpop.permute.xlu0 %6588
  %6590 = vrot.lane.b32.xlu0 %v6553, 18
  %v6591 = vpop.permute.xlu0 %6590
  %6592 = vrot.lane.b32.xlu0 %v6554, 18
  %v6593 = vpop.permute.xlu0 %6592
  %6594 = vrot.lane.b32.xlu0 %v6555, 18
  %v6595 = vpop.permute.xlu0 %6594
  %6596 = vrot.lane.b32.xlu0 %v6556, 18
  %v6597 = vpop.permute.xlu0 %6596
  %6598 = vrot.lane.b32.xlu0 %v6557, 18
  %v6599 = vpop.permute.xlu0 %6598
  %v6600 = vsel %vm259, %v6573, %v6575
  %v6601 = vsel %vm259, %v6575, %v6577
  %v6602 = vsel %vm259, %v6577, %v6579
  %v6603 = vsel %vm259, %v6579, %v6581
  %v6604 = vsel %vm259, %v6581, %v6583
  %v6605 = vsel %vm259, %v6583, %v6585
  %v6606 = vsel %vm259, %v6587, %v6589
  %v6607 = vsel %vm259, %v6589, %v6591
  %v6608 = vsel %vm259, %v6591, %v6593
  %v6609 = vsel %vm259, %v6593, %v6595
  %v6610 = vsel %vm259, %v6595, %v6597
  %v6611 = vsel %vm259, %v6597, %v6599
  %6624 = vst [vmem:[#allocation4 + $0x60] sm:$0xff] %v6600
  %6625 = vst [vmem:[#allocation4 + $0x68] sm:$0xff] %v6601
  %6626 = vst [vmem:[#allocation4 + $0x70] sm:$0xff] %v6602
  %6627 = vst [vmem:[#allocation4 + $0x78] sm:$0xff] %v6603
  %6628 = vst [vmem:[#allocation4 + $0x80] sm:$0xff] %v6604
  %6629 = vst [vmem:[#allocation4 + $0x88] sm:$0xff] %v6605
  %6630 = vst [vmem:[#allocation4 + $0x90] sm:$0xff] %v6606
  %6631 = vst [vmem:[#allocation4 + $0x98] sm:$0xff] %v6607
  %6632 = vst [vmem:[#allocation4 + $0xa0] sm:$0xff] %v6608
  %6633 = vst [vmem:[#allocation4 + $0xa8] sm:$0xff] %v6609
  %6634 = vst [vmem:[#allocation4 + $0xb0] sm:$0xff] %v6610
  %6635 = vst [vmem:[#allocation4 + $0xb8] sm:$0xff] %v6611
  %v6636 = vld [vmem:[#allocation2] sm:$0xff]
  %v6637 = vld [vmem:[#allocation2 + $0x8] sm:$0xff]
  %v6638 = vld [vmem:[#allocation2 + $0x10] sm:$0xff]
  %v6639 = vld [vmem:[#allocation2 + $0x18] sm:$0xff]
  %v6640 = vld [vmem:[#allocation2 + $0x20] sm:$0xff]
  %v6641 = vld [vmem:[#allocation2 + $0x28] sm:$0xff]
  %v6642 = vld [vmem:[#allocation2 + $0x30] sm:$0xff]
  %v6643 = vld [vmem:[#allocation2 + $0x40] sm:$0xff]
  %v6644 = vld [vmem:[#allocation2 + $0x48] sm:$0xff]
  %v6645 = vld [vmem:[#allocation2 + $0x50] sm:$0xff]
  %v6646 = vld [vmem:[#allocation2 + $0x58] sm:$0xff]
  %v6647 = vld [vmem:[#allocation2 + $0x60] sm:$0xff]
  %v6648 = vld [vmem:[#allocation2 + $0x68] sm:$0xff]
  %v6649 = vld [vmem:[#allocation2 + $0x70] sm:$0xff]
  %6664 = vrot.lane.b32.xlu0 %v6636, 17
  %v6665 = vpop.permute.xlu0 %6664
  %6666 = vrot.lane.b32.xlu0 %v6637, 17
  %v6667 = vpop.permute.xlu0 %6666
  %6668 = vrot.lane.b32.xlu0 %v6638, 17
  %v6669 = vpop.permute.xlu0 %6668
  %6670 = vrot.lane.b32.xlu0 %v6639, 17
  %v6671 = vpop.permute.xlu0 %6670
  %6672 = vrot.lane.b32.xlu0 %v6640, 17
  %v6673 = vpop.permute.xlu0 %6672
  %6674 = vrot.lane.b32.xlu0 %v6641, 17
  %v6675 = vpop.permute.xlu0 %6674
  %6676 = vrot.lane.b32.xlu0 %v6642, 17
  %v6677 = vpop.permute.xlu0 %6676
  %6678 = vrot.lane.b32.xlu0 %v6643, 17
  %v6679 = vpop.permute.xlu0 %6678
  %6680 = vrot.lane.b32.xlu0 %v6644, 17
  %v6681 = vpop.permute.xlu0 %6680
  %6682 = vrot.lane.b32.xlu0 %v6645, 17
  %v6683 = vpop.permute.xlu0 %6682
  %6684 = vrot.lane.b32.xlu0 %v6646, 17
  %v6685 = vpop.permute.xlu0 %6684
  %6686 = vrot.lane.b32.xlu0 %v6647, 17
  %v6687 = vpop.permute.xlu0 %6686
  %6688 = vrot.lane.b32.xlu0 %v6648, 17
  %v6689 = vpop.permute.xlu0 %6688
  %6690 = vrot.lane.b32.xlu0 %v6649, 17
  %v6691 = vpop.permute.xlu0 %6690
  %v6692 = vsel %vm352, %v6665, %v6667
  %v6693 = vsel %vm352, %v6667, %v6669
  %v6694 = vsel %vm352, %v6669, %v6671
  %v6695 = vsel %vm352, %v6671, %v6673
  %v6696 = vsel %vm352, %v6673, %v6675
  %v6697 = vsel %vm352, %v6675, %v6677
  %v6698 = vsel %vm352, %v6679, %v6681
  %v6699 = vsel %vm352, %v6681, %v6683
  %v6700 = vsel %vm352, %v6683, %v6685
  %v6701 = vsel %vm352, %v6685, %v6687
  %v6702 = vsel %vm352, %v6687, %v6689
  %v6703 = vsel %vm352, %v6689, %v6691
  %6716 = vst [vmem:[#allocation4 + $0xc0] sm:$0xff] %v6692
  %6717 = vst [vmem:[#allocation4 + $0xc8] sm:$0xff] %v6693
  %6718 = vst [vmem:[#allocation4 + $0xd0] sm:$0xff] %v6694
  %6719 = vst [vmem:[#allocation4 + $0xd8] sm:$0xff] %v6695
  %6720 = vst [vmem:[#allocation4 + $0xe0] sm:$0xff] %v6696
  %6721 = vst [vmem:[#allocation4 + $0xe8] sm:$0xff] %v6697
  %6722 = vst [vmem:[#allocation4 + $0xf0] sm:$0xff] %v6698
  %6723 = vst [vmem:[#allocation4 + $0xf8] sm:$0xff] %v6699
  %6724 = vst [vmem:[#allocation4 + $0x100] sm:$0xff] %v6700
  %6725 = vst [vmem:[#allocation4 + $0x108] sm:$0xff] %v6701
  %6726 = vst [vmem:[#allocation4 + $0x110] sm:$0xff] %v6702
  %6727 = vst [vmem:[#allocation4 + $0x118] sm:$0xff] %v6703
  %v6728 = vld [vmem:[#allocation2] sm:$0xff]
  %v6729 = vld [vmem:[#allocation2 + $0x8] sm:$0xff]
  %v6730 = vld [vmem:[#allocation2 + $0x10] sm:$0xff]
  %v6731 = vld [vmem:[#allocation2 + $0x18] sm:$0xff]
  %v6732 = vld [vmem:[#allocation2 + $0x20] sm:$0xff]
  %v6733 = vld [vmem:[#allocation2 + $0x28] sm:$0xff]
  %v6734 = vld [vmem:[#allocation2 + $0x30] sm:$0xff]
  %v6735 = vld [vmem:[#allocation2 + $0x40] sm:$0xff]
  %v6736 = vld [vmem:[#allocation2 + $0x48] sm:$0xff]
  %v6737 = vld [vmem:[#allocation2 + $0x50] sm:$0xff]
  %v6738 = vld [vmem:[#allocation2 + $0x58] sm:$0xff]
  %v6739 = vld [vmem:[#allocation2 + $0x60] sm:$0xff]
  %v6740 = vld [vmem:[#allocation2 + $0x68] sm:$0xff]
  %v6741 = vld [vmem:[#allocation2 + $0x70] sm:$0xff]
  %6756 = vrot.lane.b32.xlu0 %v6728, 1
  %v6757 = vpop.permute.xlu0 %6756
  %6758 = vrot.lane.b32.xlu0 %v6729, 1
  %v6759 = vpop.permute.xlu0 %6758
  %6760 = vrot.lane.b32.xlu0 %v6730, 1
  %v6761 = vpop.permute.xlu0 %6760
  %6762 = vrot.lane.b32.xlu0 %v6731, 1
  %v6763 = vpop.permute.xlu0 %6762
  %6764 = vrot.lane.b32.xlu0 %v6732, 1
  %v6765 = vpop.permute.xlu0 %6764
  %6766 = vrot.lane.b32.xlu0 %v6733, 1
  %v6767 = vpop.permute.xlu0 %6766
  %6768 = vrot.lane.b32.xlu0 %v6734, 1
  %v6769 = vpop.permute.xlu0 %6768
  %6770 = vrot.lane.b32.xlu0 %v6735, 1
  %v6771 = vpop.permute.xlu0 %6770
  %6772 = vrot.lane.b32.xlu0 %v6736, 1
  %v6773 = vpop.permute.xlu0 %6772
  %6774 = vrot.lane.b32.xlu0 %v6737, 1
  %v6775 = vpop.permute.xlu0 %6774
  %6776 = vrot.lane.b32.xlu0 %v6738, 1
  %v6777 = vpop.permute.xlu0 %6776
  %6778 = vrot.lane.b32.xlu0 %v6739, 1
  %v6779 = vpop.permute.xlu0 %6778
  %6780 = vrot.lane.b32.xlu0 %v6740, 1
  %v6781 = vpop.permute.xlu0 %6780
  %6782 = vrot.lane.b32.xlu0 %v6741, 1
  %v6783 = vpop.permute.xlu0 %6782
  %v6784 = vsel %vm445, %v6757, %v6759
  %v6785 = vsel %vm445, %v6759, %v6761
  %v6786 = vsel %vm445, %v6761, %v6763
  %v6787 = vsel %vm445, %v6763, %v6765
  %v6788 = vsel %vm445, %v6765, %v6767
  %v6789 = vsel %vm445, %v6767, %v6769
  %v6790 = vsel %vm445, %v6771, %v6773
  %v6791 = vsel %vm445, %v6773, %v6775
  %v6792 = vsel %vm445, %v6775, %v6777
  %v6793 = vsel %vm445, %v6777, %v6779
  %v6794 = vsel %vm445, %v6779, %v6781
  %v6795 = vsel %vm445, %v6781, %v6783
  %6808 = vst [vmem:[#allocation4 + $0x120] sm:$0xff] %v6784
  %6809 = vst [vmem:[#allocation4 + $0x128] sm:$0xff] %v6785
  %6810 = vst [vmem:[#allocation4 + $0x130] sm:$0xff] %v6786
  %6811 = vst [vmem:[#allocation4 + $0x138] sm:$0xff] %v6787
  %6812 = vst [vmem:[#allocation4 + $0x140] sm:$0xff] %v6788
  %6813 = vst [vmem:[#allocation4 + $0x148] sm:$0xff] %v6789
  %6814 = vst [vmem:[#allocation4 + $0x150] sm:$0xff] %v6790
  %6815 = vst [vmem:[#allocation4 + $0x158] sm:$0xff] %v6791
  %6816 = vst [vmem:[#allocation4 + $0x160] sm:$0xff] %v6792
  %6817 = vst [vmem:[#allocation4 + $0x168] sm:$0xff] %v6793
  %6818 = vst [vmem:[#allocation4 + $0x170] sm:$0xff] %v6794
  %6819 = vst [vmem:[#allocation4 + $0x178] sm:$0xff] %v6795
  %v6820 = vld [vmem:[#allocation2 + $0x8] sm:$0xff]
  %v6821 = vld [vmem:[#allocation2 + $0x10] sm:$0xff]
  %v6822 = vld [vmem:[#allocation2 + $0x18] sm:$0xff]
  %v6823 = vld [vmem:[#allocation2 + $0x20] sm:$0xff]
  %v6824 = vld [vmem:[#allocation2 + $0x28] sm:$0xff]
  %v6825 = vld [vmem:[#allocation2 + $0x30] sm:$0xff]
  %v6826 = vld [vmem:[#allocation2 + $0x48] sm:$0xff]
  %v6827 = vld [vmem:[#allocation2 + $0x50] sm:$0xff]
  %v6828 = vld [vmem:[#allocation2 + $0x58] sm:$0xff]
  %v6829 = vld [vmem:[#allocation2 + $0x60] sm:$0xff]
  %v6830 = vld [vmem:[#allocation2 + $0x68] sm:$0xff]
  %v6831 = vld [vmem:[#allocation2 + $0x70] sm:$0xff]
  %6832 = vst [vmem:[#allocation4 + $0x180] sm:$0xff] %v6820
  %6833 = vst [vmem:[#allocation4 + $0x188] sm:$0xff] %v6821
  %6834 = vst [vmem:[#allocation4 + $0x190] sm:$0xff] %v6822
  %6835 = vst [vmem:[#allocation4 + $0x198] sm:$0xff] %v6823
  %6836 = vst [vmem:[#allocation4 + $0x1a0] sm:$0xff] %v6824
  %6837 = vst [vmem:[#allocation4 + $0x1a8] sm:$0xff] %v6825
  %6838 = vst [vmem:[#allocation4 + $0x1b0] sm:$0xff] %v6826
  %6839 = vst [vmem:[#allocation4 + $0x1b8] sm:$0xff] %v6827
  %6840 = vst [vmem:[#allocation4 + $0x1c0] sm:$0xff] %v6828
  %6841 = vst [vmem:[#allocation4 + $0x1c8] sm:$0xff] %v6829
  %6842 = vst [vmem:[#allocation4 + $0x1d0] sm:$0xff] %v6830
  %6843 = vst [vmem:[#allocation4 + $0x1d8] sm:$0xff] %v6831
  %v6844 = vld [vmem:[#allocation2 + $0x8] sm:$0xff]
  %v6845 = vld [vmem:[#allocation2 + $0x10] sm:$0xff]
  %v6846 = vld [vmem:[#allocation2 + $0x18] sm:$0xff]
  %v6847 = vld [vmem:[#allocation2 + $0x20] sm:$0xff]
  %v6848 = vld [vmem:[#allocation2 + $0x28] sm:$0xff]
  %v6849 = vld [vmem:[#allocation2 + $0x30] sm:$0xff]
  %v6850 = vld [vmem:[#allocation2 + $0x38] sm:$0xff]
  %v6851 = vld [vmem:[#allocation2 + $0x48] sm:$0xff]
  %v6852 = vld [vmem:[#allocation2 + $0x50] sm:$0xff]
  %v6853 = vld [vmem:[#allocation2 + $0x58] sm:$0xff]
  %v6854 = vld [vmem:[#allocation2 + $0x60] sm:$0xff]
  %v6855 = vld [vmem:[#allocation2 + $0x68] sm:$0xff]
  %v6856 = vld [vmem:[#allocation2 + $0x70] sm:$0xff]
  %v6857 = vld [vmem:[#allocation2 + $0x78] sm:$0xff]
  %6872 = vrot.lane.b32.xlu0 %v6844, 127
  %v6873 = vpop.permute.xlu0 %6872
  %6874 = vrot.lane.b32.xlu0 %v6845, 127
  %v6875 = vpop.permute.xlu0 %6874
  %6876 = vrot.lane.b32.xlu0 %v6846, 127
  %v6877 = vpop.permute.xlu0 %6876
  %6878 = vrot.lane.b32.xlu0 %v6847, 127
  %v6879 = vpop.permute.xlu0 %6878
  %6880 = vrot.lane.b32.xlu0 %v6848, 127
  %v6881 = vpop.permute.xlu0 %6880
  %6882 = vrot.lane.b32.xlu0 %v6849, 127
  %v6883 = vpop.permute.xlu0 %6882
  %6884 = vrot.lane.b32.xlu0 %v6850, 127
  %v6885 = vpop.permute.xlu0 %6884
  %6886 = vrot.lane.b32.xlu0 %v6851, 127
  %v6887 = vpop.permute.xlu0 %6886
  %6888 = vrot.lane.b32.xlu0 %v6852, 127
  %v6889 = vpop.permute.xlu0 %6888
  %6890 = vrot.lane.b32.xlu0 %v6853, 127
  %v6891 = vpop.permute.xlu0 %6890
  %6892 = vrot.lane.b32.xlu0 %v6854, 127
  %v6893 = vpop.permute.xlu0 %6892
  %6894 = vrot.lane.b32.xlu0 %v6855, 127
  %v6895 = vpop.permute.xlu0 %6894
  %6896 = vrot.lane.b32.xlu0 %v6856, 127
  %v6897 = vpop.permute.xlu0 %6896
  %6898 = vrot.lane.b32.xlu0 %v6857, 127
  %v6899 = vpop.permute.xlu0 %6898
  %v6900 = vsel %vm562, %v6873, %v6875
  %v6901 = vsel %vm562, %v6875, %v6877
  %v6902 = vsel %vm562, %v6877, %v6879
  %v6903 = vsel %vm562, %v6879, %v6881
  %v6904 = vsel %vm562, %v6881, %v6883
  %v6905 = vsel %vm562, %v6883, %v6885
  %v6906 = vsel %vm562, %v6887, %v6889
  %v6907 = vsel %vm562, %v6889, %v6891
  %v6908 = vsel %vm562, %v6891, %v6893
  %v6909 = vsel %vm562, %v6893, %v6895
  %v6910 = vsel %vm562, %v6895, %v6897
  %v6911 = vsel %vm562, %v6897, %v6899
  %6924 = vst [vmem:[#allocation4 + $0x1e0] sm:$0xff] %v6900
  %6925 = vst [vmem:[#allocation4 + $0x1e8] sm:$0xff] %v6901
  %6926 = vst [vmem:[#allocation4 + $0x1f0] sm:$0xff] %v6902
  %6927 = vst [vmem:[#allocation4 + $0x1f8] sm:$0xff] %v6903
  %6928 = vst [vmem:[#allocation4 + $0x200] sm:$0xff] %v6904
  %6929 = vst [vmem:[#allocation4 + $0x208] sm:$0xff] %v6905
  %6930 = vst [vmem:[#allocation4 + $0x210] sm:$0xff] %v6906
  %6931 = vst [vmem:[#allocation4 + $0x218] sm:$0xff] %v6907
  %6932 = vst [vmem:[#allocation4 + $0x220] sm:$0xff] %v6908
  %6933 = vst [vmem:[#allocation4 + $0x228] sm:$0xff] %v6909
  %6934 = vst [vmem:[#allocation4 + $0x230] sm:$0xff] %v6910
  %6935 = vst [vmem:[#allocation4 + $0x238] sm:$0xff] %v6911
  %v6936 = vld [vmem:[#allocation2 + $0x8] sm:$0xff]
  %v6937 = vld [vmem:[#allocation2 + $0x10] sm:$0xff]
  %v6938 = vld [vmem:[#allocation2 + $0x18] sm:$0xff]
  %v6939 = vld [vmem:[#allocation2 + $0x20] sm:$0xff]
  %v6940 = vld [vmem:[#allocation2 + $0x28] sm:$0xff]
  %v6941 = vld [vmem:[#allocation2 + $0x30] sm:$0xff]
  %v6942 = vld [vmem:[#allocation2 + $0x38] sm:$0xff]
  %v6943 = vld [vmem:[#allocation2 + $0x48] sm:$0xff]
  %v6944 = vld [vmem:[#allocation2 + $0x50] sm:$0xff]
  %v6945 = vld [vmem:[#allocation2 + $0x58] sm:$0xff]
  %v6946 = vld [vmem:[#allocation2 + $0x60] sm:$0xff]
  %v6947 = vld [vmem:[#allocation2 + $0x68] sm:$0xff]
  %v6948 = vld [vmem:[#allocation2 + $0x70] sm:$0xff]
  %v6949 = vld [vmem:[#allocation2 + $0x78] sm:$0xff]
  %6964 = vrot.lane.b32.xlu0 %v6936, 111
  %v6965 = vpop.permute.xlu0 %6964
  %6966 = vrot.lane.b32.xlu0 %v6937, 111
  %v6967 = vpop.permute.xlu0 %6966
  %6968 = vrot.lane.b32.xlu0 %v6938, 111
  %v6969 = vpop.permute.xlu0 %6968
  %6970 = vrot.lane.b32.xlu0 %v6939, 111
  %v6971 = vpop.permute.xlu0 %6970
  %6972 = vrot.lane.b32.xlu0 %v6940, 111
  %v6973 = vpop.permute.xlu0 %6972
  %6974 = vrot.lane.b32.xlu0 %v6941, 111
  %v6975 = vpop.permute.xlu0 %6974
  %6976 = vrot.lane.b32.xlu0 %v6942, 111
  %v6977 = vpop.permute.xlu0 %6976
  %6978 = vrot.lane.b32.xlu0 %v6943, 111
  %v6979 = vpop.permute.xlu0 %6978
  %6980 = vrot.lane.b32.xlu0 %v6944, 111
  %v6981 = vpop.permute.xlu0 %6980
  %6982 = vrot.lane.b32.xlu0 %v6945, 111
  %v6983 = vpop.permute.xlu0 %6982
  %6984 = vrot.lane.b32.xlu0 %v6946, 111
  %v6985 = vpop.permute.xlu0 %6984
  %6986 = vrot.lane.b32.xlu0 %v6947, 111
  %v6987 = vpop.permute.xlu0 %6986
  %6988 = vrot.lane.b32.xlu0 %v6948, 111
  %v6989 = vpop.permute.xlu0 %6988
  %6990 = vrot.lane.b32.xlu0 %v6949, 111
  %v6991 = vpop.permute.xlu0 %6990
  %v6992 = vsel %vm655, %v6965, %v6967
  %v6993 = vsel %vm655, %v6967, %v6969
  %v6994 = vsel %vm655, %v6969, %v6971
  %v6995 = vsel %vm655, %v6971, %v6973
  %v6996 = vsel %vm655, %v6973, %v6975
  %v6997 = vsel %vm655, %v6975, %v6977
  %v6998 = vsel %vm655, %v6979, %v6981
  %v6999 = vsel %vm655, %v6981, %v6983
  %v7000 = vsel %vm655, %v6983, %v6985
  %v7001 = vsel %vm655, %v6985, %v6987
  %v7002 = vsel %vm655, %v6987, %v6989
  %v7003 = vsel %vm655, %v6989, %v6991
  %7016 = vst [vmem:[#allocation4 + $0x240] sm:$0xff] %v6992
  %7017 = vst [vmem:[#allocation4 + $0x248] sm:$0xff] %v6993
  %7018 = vst [vmem:[#allocation4 + $0x250] sm:$0xff] %v6994
  %7019 = vst [vmem:[#allocation4 + $0x258] sm:$0xff] %v6995
  %7020 = vst [vmem:[#allocation4 + $0x260] sm:$0xff] %v6996
  %7021 = vst [vmem:[#allocation4 + $0x268] sm:$0xff] %v6997
  %7022 = vst [vmem:[#allocation4 + $0x270] sm:$0xff] %v6998
  %7023 = vst [vmem:[#allocation4 + $0x278] sm:$0xff] %v6999
  %7024 = vst [vmem:[#allocation4 + $0x280] sm:$0xff] %v7000
  %7025 = vst [vmem:[#allocation4 + $0x288] sm:$0xff] %v7001
  %7026 = vst [vmem:[#allocation4 + $0x290] sm:$0xff] %v7002
  %7027 = vst [vmem:[#allocation4 + $0x298] sm:$0xff] %v7003
  %v7028 = vld [vmem:[#allocation2 + $0x8] sm:$0xff]
  %v7029 = vld [vmem:[#allocation2 + $0x10] sm:$0xff]
  %v7030 = vld [vmem:[#allocation2 + $0x18] sm:$0xff]
  %v7031 = vld [vmem:[#allocation2 + $0x20] sm:$0xff]
  %v7032 = vld [vmem:[#allocation2 + $0x28] sm:$0xff]
  %v7033 = vld [vmem:[#allocation2 + $0x30] sm:$0xff]
  %v7034 = vld [vmem:[#allocation2 + $0x38] sm:$0xff]
  %v7035 = vld [vmem:[#allocation2 + $0x48] sm:$0xff]
  %v7036 = vld [vmem:[#allocation2 + $0x50] sm:$0xff]
  %v7037 = vld [vmem:[#allocation2 + $0x58] sm:$0xff]
  %v7038 = vld [vmem:[#allocation2 + $0x60] sm:$0xff]
  %v7039 = vld [vmem:[#allocation2 + $0x68] sm:$0xff]
  %v7040 = vld [vmem:[#allocation2 + $0x70] sm:$0xff]
  %v7041 = vld [vmem:[#allocation2 + $0x78] sm:$0xff]
  %7056 = vrot.lane.b32.xlu0 %v7028, 110
  %v7057 = vpop.permute.xlu0 %7056
  %7058 = vrot.lane.b32.xlu0 %v7029, 110
  %v7059 = vpop.permute.xlu0 %7058
  %7060 = vrot.lane.b32.xlu0 %v7030, 110
  %v7061 = vpop.permute.xlu0 %7060
  %7062 = vrot.lane.b32.xlu0 %v7031, 110
  %v7063 = vpop.permute.xlu0 %7062
  %7064 = vrot.lane.b32.xlu0 %v7032, 110
  %v7065 = vpop.permute.xlu0 %7064
  %7066 = vrot.lane.b32.xlu0 %v7033, 110
  %v7067 = vpop.permute.xlu0 %7066
  %7068 = vrot.lane.b32.xlu0 %v7034, 110
  %v7069 = vpop.permute.xlu0 %7068
  %7070 = vrot.lane.b32.xlu0 %v7035, 110
  %v7071 = vpop.permute.xlu0 %7070
  %7072 = vrot.lane.b32.xlu0 %v7036, 110
  %v7073 = vpop.permute.xlu0 %7072
  %7074 = vrot.lane.b32.xlu0 %v7037, 110
  %v7075 = vpop.permute.xlu0 %7074
  %7076 = vrot.lane.b32.xlu0 %v7038, 110
  %v7077 = vpop.permute.xlu0 %7076
  %7078 = vrot.lane.b32.xlu0 %v7039, 110
  %v7079 = vpop.permute.xlu0 %7078
  %7080 = vrot.lane.b32.xlu0 %v7040, 110
  %v7081 = vpop.permute.xlu0 %7080
  %7082 = vrot.lane.b32.xlu0 %v7041, 110
  %v7083 = vpop.permute.xlu0 %7082
  %v7084 = vsel %vm748, %v7057, %v7059
  %v7085 = vsel %vm748, %v7059, %v7061
  %v7086 = vsel %vm748, %v7061, %v7063
  %v7087 = vsel %vm748, %v7063, %v7065
  %v7088 = vsel %vm748, %v7065, %v7067
  %v7089 = vsel %vm748, %v7067, %v7069
  %v7090 = vsel %vm748, %v7071, %v7073
  %v7091 = vsel %vm748, %v7073, %v7075
  %v7092 = vsel %vm748, %v7075, %v7077
  %v7093 = vsel %vm748, %v7077, %v7079
  %v7094 = vsel %vm748, %v7079, %v7081
  %v7095 = vsel %vm748, %v7081, %v7083
  %7108 = vst [vmem:[#allocation4 + $0x2a0] sm:$0xff] %v7084
  %7109 = vst [vmem:[#allocation4 + $0x2a8] sm:$0xff] %v7085
  %7110 = vst [vmem:[#allocation4 + $0x2b0] sm:$0xff] %v7086
  %7111 = vst [vmem:[#allocation4 + $0x2b8] sm:$0xff] %v7087
  %7112 = vst [vmem:[#allocation4 + $0x2c0] sm:$0xff] %v7088
  %7113 = vst [vmem:[#allocation4 + $0x2c8] sm:$0xff] %v7089
  %7114 = vst [vmem:[#allocation4 + $0x2d0] sm:$0xff] %v7090
  %7115 = vst [vmem:[#allocation4 + $0x2d8] sm:$0xff] %v7091
  %7116 = vst [vmem:[#allocation4 + $0x2e0] sm:$0xff] %v7092
  %7117 = vst [vmem:[#allocation4 + $0x2e8] sm:$0xff] %v7093
  %7118 = vst [vmem:[#allocation4 + $0x2f0] sm:$0xff] %v7094
  %7119 = vst [vmem:[#allocation4 + $0x2f8] sm:$0xff] %v7095
  %v7120 = vld [vmem:[#allocation2 + $0x8] sm:$0xff]
  %v7121 = vld [vmem:[#allocation2 + $0x10] sm:$0xff]
  %v7122 = vld [vmem:[#allocation2 + $0x18] sm:$0xff]
  %v7123 = vld [vmem:[#allocation2 + $0x20] sm:$0xff]
  %v7124 = vld [vmem:[#allocation2 + $0x28] sm:$0xff]
  %v7125 = vld [vmem:[#allocation2 + $0x30] sm:$0xff]
  %v7126 = vld [vmem:[#allocation2 + $0x38] sm:$0xff]
  %v7127 = vld [vmem:[#allocation2 + $0x48] sm:$0xff]
  %v7128 = vld [vmem:[#allocation2 + $0x50] sm:$0xff]
  %v7129 = vld [vmem:[#allocation2 + $0x58] sm:$0xff]
  %v7130 = vld [vmem:[#allocation2 + $0x60] sm:$0xff]
  %v7131 = vld [vmem:[#allocation2 + $0x68] sm:$0xff]
  %v7132 = vld [vmem:[#allocation2 + $0x70] sm:$0xff]
  %v7133 = vld [vmem:[#allocation2 + $0x78] sm:$0xff]
  %7148 = vrot.lane.b32.xlu0 %v7120, 109
  %v7149 = vpop.permute.xlu0 %7148
  %7150 = vrot.lane.b32.xlu0 %v7121, 109
  %v7151 = vpop.permute.xlu0 %7150
  %7152 = vrot.lane.b32.xlu0 %v7122, 109
  %v7153 = vpop.permute.xlu0 %7152
  %7154 = vrot.lane.b32.xlu0 %v7123, 109
  %v7155 = vpop.permute.xlu0 %7154
  %7156 = vrot.lane.b32.xlu0 %v7124, 109
  %v7157 = vpop.permute.xlu0 %7156
  %7158 = vrot.lane.b32.xlu0 %v7125, 109
  %v7159 = vpop.permute.xlu0 %7158
  %7160 = vrot.lane.b32.xlu0 %v7126, 109
  %v7161 = vpop.permute.xlu0 %7160
  %7162 = vrot.lane.b32.xlu0 %v7127, 109
  %v7163 = vpop.permute.xlu0 %7162
  %7164 = vrot.lane.b32.xlu0 %v7128, 109
  %v7165 = vpop.permute.xlu0 %7164
  %7166 = vrot.lane.b32.xlu0 %v7129, 109
  %v7167 = vpop.permute.xlu0 %7166
  %7168 = vrot.lane.b32.xlu0 %v7130, 109
  %v7169 = vpop.permute.xlu0 %7168
  %7170 = vrot.lane.b32.xlu0 %v7131, 109
  %v7171 = vpop.permute.xlu0 %7170
  %7172 = vrot.lane.b32.xlu0 %v7132, 109
  %v7173 = vpop.permute.xlu0 %7172
  %7174 = vrot.lane.b32.xlu0 %v7133, 109
  %v7175 = vpop.permute.xlu0 %7174
  %v7176 = vsel %vm841, %v7149, %v7151
  %v7177 = vsel %vm841, %v7151, %v7153
  %v7178 = vsel %vm841, %v7153, %v7155
  %v7179 = vsel %vm841, %v7155, %v7157
  %v7180 = vsel %vm841, %v7157, %v7159
  %v7181 = vsel %vm841, %v7159, %v7161
  %v7182 = vsel %vm841, %v7163, %v7165
  %v7183 = vsel %vm841, %v7165, %v7167
  %v7184 = vsel %vm841, %v7167, %v7169
  %v7185 = vsel %vm841, %v7169, %v7171
  %v7186 = vsel %vm841, %v7171, %v7173
  %v7187 = vsel %vm841, %v7173, %v7175
  %7200 = vst [vmem:[#allocation4 + $0x300] sm:$0xff] %v7176
  %7201 = vst [vmem:[#allocation4 + $0x308] sm:$0xff] %v7177
  %7202 = vst [vmem:[#allocation4 + $0x310] sm:$0xff] %v7178
  %7203 = vst [vmem:[#allocation4 + $0x318] sm:$0xff] %v7179
  %7204 = vst [vmem:[#allocation4 + $0x320] sm:$0xff] %v7180
  %7205 = vst [vmem:[#allocation4 + $0x328] sm:$0xff] %v7181
  %7206 = vst [vmem:[#allocation4 + $0x330] sm:$0xff] %v7182
  %7207 = vst [vmem:[#allocation4 + $0x338] sm:$0xff] %v7183
  %7208 = vst [vmem:[#allocation4 + $0x340] sm:$0xff] %v7184
  %7209 = vst [vmem:[#allocation4 + $0x348] sm:$0xff] %v7185
  %7210 = vst [vmem:[#allocation4 + $0x350] sm:$0xff] %v7186
  %7211 = vst [vmem:[#allocation4 + $0x358] sm:$0xff] %v7187
  %s7212 = scalar_lea.vmem %s1, 160
  %v7213 = vld [vmem:[%s7212] sm:$0xff]
  %v7214 = vld [vmem:[%s7212 + $0x8] sm:$0xff]
  %v7215 = vld [vmem:[%s7212 + $0x10] sm:$0xff]
  %v7216 = vld [vmem:[%s7212 + $0x18] sm:$0xff]
  %v7217 = vld [vmem:[#allocation4] sm:$0xff]
  %v7218 = vld [vmem:[#allocation4 + $0x8] sm:$0xff]
  %v7219 = vld [vmem:[#allocation4 + $0x10] sm:$0xff]
  %v7220 = vld [vmem:[#allocation4 + $0x18] sm:$0xff]
  %v7221 = vld [vmem:[#allocation4 + $0x20] sm:$0xff]
  %v7222 = vld [vmem:[#allocation4 + $0x28] sm:$0xff]
  %v7223 = vld [vmem:[#allocation4 + $0x30] sm:$0xff]
  %v7224 = vld [vmem:[#allocation4 + $0x38] sm:$0xff]
  %v7225 = vld [vmem:[#allocation4 + $0x40] sm:$0xff]
  %v7226 = vld [vmem:[#allocation4 + $0x48] sm:$0xff]
  %v7227 = vld [vmem:[#allocation4 + $0x50] sm:$0xff]
  %v7228 = vld [vmem:[#allocation4 + $0x58] sm:$0xff]
  %v7229 = vld [vmem:[#allocation4 + $0x60] sm:$0xff]
  %v7230 = vld [vmem:[#allocation4 + $0x68] sm:$0xff]
  %v7231 = vld [vmem:[#allocation4 + $0x70] sm:$0xff]
  %v7232 = vld [vmem:[#allocation4 + $0x78] sm:$0xff]
  %v7233 = vld [vmem:[#allocation4 + $0x80] sm:$0xff]
  %v7234 = vld [vmem:[#allocation4 + $0x88] sm:$0xff]
  %v7235 = vld [vmem:[#allocation4 + $0x90] sm:$0xff]
  %v7236 = vld [vmem:[#allocation4 + $0x98] sm:$0xff]
  %v7237 = vld [vmem:[#allocation4 + $0xa0] sm:$0xff]
  %v7238 = vld [vmem:[#allocation4 + $0xa8] sm:$0xff]
  %v7239 = vld [vmem:[#allocation4 + $0xb0] sm:$0xff]
  %v7240 = vld [vmem:[#allocation4 + $0xb8] sm:$0xff]
  %v7241 = vld [vmem:[#allocation4 + $0xc0] sm:$0xff]
  %v7242 = vld [vmem:[#allocation4 + $0xc8] sm:$0xff]
  %v7243 = vld [vmem:[#allocation4 + $0xd0] sm:$0xff]
  %v7244 = vld [vmem:[#allocation4 + $0xd8] sm:$0xff]
  %v7245 = vld [vmem:[#allocation4 + $0xe0] sm:$0xff]
  %v7246 = vld [vmem:[#allocation4 + $0xe8] sm:$0xff]
  %v7247 = vld [vmem:[#allocation4 + $0xf0] sm:$0xff]
  %v7248 = vld [vmem:[#allocation4 + $0xf8] sm:$0xff]
  %v7249 = vld [vmem:[#allocation4 + $0x100] sm:$0xff]
  %v7250 = vld [vmem:[#allocation4 + $0x108] sm:$0xff]
  %v7251 = vld [vmem:[#allocation4 + $0x110] sm:$0xff]
  %v7252 = vld [vmem:[#allocation4 + $0x118] sm:$0xff]
  %v7253 = vld [vmem:[#allocation4 + $0x120] sm:$0xff]
  %v7254 = vld [vmem:[#allocation4 + $0x128] sm:$0xff]
  %v7255 = vld [vmem:[#allocation4 + $0x130] sm:$0xff]
  %v7256 = vld [vmem:[#allocation4 + $0x138] sm:$0xff]
  %v7257 = vld [vmem:[#allocation4 + $0x140] sm:$0xff]
  %v7258 = vld [vmem:[#allocation4 + $0x148] sm:$0xff]
  %v7259 = vld [vmem:[#allocation4 + $0x150] sm:$0xff]
  %v7260 = vld [vmem:[#allocation4 + $0x158] sm:$0xff]
  %v7261 = vld [vmem:[#allocation4 + $0x160] sm:$0xff]
  %v7262 = vld [vmem:[#allocation4 + $0x168] sm:$0xff]
  %v7263 = vld [vmem:[#allocation4 + $0x170] sm:$0xff]
  %v7264 = vld [vmem:[#allocation4 + $0x178] sm:$0xff]
  %v7265 = vld [vmem:[#allocation4 + $0x180] sm:$0xff]
  %v7266 = vld [vmem:[#allocation4 + $0x188] sm:$0xff]
  %v7267 = vld [vmem:[#allocation4 + $0x190] sm:$0xff]
  %v7268 = vld [vmem:[#allocation4 + $0x198] sm:$0xff]
  %v7269 = vld [vmem:[#allocation4 + $0x1a0] sm:$0xff]
  %v7270 = vld [vmem:[#allocation4 + $0x1a8] sm:$0xff]
  %v7271 = vld [vmem:[#allocation4 + $0x1b0] sm:$0xff]
  %v7272 = vld [vmem:[#allocation4 + $0x1b8] sm:$0xff]
  %v7273 = vld [vmem:[#allocation4 + $0x1c0] sm:$0xff]
  %v7274 = vld [vmem:[#allocation4 + $0x1c8] sm:$0xff]
  %v7275 = vld [vmem:[#allocation4 + $0x1d0] sm:$0xff]
  %v7276 = vld [vmem:[#allocation4 + $0x1d8] sm:$0xff]
  %v7277 = vld [vmem:[#allocation4 + $0x1e0] sm:$0xff]
  %v7278 = vld [vmem:[#allocation4 + $0x1e8] sm:$0xff]
  %v7279 = vld [vmem:[#allocation4 + $0x1f0] sm:$0xff]
  %v7280 = vld [vmem:[#allocation4 + $0x1f8] sm:$0xff]
  %v7281 = vld [vmem:[#allocation4 + $0x200] sm:$0xff]
  %v7282 = vld [vmem:[#allocation4 + $0x208] sm:$0xff]
  %v7283 = vld [vmem:[#allocation4 + $0x210] sm:$0xff]
  %v7284 = vld [vmem:[#allocation4 + $0x218] sm:$0xff]
  %v7285 = vld [vmem:[#allocation4 + $0x220] sm:$0xff]
  %v7286 = vld [vmem:[#allocation4 + $0x228] sm:$0xff]
  %v7287 = vld [vmem:[#allocation4 + $0x230] sm:$0xff]
  %v7288 = vld [vmem:[#allocation4 + $0x238] sm:$0xff]
  %v7289 = vld [vmem:[#allocation4 + $0x240] sm:$0xff]
  %v7290 = vld [vmem:[#allocation4 + $0x248] sm:$0xff]
  %v7291 = vld [vmem:[#allocation4 + $0x250] sm:$0xff]
  %v7292 = vld [vmem:[#allocation4 + $0x258] sm:$0xff]
  %v7293 = vld [vmem:[#allocation4 + $0x260] sm:$0xff]
  %v7294 = vld [vmem:[#allocation4 + $0x268] sm:$0xff]
  %v7295 = vld [vmem:[#allocation4 + $0x270] sm:$0xff]
  %v7296 = vld [vmem:[#allocation4 + $0x278] sm:$0xff]
  %v7297 = vld [vmem:[#allocation4 + $0x280] sm:$0xff]
  %v7298 = vld [vmem:[#allocation4 + $0x288] sm:$0xff]
  %v7299 = vld [vmem:[#allocation4 + $0x290] sm:$0xff]
  %v7300 = vld [vmem:[#allocation4 + $0x298] sm:$0xff]
  %v7301 = vld [vmem:[#allocation4 + $0x2a0] sm:$0xff]
  %v7302 = vld [vmem:[#allocation4 + $0x2a8] sm:$0xff]
  %v7303 = vld [vmem:[#allocation4 + $0x2b0] sm:$0xff]
  %v7304 = vld [vmem:[#allocation4 + $0x2b8] sm:$0xff]
  %v7305 = vld [vmem:[#allocation4 + $0x2c0] sm:$0xff]
  %v7306 = vld [vmem:[#allocation4 + $0x2c8] sm:$0xff]
  %v7307 = vld [vmem:[#allocation4 + $0x2d0] sm:$0xff]
  %v7308 = vld [vmem:[#allocation4 + $0x2d8] sm:$0xff]
  %v7309 = vld [vmem:[#allocation4 + $0x2e0] sm:$0xff]
  %v7310 = vld [vmem:[#allocation4 + $0x2e8] sm:$0xff]
  %v7311 = vld [vmem:[#allocation4 + $0x2f0] sm:$0xff]
  %v7312 = vld [vmem:[#allocation4 + $0x2f8] sm:$0xff]
  %v7313 = vld [vmem:[#allocation4 + $0x300] sm:$0xff]
  %v7314 = vld [vmem:[#allocation4 + $0x308] sm:$0xff]
  %v7315 = vld [vmem:[#allocation4 + $0x310] sm:$0xff]
  %v7316 = vld [vmem:[#allocation4 + $0x318] sm:$0xff]
  %v7317 = vld [vmem:[#allocation4 + $0x320] sm:$0xff]
  %v7318 = vld [vmem:[#allocation4 + $0x328] sm:$0xff]
  %v7319 = vld [vmem:[#allocation4 + $0x330] sm:$0xff]
  %v7320 = vld [vmem:[#allocation4 + $0x338] sm:$0xff]
  %v7321 = vld [vmem:[#allocation4 + $0x340] sm:$0xff]
  %v7322 = vld [vmem:[#allocation4 + $0x348] sm:$0xff]
  %v7323 = vld [vmem:[#allocation4 + $0x350] sm:$0xff]
  %v7324 = vld [vmem:[#allocation4 + $0x358] sm:$0xff]
  %v7325 = vld [vmem:[#allocation4 + $0x360] sm:$0xff]
  %v7326 = vld [vmem:[#allocation4 + $0x368] sm:$0xff]
  %v7327 = vld [vmem:[#allocation4 + $0x370] sm:$0xff]
  %v7328 = vld [vmem:[#allocation4 + $0x378] sm:$0xff]
  %v7329 = vld [vmem:[#allocation4 + $0x380] sm:$0xff]
  %v7330 = vld [vmem:[#allocation4 + $0x388] sm:$0xff]
  %v7331 = vld [vmem:[#allocation4 + $0x390] sm:$0xff]
  %v7332 = vld [vmem:[#allocation4 + $0x398] sm:$0xff]
  %v7333 = vld [vmem:[#allocation4 + $0x3a0] sm:$0xff]
  %v7334 = vld [vmem:[#allocation4 + $0x3a8] sm:$0xff]
  %v7335 = vld [vmem:[#allocation4 + $0x3b0] sm:$0xff]
  %v7336 = vld [vmem:[#allocation4 + $0x3b8] sm:$0xff]
  %v7337 = vld [vmem:[#allocation4 + $0x3c0] sm:$0xff]
  %v7338 = vld [vmem:[#allocation4 + $0x3c8] sm:$0xff]
  %v7339 = vld [vmem:[#allocation4 + $0x3d0] sm:$0xff]
  %v7340 = vld [vmem:[#allocation4 + $0x3d8] sm:$0xff]
  %v7341 = vld [vmem:[#allocation4 + $0x3e0] sm:$0xff]
  %v7342 = vld [vmem:[#allocation4 + $0x3e8] sm:$0xff]
  %v7343 = vld [vmem:[#allocation4 + $0x3f0] sm:$0xff]
  %v7344 = vld [vmem:[#allocation4 + $0x3f8] sm:$0xff]
  %v7345 = vld [vmem:[#allocation4 + $0x400] sm:$0xff]
  %v7346 = vld [vmem:[#allocation4 + $0x408] sm:$0xff]
  %v7347 = vld [vmem:[#allocation4 + $0x410] sm:$0xff]
  %v7348 = vld [vmem:[#allocation4 + $0x418] sm:$0xff]
  %v7349 = vld [vmem:[#allocation4 + $0x420] sm:$0xff]
  %v7350 = vld [vmem:[#allocation4 + $0x428] sm:$0xff]
  %v7351 = vld [vmem:[#allocation4 + $0x430] sm:$0xff]
  %v7352 = vld [vmem:[#allocation4 + $0x438] sm:$0xff]
  %v7353 = vld [vmem:[#allocation4 + $0x440] sm:$0xff]
  %v7354 = vld [vmem:[#allocation4 + $0x448] sm:$0xff]
  %v7355 = vld [vmem:[#allocation4 + $0x450] sm:$0xff]
  %v7356 = vld [vmem:[#allocation4 + $0x458] sm:$0xff]
  %v7357 = vld [vmem:[#allocation4 + $0x460] sm:$0xff]
  %v7358 = vld [vmem:[#allocation4 + $0x468] sm:$0xff]
  %v7359 = vld [vmem:[#allocation4 + $0x470] sm:$0xff]
  %v7360 = vld [vmem:[#allocation4 + $0x478] sm:$0xff]
  %v7361 = vld [vmem:[#allocation4 + $0x480] sm:$0xff]
  %v7362 = vld [vmem:[#allocation4 + $0x488] sm:$0xff]
  %v7363 = vld [vmem:[#allocation4 + $0x490] sm:$0xff]
  %v7364 = vld [vmem:[#allocation4 + $0x498] sm:$0xff]
  %v7365 = vld [vmem:[#allocation4 + $0x4a0] sm:$0xff]
  %v7366 = vld [vmem:[#allocation4 + $0x4a8] sm:$0xff]
  %v7367 = vld [vmem:[#allocation4 + $0x4b0] sm:$0xff]
  %v7368 = vld [vmem:[#allocation4 + $0x4b8] sm:$0xff]
  %v7369 = vld [vmem:[#allocation4 + $0x4c0] sm:$0xff]
  %v7370 = vld [vmem:[#allocation4 + $0x4c8] sm:$0xff]
  %v7371 = vld [vmem:[#allocation4 + $0x4d0] sm:$0xff]
  %v7372 = vld [vmem:[#allocation4 + $0x4d8] sm:$0xff]
  %v7373 = vld [vmem:[#allocation4 + $0x4e0] sm:$0xff]
  %v7374 = vld [vmem:[#allocation4 + $0x4e8] sm:$0xff]
  %v7375 = vld [vmem:[#allocation4 + $0x4f0] sm:$0xff]
  %v7376 = vld [vmem:[#allocation4 + $0x4f8] sm:$0xff]
  %v7377 = vld [vmem:[#allocation4 + $0x500] sm:$0xff]
  %v7378 = vld [vmem:[#allocation4 + $0x508] sm:$0xff]
  %v7379 = vld [vmem:[#allocation4 + $0x510] sm:$0xff]
  %v7380 = vld [vmem:[#allocation4 + $0x518] sm:$0xff]
  %v7381 = vld [vmem:[#allocation4 + $0x520] sm:$0xff]
  %v7382 = vld [vmem:[#allocation4 + $0x528] sm:$0xff]
  %v7383 = vld [vmem:[#allocation4 + $0x530] sm:$0xff]
  %v7384 = vld [vmem:[#allocation4 + $0x538] sm:$0xff]
  %v7385 = vld [vmem:[#allocation4 + $0x540] sm:$0xff]
  %v7386 = vld [vmem:[#allocation4 + $0x548] sm:$0xff]
  %v7387 = vld [vmem:[#allocation4 + $0x550] sm:$0xff]
  %v7388 = vld [vmem:[#allocation4 + $0x558] sm:$0xff]
  %v7389 = vld [vmem:[#allocation4 + $0x560] sm:$0xff]
  %v7390 = vld [vmem:[#allocation4 + $0x568] sm:$0xff]
  %v7391 = vld [vmem:[#allocation4 + $0x570] sm:$0xff]
  %v7392 = vld [vmem:[#allocation4 + $0x578] sm:$0xff]
  %v7393 = vld [vmem:[#allocation4 + $0x580] sm:$0xff]
  %v7394 = vld [vmem:[#allocation4 + $0x588] sm:$0xff]
  %v7395 = vld [vmem:[#allocation4 + $0x590] sm:$0xff]
  %v7396 = vld [vmem:[#allocation4 + $0x598] sm:$0xff]
  %v7397 = vld [vmem:[#allocation4 + $0x5a0] sm:$0xff]
  %v7398 = vld [vmem:[#allocation4 + $0x5a8] sm:$0xff]
  %v7399 = vld [vmem:[#allocation4 + $0x5b0] sm:$0xff]
  %v7400 = vld [vmem:[#allocation4 + $0x5b8] sm:$0xff]
  %v7401 = vld [vmem:[#allocation4 + $0x5c0] sm:$0xff]
  %v7402 = vld [vmem:[#allocation4 + $0x5c8] sm:$0xff]
  %v7403 = vld [vmem:[#allocation4 + $0x5d0] sm:$0xff]
  %v7404 = vld [vmem:[#allocation4 + $0x5d8] sm:$0xff]
  %v7405 = vld [vmem:[#allocation4 + $0x5e0] sm:$0xff]
  %v7406 = vld [vmem:[#allocation4 + $0x5e8] sm:$0xff]
  %v7407 = vld [vmem:[#allocation4 + $0x5f0] sm:$0xff]
  %v7408 = vld [vmem:[#allocation4 + $0x5f8] sm:$0xff]
  %s7409 = scalar_lea.vmem %s2, 80
  %v7410 = vld [vmem:[%s7409] sm:$0xff]
  %v7411 = vld [vmem:[%s7409 + $0x8] sm:$0xff]
  %7413 = vset.pattern.permute.xlu0 0
  %7414 = vperm.xlu0 %7413, %v7410
  %v7415 = vpop.permute.xlu0 %7414
  %7418 = vset.pattern.permute.xlu0 0
  %7419 = vperm.xlu0 %7418, %v7411
  %v7420 = vpop.permute.xlu0 %7419
  %7422 = vmatprep.subr.mxu0 %v7308
  %7423 = vmatpush1.msra.mxu0 %v7307
  %7424 = vmatprep.subr.mxu0 %v7302
  %7425 = vmatpush1.msra.mxu0 %v7301
  %7426 = vmatprep.subr.mxu0 %v7296
  %7427 = vmatpush1.msra.mxu0 %v7295
  %7428 = vmatprep.subr.mxu0 %v7290
  %7429 = vmatpush1.msra.mxu0 %v7289
  %7430 = vmatprep.subr.mxu0 %v7284
  %7431 = vmatpush1.msra.mxu0 %v7283
  %7432 = vmatprep.subr.mxu0 %v7278
  %7433 = vmatpush1.msra.mxu0 %v7277
  %7434 = vmatprep.subr.mxu0 %v7272
  %7435 = vmatpush1.msra.mxu0 %v7271
  %7436 = vmatprep.subr.mxu0 %v7266
  %7437 = vmatpush1.msra.mxu0 %v7265
  %7438 = vmatprep.subr.mxu0 %v7260
  %7439 = vmatpush1.msra.mxu0 %v7259
  %7440 = vmatprep.subr.mxu0 %v7254
  %7441 = vmatpush1.msra.mxu0 %v7253
  %7442 = vmatprep.subr.mxu0 %v7248
  %7443 = vmatpush1.msra.mxu0 %v7247
  %7444 = vmatprep.subr.mxu0 %v7242
  %7445 = vmatpush1.msra.mxu0 %v7241
  %7446 = vmatprep.subr.mxu0 %v7236
  %7447 = vmatpush1.msra.mxu0 %v7235
  %7448 = vmatprep.subr.mxu0 %v7230
  %7449 = vmatpush1.msra.mxu0 %v7229
  %7450 = vmatprep.subr.mxu0 %v7224
  %7451 = vmatpush1.msra.mxu0 %v7223
  %7452 = vmatprep.subr.mxu0 %v7218
  %7453 = vmatpush1.msra.mxu0 %v7217
  %7454 = vmatprep.subr.mxu0 %v7404
  %7455 = vmatpush2.msra.mxu0 %v7403
  %7456 = vmatprep.subr.mxu0 %v7398
  %7457 = vmatpush2.msra.mxu0 %v7397
  %7458 = vmatprep.subr.mxu0 %v7392
  %7459 = vmatpush2.msra.mxu0 %v7391
  %7460 = vmatprep.subr.mxu0 %v7386
  %7461 = vmatpush2.msra.mxu0 %v7385
  %7462 = vmatprep.subr.mxu0 %v7380
  %7463 = vmatpush2.msra.mxu0 %v7379
  %7464 = vmatprep.subr.mxu0 %v7374
  %7465 = vmatpush2.msra.mxu0 %v7373
  %7466 = vmatprep.subr.mxu0 %v7368
  %7467 = vmatpush2.msra.mxu0 %v7367
  %7468 = vmatprep.subr.mxu0 %v7362
  %7469 = vmatpush2.msra.mxu0 %v7361
  %7470 = vmatprep.subr.mxu0 %v7356
  %7471 = vmatpush2.msra.mxu0 %v7355
  %7472 = vmatprep.subr.mxu0 %v7350
  %7473 = vmatpush2.msra.mxu0 %v7349
  %7474 = vmatprep.subr.mxu0 %v7344
  %7475 = vmatpush2.msra.mxu0 %v7343
  %7476 = vmatprep.subr.mxu0 %v7338
  %7477 = vmatpush2.msra.mxu0 %v7337
  %7478 = vmatprep.subr.mxu0 %v7332
  %7479 = vmatpush2.msra.mxu0 %v7331
  %7480 = vmatprep.subr.mxu0 %v7326
  %7481 = vmatpush2.msra.mxu0 %v7325
  %7482 = vmatprep.subr.mxu0 %v7320
  %7483 = vmatpush2.msra.mxu0 %v7319
  %7484 = vmatprep.subr.mxu0 %v7314
  %7485 = vmatpush2.msra.mxu0 %v7313
  %7486 = vmatprep.mubr.f32.mxu0 %v7214
  %7487 = vmatmul.mubr.f32.gmra.mxu0 %v7213
  %v7488 = vpop.f32.mrf.mxu0
  %v7489 = vadd.f32 %v7415, %v7488
  %v7490 = vpop.f32.mrf.mxu0
  %v7491 = vadd.f32 %v7415, %v7490
  %7492 = vmatprep.mubr.f32.mxu0 %v7216
  %7493 = vmatmul.mubr.f32.gmra.mxu0 %v7215
  %v7494 = vpop.f32.mrf.mxu0
  %v7495 = vadd.f32 %v7420, %v7494
  %v7496 = vpop.f32.mrf.mxu0
  %v7497 = vadd.f32 %v7420, %v7496
  %7498 = vdwg.mxu0
  %7499 = vmatprep.subr.mxu0 %v7310
  %7500 = vmatpush1.msra.mxu0 %v7309
  %7501 = vmatprep.subr.mxu0 %v7304
  %7502 = vmatpush1.msra.mxu0 %v7303
  %7503 = vmatprep.subr.mxu0 %v7298
  %7504 = vmatpush1.msra.mxu0 %v7297
  %7505 = vmatprep.subr.mxu0 %v7292
  %7506 = vmatpush1.msra.mxu0 %v7291
  %7507 = vmatprep.subr.mxu0 %v7286
  %7508 = vmatpush1.msra.mxu0 %v7285
  %7509 = vmatprep.subr.mxu0 %v7280
  %7510 = vmatpush1.msra.mxu0 %v7279
  %7511 = vmatprep.subr.mxu0 %v7274
  %7512 = vmatpush1.msra.mxu0 %v7273
  %7513 = vmatprep.subr.mxu0 %v7268
  %7514 = vmatpush1.msra.mxu0 %v7267
  %7515 = vmatprep.subr.mxu0 %v7262
  %7516 = vmatpush1.msra.mxu0 %v7261
  %7517 = vmatprep.subr.mxu0 %v7256
  %7518 = vmatpush1.msra.mxu0 %v7255
  %7519 = vmatprep.subr.mxu0 %v7250
  %7520 = vmatpush1.msra.mxu0 %v7249
  %7521 = vmatprep.subr.mxu0 %v7244
  %7522 = vmatpush1.msra.mxu0 %v7243
  %7523 = vmatprep.subr.mxu0 %v7238
  %7524 = vmatpush1.msra.mxu0 %v7237
  %7525 = vmatprep.subr.mxu0 %v7232
  %7526 = vmatpush1.msra.mxu0 %v7231
  %7527 = vmatprep.subr.mxu0 %v7226
  %7528 = vmatpush1.msra.mxu0 %v7225
  %7529 = vmatprep.subr.mxu0 %v7220
  %7530 = vmatpush1.msra.mxu0 %v7219
  %7531 = vmatprep.subr.mxu0 %v7406
  %7532 = vmatpush2.msra.mxu0 %v7405
  %7533 = vmatprep.subr.mxu0 %v7400
  %7534 = vmatpush2.msra.mxu0 %v7399
  %7535 = vmatprep.subr.mxu0 %v7394
  %7536 = vmatpush2.msra.mxu0 %v7393
  %7537 = vmatprep.subr.mxu0 %v7388
  %7538 = vmatpush2.msra.mxu0 %v7387
  %7539 = vmatprep.subr.mxu0 %v7382
  %7540 = vmatpush2.msra.mxu0 %v7381
  %7541 = vmatprep.subr.mxu0 %v7376
  %7542 = vmatpush2.msra.mxu0 %v7375
  %7543 = vmatprep.subr.mxu0 %v7370
  %7544 = vmatpush2.msra.mxu0 %v7369
  %7545 = vmatprep.subr.mxu0 %v7364
  %7546 = vmatpush2.msra.mxu0 %v7363
  %7547 = vmatprep.subr.mxu0 %v7358
  %7548 = vmatpush2.msra.mxu0 %v7357
  %7549 = vmatprep.subr.mxu0 %v7352
  %7550 = vmatpush2.msra.mxu0 %v7351
  %7551 = vmatprep.subr.mxu0 %v7346
  %7552 = vmatpush2.msra.mxu0 %v7345
  %7553 = vmatprep.subr.mxu0 %v7340
  %7554 = vmatpush2.msra.mxu0 %v7339
  %7555 = vmatprep.subr.mxu0 %v7334
  %7556 = vmatpush2.msra.mxu0 %v7333
  %7557 = vmatprep.subr.mxu0 %v7328
  %7558 = vmatpush2.msra.mxu0 %v7327
  %7559 = vmatprep.subr.mxu0 %v7322
  %7560 = vmatpush2.msra.mxu0 %v7321
  %7561 = vmatprep.subr.mxu0 %v7316
  %7562 = vmatpush2.msra.mxu0 %v7315
  %7563 = vmatprep.mubr.f32.mxu0 %v7214
  %7564 = vmatmul.mubr.f32.gmra.mxu0 %v7213
  %v7565 = vpop.f32.mrf.mxu0
  %v7566 = vadd.f32 %v7415, %v7565
  %v7567 = vpop.f32.mrf.mxu0
  %v7568 = vadd.f32 %v7415, %v7567
  %7569 = vmatprep.mubr.f32.mxu0 %v7216
  %7570 = vmatmul.mubr.f32.gmra.mxu0 %v7215
  %v7571 = vpop.f32.mrf.mxu0
  %v7572 = vadd.f32 %v7420, %v7571
  %v7573 = vpop.f32.mrf.mxu0
  %v7574 = vadd.f32 %v7420, %v7573
  %7575 = vdwg.mxu0
  %7576 = vmatprep.subr.mxu0 %v7312
  %7577 = vmatpush1.msra.mxu0 %v7311
  %7578 = vmatprep.subr.mxu0 %v7306
  %7579 = vmatpush1.msra.mxu0 %v7305
  %7580 = vmatprep.subr.mxu0 %v7300
  %7581 = vmatpush1.msra.mxu0 %v7299
  %7582 = vmatprep.subr.mxu0 %v7294
  %7583 = vmatpush1.msra.mxu0 %v7293
  %7584 = vmatprep.subr.mxu0 %v7288
  %7585 = vmatpush1.msra.mxu0 %v7287
  %7586 = vmatprep.subr.mxu0 %v7282
  %7587 = vmatpush1.msra.mxu0 %v7281
  %7588 = vmatprep.subr.mxu0 %v7276
  %7589 = vmatpush1.msra.mxu0 %v7275
  %7590 = vmatprep.subr.mxu0 %v7270
  %7591 = vmatpush1.msra.mxu0 %v7269
  %7592 = vmatprep.subr.mxu0 %v7264
  %7593 = vmatpush1.msra.mxu0 %v7263
  %7594 = vmatprep.subr.mxu0 %v7258
  %7595 = vmatpush1.msra.mxu0 %v7257
  %7596 = vmatprep.subr.mxu0 %v7252
  %7597 = vmatpush1.msra.mxu0 %v7251
  %7598 = vmatprep.subr.mxu0 %v7246
  %7599 = vmatpush1.msra.mxu0 %v7245
  %7600 = vmatprep.subr.mxu0 %v7240
  %7601 = vmatpush1.msra.mxu0 %v7239
  %7602 = vmatprep.subr.mxu0 %v7234
  %7603 = vmatpush1.msra.mxu0 %v7233
  %7604 = vmatprep.subr.mxu0 %v7228
  %7605 = vmatpush1.msra.mxu0 %v7227
  %7606 = vmatprep.subr.mxu0 %v7222
  %7607 = vmatpush1.msra.mxu0 %v7221
  %7608 = vmatprep.subr.mxu0 %v7408
  %7609 = vmatpush2.msra.mxu0 %v7407
  %7610 = vmatprep.subr.mxu0 %v7402
  %7611 = vmatpush2.msra.mxu0 %v7401
  %7612 = vmatprep.subr.mxu0 %v7396
  %7613 = vmatpush2.msra.mxu0 %v7395
  %7614 = vmatprep.subr.mxu0 %v7390
  %7615 = vmatpush2.msra.mxu0 %v7389
  %7616 = vmatprep.subr.mxu0 %v7384
  %7617 = vmatpush2.msra.mxu0 %v7383
  %7618 = vmatprep.subr.mxu0 %v7378
  %7619 = vmatpush2.msra.mxu0 %v7377
  %7620 = vmatprep.subr.mxu0 %v7372
  %7621 = vmatpush2.msra.mxu0 %v7371
  %7622 = vmatprep.subr.mxu0 %v7366
  %7623 = vmatpush2.msra.mxu0 %v7365
  %7624 = vmatprep.subr.mxu0 %v7360
  %7625 = vmatpush2.msra.mxu0 %v7359
  %7626 = vmatprep.subr.mxu0 %v7354
  %7627 = vmatpush2.msra.mxu0 %v7353
  %7628 = vmatprep.subr.mxu0 %v7348
  %7629 = vmatpush2.msra.mxu0 %v7347
  %7630 = vmatprep.subr.mxu0 %v7342
  %7631 = vmatpush2.msra.mxu0 %v7341
  %7632 = vmatprep.subr.mxu0 %v7336
  %7633 = vmatpush2.msra.mxu0 %v7335
  %7634 = vmatprep.subr.mxu0 %v7330
  %7635 = vmatpush2.msra.mxu0 %v7329
  %7636 = vmatprep.subr.mxu0 %v7324
  %7637 = vmatpush2.msra.mxu0 %v7323
  %7638 = vmatprep.subr.mxu0 %v7318
  %7639 = vmatpush2.msra.mxu0 %v7317
  %7640 = vmatprep.mubr.f32.mxu0 %v7214
  %7641 = vmatmul.mubr.f32.gmra.mxu0 %v7213
  %v7642 = vpop.f32.mrf.mxu0
  %v7643 = vadd.f32 %v7415, %v7642
  %v7644 = vpop.f32.mrf.mxu0
  %v7645 = vadd.f32 %v7415, %v7644
  %7646 = vmatprep.mubr.f32.mxu0 %v7216
  %7647 = vmatmul.mubr.f32.gmra.mxu0 %v7215
  %v7648 = vpop.f32.mrf.mxu0
  %v7649 = vadd.f32 %v7420, %v7648
  %v7650 = vpop.f32.mrf.mxu0
  %v7651 = vadd.f32 %v7420, %v7650
  %7652 = vdwg.mxu0
  %v7653 = vadd.f32 %v7489, %v6440
  %v7654 = vadd.f32 %v7491, %v6441
  %v7655 = vadd.f32 %v7566, %v6442
  %v7656 = vadd.f32 %v7568, %v6443
  %v7657 = vadd.f32 %v7643, %v6444
  %v7658 = vadd.f32 %v7645, %v6445
  %v7659 = vadd.f32 %v7495, %v6446
  %v7660 = vadd.f32 %v7497, %v6447
  %v7661 = vadd.f32 %v7572, %v6448
  %v7662 = vadd.f32 %v7574, %v6449
  %v7663 = vadd.f32 %v7649, %v6450
  %v7664 = vadd.f32 %v7651, %v6451
  %v7665 = vmul.f32 %v7653, %v1357
  %v7666 = vmul.f32 %v7654, %v1361
  %v7667 = vmul.f32 %v7655, %v1365
  %v7668 = vmul.f32 %v7656, %v1369
  %v7669 = vmul.f32 %v7657, %v1373
  %v7670 = vmul.f32 %v7658, %v1377
  %v7671 = vmul.f32 %v7659, %v1357
  %v7672 = vmul.f32 %v7660, %v1361
  %v7673 = vmul.f32 %v7661, %v1365
  %v7674 = vmul.f32 %v7662, %v1369
  %v7675 = vmul.f32 %v7663, %v1373
  %v7676 = vmul.f32 %v7664, %v1377
  %7677 = vst [vmem:[%s4] sm:$0xff] %v7665
  %7678 = vst [vmem:[%s4 + $0x8] sm:$0xff] %v7666
  %7679 = vst [vmem:[%s4 + $0x10] sm:$0xff] %v7667
  %7680 = vst [vmem:[%s4 + $0x18] sm:$0xff] %v7668
  %7681 = vst [vmem:[%s4 + $0x20] sm:$0xff] %v7669
  %7682 = vst [vmem:[%s4 + $0x28] sm:$0xff] %v7670
  %7683 = vst [vmem:[%s4 + $0x30] sm:$0xff] %v7671
  %7684 = vst [vmem:[%s4 + $0x38] sm:$0xff] %v7672
  %7685 = vst [vmem:[%s4 + $0x40] sm:$0xff] %v7673
  %7686 = vst [vmem:[%s4 + $0x48] sm:$0xff] %v7674
  %7687 = vst [vmem:[%s4 + $0x50] sm:$0xff] %v7675
  %7688 = vst [vmem:[%s4 + $0x58] sm:$0xff] %v7676
  // Predicated region
  $region18: #{encoder_forward_pallas.1} parent=0 // pred_check
    _
  $region19: #{encoder_forward_pallas.1} parent=0 // pred_check_branch
    %7690 = sbr.rel (0) target = $region21
  $region20: #{encoder_forward_pallas.1} parent=0 // pred_region
    _
  $region21: #{encoder_forward_pallas.1} parent=0 // pred_fallthru
    _
  // Predicated region
  $region22: #{encoder_forward_pallas.1} parent=0 // pred_check
    _
  $region23: #{encoder_forward_pallas.1} parent=0 // pred_check_branch
    %7692 = sbr.rel (0) target = $region25
  $region24: #{encoder_forward_pallas.1} parent=0 // pred_region
    _
  $region25: #{encoder_forward_pallas.1} parent=0 // pred_fallthru
    _

</llo_original>
